<compile_context>
chip_gen: v7x
topology: tpu7x:2x2x1
jax: 0.10.0
libtpu: 0.0.40
codegen_flags: <defaults>
</compile_context>

<pallas_src>
import functools

import jax
import jax.numpy as jnp
from jax.experimental import pallas as pl
from jax.experimental.pallas import tpu as pltpu


# ----------------------------------------------------------------------------
# Pallas kernels
# ----------------------------------------------------------------------------
def _conv_relu_pool_kernel(p_ref, w_ref, b_ref, o_ref, *, n_pool):
    """Fused conv3x3-same + bias + ReLU + 2x2 max-pool for one image.

    p_ref: (1, 4*n_pool, K) bf16  patches, 4 pool-parity blocks of n_pool rows
    w_ref: (K, Cout)        bf16  flattened HWIO conv weight (K = 9*Cin)
    b_ref: (1, Cout)        f32
    o_ref: (1, n_pool, Cout) f32  pooled output, row-major over (Ho, Wo)
    """
    w = w_ref[...]
    b = b_ref[...]

    def tap(q):
        # Conv outputs at pool-window position (ry, rx) = (q // 2, q % 2).
        a = jnp.dot(p_ref[0, pl.ds(q * n_pool, n_pool), :], w,
                    preferred_element_type=jnp.float32)
        return jnp.maximum(a + b, 0.0)

    m = jnp.maximum(jnp.maximum(tap(0), tap(1)), jnp.maximum(tap(2), tap(3)))
    o_ref[0] = m


def _mlp_kernel(f_ref, w0_ref, b0_ref, w1_ref, b1_ref, o_ref):
    """Fused 2-layer MLP: relu(f @ w0 + b0) @ w1 + b1 (intermediate in VMEM)."""
    h = jnp.dot(f_ref[...], w0_ref[...], preferred_element_type=jnp.float32)
    h = jnp.maximum(h + b0_ref[...], 0.0)
    z = jnp.dot(h.astype(jnp.bfloat16), w1_ref[...],
                preferred_element_type=jnp.float32)
    o_ref[...] = z + b1_ref[...]


# ----------------------------------------------------------------------------
# Pallas wrappers
# ----------------------------------------------------------------------------
def conv_relu_pool(patches, w, b, *, n_pool, cout):
    """patches: (B, 4*n_pool, K) bf16 -> pooled activations (B, n_pool, cout) f32."""
    B, _, K = patches.shape
    return pl.pallas_call(
        functools.partial(_conv_relu_pool_kernel, n_pool=n_pool),
        out_shape=jax.ShapeDtypeStruct((B, n_pool, cout), jnp.float32),
        grid=(B,),
        in_specs=[
            pl.BlockSpec((1, 4 * n_pool, K), lambda i: (i, 0, 0)),
            pl.BlockSpec((K, cout), lambda i: (0, 0)),
            pl.BlockSpec((1, cout), lambda i: (0, 0)),
        ],
        out_specs=pl.BlockSpec((1, n_pool, cout), lambda i: (i, 0, 0)),
        compiler_params=pltpu.CompilerParams(dimension_semantics=("parallel",)),
    )(patches, w, b)


def mlp_head(feat, w0, b0, w1, b1):
    """feat: (B, F) bf16 -> (B, L) f32 through the fused 2-layer MLP."""
    B, F = feat.shape
    H = w0.shape[1]
    L = w1.shape[1]
    return pl.pallas_call(
        _mlp_kernel,
        out_shape=jax.ShapeDtypeStruct((B, L), jnp.float32),
        grid=(1,),
        in_specs=[
            pl.BlockSpec((B, F), lambda i: (0, 0)),
            pl.BlockSpec((F, H), lambda i: (0, 0)),
            pl.BlockSpec((1, H), lambda i: (0, 0)),
            pl.BlockSpec((H, L), lambda i: (0, 0)),
            pl.BlockSpec((1, L), lambda i: (0, 0)),
        ],
        out_specs=pl.BlockSpec((B, L), lambda i: (0, 0)),
    )(feat, w0, b0, w1, b1)


# ----------------------------------------------------------------------------
# Glue (patch extraction) — plain JAX data plumbing feeding the fused kernel
# ----------------------------------------------------------------------------
def pool_ordered_patches(x):
    """x: (B, H, W, Cin) f32 NHWC -> (B, 4*Ho*Wo, 9*Cin) bf16.

    Rows are grouped into 4 blocks by 2x2 max-pool parity (ry, rx); within a
    block they are row-major over the pooled grid (i, j).  Row (q, i, j)
    holds the 3x3 'same' patch around conv position (2i+ry, 2j+rx); columns
    are ordered (dy, dx, cin), matching a (3,3,Cin,Cout)->(9*Cin,Cout) HWIO
    weight flatten.
    """
    # TODO(synk): patch extraction stays as XLA wrapper glue (bf16) rather
    # than in-kernel shifted-tap DMAs; acceptable at these sizes.
    B, H, W, Cin = x.shape
    Ho, Wo = H // 2, W // 2
    xp = jnp.pad(x, ((0, 0), (1, 1), (1, 1), (0, 0)))
    blocks = []
    for ry in range(2):
        for rx in range(2):
            taps = [
                xp[:, ry + dy: ry + dy + 2 * Ho: 2,
                      rx + dx: rx + dx + 2 * Wo: 2, :]
                for dy in range(3) for dx in range(3)
            ]
            blocks.append(
                jnp.concatenate(taps, axis=-1).reshape(B, Ho * Wo, 9 * Cin))
    return jnp.concatenate(blocks, axis=1).astype(jnp.bfloat16)


# ----------------------------------------------------------------------------
# Parameters (deterministic synthetic init; shapes follow the module __init__)
# ----------------------------------------------------------------------------
def init_params(key, in_res=32, c=3, latent_dim=64):
    num_layers = [128, 128, 128, 256]
    if in_res == 64:
        num_layers += [256]
    if in_res == 256:
        num_layers += [256, 256, 256]
    n = len(num_layers)
    keys = iter(jax.random.split(key, 2 * n + 4))

    layers = []
    prev = c
    for nl in num_layers:
        kin = 9 * prev
        layers.append(dict(
            # 3x3 conv, flattened HWIO (ky*kx*Cin, Cout); bf16 MXU operand
            w=(jax.random.normal(next(keys), (kin, nl), jnp.float32)
               / jnp.sqrt(kin)).astype(jnp.bfloat16),
            b=0.01 * jax.random.normal(next(keys), (1, nl), jnp.float32),
        ))
        prev = nl

    feature_dim = 2 * 2 * 256
    params = dict(
        layers=layers,
        # Linear weights stored (in, out); bf16 MXU operands, f32 biases.
        w_mlp0=(jax.random.normal(next(keys), (feature_dim, 2 * latent_dim),
                                  jnp.float32)
                / jnp.sqrt(feature_dim)).astype(jnp.bfloat16),
        b_mlp0=0.01 * jax.random.normal(next(keys), (1, 2 * latent_dim),
                                        jnp.float32),
        w_mlp1=(jax.random.normal(next(keys), (2 * latent_dim, latent_dim),
                                  jnp.float32)
                / jnp.sqrt(2 * latent_dim)).astype(jnp.bfloat16),
        b_mlp1=0.01 * jax.random.normal(next(keys), (1, latent_dim),
                                        jnp.float32),
    )
    return params


# ----------------------------------------------------------------------------
# Forward pass
# ----------------------------------------------------------------------------
def encoder_forward(x_nchw, params):
    # NCHW (PyTorch) -> NHWC (kernel layout)
    x = jnp.transpose(x_nchw, (0, 2, 3, 1)).astype(jnp.float32)
    B = x.shape[0]
    h = x

    for layer in params["layers"]:
        _, H, W, _ = h.shape
        Ho, Wo = H // 2, W // 2
        cout = layer["w"].shape[1]
        patches = pool_ordered_patches(h)                       # glue, bf16
        pooled = conv_relu_pool(patches, layer["w"], layer["b"],
                                n_pool=Ho * Wo, cout=cout)      # fused kernel
        h = pooled.reshape(B, Ho, Wo, cout)

    # torch.flatten(x, 1) on NCHW is channel-major -> transpose NHWC back first
    feat = jnp.transpose(h, (0, 3, 1, 2)).reshape(B, -1).astype(jnp.bfloat16)
    return mlp_head(feat, params["w_mlp0"], params["b_mlp0"],
                    params["w_mlp1"], params["b_mlp1"])


# ----------------------------------------------------------------------------
if __name__ == "__main__":
    IN_RES, C, LATENT, BATCH = 32, 3, 64, 2

    key = jax.random.PRNGKey(0)
    kx, kp = jax.random.split(key)
    x = jax.random.normal(kx, (BATCH, C, IN_RES, IN_RES), jnp.float32)  # NCHW
    params = init_params(kp, in_res=IN_RES, c=C, latent_dim=LATENT)

    fwd = jax.jit(encoder_forward)
    out = jax.block_until_ready(fwd(x, params))

    assert out.shape == (BATCH, LATENT), out.shape
    assert bool(jnp.all(jnp.isfinite(out)))
    print("KERNEL_OK")
</pallas_src>

<mosaic_0001>
module attributes {stable_mosaic.version = 11 : i64} {
  func.func @_conv_relu_pool_kernel(%arg0: i32, %arg1: memref<1x1024x27xbf16, #tpu.memory_space<vmem>>, %arg2: memref<27x128xbf16, #tpu.memory_space<vmem>>, %arg3: memref<1x128xf32, #tpu.memory_space<vmem>>, %arg4: memref<1x256x128xf32, #tpu.memory_space<vmem>>) attributes {dimension_semantics = [#tpu.dimension_semantics<parallel>], iteration_bounds = array<i64: 2>, scalar_prefetch = 0 : i64, scratch_operands = 0 : i64, tpu.core_type = #tpu.core_type<tc>, window_params = [{transform_indices = @transform_0, window_bounds = array<i64: 1, 1024, 27>}, {pipeline_mode = #tpu.pipeline_mode<synchronous>, transform_indices = @transform_1, window_bounds = array<i64: 27, 128>}, {pipeline_mode = #tpu.pipeline_mode<synchronous>, transform_indices = @transform_2, window_bounds = array<i64: 1, 128>}, {transform_indices = @transform_3, window_bounds = array<i64: 1, 256, 128>}]} {
    %c0 = arith.constant 0 : index
    %c0_0 = arith.constant 0 : index
    %0 = vector.load %arg2[%c0, %c0_0] : memref<27x128xbf16, #tpu.memory_space<vmem>>, vector<27x128xbf16>
    %c0_1 = arith.constant 0 : index
    %c0_2 = arith.constant 0 : index
    %1 = vector.load %arg3[%c0_1, %c0_2] : memref<1x128xf32, #tpu.memory_space<vmem>>, vector<1x128xf32>
    %c0_3 = arith.constant 0 : index
    %c0_4 = arith.constant 0 : index
    %c0_5 = arith.constant 0 : index
    %2 = vector.load %arg1[%c0_3, %c0_4, %c0_5] : memref<1x1024x27xbf16, #tpu.memory_space<vmem>>, vector<1x256x27xbf16>
    %3 = vector.shape_cast %2 : vector<1x256x27xbf16> to vector<256x27xbf16>
    %cst = arith.constant dense<0.000000e+00> : vector<256x128xf32>
    %4 = tpu.matmul %3, %0, %cst {dimension_numbers = #tpu.dot_dimension_numbers<[1], [0], [0], [1], [0, 0, 1, 1], [], []>} : vector<256x27xbf16>, vector<27x128xbf16>, vector<256x128xf32> -> vector<256x128xf32>
    %5 = vector.broadcast %1 : vector<1x128xf32> to vector<256x128xf32>
    %6 = arith.addf %4, %5 : vector<256x128xf32>
    %cst_6 = arith.constant 0.000000e+00 : f32
    %7 = vector.broadcast %cst_6 : f32 to vector<256x128xf32>
    %8 = arith.maximumf %6, %7 : vector<256x128xf32>
    %c0_7 = arith.constant 0 : index
    %c256 = arith.constant 256 : index
    %c0_8 = arith.constant 0 : index
    %9 = vector.load %arg1[%c0_7, %c256, %c0_8] : memref<1x1024x27xbf16, #tpu.memory_space<vmem>>, vector<1x256x27xbf16>
    %10 = vector.shape_cast %9 : vector<1x256x27xbf16> to vector<256x27xbf16>
    %cst_9 = arith.constant dense<0.000000e+00> : vector<256x128xf32>
    %11 = tpu.matmul %10, %0, %cst_9 {dimension_numbers = #tpu.dot_dimension_numbers<[1], [0], [0], [1], [0, 0, 1, 1], [], []>} : vector<256x27xbf16>, vector<27x128xbf16>, vector<256x128xf32> -> vector<256x128xf32>
    %12 = vector.broadcast %1 : vector<1x128xf32> to vector<256x128xf32>
    %13 = arith.addf %11, %12 : vector<256x128xf32>
    %cst_10 = arith.constant 0.000000e+00 : f32
    %14 = vector.broadcast %cst_10 : f32 to vector<256x128xf32>
    %15 = arith.maximumf %13, %14 : vector<256x128xf32>
    %16 = arith.maximumf %8, %15 : vector<256x128xf32>
    %c0_11 = arith.constant 0 : index
    %c512 = arith.constant 512 : index
    %c0_12 = arith.constant 0 : index
    %17 = vector.load %arg1[%c0_11, %c512, %c0_12] : memref<1x1024x27xbf16, #tpu.memory_space<vmem>>, vector<1x256x27xbf16>
    %18 = vector.shape_cast %17 : vector<1x256x27xbf16> to vector<256x27xbf16>
    %cst_13 = arith.constant dense<0.000000e+00> : vector<256x128xf32>
    %19 = tpu.matmul %18, %0, %cst_13 {dimension_numbers = #tpu.dot_dimension_numbers<[1], [0], [0], [1], [0, 0, 1, 1], [], []>} : vector<256x27xbf16>, vector<27x128xbf16>, vector<256x128xf32> -> vector<256x128xf32>
    %20 = vector.broadcast %1 : vector<1x128xf32> to vector<256x128xf32>
    %21 = arith.addf %19, %20 : vector<256x128xf32>
    %cst_14 = arith.constant 0.000000e+00 : f32
    %22 = vector.broadcast %cst_14 : f32 to vector<256x128xf32>
    %23 = arith.maximumf %21, %22 : vector<256x128xf32>
    %c0_15 = arith.constant 0 : index
    %c768 = arith.constant 768 : index
    %c0_16 = arith.constant 0 : index
    %24 = vector.load %arg1[%c0_15, %c768, %c0_16] : memref<1x1024x27xbf16, #tpu.memory_space<vmem>>, vector<1x256x27xbf16>
    %25 = vector.shape_cast %24 : vector<1x256x27xbf16> to vector<256x27xbf16>
    %cst_17 = arith.constant dense<0.000000e+00> : vector<256x128xf32>
    %26 = tpu.matmul %25, %0, %cst_17 {dimension_numbers = #tpu.dot_dimension_numbers<[1], [0], [0], [1], [0, 0, 1, 1], [], []>} : vector<256x27xbf16>, vector<27x128xbf16>, vector<256x128xf32> -> vector<256x128xf32>
    %27 = vector.broadcast %1 : vector<1x128xf32> to vector<256x128xf32>
    %28 = arith.addf %26, %27 : vector<256x128xf32>
    %cst_18 = arith.constant 0.000000e+00 : f32
    %29 = vector.broadcast %cst_18 : f32 to vector<256x128xf32>
    %30 = arith.maximumf %28, %29 : vector<256x128xf32>
    %31 = arith.maximumf %23, %30 : vector<256x128xf32>
    %32 = arith.maximumf %16, %31 : vector<256x128xf32>
    %c0_19 = arith.constant 0 : index
    %c0_20 = arith.constant 0 : index
    %c0_21 = arith.constant 0 : index
    %33 = vector.load %arg4[%c0_19, %c0_20, %c0_21] : memref<1x256x128xf32, #tpu.memory_space<vmem>>, vector<1x256x128xf32>
    %34 = vector.shape_cast %33 : vector<1x256x128xf32> to vector<256x128xf32>
    %35 = vector.shape_cast %32 : vector<256x128xf32> to vector<1x256x128xf32>
    tpu.vector_store %arg4[%c0_19, %c0_20, %c0_21], %35 {strides = array<i32>} : memref<1x256x128xf32, #tpu.memory_space<vmem>>, vector<1x256x128xf32>,
    return
  }
  func.func @transform_0(%arg0: i32) -> (i32, i32, i32) {
    %c0_i32 = arith.constant 0 : i32
    %c0_i32_0 = arith.constant 0 : i32
    %c0_i32_1 = arith.constant 0 : i32
    return %arg0, %c0_i32, %c0_i32_0 : i32, i32, i32
  }
  func.func @transform_1(%arg0: i32) -> (i32, i32) {
    %c0_i32 = arith.constant 0 : i32
    %c0_i32_0 = arith.constant 0 : i32
    %c0_i32_1 = arith.constant 0 : i32
    return %c0_i32, %c0_i32_0 : i32, i32
  }
  func.func @transform_2(%arg0: i32) -> (i32, i32) {
    %c0_i32 = arith.constant 0 : i32
    %c0_i32_0 = arith.constant 0 : i32
    %c0_i32_1 = arith.constant 0 : i32
    return %c0_i32, %c0_i32_0 : i32, i32
  }
  func.func @transform_3(%arg0: i32) -> (i32, i32, i32) {
    %c0_i32 = arith.constant 0 : i32
    %c0_i32_0 = arith.constant 0 : i32
    %c0_i32_1 = arith.constant 0 : i32
    return %arg0, %c0_i32, %c0_i32_0 : i32, i32, i32
  }
}

module attributes {stable_mosaic.version = 11 : i64} {
  func.func @_conv_relu_pool_kernel(%arg0: i32, %arg1: memref<1x256x1152xbf16, #tpu.memory_space<vmem>>, %arg2: memref<1152x128xbf16, #tpu.memory_space<vmem>>, %arg3: memref<1x128xf32, #tpu.memory_space<vmem>>, %arg4: memref<1x64x128xf32, #tpu.memory_space<vmem>>) attributes {dimension_semantics = [#tpu.dimension_semantics<parallel>], iteration_bounds = array<i64: 2>, scalar_prefetch = 0 : i64, scratch_operands = 0 : i64, tpu.core_type = #tpu.core_type<tc>, window_params = [{transform_indices = @transform_0, window_bounds = array<i64: 1, 256, 1152>}, {pipeline_mode = #tpu.pipeline_mode<synchronous>, transform_indices = @transform_1, window_bounds = array<i64: 1152, 128>}, {pipeline_mode = #tpu.pipeline_mode<synchronous>, transform_indices = @transform_2, window_bounds = array<i64: 1, 128>}, {transform_indices = @transform_3, window_bounds = array<i64: 1, 64, 128>}]} {
    %c0 = arith.constant 0 : index
    %c0_0 = arith.constant 0 : index
    %0 = vector.load %arg2[%c0, %c0_0] : memref<1152x128xbf16, #tpu.memory_space<vmem>>, vector<1152x128xbf16>
    %c0_1 = arith.constant 0 : index
    %c0_2 = arith.constant 0 : index
    %1 = vector.load %arg3[%c0_1, %c0_2] : memref<1x128xf32, #tpu.memory_space<vmem>>, vector<1x128xf32>
    %c0_3 = arith.constant 0 : index
    %c0_4 = arith.constant 0 : index
    %c0_5 = arith.constant 0 : index
    %2 = vector.load %arg1[%c0_3, %c0_4, %c0_5] : memref<1x256x1152xbf16, #tpu.memory_space<vmem>>, vector<1x64x1152xbf16>
    %3 = vector.shape_cast %2 : vector<1x64x1152xbf16> to vector<64x1152xbf16>
    %cst = arith.constant dense<0.000000e+00> : vector<64x128xf32>
    %4 = tpu.matmul %3, %0, %cst {dimension_numbers = #tpu.dot_dimension_numbers<[1], [0], [0], [1], [0, 0, 1, 1], [], []>} : vector<64x1152xbf16>, vector<1152x128xbf16>, vector<64x128xf32> -> vector<64x128xf32>
    %5 = vector.broadcast %1 : vector<1x128xf32> to vector<64x128xf32>
    %6 = arith.addf %4, %5 : vector<64x128xf32>
    %cst_6 = arith.constant 0.000000e+00 : f32
    %7 = vector.broadcast %cst_6 : f32 to vector<64x128xf32>
    %8 = arith.maximumf %6, %7 : vector<64x128xf32>
    %c0_7 = arith.constant 0 : index
    %c64 = arith.constant 64 : index
    %c0_8 = arith.constant 0 : index
    %9 = vector.load %arg1[%c0_7, %c64, %c0_8] : memref<1x256x1152xbf16, #tpu.memory_space<vmem>>, vector<1x64x1152xbf16>
    %10 = vector.shape_cast %9 : vector<1x64x1152xbf16> to vector<64x1152xbf16>
    %cst_9 = arith.constant dense<0.000000e+00> : vector<64x128xf32>
    %11 = tpu.matmul %10, %0, %cst_9 {dimension_numbers = #tpu.dot_dimension_numbers<[1], [0], [0], [1], [0, 0, 1, 1], [], []>} : vector<64x1152xbf16>, vector<1152x128xbf16>, vector<64x128xf32> -> vector<64x128xf32>
    %12 = vector.broadcast %1 : vector<1x128xf32> to vector<64x128xf32>
    %13 = arith.addf %11, %12 : vector<64x128xf32>
    %cst_10 = arith.constant 0.000000e+00 : f32
    %14 = vector.broadcast %cst_10 : f32 to vector<64x128xf32>
    %15 = arith.maximumf %13, %14 : vector<64x128xf32>
    %16 = arith.maximumf %8, %15 : vector<64x128xf32>
    %c0_11 = arith.constant 0 : index
    %c128 = arith.constant 128 : index
    %c0_12 = arith.constant 0 : index
    %17 = vector.load %arg1[%c0_11, %c128, %c0_12] : memref<1x256x1152xbf16, #tpu.memory_space<vmem>>, vector<1x64x1152xbf16>
    %18 = vector.shape_cast %17 : vector<1x64x1152xbf16> to vector<64x1152xbf16>
    %cst_13 = arith.constant dense<0.000000e+00> : vector<64x128xf32>
    %19 = tpu.matmul %18, %0, %cst_13 {dimension_numbers = #tpu.dot_dimension_numbers<[1], [0], [0], [1], [0, 0, 1, 1], [], []>} : vector<64x1152xbf16>, vector<1152x128xbf16>, vector<64x128xf32> -> vector<64x128xf32>
    %20 = vector.broadcast %1 : vector<1x128xf32> to vector<64x128xf32>
    %21 = arith.addf %19, %20 : vector<64x128xf32>
    %cst_14 = arith.constant 0.000000e+00 : f32
    %22 = vector.broadcast %cst_14 : f32 to vector<64x128xf32>
    %23 = arith.maximumf %21, %22 : vector<64x128xf32>
    %c0_15 = arith.constant 0 : index
    %c192 = arith.constant 192 : index
    %c0_16 = arith.constant 0 : index
    %24 = vector.load %arg1[%c0_15, %c192, %c0_16] : memref<1x256x1152xbf16, #tpu.memory_space<vmem>>, vector<1x64x1152xbf16>
    %25 = vector.shape_cast %24 : vector<1x64x1152xbf16> to vector<64x1152xbf16>
    %cst_17 = arith.constant dense<0.000000e+00> : vector<64x128xf32>
    %26 = tpu.matmul %25, %0, %cst_17 {dimension_numbers = #tpu.dot_dimension_numbers<[1], [0], [0], [1], [0, 0, 1, 1], [], []>} : vector<64x1152xbf16>, vector<1152x128xbf16>, vector<64x128xf32> -> vector<64x128xf32>
    %27 = vector.broadcast %1 : vector<1x128xf32> to vector<64x128xf32>
    %28 = arith.addf %26, %27 : vector<64x128xf32>
    %cst_18 = arith.constant 0.000000e+00 : f32
    %29 = vector.broadcast %cst_18 : f32 to vector<64x128xf32>
    %30 = arith.maximumf %28, %29 : vector<64x128xf32>
    %31 = arith.maximumf %23, %30 : vector<64x128xf32>
    %32 = arith.maximumf %16, %31 : vector<64x128xf32>
    %c0_19 = arith.constant 0 : index
    %c0_20 = arith.constant 0 : index
    %c0_21 = arith.constant 0 : index
    %33 = vector.load %arg4[%c0_19, %c0_20, %c0_21] : memref<1x64x128xf32, #tpu.memory_space<vmem>>, vector<1x64x128xf32>
    %34 = vector.shape_cast %33 : vector<1x64x128xf32> to vector<64x128xf32>
    %35 = vector.shape_cast %32 : vector<64x128xf32> to vector<1x64x128xf32>
    tpu.vector_store %arg4[%c0_19, %c0_20, %c0_21], %35 {strides = array<i32>} : memref<1x64x128xf32, #tpu.memory_space<vmem>>, vector<1x64x128xf32>,
    return
  }
  func.func @transform_0(%arg0: i32) -> (i32, i32, i32) {
    %c0_i32 = arith.constant 0 : i32
    %c0_i32_0 = arith.constant 0 : i32
    %c0_i32_1 = arith.constant 0 : i32
    return %arg0, %c0_i32, %c0_i32_0 : i32, i32, i32
  }
  func.func @transform_1(%arg0: i32) -> (i32, i32) {
    %c0_i32 = arith.constant 0 : i32
    %c0_i32_0 = arith.constant 0 : i32
    %c0_i32_1 = arith.constant 0 : i32
    return %c0_i32, %c0_i32_0 : i32, i32
  }
  func.func @transform_2(%arg0: i32) -> (i32, i32) {
    %c0_i32 = arith.constant 0 : i32
    %c0_i32_0 = arith.constant 0 : i32
    %c0_i32_1 = arith.constant 0 : i32
    return %c0_i32, %c0_i32_0 : i32, i32
  }
  func.func @transform_3(%arg0: i32) -> (i32, i32, i32) {
    %c0_i32 = arith.constant 0 : i32
    %c0_i32_0 = arith.constant 0 : i32
    %c0_i32_1 = arith.constant 0 : i32
    return %arg0, %c0_i32, %c0_i32_0 : i32, i32, i32
  }
}

module attributes {stable_mosaic.version = 11 : i64} {
  func.func @_conv_relu_pool_kernel(%arg0: i32, %arg1: memref<1x64x1152xbf16, #tpu.memory_space<vmem>>, %arg2: memref<1152x128xbf16, #tpu.memory_space<vmem>>, %arg3: memref<1x128xf32, #tpu.memory_space<vmem>>, %arg4: memref<1x16x128xf32, #tpu.memory_space<vmem>>) attributes {dimension_semantics = [#tpu.dimension_semantics<parallel>], iteration_bounds = array<i64: 2>, scalar_prefetch = 0 : i64, scratch_operands = 0 : i64, tpu.core_type = #tpu.core_type<tc>, window_params = [{transform_indices = @transform_0, window_bounds = array<i64: 1, 64, 1152>}, {pipeline_mode = #tpu.pipeline_mode<synchronous>, transform_indices = @transform_1, window_bounds = array<i64: 1152, 128>}, {pipeline_mode = #tpu.pipeline_mode<synchronous>, transform_indices = @transform_2, window_bounds = array<i64: 1, 128>}, {transform_indices = @transform_3, window_bounds = array<i64: 1, 16, 128>}]} {
    %c0 = arith.constant 0 : index
    %c0_0 = arith.constant 0 : index
    %0 = vector.load %arg2[%c0, %c0_0] : memref<1152x128xbf16, #tpu.memory_space<vmem>>, vector<1152x128xbf16>
    %c0_1 = arith.constant 0 : index
    %c0_2 = arith.constant 0 : index
    %1 = vector.load %arg3[%c0_1, %c0_2] : memref<1x128xf32, #tpu.memory_space<vmem>>, vector<1x128xf32>
    %c0_3 = arith.constant 0 : index
    %c0_4 = arith.constant 0 : index
    %c0_5 = arith.constant 0 : index
    %2 = vector.load %arg1[%c0_3, %c0_4, %c0_5] : memref<1x64x1152xbf16, #tpu.memory_space<vmem>>, vector<1x16x1152xbf16>
    %3 = vector.shape_cast %2 : vector<1x16x1152xbf16> to vector<16x1152xbf16>
    %cst = arith.constant dense<0.000000e+00> : vector<16x128xf32>
    %4 = tpu.matmul %3, %0, %cst {dimension_numbers = #tpu.dot_dimension_numbers<[1], [0], [0], [1], [0, 0, 1, 1], [], []>} : vector<16x1152xbf16>, vector<1152x128xbf16>, vector<16x128xf32> -> vector<16x128xf32>
    %5 = vector.broadcast %1 : vector<1x128xf32> to vector<16x128xf32>
    %6 = arith.addf %4, %5 : vector<16x128xf32>
    %cst_6 = arith.constant 0.000000e+00 : f32
    %7 = vector.broadcast %cst_6 : f32 to vector<16x128xf32>
    %8 = arith.maximumf %6, %7 : vector<16x128xf32>
    %c0_7 = arith.constant 0 : index
    %c16 = arith.constant 16 : index
    %c0_8 = arith.constant 0 : index
    %9 = vector.load %arg1[%c0_7, %c16, %c0_8] : memref<1x64x1152xbf16, #tpu.memory_space<vmem>>, vector<1x16x1152xbf16>
    %10 = vector.shape_cast %9 : vector<1x16x1152xbf16> to vector<16x1152xbf16>
    %cst_9 = arith.constant dense<0.000000e+00> : vector<16x128xf32>
    %11 = tpu.matmul %10, %0, %cst_9 {dimension_numbers = #tpu.dot_dimension_numbers<[1], [0], [0], [1], [0, 0, 1, 1], [], []>} : vector<16x1152xbf16>, vector<1152x128xbf16>, vector<16x128xf32> -> vector<16x128xf32>
    %12 = vector.broadcast %1 : vector<1x128xf32> to vector<16x128xf32>
    %13 = arith.addf %11, %12 : vector<16x128xf32>
    %cst_10 = arith.constant 0.000000e+00 : f32
    %14 = vector.broadcast %cst_10 : f32 to vector<16x128xf32>
    %15 = arith.maximumf %13, %14 : vector<16x128xf32>
    %16 = arith.maximumf %8, %15 : vector<16x128xf32>
    %c0_11 = arith.constant 0 : index
    %c32 = arith.constant 32 : index
    %c0_12 = arith.constant 0 : index
    %17 = vector.load %arg1[%c0_11, %c32, %c0_12] : memref<1x64x1152xbf16, #tpu.memory_space<vmem>>, vector<1x16x1152xbf16>
    %18 = vector.shape_cast %17 : vector<1x16x1152xbf16> to vector<16x1152xbf16>
    %cst_13 = arith.constant dense<0.000000e+00> : vector<16x128xf32>
    %19 = tpu.matmul %18, %0, %cst_13 {dimension_numbers = #tpu.dot_dimension_numbers<[1], [0], [0], [1], [0, 0, 1, 1], [], []>} : vector<16x1152xbf16>, vector<1152x128xbf16>, vector<16x128xf32> -> vector<16x128xf32>
    %20 = vector.broadcast %1 : vector<1x128xf32> to vector<16x128xf32>
    %21 = arith.addf %19, %20 : vector<16x128xf32>
    %cst_14 = arith.constant 0.000000e+00 : f32
    %22 = vector.broadcast %cst_14 : f32 to vector<16x128xf32>
    %23 = arith.maximumf %21, %22 : vector<16x128xf32>
    %c0_15 = arith.constant 0 : index
    %c48 = arith.constant 48 : index
    %c0_16 = arith.constant 0 : index
    %24 = vector.load %arg1[%c0_15, %c48, %c0_16] : memref<1x64x1152xbf16, #tpu.memory_space<vmem>>, vector<1x16x1152xbf16>
    %25 = vector.shape_cast %24 : vector<1x16x1152xbf16> to vector<16x1152xbf16>
    %cst_17 = arith.constant dense<0.000000e+00> : vector<16x128xf32>
    %26 = tpu.matmul %25, %0, %cst_17 {dimension_numbers = #tpu.dot_dimension_numbers<[1], [0], [0], [1], [0, 0, 1, 1], [], []>} : vector<16x1152xbf16>, vector<1152x128xbf16>, vector<16x128xf32> -> vector<16x128xf32>
    %27 = vector.broadcast %1 : vector<1x128xf32> to vector<16x128xf32>
    %28 = arith.addf %26, %27 : vector<16x128xf32>
    %cst_18 = arith.constant 0.000000e+00 : f32
    %29 = vector.broadcast %cst_18 : f32 to vector<16x128xf32>
    %30 = arith.maximumf %28, %29 : vector<16x128xf32>
    %31 = arith.maximumf %23, %30 : vector<16x128xf32>
    %32 = arith.maximumf %16, %31 : vector<16x128xf32>
    %c0_19 = arith.constant 0 : index
    %c0_20 = arith.constant 0 : index
    %c0_21 = arith.constant 0 : index
    %33 = vector.load %arg4[%c0_19, %c0_20, %c0_21] : memref<1x16x128xf32, #tpu.memory_space<vmem>>, vector<1x16x128xf32>
    %34 = vector.shape_cast %33 : vector<1x16x128xf32> to vector<16x128xf32>
    %35 = vector.shape_cast %32 : vector<16x128xf32> to vector<1x16x128xf32>
    tpu.vector_store %arg4[%c0_19, %c0_20, %c0_21], %35 {strides = array<i32>} : memref<1x16x128xf32, #tpu.memory_space<vmem>>, vector<1x16x128xf32>,
    return
  }
  func.func @transform_0(%arg0: i32) -> (i32, i32, i32) {
    %c0_i32 = arith.constant 0 : i32
    %c0_i32_0 = arith.constant 0 : i32
    %c0_i32_1 = arith.constant 0 : i32
    return %arg0, %c0_i32, %c0_i32_0 : i32, i32, i32
  }
  func.func @transform_1(%arg0: i32) -> (i32, i32) {
    %c0_i32 = arith.constant 0 : i32
    %c0_i32_0 = arith.constant 0 : i32
    %c0_i32_1 = arith.constant 0 : i32
    return %c0_i32, %c0_i32_0 : i32, i32
  }
  func.func @transform_2(%arg0: i32) -> (i32, i32) {
    %c0_i32 = arith.constant 0 : i32
    %c0_i32_0 = arith.constant 0 : i32
    %c0_i32_1 = arith.constant 0 : i32
    return %c0_i32, %c0_i32_0 : i32, i32
  }
  func.func @transform_3(%arg0: i32) -> (i32, i32, i32) {
    %c0_i32 = arith.constant 0 : i32
    %c0_i32_0 = arith.constant 0 : i32
    %c0_i32_1 = arith.constant 0 : i32
    return %arg0, %c0_i32, %c0_i32_0 : i32, i32, i32
  }
}

module attributes {stable_mosaic.version = 11 : i64} {
  func.func @_mlp_kernel(%arg0: i32, %arg1: memref<2x1024xbf16, #tpu.memory_space<vmem>>, %arg2: memref<1024x128xbf16, #tpu.memory_space<vmem>>, %arg3: memref<1x128xf32, #tpu.memory_space<vmem>>, %arg4: memref<128x64xbf16, #tpu.memory_space<vmem>>, %arg5: memref<1x64xf32, #tpu.memory_space<vmem>>, %arg6: memref<2x64xf32, #tpu.memory_space<vmem>>) attributes {dimension_semantics = [#tpu.dimension_semantics<arbitrary>], iteration_bounds = array<i64: 1>, scalar_prefetch = 0 : i64, scratch_operands = 0 : i64, tpu.core_type = #tpu.core_type<tc>, window_params = [{pipeline_mode = #tpu.pipeline_mode<synchronous>, transform_indices = @transform_0, window_bounds = array<i64: 2, 1024>}, {pipeline_mode = #tpu.pipeline_mode<synchronous>, transform_indices = @transform_1, window_bounds = array<i64: 1024, 128>}, {pipeline_mode = #tpu.pipeline_mode<synchronous>, transform_indices = @transform_2, window_bounds = array<i64: 1, 128>}, {pipeline_mode = #tpu.pipeline_mode<synchronous>, transform_indices = @transform_3, window_bounds = array<i64: 128, 64>}, {pipeline_mode = #tpu.pipeline_mode<synchronous>, transform_indices = @transform_4, window_bounds = array<i64: 1, 64>}, {pipeline_mode = #tpu.pipeline_mode<synchronous>, transform_indices = @transform_5, window_bounds = array<i64: 2, 64>}]} {
    %c0 = arith.constant 0 : index
    %c0_0 = arith.constant 0 : index
    %0 = vector.load %arg1[%c0, %c0_0] : memref<2x1024xbf16, #tpu.memory_space<vmem>>, vector<2x1024xbf16>
    %c0_1 = arith.constant 0 : index
    %c0_2 = arith.constant 0 : index
    %1 = vector.load %arg2[%c0_1, %c0_2] : memref<1024x128xbf16, #tpu.memory_space<vmem>>, vector<1024x128xbf16>
    %cst = arith.constant dense<0.000000e+00> : vector<2x128xf32>
    %2 = tpu.matmul %0, %1, %cst {dimension_numbers = #tpu.dot_dimension_numbers<[1], [0], [0], [1], [0, 0, 1, 1], [], []>} : vector<2x1024xbf16>, vector<1024x128xbf16>, vector<2x128xf32> -> vector<2x128xf32>
    %c0_3 = arith.constant 0 : index
    %c0_4 = arith.constant 0 : index
    %3 = vector.load %arg3[%c0_3, %c0_4] : memref<1x128xf32, #tpu.memory_space<vmem>>, vector<1x128xf32>
    %4 = vector.broadcast %3 : vector<1x128xf32> to vector<2x128xf32>
    %5 = arith.addf %2, %4 : vector<2x128xf32>
    %cst_5 = arith.constant 0.000000e+00 : f32
    %6 = vector.broadcast %cst_5 : f32 to vector<2x128xf32>
    %7 = arith.maximumf %5, %6 : vector<2x128xf32>
    %8 = arith.truncf %7 : vector<2x128xf32> to vector<2x128xbf16>
    %c0_6 = arith.constant 0 : index
    %c0_7 = arith.constant 0 : index
    %9 = vector.load %arg4[%c0_6, %c0_7] : memref<128x64xbf16, #tpu.memory_space<vmem>>, vector<128x64xbf16>
    %cst_8 = arith.constant dense<0.000000e+00> : vector<2x64xf32>
    %10 = tpu.matmul %8, %9, %cst_8 {dimension_numbers = #tpu.dot_dimension_numbers<[1], [0], [0], [1], [0, 0, 1, 1], [], []>} : vector<2x128xbf16>, vector<128x64xbf16>, vector<2x64xf32> -> vector<2x64xf32>
    %c0_9 = arith.constant 0 : index
    %c0_10 = arith.constant 0 : index
    %11 = vector.load %arg5[%c0_9, %c0_10] : memref<1x64xf32, #tpu.memory_space<vmem>>, vector<1x64xf32>
    %12 = vector.broadcast %11 : vector<1x64xf32> to vector<2x64xf32>
    %13 = arith.addf %10, %12 : vector<2x64xf32>
    %c0_11 = arith.constant 0 : index
    %c0_12 = arith.constant 0 : index
    %14 = vector.load %arg6[%c0_11, %c0_12] : memref<2x64xf32, #tpu.memory_space<vmem>>, vector<2x64xf32>
    tpu.vector_store %arg6[%c0_11, %c0_12], %13 {strides = array<i32>} : memref<2x64xf32, #tpu.memory_space<vmem>>, vector<2x64xf32>,
    return
  }
  func.func @transform_0(%arg0: i32) -> (i32, i32) {
    %c0_i32 = arith.constant 0 : i32
    %c0_i32_0 = arith.constant 0 : i32
    %c0_i32_1 = arith.constant 0 : i32
    return %c0_i32, %c0_i32_0 : i32, i32
  }
  func.func @transform_1(%arg0: i32) -> (i32, i32) {
    %c0_i32 = arith.constant 0 : i32
    %c0_i32_0 = arith.constant 0 : i32
    %c0_i32_1 = arith.constant 0 : i32
    return %c0_i32, %c0_i32_0 : i32, i32
  }
  func.func @transform_2(%arg0: i32) -> (i32, i32) {
    %c0_i32 = arith.constant 0 : i32
    %c0_i32_0 = arith.constant 0 : i32
    %c0_i32_1 = arith.constant 0 : i32
    return %c0_i32, %c0_i32_0 : i32, i32
  }
  func.func @transform_3(%arg0: i32) -> (i32, i32) {
    %c0_i32 = arith.constant 0 : i32
    %c0_i32_0 = arith.constant 0 : i32
    %c0_i32_1 = arith.constant 0 : i32
    return %c0_i32, %c0_i32_0 : i32, i32
  }
  func.func @transform_4(%arg0: i32) -> (i32, i32) {
    %c0_i32 = arith.constant 0 : i32
    %c0_i32_0 = arith.constant 0 : i32
    %c0_i32_1 = arith.constant 0 : i32
    return %c0_i32, %c0_i32_0 : i32, i32
  }
  func.func @transform_5(%arg0: i32) -> (i32, i32) {
    %c0_i32 = arith.constant 0 : i32
    %c0_i32_0 = arith.constant 0 : i32
    %c0_i32_1 = arith.constant 0 : i32
    return %c0_i32, %c0_i32_0 : i32, i32
  }
}

module attributes {stable_mosaic.version = 11 : i64} {
  func.func @_conv_relu_pool_kernel(%arg0: i32, %arg1: memref<1x16x1152xbf16, #tpu.memory_space<vmem>>, %arg2: memref<1152x256xbf16, #tpu.memory_space<vmem>>, %arg3: memref<1x256xf32, #tpu.memory_space<vmem>>, %arg4: memref<1x4x256xf32, #tpu.memory_space<vmem>>) attributes {dimension_semantics = [#tpu.dimension_semantics<parallel>], iteration_bounds = array<i64: 2>, scalar_prefetch = 0 : i64, scratch_operands = 0 : i64, tpu.core_type = #tpu.core_type<tc>, window_params = [{transform_indices = @transform_0, window_bounds = array<i64: 1, 16, 1152>}, {pipeline_mode = #tpu.pipeline_mode<synchronous>, transform_indices = @transform_1, window_bounds = array<i64: 1152, 256>}, {pipeline_mode = #tpu.pipeline_mode<synchronous>, transform_indices = @transform_2, window_bounds = array<i64: 1, 256>}, {transform_indices = @transform_3, window_bounds = array<i64: 1, 4, 256>}]} {
    %c0 = arith.constant 0 : index
    %c0_0 = arith.constant 0 : index
    %0 = vector.load %arg2[%c0, %c0_0] : memref<1152x256xbf16, #tpu.memory_space<vmem>>, vector<1152x256xbf16>
    %c0_1 = arith.constant 0 : index
    %c0_2 = arith.constant 0 : index
    %1 = vector.load %arg3[%c0_1, %c0_2] : memref<1x256xf32, #tpu.memory_space<vmem>>, vector<1x256xf32>
    %c0_3 = arith.constant 0 : index
    %c0_4 = arith.constant 0 : index
    %c0_5 = arith.constant 0 : index
    %2 = vector.load %arg1[%c0_3, %c0_4, %c0_5] : memref<1x16x1152xbf16, #tpu.memory_space<vmem>>, vector<1x4x1152xbf16>
    %3 = vector.shape_cast %2 : vector<1x4x1152xbf16> to vector<4x1152xbf16>
    %cst = arith.constant dense<0.000000e+00> : vector<4x256xf32>
    %4 = tpu.matmul %3, %0, %cst {dimension_numbers = #tpu.dot_dimension_numbers<[1], [0], [0], [1], [0, 0, 1, 1], [], []>} : vector<4x1152xbf16>, vector<1152x256xbf16>, vector<4x256xf32> -> vector<4x256xf32>
    %5 = vector.broadcast %1 : vector<1x256xf32> to vector<4x256xf32>
    %6 = arith.addf %4, %5 : vector<4x256xf32>
    %cst_6 = arith.constant 0.000000e+00 : f32
    %7 = vector.broadcast %cst_6 : f32 to vector<4x256xf32>
    %8 = arith.maximumf %6, %7 : vector<4x256xf32>
    %c0_7 = arith.constant 0 : index
    %c4 = arith.constant 4 : index
    %c0_8 = arith.constant 0 : index
    %9 = vector.load %arg1[%c0_7, %c4, %c0_8] : memref<1x16x1152xbf16, #tpu.memory_space<vmem>>, vector<1x4x1152xbf16>
    %10 = vector.shape_cast %9 : vector<1x4x1152xbf16> to vector<4x1152xbf16>
    %cst_9 = arith.constant dense<0.000000e+00> : vector<4x256xf32>
    %11 = tpu.matmul %10, %0, %cst_9 {dimension_numbers = #tpu.dot_dimension_numbers<[1], [0], [0], [1], [0, 0, 1, 1], [], []>} : vector<4x1152xbf16>, vector<1152x256xbf16>, vector<4x256xf32> -> vector<4x256xf32>
    %12 = vector.broadcast %1 : vector<1x256xf32> to vector<4x256xf32>
    %13 = arith.addf %11, %12 : vector<4x256xf32>
    %cst_10 = arith.constant 0.000000e+00 : f32
    %14 = vector.broadcast %cst_10 : f32 to vector<4x256xf32>
    %15 = arith.maximumf %13, %14 : vector<4x256xf32>
    %16 = arith.maximumf %8, %15 : vector<4x256xf32>
    %c0_11 = arith.constant 0 : index
    %c8 = arith.constant 8 : index
    %c0_12 = arith.constant 0 : index
    %17 = vector.load %arg1[%c0_11, %c8, %c0_12] : memref<1x16x1152xbf16, #tpu.memory_space<vmem>>, vector<1x4x1152xbf16>
    %18 = vector.shape_cast %17 : vector<1x4x1152xbf16> to vector<4x1152xbf16>
    %cst_13 = arith.constant dense<0.000000e+00> : vector<4x256xf32>
    %19 = tpu.matmul %18, %0, %cst_13 {dimension_numbers = #tpu.dot_dimension_numbers<[1], [0], [0], [1], [0, 0, 1, 1], [], []>} : vector<4x1152xbf16>, vector<1152x256xbf16>, vector<4x256xf32> -> vector<4x256xf32>
    %20 = vector.broadcast %1 : vector<1x256xf32> to vector<4x256xf32>
    %21 = arith.addf %19, %20 : vector<4x256xf32>
    %cst_14 = arith.constant 0.000000e+00 : f32
    %22 = vector.broadcast %cst_14 : f32 to vector<4x256xf32>
    %23 = arith.maximumf %21, %22 : vector<4x256xf32>
    %c0_15 = arith.constant 0 : index
    %c12 = arith.constant 12 : index
    %c0_16 = arith.constant 0 : index
    %24 = vector.load %arg1[%c0_15, %c12, %c0_16] : memref<1x16x1152xbf16, #tpu.memory_space<vmem>>, vector<1x4x1152xbf16>
    %25 = vector.shape_cast %24 : vector<1x4x1152xbf16> to vector<4x1152xbf16>
    %cst_17 = arith.constant dense<0.000000e+00> : vector<4x256xf32>
    %26 = tpu.matmul %25, %0, %cst_17 {dimension_numbers = #tpu.dot_dimension_numbers<[1], [0], [0], [1], [0, 0, 1, 1], [], []>} : vector<4x1152xbf16>, vector<1152x256xbf16>, vector<4x256xf32> -> vector<4x256xf32>
    %27 = vector.broadcast %1 : vector<1x256xf32> to vector<4x256xf32>
    %28 = arith.addf %26, %27 : vector<4x256xf32>
    %cst_18 = arith.constant 0.000000e+00 : f32
    %29 = vector.broadcast %cst_18 : f32 to vector<4x256xf32>
    %30 = arith.maximumf %28, %29 : vector<4x256xf32>
    %31 = arith.maximumf %23, %30 : vector<4x256xf32>
    %32 = arith.maximumf %16, %31 : vector<4x256xf32>
    %c0_19 = arith.constant 0 : index
    %c0_20 = arith.constant 0 : index
    %c0_21 = arith.constant 0 : index
    %33 = vector.load %arg4[%c0_19, %c0_20, %c0_21] : memref<1x4x256xf32, #tpu.memory_space<vmem>>, vector<1x4x256xf32>
    %34 = vector.shape_cast %33 : vector<1x4x256xf32> to vector<4x256xf32>
    %35 = vector.shape_cast %32 : vector<4x256xf32> to vector<1x4x256xf32>
    tpu.vector_store %arg4[%c0_19, %c0_20, %c0_21], %35 {strides = array<i32>} : memref<1x4x256xf32, #tpu.memory_space<vmem>>, vector<1x4x256xf32>,
    return
  }
  func.func @transform_0(%arg0: i32) -> (i32, i32, i32) {
    %c0_i32 = arith.constant 0 : i32
    %c0_i32_0 = arith.constant 0 : i32
    %c0_i32_1 = arith.constant 0 : i32
    return %arg0, %c0_i32, %c0_i32_0 : i32, i32, i32
  }
  func.func @transform_1(%arg0: i32) -> (i32, i32) {
    %c0_i32 = arith.constant 0 : i32
    %c0_i32_0 = arith.constant 0 : i32
    %c0_i32_1 = arith.constant 0 : i32
    return %c0_i32, %c0_i32_0 : i32, i32
  }
  func.func @transform_2(%arg0: i32) -> (i32, i32) {
    %c0_i32 = arith.constant 0 : i32
    %c0_i32_0 = arith.constant 0 : i32
    %c0_i32_1 = arith.constant 0 : i32
    return %c0_i32, %c0_i32_0 : i32, i32
  }
  func.func @transform_3(%arg0: i32) -> (i32, i32, i32) {
    %c0_i32 = arith.constant 0 : i32
    %c0_i32_0 = arith.constant 0 : i32
    %c0_i32_1 = arith.constant 0 : i32
    return %arg0, %c0_i32, %c0_i32_0 : i32, i32, i32
  }
}

</mosaic_0001>

<llo_original>
// kernel: encoder_forward.5
$region0: #{encoder_forward.5}
  #allocation0 [shape = 'u32[]', space=smem, size = 0x4, offset = 0x4, fixed_abs, tag = 'smem constant byte address 0x4 - core index']
  #allocation1 [shape = 'u32[144,128]{1,0:T(1,128)}', space=vmem, size = 0x12000, scoped, tag = 'internal scratch']
  %s0 = inlined_call_operand.vmem [shape: bf16[2,1024,27], index: 0, kind: input, shape index: {}]
  %s1 = inlined_call_operand.vmem [shape: bf16[27,128], index: 1, kind: input, shape index: {}]
  %s2 = inlined_call_operand.vmem [shape: f32[1,128], index: 2, kind: input, shape index: {}]
  %s3 = inlined_call_operand.vmem [shape: f32[2,256,128], index: 3, kind: output, shape index: {}]
  %s4 = sld [smem:[#allocation0]]
  $region45: #{encoder_forward.5} parent=0
    _
  %s6 = ssub.s32 1, %s4
  %s7 = scalar_select 0, %s6, %s4
  loop: start=0, step=1, limit=4
  $region2: #{encoder_forward.5} parent=0 // loop_pre_header
    _
  $region3: #{encoder_forward.5} parent=0 // loop_header
    %s9 = sphi 0, %s13
    %p10 = scmp.ge.s32.totalorder %s9, 4
    %s19 = sphi 0, %s21
    %s22 = sphi 0, %s19
    %s23 = sphi 0, %s22
    %s39 = sphi 0, %s23
    %s43 = sphi 0, %s43
    %s45 = sphi 0, %s43
    %s46 = sphi 0, %s45
    %s60 = sphi 0, %s46
    %s64 = sphi 0, %s64
    %s66 = sphi 0, %s64
    %s67 = sphi 0, %s66
    %s81 = sphi 0, %s67
    %s87 = sphi 0, %s89
    %s90 = sphi 0, %s87
    %s91 = sphi 0, %s90
    %s107 = sphi 0, %s91
  $region4: #{encoder_forward.5} parent=0 // loop_header_branch
    %12 = sbr.rel (%p10) target = $region8
  $region5: #{encoder_forward.5} parent=0 // loop_body
    %s14 = ssub.s32 %s9, 1
    %s15 = ssub.s32 %s9, 2
    %s16 = sadd.s32 %s9, 1
    %s17 = ssub.s32 %s9, %s16
    %p18 = scmp.eq.s32.totalorder %s17, 0
    %s20 = sadd.s32 %s19, 1
    %s21 = scalar_select %p18, %s19, %s20
    %p24 = pneg %p18
    %p25 = scmp.eq.s32.totalorder %s9, 1
    %p26 = por %p24, %p25
    %p27 = scmp.ne.s32.totalorder %s19, %s22
    %p28 = scmp.eq.s32.totalorder %s9, 0
    %p29 = por %p27, %p28
    %p30 = scmp.ne.s32.totalorder %s19, %s22
    %p31 = scmp.eq.s32.totalorder %s14, 1
    %p32 = por %p30, %p31
    %p33 = scmp.ne.s32.totalorder %s22, %s23
    %p34 = scmp.eq.s32.totalorder %s14, 0
    %p35 = por %p33, %p34
    %p36 = scmp.ne.s32.totalorder %s22, %s23
    %p37 = scmp.eq.s32.totalorder %s15, 1
    %p38 = por %p36, %p37
    %p40 = scmp.ne.s32.totalorder %s23, %s39
    %p41 = scmp.eq.s32.totalorder %s15, 0
    %p42 = por %p40, %p41
    %s44 = sadd.s32 %s43, 1
    %p47 = scmp.eq.s32.totalorder %s9, 1
    %p48 = scmp.ne.s32.totalorder %s43, %s45
    %p49 = scmp.eq.s32.totalorder %s9, 0
    %p50 = por %p48, %p49
    %p51 = scmp.ne.s32.totalorder %s43, %s45
    %p52 = scmp.eq.s32.totalorder %s14, 1
    %p53 = por %p51, %p52
    %p54 = scmp.ne.s32.totalorder %s45, %s46
    %p55 = scmp.eq.s32.totalorder %s14, 0
    %p56 = por %p54, %p55
    %p57 = scmp.ne.s32.totalorder %s45, %s46
    %p58 = scmp.eq.s32.totalorder %s15, 1
    %p59 = por %p57, %p58
    %p61 = scmp.ne.s32.totalorder %s46, %s60
    %p62 = scmp.eq.s32.totalorder %s15, 0
    %p63 = por %p61, %p62
    %s65 = sadd.s32 %s64, 1
    %p68 = scmp.eq.s32.totalorder %s9, 1
    %p69 = scmp.ne.s32.totalorder %s64, %s66
    %p70 = scmp.eq.s32.totalorder %s9, 0
    %p71 = por %p69, %p70
    %p72 = scmp.ne.s32.totalorder %s64, %s66
    %p73 = scmp.eq.s32.totalorder %s14, 1
    %p74 = por %p72, %p73
    %p75 = scmp.ne.s32.totalorder %s66, %s67
    %p76 = scmp.eq.s32.totalorder %s14, 0
    %p77 = por %p75, %p76
    %p78 = scmp.ne.s32.totalorder %s66, %s67
    %p79 = scmp.eq.s32.totalorder %s15, 1
    %p80 = por %p78, %p79
    %p82 = scmp.ne.s32.totalorder %s67, %s81
    %p83 = scmp.eq.s32.totalorder %s15, 0
    %p84 = por %p82, %p83
    %s85 = ssub.s32 %s9, %s16
    %p86 = scmp.eq.s32.totalorder %s85, 0
    %s88 = sadd.s32 %s87, 1
    %s89 = scalar_select %p86, %s87, %s88
    %p92 = pneg %p86
    %p93 = scmp.eq.s32.totalorder %s9, 1
    %p94 = por %p92, %p93
    %p95 = scmp.ne.s32.totalorder %s87, %s90
    %p96 = scmp.eq.s32.totalorder %s9, 0
    %p97 = por %p95, %p96
    %p98 = scmp.ne.s32.totalorder %s87, %s90
    %p99 = scmp.eq.s32.totalorder %s14, 1
    %p100 = por %p98, %p99
    %p101 = scmp.ne.s32.totalorder %s90, %s91
    %p102 = scmp.eq.s32.totalorder %s14, 0
    %p103 = por %p101, %p102
    %p104 = scmp.ne.s32.totalorder %s90, %s91
    %p105 = scmp.eq.s32.totalorder %s15, 1
    %p106 = por %p104, %p105
    %p108 = scmp.ne.s32.totalorder %s91, %s107
    %p109 = scmp.eq.s32.totalorder %s15, 0
    %p110 = por %p108, %p109
    %p111 = scmp.le.s32.totalorder 1, %s9
    %p112 = scmp.lt.s32.totalorder %s9, 3
    %p113 = pnand %p111, %p112
    %p114 = pneg %p113
    // Predicated region
    $region9: #{encoder_forward.5} parent=5 // pred_check
      _
    $region10: #{encoder_forward.5} parent=5 // pred_check_branch
      %116 = sbr.rel (%p113) target = $region12
    $region11: #{encoder_forward.5} parent=5 // pred_region
      %s117 = ssub.s32 %s9, 1
      // Predicated region
      $region13: #{encoder_forward.5} parent=11 // pred_check
        %p118 = pneg %p56
      $region14: #{encoder_forward.5} parent=11 // pred_check_branch
        %120 = sbr.rel (%p118) target = $region16
      $region15: #{encoder_forward.5} parent=11 // pred_region
        _
      $region16: #{encoder_forward.5} parent=11 // pred_fallthru
        _
      // Predicated region
      $region17: #{encoder_forward.5} parent=11 // pred_check
        %p121 = pneg %p77
      $region18: #{encoder_forward.5} parent=11 // pred_check_branch
        %123 = sbr.rel (%p121) target = $region20
      $region19: #{encoder_forward.5} parent=11 // pred_region
        _
      $region20: #{encoder_forward.5} parent=11 // pred_fallthru
        _
    $region12: #{encoder_forward.5} parent=5 // pred_fallthru
      _
    %p124 = scmp.lt.s32.totalorder %s9, 2
    // Predicated region
    $region21: #{encoder_forward.5} parent=5 // pred_check
      %p125 = pneg %p124
    $region22: #{encoder_forward.5} parent=5 // pred_check_branch
      %127 = sbr.rel (%p125) target = $region24
    $region23: #{encoder_forward.5} parent=5 // pred_region
      // Predicated region
      $region25: #{encoder_forward.5} parent=23 // pred_check
        %p128 = pneg %p29
      $region26: #{encoder_forward.5} parent=23 // pred_check_branch
        %130 = sbr.rel (%p128) target = $region28
      $region27: #{encoder_forward.5} parent=23 // pred_region
        %p131 = scmp.lt.s32.totalorder %s9, 1
        %s132 = scalar_select %p131, %s9, 1
        %s133 = smul.addr %s132, 128
        %s134 = smul.addr %s133, 4
        %s135 = scalar_lea.vmem %s0, %s134
      $region28: #{encoder_forward.5} parent=23 // pred_fallthru
        _
    $region24: #{encoder_forward.5} parent=5 // pred_fallthru
      _
    %p136 = scmp.le.s32.totalorder 1, %s9
    %p137 = scmp.lt.s32.totalorder %s9, 3
    %p138 = pnand %p136, %p137
    %p139 = pneg %p138
    // Predicated region
    $region29: #{encoder_forward.5} parent=5 // pred_check
      _
    $region30: #{encoder_forward.5} parent=5 // pred_check_branch
      %141 = sbr.rel (%p138) target = $region32
    $region31: #{encoder_forward.5} parent=5 // pred_region
      %s142 = ssub.s32 %s9, 1
      %p143 = scmp.lt.s32.totalorder %s14, 1
      %s144 = scalar_select %p143, %s14, 1
      %s145 = smul.addr %s144, 128
      %s146 = smul.addr %s145, 4
      %s147 = scalar_lea.vmem %s0, %s146
      %p148 = pneg %p35
      %p149 = pneg %p32
      %p150 = pneg %p56
      %p151 = pneg %p53
      %p152 = pneg %p77
      %p153 = pneg %p74
      %p154 = pneg %p103
      %p155 = pneg %p100
      %p156 = scmp.lt.s32.totalorder %s14, 1
      %s157 = scalar_select %p156, %s14, 1
      %s158 = smul.addr %s157, 32
      %s159 = smul.addr %s158, 8
      %s160 = scalar_lea.vmem %s3, %s159
      %p161 = scmp.lt.s32.totalorder %s14, 1
      %s162 = scalar_select %p161, %s14, 1
      %s163 = smul.addr %s162, 128
      %s164 = smul.addr %s163, 4
      %s165 = scalar_lea.vmem %s0, %s164
      %p166 = scmp.lt.s32.totalorder %s14, 1
      %s167 = scalar_select %p166, %s14, 1
      %s168 = smul.addr %s167, 32
      %s169 = smul.addr %s168, 8
      %s170 = scalar_lea.vmem %s3, %s169
      %v172 = vld [vmem:[%s1] sm:$0xf]
      %v173 = vld [vmem:[%s1 + $0x4] sm:$0xf]
      %v174 = vld [vmem:[%s1 + $0x8] sm:$0xf]
      %v175 = vld [vmem:[%s1 + $0xc] sm:$0x3]
      %v176 = vld [vmem:[%s2] sm:$0x1]
      %v177 = vld [vmem:[%s165] sm:$0xf]
      %v178 = vld [vmem:[%s165 + $0x4] sm:$0xf]
      %v179 = vld [vmem:[%s165 + $0x8] sm:$0xf]
      %v180 = vld [vmem:[%s165 + $0xc] sm:$0xf]
      %v181 = vld [vmem:[%s165 + $0x10] sm:$0xf]
      %v182 = vld [vmem:[%s165 + $0x14] sm:$0xf]
      %v183 = vld [vmem:[%s165 + $0x18] sm:$0xf]
      %v184 = vld [vmem:[%s165 + $0x1c] sm:$0xf]
      %v185 = vld [vmem:[%s165 + $0x20] sm:$0xf]
      %v186 = vld [vmem:[%s165 + $0x24] sm:$0xf]
      %v187 = vld [vmem:[%s165 + $0x28] sm:$0xf]
      %v188 = vld [vmem:[%s165 + $0x2c] sm:$0xf]
      %v189 = vld [vmem:[%s165 + $0x30] sm:$0xf]
      %v190 = vld [vmem:[%s165 + $0x34] sm:$0xf]
      %v191 = vld [vmem:[%s165 + $0x38] sm:$0xf]
      %v192 = vld [vmem:[%s165 + $0x3c] sm:$0xf]
      %v193 = vld [vmem:[%s165 + $0x40] sm:$0xf]
      %v194 = vld [vmem:[%s165 + $0x44] sm:$0xf]
      %v195 = vld [vmem:[%s165 + $0x48] sm:$0xf]
      %v196 = vld [vmem:[%s165 + $0x4c] sm:$0xf]
      %v197 = vld [vmem:[%s165 + $0x50] sm:$0xf]
      %v198 = vld [vmem:[%s165 + $0x54] sm:$0xf]
      %v199 = vld [vmem:[%s165 + $0x58] sm:$0xf]
      %v200 = vld [vmem:[%s165 + $0x5c] sm:$0xf]
      %v201 = vld [vmem:[%s165 + $0x60] sm:$0xf]
      %v202 = vld [vmem:[%s165 + $0x64] sm:$0xf]
      %v203 = vld [vmem:[%s165 + $0x68] sm:$0xf]
      %v204 = vld [vmem:[%s165 + $0x6c] sm:$0xf]
      %v205 = vld [vmem:[%s165 + $0x70] sm:$0xf]
      %v206 = vld [vmem:[%s165 + $0x74] sm:$0xf]
      %v207 = vld [vmem:[%s165 + $0x78] sm:$0xf]
      %v208 = vld [vmem:[%s165 + $0x7c] sm:$0xf]
      %v210 = vlaneseq
      %v211 = vshrl.u32 %v210, 7
      %v212 = vsub.s32 0, %v211
      %v213 = vrot.slane %v176, %v212
      %v247 = vunpack.c.l.b16 %v177
      %v248 = vunpack.c.l.b16 %v178
      %v249 = vunpack.c.l.b16 %v179
      %v250 = vunpack.c.l.b16 %v180
      %v251 = vunpack.c.l.b16 %v181
      %v252 = vunpack.c.l.b16 %v182
      %v253 = vunpack.c.l.b16 %v183
      %v254 = vunpack.c.l.b16 %v184
      %v255 = vunpack.c.l.b16 %v185
      %v256 = vunpack.c.l.b16 %v186
      %v257 = vunpack.c.l.b16 %v187
      %v258 = vunpack.c.l.b16 %v188
      %v259 = vunpack.c.l.b16 %v189
      %v260 = vunpack.c.l.b16 %v190
      %v261 = vunpack.c.l.b16 %v191
      %v262 = vunpack.c.l.b16 %v192
      %v263 = vunpack.c.l.b16 %v193
      %v264 = vunpack.c.l.b16 %v194
      %v265 = vunpack.c.l.b16 %v195
      %v266 = vunpack.c.l.b16 %v196
      %v267 = vunpack.c.l.b16 %v197
      %v268 = vunpack.c.l.b16 %v198
      %v269 = vunpack.c.l.b16 %v199
      %v270 = vunpack.c.l.b16 %v200
      %v271 = vunpack.c.l.b16 %v201
      %v272 = vunpack.c.l.b16 %v202
      %v273 = vunpack.c.l.b16 %v203
      %v274 = vunpack.c.l.b16 %v204
      %v275 = vunpack.c.l.b16 %v205
      %v276 = vunpack.c.l.b16 %v206
      %v277 = vunpack.c.l.b16 %v207
      %v278 = vunpack.c.l.b16 %v208
      %v279 = vpack.c.b16 %v248, %v247
      %v280 = vpack.c.b16 %v250, %v249
      %v281 = vpack.c.b16 %v252, %v251
      %v282 = vpack.c.b16 %v254, %v253
      %v283 = vpack.c.b16 %v256, %v255
      %v284 = vpack.c.b16 %v258, %v257
      %v285 = vpack.c.b16 %v260, %v259
      %v286 = vpack.c.b16 %v262, %v261
      %v287 = vpack.c.b16 %v264, %v263
      %v288 = vpack.c.b16 %v266, %v265
      %v289 = vpack.c.b16 %v268, %v267
      %v290 = vpack.c.b16 %v270, %v269
      %v291 = vpack.c.b16 %v272, %v271
      %v292 = vpack.c.b16 %v274, %v273
      %v293 = vpack.c.b16 %v276, %v275
      %v294 = vpack.c.b16 %v278, %v277
      %v299 = vunpack.c.l.b16 %v172
      %v300 = vunpack.c.l.b16 %v173
      %v301 = vunpack.c.l.b16 %v174
      %v302 = vunpack.c.l.b16 %v175
      %v303 = vpack.c.b16 %v300, %v299
      %v304 = vpack.c.b16 %v302, %v301
      %vm306 = vcmask 220160
      %v308 = vsel %vm306, %v279, 0
      %v311 = vsel %vm306, %v280, 0
      %v314 = vsel %vm306, %v281, 0
      %v317 = vsel %vm306, %v282, 0
      %v320 = vsel %vm306, %v283, 0
      %v323 = vsel %vm306, %v284, 0
      %v326 = vsel %vm306, %v285, 0
      %v329 = vsel %vm306, %v286, 0
      %v332 = vsel %vm306, %v287, 0
      %v335 = vsel %vm306, %v288, 0
      %v338 = vsel %vm306, %v289, 0
      %v341 = vsel %vm306, %v290, 0
      %v344 = vsel %vm306, %v291, 0
      %v347 = vsel %vm306, %v292, 0
      %v350 = vsel %vm306, %v293, 0
      %v353 = vsel %vm306, %v294, 0
      %vm355 = vcmask 1044480
      %vm356 = vcmask 1045504
      %v357 = vsel %vm355, 4294967295, 65535
      %v358 = vsel %vm356, %v357, 0
      %v360 = vand.u32 %v304, %v358
      %362 = vmatprep.subr.bf16.mxu0 0
      %363 = vmatpush1.bf16.msra.mxu0 %v303
      %364 = vmatprep.subr.bf16.mxu0 0
      %365 = vmatpush1.bf16.msra.mxu0 %v360
      %366 = vmatprep.subr.bf16.mxu0 0
      %367 = vmatpush1.bf16.msra.mxu0 0
      %368 = vmatprep.subr.bf16.mxu0 0
      %369 = vmatpush1.bf16.msra.mxu0 0
      %370 = vmatprep.subr.bf16.mxu0 0
      %371 = vmatpush1.bf16.msra.mxu0 0
      %372 = vmatprep.subr.bf16.mxu0 0
      %373 = vmatpush1.bf16.msra.mxu0 0
      %374 = vmatprep.subr.bf16.mxu0 0
      %375 = vmatpush1.bf16.msra.mxu0 0
      %376 = vmatprep.subr.bf16.mxu0 0
      %377 = vmatpush1.bf16.msra.mxu0 0
      %378 = vmatprep.subr.bf16.mxu0 0
      %379 = vmatpush1.bf16.msra.mxu0 0
      %380 = vmatprep.subr.bf16.mxu0 0
      %381 = vmatpush1.bf16.msra.mxu0 0
      %382 = vmatprep.subr.bf16.mxu0 0
      %383 = vmatpush1.bf16.msra.mxu0 0
      %384 = vmatprep.subr.bf16.mxu0 0
      %385 = vmatpush1.bf16.msra.mxu0 0
      %386 = vmatprep.subr.bf16.mxu0 0
      %387 = vmatpush1.bf16.msra.mxu0 0
      %388 = vmatprep.subr.bf16.mxu0 0
      %389 = vmatpush1.bf16.msra.mxu0 0
      %390 = vmatprep.subr.bf16.mxu0 0
      %391 = vmatpush1.bf16.msra.mxu0 0
      %392 = vmatprep.subr.bf16.mxu0 0
      %393 = vmatpush1.bf16.msra.mxu0 0
      %394 = vmatprep.mubr.bf16.mxu0 0
      %395 = vmatmul.mubr.bf16.gmra.mrb[0].mxu0 %v308
      %v396 = vpop.f32.mrb[0].mxu0
      %v397 = vadd.f32 %v213, %v396
      %v398 = vpop.f32.mrb[0].mxu0
      %v399 = vpop.f32.mrb[0].mxu0
      %v400 = vadd.f32 %v213, %v399
      %v401 = vpop.f32.mrb[0].mxu0
      %402 = vmatprep.mubr.bf16.mxu0 0
      %403 = vmatmul.mubr.bf16.gmra.mrb[0].mxu0 %v311
      %v404 = vpop.f32.mrb[0].mxu0
      %v405 = vadd.f32 %v213, %v404
      %v406 = vpop.f32.mrb[0].mxu0
      %v407 = vpop.f32.mrb[0].mxu0
      %v408 = vadd.f32 %v213, %v407
      %v409 = vpop.f32.mrb[0].mxu0
      %410 = vmatprep.mubr.bf16.mxu0 0
      %411 = vmatmul.mubr.bf16.gmra.mrb[0].mxu0 %v314
      %v412 = vpop.f32.mrb[0].mxu0
      %v413 = vadd.f32 %v213, %v412
      %v414 = vpop.f32.mrb[0].mxu0
      %v415 = vpop.f32.mrb[0].mxu0
      %v416 = vadd.f32 %v213, %v415
      %v417 = vpop.f32.mrb[0].mxu0
      %418 = vmatprep.mubr.bf16.mxu0 0
      %419 = vmatmul.mubr.bf16.gmra.mrb[0].mxu0 %v317
      %v420 = vpop.f32.mrb[0].mxu0
      %v421 = vadd.f32 %v213, %v420
      %v422 = vpop.f32.mrb[0].mxu0
      %v423 = vpop.f32.mrb[0].mxu0
      %v424 = vadd.f32 %v213, %v423
      %v425 = vpop.f32.mrb[0].mxu0
      %426 = vmatprep.mubr.bf16.mxu0 0
      %427 = vmatmul.mubr.bf16.gmra.mrb[0].mxu0 %v320
      %v428 = vpop.f32.mrb[0].mxu0
      %v429 = vadd.f32 %v213, %v428
      %v430 = vpop.f32.mrb[0].mxu0
      %v431 = vpop.f32.mrb[0].mxu0
      %v432 = vadd.f32 %v213, %v431
      %v433 = vpop.f32.mrb[0].mxu0
      %434 = vmatprep.mubr.bf16.mxu0 0
      %435 = vmatmul.mubr.bf16.gmra.mrb[0].mxu0 %v323
      %v436 = vpop.f32.mrb[0].mxu0
      %v437 = vadd.f32 %v213, %v436
      %v438 = vpop.f32.mrb[0].mxu0
      %v439 = vpop.f32.mrb[0].mxu0
      %v440 = vadd.f32 %v213, %v439
      %v441 = vpop.f32.mrb[0].mxu0
      %442 = vmatprep.mubr.bf16.mxu0 0
      %443 = vmatmul.mubr.bf16.gmra.mrb[0].mxu0 %v326
      %v444 = vpop.f32.mrb[0].mxu0
      %v445 = vadd.f32 %v213, %v444
      %v446 = vpop.f32.mrb[0].mxu0
      %v447 = vpop.f32.mrb[0].mxu0
      %v448 = vadd.f32 %v213, %v447
      %v449 = vpop.f32.mrb[0].mxu0
      %450 = vmatprep.mubr.bf16.mxu0 0
      %451 = vmatmul.mubr.bf16.gmra.mrb[0].mxu0 %v329
      %v452 = vpop.f32.mrb[0].mxu0
      %v453 = vadd.f32 %v213, %v452
      %v454 = vpop.f32.mrb[0].mxu0
      %v455 = vpop.f32.mrb[0].mxu0
      %v456 = vadd.f32 %v213, %v455
      %v457 = vpop.f32.mrb[0].mxu0
      %458 = vmatprep.mubr.bf16.mxu0 0
      %459 = vmatmul.mubr.bf16.gmra.mrb[0].mxu0 %v332
      %v460 = vpop.f32.mrb[0].mxu0
      %v461 = vadd.f32 %v213, %v460
      %v462 = vpop.f32.mrb[0].mxu0
      %v463 = vpop.f32.mrb[0].mxu0
      %v464 = vadd.f32 %v213, %v463
      %v465 = vpop.f32.mrb[0].mxu0
      %466 = vmatprep.mubr.bf16.mxu0 0
      %467 = vmatmul.mubr.bf16.gmra.mrb[0].mxu0 %v335
      %v468 = vpop.f32.mrb[0].mxu0
      %v469 = vadd.f32 %v213, %v468
      %v470 = vpop.f32.mrb[0].mxu0
      %v471 = vpop.f32.mrb[0].mxu0
      %v472 = vadd.f32 %v213, %v471
      %v473 = vpop.f32.mrb[0].mxu0
      %474 = vmatprep.mubr.bf16.mxu0 0
      %475 = vmatmul.mubr.bf16.gmra.mrb[0].mxu0 %v338
      %v476 = vpop.f32.mrb[0].mxu0
      %v477 = vadd.f32 %v213, %v476
      %v478 = vpop.f32.mrb[0].mxu0
      %v479 = vpop.f32.mrb[0].mxu0
      %v480 = vadd.f32 %v213, %v479
      %v481 = vpop.f32.mrb[0].mxu0
      %482 = vmatprep.mubr.bf16.mxu0 0
      %483 = vmatmul.mubr.bf16.gmra.mrb[0].mxu0 %v341
      %v484 = vpop.f32.mrb[0].mxu0
      %v485 = vadd.f32 %v213, %v484
      %v486 = vpop.f32.mrb[0].mxu0
      %v487 = vpop.f32.mrb[0].mxu0
      %v488 = vadd.f32 %v213, %v487
      %v489 = vpop.f32.mrb[0].mxu0
      %490 = vmatprep.mubr.bf16.mxu0 0
      %491 = vmatmul.mubr.bf16.gmra.mrb[0].mxu0 %v344
      %v492 = vpop.f32.mrb[0].mxu0
      %v493 = vadd.f32 %v213, %v492
      %v494 = vpop.f32.mrb[0].mxu0
      %v495 = vpop.f32.mrb[0].mxu0
      %v496 = vadd.f32 %v213, %v495
      %v497 = vpop.f32.mrb[0].mxu0
      %498 = vmatprep.mubr.bf16.mxu0 0
      %499 = vmatmul.mubr.bf16.gmra.mrb[0].mxu0 %v347
      %v500 = vpop.f32.mrb[0].mxu0
      %v501 = vadd.f32 %v213, %v500
      %v502 = vpop.f32.mrb[0].mxu0
      %v503 = vpop.f32.mrb[0].mxu0
      %v504 = vadd.f32 %v213, %v503
      %v505 = vpop.f32.mrb[0].mxu0
      %506 = vmatprep.mubr.bf16.mxu0 0
      %507 = vmatmul.mubr.bf16.gmra.mrb[0].mxu0 %v350
      %v508 = vpop.f32.mrb[0].mxu0
      %v509 = vadd.f32 %v213, %v508
      %v510 = vpop.f32.mrb[0].mxu0
      %v511 = vpop.f32.mrb[0].mxu0
      %v512 = vadd.f32 %v213, %v511
      %v513 = vpop.f32.mrb[0].mxu0
      %514 = vmatprep.mubr.bf16.mxu0 0
      %515 = vmatmul.mubr.bf16.gmra.mrb[0].mxu0 %v353
      %v516 = vpop.f32.mrb[0].mxu0
      %v517 = vadd.f32 %v213, %v516
      %v518 = vpop.f32.mrb[0].mxu0
      %v519 = vpop.f32.mrb[0].mxu0
      %v520 = vadd.f32 %v213, %v519
      %v521 = vpop.f32.mrb[0].mxu0
      %522 = vdwg.mxu0
      %v523 = vmax.f32 %v397, 0.0
      %v524 = vmax.f32 %v400, 0.0
      %v525 = vmax.f32 %v405, 0.0
      %v526 = vmax.f32 %v408, 0.0
      %v527 = vmax.f32 %v413, 0.0
      %v528 = vmax.f32 %v416, 0.0
      %v529 = vmax.f32 %v421, 0.0
      %v530 = vmax.f32 %v424, 0.0
      %v531 = vmax.f32 %v429, 0.0
      %v532 = vmax.f32 %v432, 0.0
      %v533 = vmax.f32 %v437, 0.0
      %v534 = vmax.f32 %v440, 0.0
      %v535 = vmax.f32 %v445, 0.0
      %v536 = vmax.f32 %v448, 0.0
      %v537 = vmax.f32 %v453, 0.0
      %v538 = vmax.f32 %v456, 0.0
      %v539 = vmax.f32 %v461, 0.0
      %v540 = vmax.f32 %v464, 0.0
      %v541 = vmax.f32 %v469, 0.0
      %v542 = vmax.f32 %v472, 0.0
      %v543 = vmax.f32 %v477, 0.0
      %v544 = vmax.f32 %v480, 0.0
      %v545 = vmax.f32 %v485, 0.0
      %v546 = vmax.f32 %v488, 0.0
      %v547 = vmax.f32 %v493, 0.0
      %v548 = vmax.f32 %v496, 0.0
      %v549 = vmax.f32 %v501, 0.0
      %v550 = vmax.f32 %v504, 0.0
      %v551 = vmax.f32 %v509, 0.0
      %v552 = vmax.f32 %v512, 0.0
      %v553 = vmax.f32 %v517, 0.0
      %v554 = vmax.f32 %v520, 0.0
      %v555 = vld [vmem:[%s165 + $0x80] sm:$0xf]
      %v556 = vld [vmem:[%s165 + $0x84] sm:$0xf]
      %v557 = vld [vmem:[%s165 + $0x88] sm:$0xf]
      %v558 = vld [vmem:[%s165 + $0x8c] sm:$0xf]
      %v559 = vld [vmem:[%s165 + $0x90] sm:$0xf]
      %v560 = vld [vmem:[%s165 + $0x94] sm:$0xf]
      %v561 = vld [vmem:[%s165 + $0x98] sm:$0xf]
      %v562 = vld [vmem:[%s165 + $0x9c] sm:$0xf]
      %v563 = vld [vmem:[%s165 + $0xa0] sm:$0xf]
      %v564 = vld [vmem:[%s165 + $0xa4] sm:$0xf]
      %v565 = vld [vmem:[%s165 + $0xa8] sm:$0xf]
      %v566 = vld [vmem:[%s165 + $0xac] sm:$0xf]
      %v567 = vld [vmem:[%s165 + $0xb0] sm:$0xf]
      %v568 = vld [vmem:[%s165 + $0xb4] sm:$0xf]
      %v569 = vld [vmem:[%s165 + $0xb8] sm:$0xf]
      %v570 = vld [vmem:[%s165 + $0xbc] sm:$0xf]
      %v571 = vld [vmem:[%s165 + $0xc0] sm:$0xf]
      %v572 = vld [vmem:[%s165 + $0xc4] sm:$0xf]
      %v573 = vld [vmem:[%s165 + $0xc8] sm:$0xf]
      %v574 = vld [vmem:[%s165 + $0xcc] sm:$0xf]
      %v575 = vld [vmem:[%s165 + $0xd0] sm:$0xf]
      %v576 = vld [vmem:[%s165 + $0xd4] sm:$0xf]
      %v577 = vld [vmem:[%s165 + $0xd8] sm:$0xf]
      %v578 = vld [vmem:[%s165 + $0xdc] sm:$0xf]
      %v579 = vld [vmem:[%s165 + $0xe0] sm:$0xf]
      %v580 = vld [vmem:[%s165 + $0xe4] sm:$0xf]
      %v581 = vld [vmem:[%s165 + $0xe8] sm:$0xf]
      %v582 = vld [vmem:[%s165 + $0xec] sm:$0xf]
      %v583 = vld [vmem:[%s165 + $0xf0] sm:$0xf]
      %v584 = vld [vmem:[%s165 + $0xf4] sm:$0xf]
      %v585 = vld [vmem:[%s165 + $0xf8] sm:$0xf]
      %v586 = vld [vmem:[%s165 + $0xfc] sm:$0xf]
      %v619 = vunpack.c.l.b16 %v555
      %v620 = vunpack.c.l.b16 %v556
      %v621 = vunpack.c.l.b16 %v557
      %v622 = vunpack.c.l.b16 %v558
      %v623 = vunpack.c.l.b16 %v559
      %v624 = vunpack.c.l.b16 %v560
      %v625 = vunpack.c.l.b16 %v561
      %v626 = vunpack.c.l.b16 %v562
      %v627 = vunpack.c.l.b16 %v563
      %v628 = vunpack.c.l.b16 %v564
      %v629 = vunpack.c.l.b16 %v565
      %v630 = vunpack.c.l.b16 %v566
      %v631 = vunpack.c.l.b16 %v567
      %v632 = vunpack.c.l.b16 %v568
      %v633 = vunpack.c.l.b16 %v569
      %v634 = vunpack.c.l.b16 %v570
      %v635 = vunpack.c.l.b16 %v571
      %v636 = vunpack.c.l.b16 %v572
      %v637 = vunpack.c.l.b16 %v573
      %v638 = vunpack.c.l.b16 %v574
      %v639 = vunpack.c.l.b16 %v575
      %v640 = vunpack.c.l.b16 %v576
      %v641 = vunpack.c.l.b16 %v577
      %v642 = vunpack.c.l.b16 %v578
      %v643 = vunpack.c.l.b16 %v579
      %v644 = vunpack.c.l.b16 %v580
      %v645 = vunpack.c.l.b16 %v581
      %v646 = vunpack.c.l.b16 %v582
      %v647 = vunpack.c.l.b16 %v583
      %v648 = vunpack.c.l.b16 %v584
      %v649 = vunpack.c.l.b16 %v585
      %v650 = vunpack.c.l.b16 %v586
      %v651 = vpack.c.b16 %v620, %v619
      %v652 = vpack.c.b16 %v622, %v621
      %v653 = vpack.c.b16 %v624, %v623
      %v654 = vpack.c.b16 %v626, %v625
      %v655 = vpack.c.b16 %v628, %v627
      %v656 = vpack.c.b16 %v630, %v629
      %v657 = vpack.c.b16 %v632, %v631
      %v658 = vpack.c.b16 %v634, %v633
      %v659 = vpack.c.b16 %v636, %v635
      %v660 = vpack.c.b16 %v638, %v637
      %v661 = vpack.c.b16 %v640, %v639
      %v662 = vpack.c.b16 %v642, %v641
      %v663 = vpack.c.b16 %v644, %v643
      %v664 = vpack.c.b16 %v646, %v645
      %v665 = vpack.c.b16 %v648, %v647
      %v666 = vpack.c.b16 %v650, %v649
      %v668 = vsel %vm306, %v651, 0
      %v671 = vsel %vm306, %v652, 0
      %v674 = vsel %vm306, %v653, 0
      %v677 = vsel %vm306, %v654, 0
      %v680 = vsel %vm306, %v655, 0
      %v683 = vsel %vm306, %v656, 0
      %v686 = vsel %vm306, %v657, 0
      %v689 = vsel %vm306, %v658, 0
      %v692 = vsel %vm306, %v659, 0
      %v695 = vsel %vm306, %v660, 0
      %v698 = vsel %vm306, %v661, 0
      %v701 = vsel %vm306, %v662, 0
      %v704 = vsel %vm306, %v663, 0
      %v707 = vsel %vm306, %v664, 0
      %v710 = vsel %vm306, %v665, 0
      %v713 = vsel %vm306, %v666, 0
      %715 = vmatprep.subr.bf16.mxu0 0
      %716 = vmatpush1.bf16.msra.mxu0 %v303
      %717 = vmatprep.subr.bf16.mxu0 0
      %718 = vmatpush1.bf16.msra.mxu0 %v360
      %719 = vmatprep.subr.bf16.mxu0 0
      %720 = vmatpush1.bf16.msra.mxu0 0
      %721 = vmatprep.subr.bf16.mxu0 0
      %722 = vmatpush1.bf16.msra.mxu0 0
      %723 = vmatprep.subr.bf16.mxu0 0
      %724 = vmatpush1.bf16.msra.mxu0 0
      %725 = vmatprep.subr.bf16.mxu0 0
      %726 = vmatpush1.bf16.msra.mxu0 0
      %727 = vmatprep.subr.bf16.mxu0 0
      %728 = vmatpush1.bf16.msra.mxu0 0
      %729 = vmatprep.subr.bf16.mxu0 0
      %730 = vmatpush1.bf16.msra.mxu0 0
      %731 = vmatprep.subr.bf16.mxu0 0
      %732 = vmatpush1.bf16.msra.mxu0 0
      %733 = vmatprep.subr.bf16.mxu0 0
      %734 = vmatpush1.bf16.msra.mxu0 0
      %735 = vmatprep.subr.bf16.mxu0 0
      %736 = vmatpush1.bf16.msra.mxu0 0
      %737 = vmatprep.subr.bf16.mxu0 0
      %738 = vmatpush1.bf16.msra.mxu0 0
      %739 = vmatprep.subr.bf16.mxu0 0
      %740 = vmatpush1.bf16.msra.mxu0 0
      %741 = vmatprep.subr.bf16.mxu0 0
      %742 = vmatpush1.bf16.msra.mxu0 0
      %743 = vmatprep.subr.bf16.mxu0 0
      %744 = vmatpush1.bf16.msra.mxu0 0
      %745 = vmatprep.subr.bf16.mxu0 0
      %746 = vmatpush1.bf16.msra.mxu0 0
      %747 = vmatprep.mubr.bf16.mxu0 0
      %748 = vmatmul.mubr.bf16.gmra.mrb[0].mxu0 %v668
      %v749 = vpop.f32.mrb[0].mxu0
      %v750 = vadd.f32 %v213, %v749
      %v751 = vpop.f32.mrb[0].mxu0
      %v752 = vpop.f32.mrb[0].mxu0
      %v753 = vadd.f32 %v213, %v752
      %v754 = vpop.f32.mrb[0].mxu0
      %755 = vmatprep.mubr.bf16.mxu0 0
      %756 = vmatmul.mubr.bf16.gmra.mrb[0].mxu0 %v671
      %v757 = vpop.f32.mrb[0].mxu0
      %v758 = vadd.f32 %v213, %v757
      %v759 = vpop.f32.mrb[0].mxu0
      %v760 = vpop.f32.mrb[0].mxu0
      %v761 = vadd.f32 %v213, %v760
      %v762 = vpop.f32.mrb[0].mxu0
      %763 = vmatprep.mubr.bf16.mxu0 0
      %764 = vmatmul.mubr.bf16.gmra.mrb[0].mxu0 %v674
      %v765 = vpop.f32.mrb[0].mxu0
      %v766 = vadd.f32 %v213, %v765
      %v767 = vpop.f32.mrb[0].mxu0
      %v768 = vpop.f32.mrb[0].mxu0
      %v769 = vadd.f32 %v213, %v768
      %v770 = vpop.f32.mrb[0].mxu0
      %771 = vmatprep.mubr.bf16.mxu0 0
      %772 = vmatmul.mubr.bf16.gmra.mrb[0].mxu0 %v677
      %v773 = vpop.f32.mrb[0].mxu0
      %v774 = vadd.f32 %v213, %v773
      %v775 = vpop.f32.mrb[0].mxu0
      %v776 = vpop.f32.mrb[0].mxu0
      %v777 = vadd.f32 %v213, %v776
      %v778 = vpop.f32.mrb[0].mxu0
      %779 = vmatprep.mubr.bf16.mxu0 0
      %780 = vmatmul.mubr.bf16.gmra.mrb[0].mxu0 %v680
      %v781 = vpop.f32.mrb[0].mxu0
      %v782 = vadd.f32 %v213, %v781
      %v783 = vpop.f32.mrb[0].mxu0
      %v784 = vpop.f32.mrb[0].mxu0
      %v785 = vadd.f32 %v213, %v784
      %v786 = vpop.f32.mrb[0].mxu0
      %787 = vmatprep.mubr.bf16.mxu0 0
      %788 = vmatmul.mubr.bf16.gmra.mrb[0].mxu0 %v683
      %v789 = vpop.f32.mrb[0].mxu0
      %v790 = vadd.f32 %v213, %v789
      %v791 = vpop.f32.mrb[0].mxu0
      %v792 = vpop.f32.mrb[0].mxu0
      %v793 = vadd.f32 %v213, %v792
      %v794 = vpop.f32.mrb[0].mxu0
      %795 = vmatprep.mubr.bf16.mxu0 0
      %796 = vmatmul.mubr.bf16.gmra.mrb[0].mxu0 %v686
      %v797 = vpop.f32.mrb[0].mxu0
      %v798 = vadd.f32 %v213, %v797
      %v799 = vpop.f32.mrb[0].mxu0
      %v800 = vpop.f32.mrb[0].mxu0
      %v801 = vadd.f32 %v213, %v800
      %v802 = vpop.f32.mrb[0].mxu0
      %803 = vmatprep.mubr.bf16.mxu0 0
      %804 = vmatmul.mubr.bf16.gmra.mrb[0].mxu0 %v689
      %v805 = vpop.f32.mrb[0].mxu0
      %v806 = vadd.f32 %v213, %v805
      %v807 = vpop.f32.mrb[0].mxu0
      %v808 = vpop.f32.mrb[0].mxu0
      %v809 = vadd.f32 %v213, %v808
      %v810 = vpop.f32.mrb[0].mxu0
      %811 = vmatprep.mubr.bf16.mxu0 0
      %812 = vmatmul.mubr.bf16.gmra.mrb[0].mxu0 %v692
      %v813 = vpop.f32.mrb[0].mxu0
      %v814 = vadd.f32 %v213, %v813
      %v815 = vpop.f32.mrb[0].mxu0
      %v816 = vpop.f32.mrb[0].mxu0
      %v817 = vadd.f32 %v213, %v816
      %v818 = vpop.f32.mrb[0].mxu0
      %819 = vmatprep.mubr.bf16.mxu0 0
      %820 = vmatmul.mubr.bf16.gmra.mrb[0].mxu0 %v695
      %v821 = vpop.f32.mrb[0].mxu0
      %v822 = vadd.f32 %v213, %v821
      %v823 = vpop.f32.mrb[0].mxu0
      %v824 = vpop.f32.mrb[0].mxu0
      %v825 = vadd.f32 %v213, %v824
      %v826 = vpop.f32.mrb[0].mxu0
      %827 = vmatprep.mubr.bf16.mxu0 0
      %828 = vmatmul.mubr.bf16.gmra.mrb[0].mxu0 %v698
      %v829 = vpop.f32.mrb[0].mxu0
      %v830 = vadd.f32 %v213, %v829
      %v831 = vpop.f32.mrb[0].mxu0
      %v832 = vpop.f32.mrb[0].mxu0
      %v833 = vadd.f32 %v213, %v832
      %v834 = vpop.f32.mrb[0].mxu0
      %835 = vmatprep.mubr.bf16.mxu0 0
      %836 = vmatmul.mubr.bf16.gmra.mrb[0].mxu0 %v701
      %v837 = vpop.f32.mrb[0].mxu0
      %v838 = vadd.f32 %v213, %v837
      %v839 = vpop.f32.mrb[0].mxu0
      %v840 = vpop.f32.mrb[0].mxu0
      %v841 = vadd.f32 %v213, %v840
      %v842 = vpop.f32.mrb[0].mxu0
      %843 = vmatprep.mubr.bf16.mxu0 0
      %844 = vmatmul.mubr.bf16.gmra.mrb[0].mxu0 %v704
      %v845 = vpop.f32.mrb[0].mxu0
      %v846 = vadd.f32 %v213, %v845
      %v847 = vpop.f32.mrb[0].mxu0
      %v848 = vpop.f32.mrb[0].mxu0
      %v849 = vadd.f32 %v213, %v848
      %v850 = vpop.f32.mrb[0].mxu0
      %851 = vmatprep.mubr.bf16.mxu0 0
      %852 = vmatmul.mubr.bf16.gmra.mrb[0].mxu0 %v707
      %v853 = vpop.f32.mrb[0].mxu0
      %v854 = vadd.f32 %v213, %v853
      %v855 = vpop.f32.mrb[0].mxu0
      %v856 = vpop.f32.mrb[0].mxu0
      %v857 = vadd.f32 %v213, %v856
      %v858 = vpop.f32.mrb[0].mxu0
      %859 = vmatprep.mubr.bf16.mxu0 0
      %860 = vmatmul.mubr.bf16.gmra.mrb[0].mxu0 %v710
      %v861 = vpop.f32.mrb[0].mxu0
      %v862 = vadd.f32 %v213, %v861
      %v863 = vpop.f32.mrb[0].mxu0
      %v864 = vpop.f32.mrb[0].mxu0
      %v865 = vadd.f32 %v213, %v864
      %v866 = vpop.f32.mrb[0].mxu0
      %867 = vmatprep.mubr.bf16.mxu0 0
      %868 = vmatmul.mubr.bf16.gmra.mrb[0].mxu0 %v713
      %v869 = vpop.f32.mrb[0].mxu0
      %v870 = vadd.f32 %v213, %v869
      %v871 = vpop.f32.mrb[0].mxu0
      %v872 = vpop.f32.mrb[0].mxu0
      %v873 = vadd.f32 %v213, %v872
      %v874 = vpop.f32.mrb[0].mxu0
      %875 = vdwg.mxu0
      %v876 = vmax.f32 %v750, 0.0
      %v877 = vmax.f32 %v753, 0.0
      %v878 = vmax.f32 %v758, 0.0
      %v879 = vmax.f32 %v761, 0.0
      %v880 = vmax.f32 %v766, 0.0
      %v881 = vmax.f32 %v769, 0.0
      %v882 = vmax.f32 %v774, 0.0
      %v883 = vmax.f32 %v777, 0.0
      %v884 = vmax.f32 %v782, 0.0
      %v885 = vmax.f32 %v785, 0.0
      %v886 = vmax.f32 %v790, 0.0
      %v887 = vmax.f32 %v793, 0.0
      %v888 = vmax.f32 %v798, 0.0
      %v889 = vmax.f32 %v801, 0.0
      %v890 = vmax.f32 %v806, 0.0
      %v891 = vmax.f32 %v809, 0.0
      %v892 = vmax.f32 %v814, 0.0
      %v893 = vmax.f32 %v817, 0.0
      %v894 = vmax.f32 %v822, 0.0
      %v895 = vmax.f32 %v825, 0.0
      %v896 = vmax.f32 %v830, 0.0
      %v897 = vmax.f32 %v833, 0.0
      %v898 = vmax.f32 %v838, 0.0
      %v899 = vmax.f32 %v841, 0.0
      %v900 = vmax.f32 %v846, 0.0
      %v901 = vmax.f32 %v849, 0.0
      %v902 = vmax.f32 %v854, 0.0
      %v903 = vmax.f32 %v857, 0.0
      %v904 = vmax.f32 %v862, 0.0
      %v905 = vmax.f32 %v865, 0.0
      %v906 = vmax.f32 %v870, 0.0
      %v907 = vmax.f32 %v873, 0.0
      %v908 = vmax.f32 %v523, %v876
      %v909 = vmax.f32 %v524, %v877
      %v910 = vmax.f32 %v525, %v878
      %v911 = vmax.f32 %v526, %v879
      %v912 = vmax.f32 %v527, %v880
      %v913 = vmax.f32 %v528, %v881
      %v914 = vmax.f32 %v529, %v882
      %v915 = vmax.f32 %v530, %v883
      %v916 = vmax.f32 %v531, %v884
      %v917 = vmax.f32 %v532, %v885
      %v918 = vmax.f32 %v533, %v886
      %v919 = vmax.f32 %v534, %v887
      %v920 = vmax.f32 %v535, %v888
      %v921 = vmax.f32 %v536, %v889
      %v922 = vmax.f32 %v537, %v890
      %v923 = vmax.f32 %v538, %v891
      %v924 = vmax.f32 %v539, %v892
      %v925 = vmax.f32 %v540, %v893
      %v926 = vmax.f32 %v541, %v894
      %v927 = vmax.f32 %v542, %v895
      %v928 = vmax.f32 %v543, %v896
      %v929 = vmax.f32 %v544, %v897
      %v930 = vmax.f32 %v545, %v898
      %v931 = vmax.f32 %v546, %v899
      %v932 = vmax.f32 %v547, %v900
      %v933 = vmax.f32 %v548, %v901
      %v934 = vmax.f32 %v549, %v902
      %v935 = vmax.f32 %v550, %v903
      %v936 = vmax.f32 %v551, %v904
      %v937 = vmax.f32 %v552, %v905
      %v938 = vmax.f32 %v553, %v906
      %v939 = vmax.f32 %v554, %v907
      %v940 = vld [vmem:[%s165 + $0x100] sm:$0xf]
      %v941 = vld [vmem:[%s165 + $0x104] sm:$0xf]
      %v942 = vld [vmem:[%s165 + $0x108] sm:$0xf]
      %v943 = vld [vmem:[%s165 + $0x10c] sm:$0xf]
      %v944 = vld [vmem:[%s165 + $0x110] sm:$0xf]
      %v945 = vld [vmem:[%s165 + $0x114] sm:$0xf]
      %v946 = vld [vmem:[%s165 + $0x118] sm:$0xf]
      %v947 = vld [vmem:[%s165 + $0x11c] sm:$0xf]
      %v948 = vld [vmem:[%s165 + $0x120] sm:$0xf]
      %v949 = vld [vmem:[%s165 + $0x124] sm:$0xf]
      %v950 = vld [vmem:[%s165 + $0x128] sm:$0xf]
      %v951 = vld [vmem:[%s165 + $0x12c] sm:$0xf]
      %v952 = vld [vmem:[%s165 + $0x130] sm:$0xf]
      %v953 = vld [vmem:[%s165 + $0x134] sm:$0xf]
      %v954 = vld [vmem:[%s165 + $0x138] sm:$0xf]
      %v955 = vld [vmem:[%s165 + $0x13c] sm:$0xf]
      %v956 = vld [vmem:[%s165 + $0x140] sm:$0xf]
      %v957 = vld [vmem:[%s165 + $0x144] sm:$0xf]
      %v958 = vld [vmem:[%s165 + $0x148] sm:$0xf]
      %v959 = vld [vmem:[%s165 + $0x14c] sm:$0xf]
      %v960 = vld [vmem:[%s165 + $0x150] sm:$0xf]
      %v961 = vld [vmem:[%s165 + $0x154] sm:$0xf]
      %v962 = vld [vmem:[%s165 + $0x158] sm:$0xf]
      %v963 = vld [vmem:[%s165 + $0x15c] sm:$0xf]
      %v964 = vld [vmem:[%s165 + $0x160] sm:$0xf]
      %v965 = vld [vmem:[%s165 + $0x164] sm:$0xf]
      %v966 = vld [vmem:[%s165 + $0x168] sm:$0xf]
      %v967 = vld [vmem:[%s165 + $0x16c] sm:$0xf]
      %v968 = vld [vmem:[%s165 + $0x170] sm:$0xf]
      %v969 = vld [vmem:[%s165 + $0x174] sm:$0xf]
      %v970 = vld [vmem:[%s165 + $0x178] sm:$0xf]
      %v971 = vld [vmem:[%s165 + $0x17c] sm:$0xf]
      %v1004 = vunpack.c.l.b16 %v940
      %v1005 = vunpack.c.l.b16 %v941
      %v1006 = vunpack.c.l.b16 %v942
      %v1007 = vunpack.c.l.b16 %v943
      %v1008 = vunpack.c.l.b16 %v944
      %v1009 = vunpack.c.l.b16 %v945
      %v1010 = vunpack.c.l.b16 %v946
      %v1011 = vunpack.c.l.b16 %v947
      %v1012 = vunpack.c.l.b16 %v948
      %v1013 = vunpack.c.l.b16 %v949
      %v1014 = vunpack.c.l.b16 %v950
      %v1015 = vunpack.c.l.b16 %v951
      %v1016 = vunpack.c.l.b16 %v952
      %v1017 = vunpack.c.l.b16 %v953
      %v1018 = vunpack.c.l.b16 %v954
      %v1019 = vunpack.c.l.b16 %v955
      %v1020 = vunpack.c.l.b16 %v956
      %v1021 = vunpack.c.l.b16 %v957
      %v1022 = vunpack.c.l.b16 %v958
      %v1023 = vunpack.c.l.b16 %v959
      %v1024 = vunpack.c.l.b16 %v960
      %v1025 = vunpack.c.l.b16 %v961
      %v1026 = vunpack.c.l.b16 %v962
      %v1027 = vunpack.c.l.b16 %v963
      %v1028 = vunpack.c.l.b16 %v964
      %v1029 = vunpack.c.l.b16 %v965
      %v1030 = vunpack.c.l.b16 %v966
      %v1031 = vunpack.c.l.b16 %v967
      %v1032 = vunpack.c.l.b16 %v968
      %v1033 = vunpack.c.l.b16 %v969
      %v1034 = vunpack.c.l.b16 %v970
      %v1035 = vunpack.c.l.b16 %v971
      %v1036 = vpack.c.b16 %v1005, %v1004
      %v1037 = vpack.c.b16 %v1007, %v1006
      %v1038 = vpack.c.b16 %v1009, %v1008
      %v1039 = vpack.c.b16 %v1011, %v1010
      %v1040 = vpack.c.b16 %v1013, %v1012
      %v1041 = vpack.c.b16 %v1015, %v1014
      %v1042 = vpack.c.b16 %v1017, %v1016
      %v1043 = vpack.c.b16 %v1019, %v1018
      %v1044 = vpack.c.b16 %v1021, %v1020
      %v1045 = vpack.c.b16 %v1023, %v1022
      %v1046 = vpack.c.b16 %v1025, %v1024
      %v1047 = vpack.c.b16 %v1027, %v1026
      %v1048 = vpack.c.b16 %v1029, %v1028
      %v1049 = vpack.c.b16 %v1031, %v1030
      %v1050 = vpack.c.b16 %v1033, %v1032
      %v1051 = vpack.c.b16 %v1035, %v1034
      %v1053 = vsel %vm306, %v1036, 0
      %v1056 = vsel %vm306, %v1037, 0
      %v1059 = vsel %vm306, %v1038, 0
      %v1062 = vsel %vm306, %v1039, 0
      %v1065 = vsel %vm306, %v1040, 0
      %v1068 = vsel %vm306, %v1041, 0
      %v1071 = vsel %vm306, %v1042, 0
      %v1074 = vsel %vm306, %v1043, 0
      %v1077 = vsel %vm306, %v1044, 0
      %v1080 = vsel %vm306, %v1045, 0
      %v1083 = vsel %vm306, %v1046, 0
      %v1086 = vsel %vm306, %v1047, 0
      %v1089 = vsel %vm306, %v1048, 0
      %v1092 = vsel %vm306, %v1049, 0
      %v1095 = vsel %vm306, %v1050, 0
      %v1098 = vsel %vm306, %v1051, 0
      %1100 = vmatprep.subr.bf16.mxu0 0
      %1101 = vmatpush1.bf16.msra.mxu0 %v303
      %1102 = vmatprep.subr.bf16.mxu0 0
      %1103 = vmatpush1.bf16.msra.mxu0 %v360
      %1104 = vmatprep.subr.bf16.mxu0 0
      %1105 = vmatpush1.bf16.msra.mxu0 0
      %1106 = vmatprep.subr.bf16.mxu0 0
      %1107 = vmatpush1.bf16.msra.mxu0 0
      %1108 = vmatprep.subr.bf16.mxu0 0
      %1109 = vmatpush1.bf16.msra.mxu0 0
      %1110 = vmatprep.subr.bf16.mxu0 0
      %1111 = vmatpush1.bf16.msra.mxu0 0
      %1112 = vmatprep.subr.bf16.mxu0 0
      %1113 = vmatpush1.bf16.msra.mxu0 0
      %1114 = vmatprep.subr.bf16.mxu0 0
      %1115 = vmatpush1.bf16.msra.mxu0 0
      %1116 = vmatprep.subr.bf16.mxu0 0
      %1117 = vmatpush1.bf16.msra.mxu0 0
      %1118 = vmatprep.subr.bf16.mxu0 0
      %1119 = vmatpush1.bf16.msra.mxu0 0
      %1120 = vmatprep.subr.bf16.mxu0 0
      %1121 = vmatpush1.bf16.msra.mxu0 0
      %1122 = vmatprep.subr.bf16.mxu0 0
      %1123 = vmatpush1.bf16.msra.mxu0 0
      %1124 = vmatprep.subr.bf16.mxu0 0
      %1125 = vmatpush1.bf16.msra.mxu0 0
      %1126 = vmatprep.subr.bf16.mxu0 0
      %1127 = vmatpush1.bf16.msra.mxu0 0
      %1128 = vmatprep.subr.bf16.mxu0 0
      %1129 = vmatpush1.bf16.msra.mxu0 0
      %1130 = vmatprep.subr.bf16.mxu0 0
      %1131 = vmatpush1.bf16.msra.mxu0 0
      %1132 = vmatprep.mubr.bf16.mxu0 0
      %1133 = vmatmul.mubr.bf16.gmra.mrb[0].mxu0 %v1053
      %v1134 = vpop.f32.mrb[0].mxu0
      %v1135 = vadd.f32 %v213, %v1134
      %v1136 = vpop.f32.mrb[0].mxu0
      %v1137 = vpop.f32.mrb[0].mxu0
      %v1138 = vadd.f32 %v213, %v1137
      %v1139 = vpop.f32.mrb[0].mxu0
      %1140 = vmatprep.mubr.bf16.mxu0 0
      %1141 = vmatmul.mubr.bf16.gmra.mrb[0].mxu0 %v1056
      %v1142 = vpop.f32.mrb[0].mxu0
      %v1143 = vadd.f32 %v213, %v1142
      %v1144 = vpop.f32.mrb[0].mxu0
      %v1145 = vpop.f32.mrb[0].mxu0
      %v1146 = vadd.f32 %v213, %v1145
      %v1147 = vpop.f32.mrb[0].mxu0
      %1148 = vmatprep.mubr.bf16.mxu0 0
      %1149 = vmatmul.mubr.bf16.gmra.mrb[0].mxu0 %v1059
      %v1150 = vpop.f32.mrb[0].mxu0
      %v1151 = vadd.f32 %v213, %v1150
      %v1152 = vpop.f32.mrb[0].mxu0
      %v1153 = vpop.f32.mrb[0].mxu0
      %v1154 = vadd.f32 %v213, %v1153
      %v1155 = vpop.f32.mrb[0].mxu0
      %1156 = vmatprep.mubr.bf16.mxu0 0
      %1157 = vmatmul.mubr.bf16.gmra.mrb[0].mxu0 %v1062
      %v1158 = vpop.f32.mrb[0].mxu0
      %v1159 = vadd.f32 %v213, %v1158
      %v1160 = vpop.f32.mrb[0].mxu0
      %v1161 = vpop.f32.mrb[0].mxu0
      %v1162 = vadd.f32 %v213, %v1161
      %v1163 = vpop.f32.mrb[0].mxu0
      %1164 = vmatprep.mubr.bf16.mxu0 0
      %1165 = vmatmul.mubr.bf16.gmra.mrb[0].mxu0 %v1065
      %v1166 = vpop.f32.mrb[0].mxu0
      %v1167 = vadd.f32 %v213, %v1166
      %v1168 = vpop.f32.mrb[0].mxu0
      %v1169 = vpop.f32.mrb[0].mxu0
      %v1170 = vadd.f32 %v213, %v1169
      %v1171 = vpop.f32.mrb[0].mxu0
      %1172 = vmatprep.mubr.bf16.mxu0 0
      %1173 = vmatmul.mubr.bf16.gmra.mrb[0].mxu0 %v1068
      %v1174 = vpop.f32.mrb[0].mxu0
      %v1175 = vadd.f32 %v213, %v1174
      %v1176 = vpop.f32.mrb[0].mxu0
      %v1177 = vpop.f32.mrb[0].mxu0
      %v1178 = vadd.f32 %v213, %v1177
      %v1179 = vpop.f32.mrb[0].mxu0
      %1180 = vmatprep.mubr.bf16.mxu0 0
      %1181 = vmatmul.mubr.bf16.gmra.mrb[0].mxu0 %v1071
      %v1182 = vpop.f32.mrb[0].mxu0
      %v1183 = vadd.f32 %v213, %v1182
      %v1184 = vpop.f32.mrb[0].mxu0
      %v1185 = vpop.f32.mrb[0].mxu0
      %v1186 = vadd.f32 %v213, %v1185
      %v1187 = vpop.f32.mrb[0].mxu0
      %1188 = vmatprep.mubr.bf16.mxu0 0
      %1189 = vmatmul.mubr.bf16.gmra.mrb[0].mxu0 %v1074
      %v1190 = vpop.f32.mrb[0].mxu0
      %v1191 = vadd.f32 %v213, %v1190
      %v1192 = vpop.f32.mrb[0].mxu0
      %v1193 = vpop.f32.mrb[0].mxu0
      %v1194 = vadd.f32 %v213, %v1193
      %v1195 = vpop.f32.mrb[0].mxu0
      %1196 = vmatprep.mubr.bf16.mxu0 0
      %1197 = vmatmul.mubr.bf16.gmra.mrb[0].mxu0 %v1077
      %v1198 = vpop.f32.mrb[0].mxu0
      %v1199 = vadd.f32 %v213, %v1198
      %v1200 = vpop.f32.mrb[0].mxu0
      %v1201 = vpop.f32.mrb[0].mxu0
      %v1202 = vadd.f32 %v213, %v1201
      %v1203 = vpop.f32.mrb[0].mxu0
      %1204 = vmatprep.mubr.bf16.mxu0 0
      %1205 = vmatmul.mubr.bf16.gmra.mrb[0].mxu0 %v1080
      %v1206 = vpop.f32.mrb[0].mxu0
      %v1207 = vadd.f32 %v213, %v1206
      %v1208 = vpop.f32.mrb[0].mxu0
      %v1209 = vpop.f32.mrb[0].mxu0
      %v1210 = vadd.f32 %v213, %v1209
      %v1211 = vpop.f32.mrb[0].mxu0
      %1212 = vmatprep.mubr.bf16.mxu0 0
      %1213 = vmatmul.mubr.bf16.gmra.mrb[0].mxu0 %v1083
      %v1214 = vpop.f32.mrb[0].mxu0
      %v1215 = vadd.f32 %v213, %v1214
      %v1216 = vpop.f32.mrb[0].mxu0
      %v1217 = vpop.f32.mrb[0].mxu0
      %v1218 = vadd.f32 %v213, %v1217
      %v1219 = vpop.f32.mrb[0].mxu0
      %1220 = vmatprep.mubr.bf16.mxu0 0
      %1221 = vmatmul.mubr.bf16.gmra.mrb[0].mxu0 %v1086
      %v1222 = vpop.f32.mrb[0].mxu0
      %v1223 = vadd.f32 %v213, %v1222
      %v1224 = vpop.f32.mrb[0].mxu0
      %v1225 = vpop.f32.mrb[0].mxu0
      %v1226 = vadd.f32 %v213, %v1225
      %v1227 = vpop.f32.mrb[0].mxu0
      %1228 = vmatprep.mubr.bf16.mxu0 0
      %1229 = vmatmul.mubr.bf16.gmra.mrb[0].mxu0 %v1089
      %v1230 = vpop.f32.mrb[0].mxu0
      %v1231 = vadd.f32 %v213, %v1230
      %v1232 = vpop.f32.mrb[0].mxu0
      %v1233 = vpop.f32.mrb[0].mxu0
      %v1234 = vadd.f32 %v213, %v1233
      %v1235 = vpop.f32.mrb[0].mxu0
      %1236 = vmatprep.mubr.bf16.mxu0 0
      %1237 = vmatmul.mubr.bf16.gmra.mrb[0].mxu0 %v1092
      %v1238 = vpop.f32.mrb[0].mxu0
      %v1239 = vadd.f32 %v213, %v1238
      %v1240 = vpop.f32.mrb[0].mxu0
      %v1241 = vpop.f32.mrb[0].mxu0
      %v1242 = vadd.f32 %v213, %v1241
      %v1243 = vpop.f32.mrb[0].mxu0
      %1244 = vmatprep.mubr.bf16.mxu0 0
      %1245 = vmatmul.mubr.bf16.gmra.mrb[0].mxu0 %v1095
      %v1246 = vpop.f32.mrb[0].mxu0
      %v1247 = vadd.f32 %v213, %v1246
      %v1248 = vpop.f32.mrb[0].mxu0
      %v1249 = vpop.f32.mrb[0].mxu0
      %v1250 = vadd.f32 %v213, %v1249
      %v1251 = vpop.f32.mrb[0].mxu0
      %1252 = vmatprep.mubr.bf16.mxu0 0
      %1253 = vmatmul.mubr.bf16.gmra.mrb[0].mxu0 %v1098
      %v1254 = vpop.f32.mrb[0].mxu0
      %v1255 = vadd.f32 %v213, %v1254
      %v1256 = vpop.f32.mrb[0].mxu0
      %v1257 = vpop.f32.mrb[0].mxu0
      %v1258 = vadd.f32 %v213, %v1257
      %v1259 = vpop.f32.mrb[0].mxu0
      %1260 = vdwg.mxu0
      %v1261 = vmax.f32 %v1135, 0.0
      %v1262 = vmax.f32 %v1138, 0.0
      %v1263 = vmax.f32 %v1143, 0.0
      %v1264 = vmax.f32 %v1146, 0.0
      %v1265 = vmax.f32 %v1151, 0.0
      %v1266 = vmax.f32 %v1154, 0.0
      %v1267 = vmax.f32 %v1159, 0.0
      %v1268 = vmax.f32 %v1162, 0.0
      %v1269 = vmax.f32 %v1167, 0.0
      %v1270 = vmax.f32 %v1170, 0.0
      %v1271 = vmax.f32 %v1175, 0.0
      %v1272 = vmax.f32 %v1178, 0.0
      %v1273 = vmax.f32 %v1183, 0.0
      %v1274 = vmax.f32 %v1186, 0.0
      %v1275 = vmax.f32 %v1191, 0.0
      %v1276 = vmax.f32 %v1194, 0.0
      %v1277 = vmax.f32 %v1199, 0.0
      %v1278 = vmax.f32 %v1202, 0.0
      %v1279 = vmax.f32 %v1207, 0.0
      %v1280 = vmax.f32 %v1210, 0.0
      %v1281 = vmax.f32 %v1215, 0.0
      %v1282 = vmax.f32 %v1218, 0.0
      %v1283 = vmax.f32 %v1223, 0.0
      %v1284 = vmax.f32 %v1226, 0.0
      %v1285 = vmax.f32 %v1231, 0.0
      %v1286 = vmax.f32 %v1234, 0.0
      %v1287 = vmax.f32 %v1239, 0.0
      %v1288 = vmax.f32 %v1242, 0.0
      %v1289 = vmax.f32 %v1247, 0.0
      %v1290 = vmax.f32 %v1250, 0.0
      %v1291 = vmax.f32 %v1255, 0.0
      %v1292 = vmax.f32 %v1258, 0.0
      %v1293 = vld [vmem:[%s165 + $0x180] sm:$0xf]
      %v1294 = vld [vmem:[%s165 + $0x184] sm:$0xf]
      %v1295 = vld [vmem:[%s165 + $0x188] sm:$0xf]
      %v1296 = vld [vmem:[%s165 + $0x18c] sm:$0xf]
      %v1297 = vld [vmem:[%s165 + $0x190] sm:$0xf]
      %v1298 = vld [vmem:[%s165 + $0x194] sm:$0xf]
      %v1299 = vld [vmem:[%s165 + $0x198] sm:$0xf]
      %v1300 = vld [vmem:[%s165 + $0x19c] sm:$0xf]
      %v1301 = vld [vmem:[%s165 + $0x1a0] sm:$0xf]
      %v1302 = vld [vmem:[%s165 + $0x1a4] sm:$0xf]
      %v1303 = vld [vmem:[%s165 + $0x1a8] sm:$0xf]
      %v1304 = vld [vmem:[%s165 + $0x1ac] sm:$0xf]
      %v1305 = vld [vmem:[%s165 + $0x1b0] sm:$0xf]
      %v1306 = vld [vmem:[%s165 + $0x1b4] sm:$0xf]
      %v1307 = vld [vmem:[%s165 + $0x1b8] sm:$0xf]
      %v1308 = vld [vmem:[%s165 + $0x1bc] sm:$0xf]
      %v1309 = vld [vmem:[%s165 + $0x1c0] sm:$0xf]
      %v1310 = vld [vmem:[%s165 + $0x1c4] sm:$0xf]
      %v1311 = vld [vmem:[%s165 + $0x1c8] sm:$0xf]
      %v1312 = vld [vmem:[%s165 + $0x1cc] sm:$0xf]
      %v1313 = vld [vmem:[%s165 + $0x1d0] sm:$0xf]
      %v1314 = vld [vmem:[%s165 + $0x1d4] sm:$0xf]
      %v1315 = vld [vmem:[%s165 + $0x1d8] sm:$0xf]
      %v1316 = vld [vmem:[%s165 + $0x1dc] sm:$0xf]
      %v1317 = vld [vmem:[%s165 + $0x1e0] sm:$0xf]
      %v1318 = vld [vmem:[%s165 + $0x1e4] sm:$0xf]
      %v1319 = vld [vmem:[%s165 + $0x1e8] sm:$0xf]
      %v1320 = vld [vmem:[%s165 + $0x1ec] sm:$0xf]
      %v1321 = vld [vmem:[%s165 + $0x1f0] sm:$0xf]
      %v1322 = vld [vmem:[%s165 + $0x1f4] sm:$0xf]
      %v1323 = vld [vmem:[%s165 + $0x1f8] sm:$0xf]
      %v1324 = vld [vmem:[%s165 + $0x1fc] sm:$0xf]
      %v1357 = vunpack.c.l.b16 %v1293
      %v1358 = vunpack.c.l.b16 %v1294
      %v1359 = vunpack.c.l.b16 %v1295
      %v1360 = vunpack.c.l.b16 %v1296
      %v1361 = vunpack.c.l.b16 %v1297
      %v1362 = vunpack.c.l.b16 %v1298
      %v1363 = vunpack.c.l.b16 %v1299
      %v1364 = vunpack.c.l.b16 %v1300
      %v1365 = vunpack.c.l.b16 %v1301
      %v1366 = vunpack.c.l.b16 %v1302
      %v1367 = vunpack.c.l.b16 %v1303
      %v1368 = vunpack.c.l.b16 %v1304
      %v1369 = vunpack.c.l.b16 %v1305
      %v1370 = vunpack.c.l.b16 %v1306
      %v1371 = vunpack.c.l.b16 %v1307
      %v1372 = vunpack.c.l.b16 %v1308
      %v1373 = vunpack.c.l.b16 %v1309
      %v1374 = vunpack.c.l.b16 %v1310
      %v1375 = vunpack.c.l.b16 %v1311
      %v1376 = vunpack.c.l.b16 %v1312
      %v1377 = vunpack.c.l.b16 %v1313
      %v1378 = vunpack.c.l.b16 %v1314
      %v1379 = vunpack.c.l.b16 %v1315
      %v1380 = vunpack.c.l.b16 %v1316
      %v1381 = vunpack.c.l.b16 %v1317
      %v1382 = vunpack.c.l.b16 %v1318
      %v1383 = vunpack.c.l.b16 %v1319
      %v1384 = vunpack.c.l.b16 %v1320
      %v1385 = vunpack.c.l.b16 %v1321
      %v1386 = vunpack.c.l.b16 %v1322
      %v1387 = vunpack.c.l.b16 %v1323
      %v1388 = vunpack.c.l.b16 %v1324
      %v1389 = vpack.c.b16 %v1358, %v1357
      %v1390 = vpack.c.b16 %v1360, %v1359
      %v1391 = vpack.c.b16 %v1362, %v1361
      %v1392 = vpack.c.b16 %v1364, %v1363
      %v1393 = vpack.c.b16 %v1366, %v1365
      %v1394 = vpack.c.b16 %v1368, %v1367
      %v1395 = vpack.c.b16 %v1370, %v1369
      %v1396 = vpack.c.b16 %v1372, %v1371
      %v1397 = vpack.c.b16 %v1374, %v1373
      %v1398 = vpack.c.b16 %v1376, %v1375
      %v1399 = vpack.c.b16 %v1378, %v1377
      %v1400 = vpack.c.b16 %v1380, %v1379
      %v1401 = vpack.c.b16 %v1382, %v1381
      %v1402 = vpack.c.b16 %v1384, %v1383
      %v1403 = vpack.c.b16 %v1386, %v1385
      %v1404 = vpack.c.b16 %v1388, %v1387
      %v1406 = vsel %vm306, %v1389, 0
      %v1409 = vsel %vm306, %v1390, 0
      %v1412 = vsel %vm306, %v1391, 0
      %v1415 = vsel %vm306, %v1392, 0
      %v1418 = vsel %vm306, %v1393, 0
      %v1421 = vsel %vm306, %v1394, 0
      %v1424 = vsel %vm306, %v1395, 0
      %v1427 = vsel %vm306, %v1396, 0
      %v1430 = vsel %vm306, %v1397, 0
      %v1433 = vsel %vm306, %v1398, 0
      %v1436 = vsel %vm306, %v1399, 0
      %v1439 = vsel %vm306, %v1400, 0
      %v1442 = vsel %vm306, %v1401, 0
      %v1445 = vsel %vm306, %v1402, 0
      %v1448 = vsel %vm306, %v1403, 0
      %v1451 = vsel %vm306, %v1404, 0
      %1453 = vmatprep.subr.bf16.mxu0 0
      %1454 = vmatpush1.bf16.msra.mxu0 %v303
      %1455 = vmatprep.subr.bf16.mxu0 0
      %1456 = vmatpush1.bf16.msra.mxu0 %v360
      %1457 = vmatprep.subr.bf16.mxu0 0
      %1458 = vmatpush1.bf16.msra.mxu0 0
      %1459 = vmatprep.subr.bf16.mxu0 0
      %1460 = vmatpush1.bf16.msra.mxu0 0
      %1461 = vmatprep.subr.bf16.mxu0 0
      %1462 = vmatpush1.bf16.msra.mxu0 0
      %1463 = vmatprep.subr.bf16.mxu0 0
      %1464 = vmatpush1.bf16.msra.mxu0 0
      %1465 = vmatprep.subr.bf16.mxu0 0
      %1466 = vmatpush1.bf16.msra.mxu0 0
      %1467 = vmatprep.subr.bf16.mxu0 0
      %1468 = vmatpush1.bf16.msra.mxu0 0
      %1469 = vmatprep.subr.bf16.mxu0 0
      %1470 = vmatpush1.bf16.msra.mxu0 0
      %1471 = vmatprep.subr.bf16.mxu0 0
      %1472 = vmatpush1.bf16.msra.mxu0 0
      %1473 = vmatprep.subr.bf16.mxu0 0
      %1474 = vmatpush1.bf16.msra.mxu0 0
      %1475 = vmatprep.subr.bf16.mxu0 0
      %1476 = vmatpush1.bf16.msra.mxu0 0
      %1477 = vmatprep.subr.bf16.mxu0 0
      %1478 = vmatpush1.bf16.msra.mxu0 0
      %1479 = vmatprep.subr.bf16.mxu0 0
      %1480 = vmatpush1.bf16.msra.mxu0 0
      %1481 = vmatprep.subr.bf16.mxu0 0
      %1482 = vmatpush1.bf16.msra.mxu0 0
      %1483 = vmatprep.subr.bf16.mxu0 0
      %1484 = vmatpush1.bf16.msra.mxu0 0
      %1485 = vmatprep.mubr.bf16.mxu0 0
      %1486 = vmatmul.mubr.bf16.gmra.mrb[0].mxu0 %v1406
      %v1487 = vpop.f32.mrb[0].mxu0
      %v1488 = vadd.f32 %v213, %v1487
      %v1489 = vpop.f32.mrb[0].mxu0
      %v1490 = vpop.f32.mrb[0].mxu0
      %v1491 = vadd.f32 %v213, %v1490
      %v1492 = vpop.f32.mrb[0].mxu0
      %1493 = vmatprep.mubr.bf16.mxu0 0
      %1494 = vmatmul.mubr.bf16.gmra.mrb[0].mxu0 %v1409
      %v1495 = vpop.f32.mrb[0].mxu0
      %v1496 = vadd.f32 %v213, %v1495
      %v1497 = vpop.f32.mrb[0].mxu0
      %v1498 = vpop.f32.mrb[0].mxu0
      %v1499 = vadd.f32 %v213, %v1498
      %v1500 = vpop.f32.mrb[0].mxu0
      %1501 = vmatprep.mubr.bf16.mxu0 0
      %1502 = vmatmul.mubr.bf16.gmra.mrb[0].mxu0 %v1412
      %v1503 = vpop.f32.mrb[0].mxu0
      %v1504 = vadd.f32 %v213, %v1503
      %v1505 = vpop.f32.mrb[0].mxu0
      %v1506 = vpop.f32.mrb[0].mxu0
      %v1507 = vadd.f32 %v213, %v1506
      %v1508 = vpop.f32.mrb[0].mxu0
      %1509 = vmatprep.mubr.bf16.mxu0 0
      %1510 = vmatmul.mubr.bf16.gmra.mrb[0].mxu0 %v1415
      %v1511 = vpop.f32.mrb[0].mxu0
      %v1512 = vadd.f32 %v213, %v1511
      %v1513 = vpop.f32.mrb[0].mxu0
      %v1514 = vpop.f32.mrb[0].mxu0
      %v1515 = vadd.f32 %v213, %v1514
      %v1516 = vpop.f32.mrb[0].mxu0
      %1517 = vmatprep.mubr.bf16.mxu0 0
      %1518 = vmatmul.mubr.bf16.gmra.mrb[0].mxu0 %v1418
      %v1519 = vpop.f32.mrb[0].mxu0
      %v1520 = vadd.f32 %v213, %v1519
      %v1521 = vpop.f32.mrb[0].mxu0
      %v1522 = vpop.f32.mrb[0].mxu0
      %v1523 = vadd.f32 %v213, %v1522
      %v1524 = vpop.f32.mrb[0].mxu0
      %1525 = vmatprep.mubr.bf16.mxu0 0
      %1526 = vmatmul.mubr.bf16.gmra.mrb[0].mxu0 %v1421
      %v1527 = vpop.f32.mrb[0].mxu0
      %v1528 = vadd.f32 %v213, %v1527
      %v1529 = vpop.f32.mrb[0].mxu0
      %v1530 = vpop.f32.mrb[0].mxu0
      %v1531 = vadd.f32 %v213, %v1530
      %v1532 = vpop.f32.mrb[0].mxu0
      %1533 = vmatprep.mubr.bf16.mxu0 0
      %1534 = vmatmul.mubr.bf16.gmra.mrb[0].mxu0 %v1424
      %v1535 = vpop.f32.mrb[0].mxu0
      %v1536 = vadd.f32 %v213, %v1535
      %v1537 = vpop.f32.mrb[0].mxu0
      %v1538 = vpop.f32.mrb[0].mxu0
      %v1539 = vadd.f32 %v213, %v1538
      %v1540 = vpop.f32.mrb[0].mxu0
      %1541 = vmatprep.mubr.bf16.mxu0 0
      %1542 = vmatmul.mubr.bf16.gmra.mrb[0].mxu0 %v1427
      %v1543 = vpop.f32.mrb[0].mxu0
      %v1544 = vadd.f32 %v213, %v1543
      %v1545 = vpop.f32.mrb[0].mxu0
      %v1546 = vpop.f32.mrb[0].mxu0
      %v1547 = vadd.f32 %v213, %v1546
      %v1548 = vpop.f32.mrb[0].mxu0
      %1549 = vmatprep.mubr.bf16.mxu0 0
      %1550 = vmatmul.mubr.bf16.gmra.mrb[0].mxu0 %v1430
      %v1551 = vpop.f32.mrb[0].mxu0
      %v1552 = vadd.f32 %v213, %v1551
      %v1553 = vpop.f32.mrb[0].mxu0
      %v1554 = vpop.f32.mrb[0].mxu0
      %v1555 = vadd.f32 %v213, %v1554
      %v1556 = vpop.f32.mrb[0].mxu0
      %1557 = vmatprep.mubr.bf16.mxu0 0
      %1558 = vmatmul.mubr.bf16.gmra.mrb[0].mxu0 %v1433
      %v1559 = vpop.f32.mrb[0].mxu0
      %v1560 = vadd.f32 %v213, %v1559
      %v1561 = vpop.f32.mrb[0].mxu0
      %v1562 = vpop.f32.mrb[0].mxu0
      %v1563 = vadd.f32 %v213, %v1562
      %v1564 = vpop.f32.mrb[0].mxu0
      %1565 = vmatprep.mubr.bf16.mxu0 0
      %1566 = vmatmul.mubr.bf16.gmra.mrb[0].mxu0 %v1436
      %v1567 = vpop.f32.mrb[0].mxu0
      %v1568 = vadd.f32 %v213, %v1567
      %v1569 = vpop.f32.mrb[0].mxu0
      %v1570 = vpop.f32.mrb[0].mxu0
      %v1571 = vadd.f32 %v213, %v1570
      %v1572 = vpop.f32.mrb[0].mxu0
      %1573 = vmatprep.mubr.bf16.mxu0 0
      %1574 = vmatmul.mubr.bf16.gmra.mrb[0].mxu0 %v1439
      %v1575 = vpop.f32.mrb[0].mxu0
      %v1576 = vadd.f32 %v213, %v1575
      %v1577 = vpop.f32.mrb[0].mxu0
      %v1578 = vpop.f32.mrb[0].mxu0
      %v1579 = vadd.f32 %v213, %v1578
      %v1580 = vpop.f32.mrb[0].mxu0
      %1581 = vmatprep.mubr.bf16.mxu0 0
      %1582 = vmatmul.mubr.bf16.gmra.mrb[0].mxu0 %v1442
      %v1583 = vpop.f32.mrb[0].mxu0
      %v1584 = vadd.f32 %v213, %v1583
      %v1585 = vpop.f32.mrb[0].mxu0
      %v1586 = vpop.f32.mrb[0].mxu0
      %v1587 = vadd.f32 %v213, %v1586
      %v1588 = vpop.f32.mrb[0].mxu0
      %1589 = vmatprep.mubr.bf16.mxu0 0
      %1590 = vmatmul.mubr.bf16.gmra.mrb[0].mxu0 %v1445
      %v1591 = vpop.f32.mrb[0].mxu0
      %v1592 = vadd.f32 %v213, %v1591
      %v1593 = vpop.f32.mrb[0].mxu0
      %v1594 = vpop.f32.mrb[0].mxu0
      %v1595 = vadd.f32 %v213, %v1594
      %v1596 = vpop.f32.mrb[0].mxu0
      %1597 = vmatprep.mubr.bf16.mxu0 0
      %1598 = vmatmul.mubr.bf16.gmra.mrb[0].mxu0 %v1448
      %v1599 = vpop.f32.mrb[0].mxu0
      %v1600 = vadd.f32 %v213, %v1599
      %v1601 = vpop.f32.mrb[0].mxu0
      %v1602 = vpop.f32.mrb[0].mxu0
      %v1603 = vadd.f32 %v213, %v1602
      %v1604 = vpop.f32.mrb[0].mxu0
      %1605 = vmatprep.mubr.bf16.mxu0 0
      %1606 = vmatmul.mubr.bf16.gmra.mrb[0].mxu0 %v1451
      %v1607 = vpop.f32.mrb[0].mxu0
      %v1608 = vadd.f32 %v213, %v1607
      %v1609 = vpop.f32.mrb[0].mxu0
      %v1610 = vpop.f32.mrb[0].mxu0
      %v1611 = vadd.f32 %v213, %v1610
      %v1612 = vpop.f32.mrb[0].mxu0
      %1613 = vdwg.mxu0
      %v1614 = vmax.f32 %v1488, 0.0
      %v1615 = vmax.f32 %v1491, 0.0
      %v1616 = vmax.f32 %v1496, 0.0
      %v1617 = vmax.f32 %v1499, 0.0
      %v1618 = vmax.f32 %v1504, 0.0
      %v1619 = vmax.f32 %v1507, 0.0
      %v1620 = vmax.f32 %v1512, 0.0
      %v1621 = vmax.f32 %v1515, 0.0
      %v1622 = vmax.f32 %v1520, 0.0
      %v1623 = vmax.f32 %v1523, 0.0
      %v1624 = vmax.f32 %v1528, 0.0
      %v1625 = vmax.f32 %v1531, 0.0
      %v1626 = vmax.f32 %v1536, 0.0
      %v1627 = vmax.f32 %v1539, 0.0
      %v1628 = vmax.f32 %v1544, 0.0
      %v1629 = vmax.f32 %v1547, 0.0
      %v1630 = vmax.f32 %v1552, 0.0
      %v1631 = vmax.f32 %v1555, 0.0
      %v1632 = vmax.f32 %v1560, 0.0
      %v1633 = vmax.f32 %v1563, 0.0
      %v1634 = vmax.f32 %v1568, 0.0
      %v1635 = vmax.f32 %v1571, 0.0
      %v1636 = vmax.f32 %v1576, 0.0
      %v1637 = vmax.f32 %v1579, 0.0
      %v1638 = vmax.f32 %v1584, 0.0
      %v1639 = vmax.f32 %v1587, 0.0
      %v1640 = vmax.f32 %v1592, 0.0
      %v1641 = vmax.f32 %v1595, 0.0
      %v1642 = vmax.f32 %v1600, 0.0
      %v1643 = vmax.f32 %v1603, 0.0
      %v1644 = vmax.f32 %v1608, 0.0
      %v1645 = vmax.f32 %v1611, 0.0
      %v1646 = vmax.f32 %v1261, %v1614
      %v1647 = vmax.f32 %v1262, %v1615
      %v1648 = vmax.f32 %v1263, %v1616
      %v1649 = vmax.f32 %v1264, %v1617
      %v1650 = vmax.f32 %v1265, %v1618
      %v1651 = vmax.f32 %v1266, %v1619
      %v1652 = vmax.f32 %v1267, %v1620
      %v1653 = vmax.f32 %v1268, %v1621
      %v1654 = vmax.f32 %v1269, %v1622
      %v1655 = vmax.f32 %v1270, %v1623
      %v1656 = vmax.f32 %v1271, %v1624
      %v1657 = vmax.f32 %v1272, %v1625
      %v1658 = vmax.f32 %v1273, %v1626
      %v1659 = vmax.f32 %v1274, %v1627
      %v1660 = vmax.f32 %v1275, %v1628
      %v1661 = vmax.f32 %v1276, %v1629
      %v1662 = vmax.f32 %v1277, %v1630
      %v1663 = vmax.f32 %v1278, %v1631
      %v1664 = vmax.f32 %v1279, %v1632
      %v1665 = vmax.f32 %v1280, %v1633
      %v1666 = vmax.f32 %v1281, %v1634
      %v1667 = vmax.f32 %v1282, %v1635
      %v1668 = vmax.f32 %v1283, %v1636
      %v1669 = vmax.f32 %v1284, %v1637
      %v1670 = vmax.f32 %v1285, %v1638
      %v1671 = vmax.f32 %v1286, %v1639
      %v1672 = vmax.f32 %v1287, %v1640
      %v1673 = vmax.f32 %v1288, %v1641
      %v1674 = vmax.f32 %v1289, %v1642
      %v1675 = vmax.f32 %v1290, %v1643
      %v1676 = vmax.f32 %v1291, %v1644
      %v1677 = vmax.f32 %v1292, %v1645
      %v1678 = vmax.f32 %v908, %v1646
      %v1679 = vmax.f32 %v909, %v1647
      %v1680 = vmax.f32 %v910, %v1648
      %v1681 = vmax.f32 %v911, %v1649
      %v1682 = vmax.f32 %v912, %v1650
      %v1683 = vmax.f32 %v913, %v1651
      %v1684 = vmax.f32 %v914, %v1652
      %v1685 = vmax.f32 %v915, %v1653
      %v1686 = vmax.f32 %v916, %v1654
      %v1687 = vmax.f32 %v917, %v1655
      %v1688 = vmax.f32 %v918, %v1656
      %v1689 = vmax.f32 %v919, %v1657
      %v1690 = vmax.f32 %v920, %v1658
      %v1691 = vmax.f32 %v921, %v1659
      %v1692 = vmax.f32 %v922, %v1660
      %v1693 = vmax.f32 %v923, %v1661
      %v1694 = vmax.f32 %v924, %v1662
      %v1695 = vmax.f32 %v925, %v1663
      %v1696 = vmax.f32 %v926, %v1664
      %v1697 = vmax.f32 %v927, %v1665
      %v1698 = vmax.f32 %v928, %v1666
      %v1699 = vmax.f32 %v929, %v1667
      %v1700 = vmax.f32 %v930, %v1668
      %v1701 = vmax.f32 %v931, %v1669
      %v1702 = vmax.f32 %v932, %v1670
      %v1703 = vmax.f32 %v933, %v1671
      %v1704 = vmax.f32 %v934, %v1672
      %v1705 = vmax.f32 %v935, %v1673
      %v1706 = vmax.f32 %v936, %v1674
      %v1707 = vmax.f32 %v937, %v1675
      %v1708 = vmax.f32 %v938, %v1676
      %v1709 = vmax.f32 %v939, %v1677
      %1710 = vst [vmem:[%s170] sm:$0xff] %v1678
      %1711 = vst [vmem:[%s170 + $0x8] sm:$0xff] %v1679
      %1712 = vst [vmem:[%s170 + $0x10] sm:$0xff] %v1680
      %1713 = vst [vmem:[%s170 + $0x18] sm:$0xff] %v1681
      %1714 = vst [vmem:[%s170 + $0x20] sm:$0xff] %v1682
      %1715 = vst [vmem:[%s170 + $0x28] sm:$0xff] %v1683
      %1716 = vst [vmem:[%s170 + $0x30] sm:$0xff] %v1684
      %1717 = vst [vmem:[%s170 + $0x38] sm:$0xff] %v1685
      %1718 = vst [vmem:[%s170 + $0x40] sm:$0xff] %v1686
      %1719 = vst [vmem:[%s170 + $0x48] sm:$0xff] %v1687
      %1720 = vst [vmem:[%s170 + $0x50] sm:$0xff] %v1688
      %1721 = vst [vmem:[%s170 + $0x58] sm:$0xff] %v1689
      %1722 = vst [vmem:[%s170 + $0x60] sm:$0xff] %v1690
      %1723 = vst [vmem:[%s170 + $0x68] sm:$0xff] %v1691
      %1724 = vst [vmem:[%s170 + $0x70] sm:$0xff] %v1692
      %1725 = vst [vmem:[%s170 + $0x78] sm:$0xff] %v1693
      %1726 = vst [vmem:[%s170 + $0x80] sm:$0xff] %v1694
      %1727 = vst [vmem:[%s170 + $0x88] sm:$0xff] %v1695
      %1728 = vst [vmem:[%s170 + $0x90] sm:$0xff] %v1696
      %1729 = vst [vmem:[%s170 + $0x98] sm:$0xff] %v1697
      %1730 = vst [vmem:[%s170 + $0xa0] sm:$0xff] %v1698
      %1731 = vst [vmem:[%s170 + $0xa8] sm:$0xff] %v1699
      %1732 = vst [vmem:[%s170 + $0xb0] sm:$0xff] %v1700
      %1733 = vst [vmem:[%s170 + $0xb8] sm:$0xff] %v1701
      %1734 = vst [vmem:[%s170 + $0xc0] sm:$0xff] %v1702
      %1735 = vst [vmem:[%s170 + $0xc8] sm:$0xff] %v1703
      %1736 = vst [vmem:[%s170 + $0xd0] sm:$0xff] %v1704
      %1737 = vst [vmem:[%s170 + $0xd8] sm:$0xff] %v1705
      %1738 = vst [vmem:[%s170 + $0xe0] sm:$0xff] %v1706
      %1739 = vst [vmem:[%s170 + $0xe8] sm:$0xff] %v1707
      %1740 = vst [vmem:[%s170 + $0xf0] sm:$0xff] %v1708
      %1741 = vst [vmem:[%s170 + $0xf8] sm:$0xff] %v1709
      %p1742 = scmp.lt.s32.totalorder %s14, 1
      %s1743 = scalar_select %p1742, %s14, 1
      %s1744 = smul.addr %s1743, 32
      %s1745 = smul.addr %s1744, 8
      %s1746 = scalar_lea.vmem %s3, %s1745
      // Predicated region
      $region33: #{encoder_forward.5} parent=31 // pred_check
        %p1747 = pneg %p100
      $region34: #{encoder_forward.5} parent=31 // pred_check_branch
        %1749 = sbr.rel (%p1747) target = $region36
      $region35: #{encoder_forward.5} parent=31 // pred_region
        _
      $region36: #{encoder_forward.5} parent=31 // pred_fallthru
        _
    $region32: #{encoder_forward.5} parent=5 // pred_fallthru
      _
    %p1750 = scmp.le.s32.totalorder 2, %s9
    // Predicated region
    $region37: #{encoder_forward.5} parent=5 // pred_check
      %p1751 = pneg %p1750
    $region38: #{encoder_forward.5} parent=5 // pred_check_branch
      %1753 = sbr.rel (%p1751) target = $region40
    $region39: #{encoder_forward.5} parent=5 // pred_region
      %s1754 = ssub.s32 %s9, 2
      // Predicated region
      $region41: #{encoder_forward.5} parent=39 // pred_check
        %p1755 = pneg %p106
      $region42: #{encoder_forward.5} parent=39 // pred_check_branch
        %1757 = sbr.rel (%p1755) target = $region44
      $region43: #{encoder_forward.5} parent=39 // pred_region
        %p1758 = scmp.lt.s32.totalorder %s15, 1
        %s1759 = scalar_select %p1758, %s15, 1
        %s1760 = smul.addr %s1759, 32
        %s1761 = smul.addr %s1760, 8
        %s1762 = scalar_lea.vmem %s3, %s1761
      $region44: #{encoder_forward.5} parent=39 // pred_fallthru
        _
    $region40: #{encoder_forward.5} parent=5 // pred_fallthru
      _
  $region6: #{encoder_forward.5} parent=0 // loop_footer
    %s13 = sadd.s32 1, %s9
  $region7: #{encoder_forward.5} parent=0 // loop_footer_branch
    %8 = sbr.rel target = $region3
  $region8: #{encoder_forward.5} parent=0 // loop_exit
    _

// kernel: encoder_forward.6
$region0: #{encoder_forward.6}
  #allocation0 [shape = 'u32[]', space=smem, size = 0x4, offset = 0x4, fixed_abs, tag = 'smem constant byte address 0x4 - core index']
  #allocation1 [shape = 'u32[144,128]{1,0:T(1,128)}', space=vmem, size = 0x12000, scoped, tag = 'internal scratch']
  %s0 = inlined_call_operand.vmem [shape: bf16[2,256,1152], index: 0, kind: input, shape index: {}]
  %s1 = inlined_call_operand.vmem [shape: bf16[1152,128], index: 1, kind: input, shape index: {}]
  %s2 = inlined_call_operand.vmem [shape: f32[1,128], index: 2, kind: input, shape index: {}]
  %s3 = inlined_call_operand.vmem [shape: f32[2,64,128], index: 3, kind: output, shape index: {}]
  %s4 = sld [smem:[#allocation0]]
  $region45: #{encoder_forward.6} parent=0
    _
  %s6 = ssub.s32 1, %s4
  %s7 = scalar_select 0, %s6, %s4
  loop: start=0, step=1, limit=4
  $region2: #{encoder_forward.6} parent=0 // loop_pre_header
    _
  $region3: #{encoder_forward.6} parent=0 // loop_header
    %s9 = sphi 0, %s13
    %p10 = scmp.ge.s32.totalorder %s9, 4
    %s19 = sphi 0, %s21
    %s22 = sphi 0, %s19
    %s23 = sphi 0, %s22
    %s39 = sphi 0, %s23
    %s43 = sphi 0, %s43
    %s45 = sphi 0, %s43
    %s46 = sphi 0, %s45
    %s60 = sphi 0, %s46
    %s64 = sphi 0, %s64
    %s66 = sphi 0, %s64
    %s67 = sphi 0, %s66
    %s81 = sphi 0, %s67
    %s87 = sphi 0, %s89
    %s90 = sphi 0, %s87
    %s91 = sphi 0, %s90
    %s107 = sphi 0, %s91
  $region4: #{encoder_forward.6} parent=0 // loop_header_branch
    %12 = sbr.rel (%p10) target = $region8
  $region5: #{encoder_forward.6} parent=0 // loop_body
    %s14 = ssub.s32 %s9, 1
    %s15 = ssub.s32 %s9, 2
    %s16 = sadd.s32 %s9, 1
    %s17 = ssub.s32 %s9, %s16
    %p18 = scmp.eq.s32.totalorder %s17, 0
    %s20 = sadd.s32 %s19, 1
    %s21 = scalar_select %p18, %s19, %s20
    %p24 = pneg %p18
    %p25 = scmp.eq.s32.totalorder %s9, 1
    %p26 = por %p24, %p25
    %p27 = scmp.ne.s32.totalorder %s19, %s22
    %p28 = scmp.eq.s32.totalorder %s9, 0
    %p29 = por %p27, %p28
    %p30 = scmp.ne.s32.totalorder %s19, %s22
    %p31 = scmp.eq.s32.totalorder %s14, 1
    %p32 = por %p30, %p31
    %p33 = scmp.ne.s32.totalorder %s22, %s23
    %p34 = scmp.eq.s32.totalorder %s14, 0
    %p35 = por %p33, %p34
    %p36 = scmp.ne.s32.totalorder %s22, %s23
    %p37 = scmp.eq.s32.totalorder %s15, 1
    %p38 = por %p36, %p37
    %p40 = scmp.ne.s32.totalorder %s23, %s39
    %p41 = scmp.eq.s32.totalorder %s15, 0
    %p42 = por %p40, %p41
    %s44 = sadd.s32 %s43, 1
    %p47 = scmp.eq.s32.totalorder %s9, 1
    %p48 = scmp.ne.s32.totalorder %s43, %s45
    %p49 = scmp.eq.s32.totalorder %s9, 0
    %p50 = por %p48, %p49
    %p51 = scmp.ne.s32.totalorder %s43, %s45
    %p52 = scmp.eq.s32.totalorder %s14, 1
    %p53 = por %p51, %p52
    %p54 = scmp.ne.s32.totalorder %s45, %s46
    %p55 = scmp.eq.s32.totalorder %s14, 0
    %p56 = por %p54, %p55
    %p57 = scmp.ne.s32.totalorder %s45, %s46
    %p58 = scmp.eq.s32.totalorder %s15, 1
    %p59 = por %p57, %p58
    %p61 = scmp.ne.s32.totalorder %s46, %s60
    %p62 = scmp.eq.s32.totalorder %s15, 0
    %p63 = por %p61, %p62
    %s65 = sadd.s32 %s64, 1
    %p68 = scmp.eq.s32.totalorder %s9, 1
    %p69 = scmp.ne.s32.totalorder %s64, %s66
    %p70 = scmp.eq.s32.totalorder %s9, 0
    %p71 = por %p69, %p70
    %p72 = scmp.ne.s32.totalorder %s64, %s66
    %p73 = scmp.eq.s32.totalorder %s14, 1
    %p74 = por %p72, %p73
    %p75 = scmp.ne.s32.totalorder %s66, %s67
    %p76 = scmp.eq.s32.totalorder %s14, 0
    %p77 = por %p75, %p76
    %p78 = scmp.ne.s32.totalorder %s66, %s67
    %p79 = scmp.eq.s32.totalorder %s15, 1
    %p80 = por %p78, %p79
    %p82 = scmp.ne.s32.totalorder %s67, %s81
    %p83 = scmp.eq.s32.totalorder %s15, 0
    %p84 = por %p82, %p83
    %s85 = ssub.s32 %s9, %s16
    %p86 = scmp.eq.s32.totalorder %s85, 0
    %s88 = sadd.s32 %s87, 1
    %s89 = scalar_select %p86, %s87, %s88
    %p92 = pneg %p86
    %p93 = scmp.eq.s32.totalorder %s9, 1
    %p94 = por %p92, %p93
    %p95 = scmp.ne.s32.totalorder %s87, %s90
    %p96 = scmp.eq.s32.totalorder %s9, 0
    %p97 = por %p95, %p96
    %p98 = scmp.ne.s32.totalorder %s87, %s90
    %p99 = scmp.eq.s32.totalorder %s14, 1
    %p100 = por %p98, %p99
    %p101 = scmp.ne.s32.totalorder %s90, %s91
    %p102 = scmp.eq.s32.totalorder %s14, 0
    %p103 = por %p101, %p102
    %p104 = scmp.ne.s32.totalorder %s90, %s91
    %p105 = scmp.eq.s32.totalorder %s15, 1
    %p106 = por %p104, %p105
    %p108 = scmp.ne.s32.totalorder %s91, %s107
    %p109 = scmp.eq.s32.totalorder %s15, 0
    %p110 = por %p108, %p109
    %p111 = scmp.le.s32.totalorder 1, %s9
    %p112 = scmp.lt.s32.totalorder %s9, 3
    %p113 = pnand %p111, %p112
    %p114 = pneg %p113
    // Predicated region
    $region9: #{encoder_forward.6} parent=5 // pred_check
      _
    $region10: #{encoder_forward.6} parent=5 // pred_check_branch
      %116 = sbr.rel (%p113) target = $region12
    $region11: #{encoder_forward.6} parent=5 // pred_region
      %s117 = ssub.s32 %s9, 1
      // Predicated region
      $region13: #{encoder_forward.6} parent=11 // pred_check
        %p118 = pneg %p56
      $region14: #{encoder_forward.6} parent=11 // pred_check_branch
        %120 = sbr.rel (%p118) target = $region16
      $region15: #{encoder_forward.6} parent=11 // pred_region
        _
      $region16: #{encoder_forward.6} parent=11 // pred_fallthru
        _
      // Predicated region
      $region17: #{encoder_forward.6} parent=11 // pred_check
        %p121 = pneg %p77
      $region18: #{encoder_forward.6} parent=11 // pred_check_branch
        %123 = sbr.rel (%p121) target = $region20
      $region19: #{encoder_forward.6} parent=11 // pred_region
        _
      $region20: #{encoder_forward.6} parent=11 // pred_fallthru
        _
    $region12: #{encoder_forward.6} parent=5 // pred_fallthru
      _
    %p124 = scmp.lt.s32.totalorder %s9, 2
    // Predicated region
    $region21: #{encoder_forward.6} parent=5 // pred_check
      %p125 = pneg %p124
    $region22: #{encoder_forward.6} parent=5 // pred_check_branch
      %127 = sbr.rel (%p125) target = $region24
    $region23: #{encoder_forward.6} parent=5 // pred_region
      // Predicated region
      $region25: #{encoder_forward.6} parent=23 // pred_check
        %p128 = pneg %p29
      $region26: #{encoder_forward.6} parent=23 // pred_check_branch
        %130 = sbr.rel (%p128) target = $region28
      $region27: #{encoder_forward.6} parent=23 // pred_region
        %p131 = scmp.lt.s32.totalorder %s9, 1
        %s132 = scalar_select %p131, %s9, 1
        %s133 = smul.addr %s132, 288
        %s134 = smul.addr %s133, 4
        %s135 = scalar_lea.vmem %s0, %s134
      $region28: #{encoder_forward.6} parent=23 // pred_fallthru
        _
    $region24: #{encoder_forward.6} parent=5 // pred_fallthru
      _
    %p136 = scmp.le.s32.totalorder 1, %s9
    %p137 = scmp.lt.s32.totalorder %s9, 3
    %p138 = pnand %p136, %p137
    %p139 = pneg %p138
    // Predicated region
    $region29: #{encoder_forward.6} parent=5 // pred_check
      _
    $region30: #{encoder_forward.6} parent=5 // pred_check_branch
      %141 = sbr.rel (%p138) target = $region32
    $region31: #{encoder_forward.6} parent=5 // pred_region
      %s142 = ssub.s32 %s9, 1
      %p143 = scmp.lt.s32.totalorder %s14, 1
      %s144 = scalar_select %p143, %s14, 1
      %s145 = smul.addr %s144, 288
      %s146 = smul.addr %s145, 4
      %s147 = scalar_lea.vmem %s0, %s146
      %p148 = pneg %p35
      %p149 = pneg %p32
      %p150 = pneg %p56
      %p151 = pneg %p53
      %p152 = pneg %p77
      %p153 = pneg %p74
      %p154 = pneg %p103
      %p155 = pneg %p100
      %p156 = scmp.lt.s32.totalorder %s14, 1
      %s157 = scalar_select %p156, %s14, 1
      %s158 = smul.addr %s157, 8
      %s159 = smul.addr %s158, 8
      %s160 = scalar_lea.vmem %s3, %s159
      %p161 = scmp.lt.s32.totalorder %s14, 1
      %s162 = scalar_select %p161, %s14, 1
      %s163 = smul.addr %s162, 288
      %s164 = smul.addr %s163, 4
      %s165 = scalar_lea.vmem %s0, %s164
      %p166 = scmp.lt.s32.totalorder %s14, 1
      %s167 = scalar_select %p166, %s14, 1
      %s168 = smul.addr %s167, 8
      %s169 = smul.addr %s168, 8
      %s170 = scalar_lea.vmem %s3, %s169
      %v172 = vld [vmem:[%s1] sm:$0xf]
      %v173 = vld [vmem:[%s1 + $0x4] sm:$0xf]
      %v174 = vld [vmem:[%s1 + $0x8] sm:$0xf]
      %v175 = vld [vmem:[%s1 + $0xc] sm:$0xf]
      %v176 = vld [vmem:[%s1 + $0x10] sm:$0xf]
      %v177 = vld [vmem:[%s1 + $0x14] sm:$0xf]
      %v178 = vld [vmem:[%s1 + $0x18] sm:$0xf]
      %v179 = vld [vmem:[%s1 + $0x1c] sm:$0xf]
      %v180 = vld [vmem:[%s1 + $0x20] sm:$0xf]
      %v181 = vld [vmem:[%s1 + $0x24] sm:$0xf]
      %v182 = vld [vmem:[%s1 + $0x28] sm:$0xf]
      %v183 = vld [vmem:[%s1 + $0x2c] sm:$0xf]
      %v184 = vld [vmem:[%s1 + $0x30] sm:$0xf]
      %v185 = vld [vmem:[%s1 + $0x34] sm:$0xf]
      %v186 = vld [vmem:[%s1 + $0x38] sm:$0xf]
      %v187 = vld [vmem:[%s1 + $0x3c] sm:$0xf]
      %v188 = vld [vmem:[%s1 + $0x40] sm:$0xf]
      %v189 = vld [vmem:[%s1 + $0x44] sm:$0xf]
      %v190 = vld [vmem:[%s1 + $0x48] sm:$0xf]
      %v191 = vld [vmem:[%s1 + $0x4c] sm:$0xf]
      %v192 = vld [vmem:[%s1 + $0x50] sm:$0xf]
      %v193 = vld [vmem:[%s1 + $0x54] sm:$0xf]
      %v194 = vld [vmem:[%s1 + $0x58] sm:$0xf]
      %v195 = vld [vmem:[%s1 + $0x5c] sm:$0xf]
      %v196 = vld [vmem:[%s1 + $0x60] sm:$0xf]
      %v197 = vld [vmem:[%s1 + $0x64] sm:$0xf]
      %v198 = vld [vmem:[%s1 + $0x68] sm:$0xf]
      %v199 = vld [vmem:[%s1 + $0x6c] sm:$0xf]
      %v200 = vld [vmem:[%s1 + $0x70] sm:$0xf]
      %v201 = vld [vmem:[%s1 + $0x74] sm:$0xf]
      %v202 = vld [vmem:[%s1 + $0x78] sm:$0xf]
      %v203 = vld [vmem:[%s1 + $0x7c] sm:$0xf]
      %v204 = vld [vmem:[%s1 + $0x80] sm:$0xf]
      %v205 = vld [vmem:[%s1 + $0x84] sm:$0xf]
      %v206 = vld [vmem:[%s1 + $0x88] sm:$0xf]
      %v207 = vld [vmem:[%s1 + $0x8c] sm:$0xf]
      %v208 = vld [vmem:[%s1 + $0x90] sm:$0xf]
      %v209 = vld [vmem:[%s1 + $0x94] sm:$0xf]
      %v210 = vld [vmem:[%s1 + $0x98] sm:$0xf]
      %v211 = vld [vmem:[%s1 + $0x9c] sm:$0xf]
      %v212 = vld [vmem:[%s1 + $0xa0] sm:$0xf]
      %v213 = vld [vmem:[%s1 + $0xa4] sm:$0xf]
      %v214 = vld [vmem:[%s1 + $0xa8] sm:$0xf]
      %v215 = vld [vmem:[%s1 + $0xac] sm:$0xf]
      %v216 = vld [vmem:[%s1 + $0xb0] sm:$0xf]
      %v217 = vld [vmem:[%s1 + $0xb4] sm:$0xf]
      %v218 = vld [vmem:[%s1 + $0xb8] sm:$0xf]
      %v219 = vld [vmem:[%s1 + $0xbc] sm:$0xf]
      %v220 = vld [vmem:[%s1 + $0xc0] sm:$0xf]
      %v221 = vld [vmem:[%s1 + $0xc4] sm:$0xf]
      %v222 = vld [vmem:[%s1 + $0xc8] sm:$0xf]
      %v223 = vld [vmem:[%s1 + $0xcc] sm:$0xf]
      %v224 = vld [vmem:[%s1 + $0xd0] sm:$0xf]
      %v225 = vld [vmem:[%s1 + $0xd4] sm:$0xf]
      %v226 = vld [vmem:[%s1 + $0xd8] sm:$0xf]
      %v227 = vld [vmem:[%s1 + $0xdc] sm:$0xf]
      %v228 = vld [vmem:[%s1 + $0xe0] sm:$0xf]
      %v229 = vld [vmem:[%s1 + $0xe4] sm:$0xf]
      %v230 = vld [vmem:[%s1 + $0xe8] sm:$0xf]
      %v231 = vld [vmem:[%s1 + $0xec] sm:$0xf]
      %v232 = vld [vmem:[%s1 + $0xf0] sm:$0xf]
      %v233 = vld [vmem:[%s1 + $0xf4] sm:$0xf]
      %v234 = vld [vmem:[%s1 + $0xf8] sm:$0xf]
      %v235 = vld [vmem:[%s1 + $0xfc] sm:$0xf]
      %v236 = vld [vmem:[%s1 + $0x100] sm:$0xf]
      %v237 = vld [vmem:[%s1 + $0x104] sm:$0xf]
      %v238 = vld [vmem:[%s1 + $0x108] sm:$0xf]
      %v239 = vld [vmem:[%s1 + $0x10c] sm:$0xf]
      %v240 = vld [vmem:[%s1 + $0x110] sm:$0xf]
      %v241 = vld [vmem:[%s1 + $0x114] sm:$0xf]
      %v242 = vld [vmem:[%s1 + $0x118] sm:$0xf]
      %v243 = vld [vmem:[%s1 + $0x11c] sm:$0xf]
      %v244 = vld [vmem:[%s1 + $0x120] sm:$0xf]
      %v245 = vld [vmem:[%s1 + $0x124] sm:$0xf]
      %v246 = vld [vmem:[%s1 + $0x128] sm:$0xf]
      %v247 = vld [vmem:[%s1 + $0x12c] sm:$0xf]
      %v248 = vld [vmem:[%s1 + $0x130] sm:$0xf]
      %v249 = vld [vmem:[%s1 + $0x134] sm:$0xf]
      %v250 = vld [vmem:[%s1 + $0x138] sm:$0xf]
      %v251 = vld [vmem:[%s1 + $0x13c] sm:$0xf]
      %v252 = vld [vmem:[%s1 + $0x140] sm:$0xf]
      %v253 = vld [vmem:[%s1 + $0x144] sm:$0xf]
      %v254 = vld [vmem:[%s1 + $0x148] sm:$0xf]
      %v255 = vld [vmem:[%s1 + $0x14c] sm:$0xf]
      %v256 = vld [vmem:[%s1 + $0x150] sm:$0xf]
      %v257 = vld [vmem:[%s1 + $0x154] sm:$0xf]
      %v258 = vld [vmem:[%s1 + $0x158] sm:$0xf]
      %v259 = vld [vmem:[%s1 + $0x15c] sm:$0xf]
      %v260 = vld [vmem:[%s1 + $0x160] sm:$0xf]
      %v261 = vld [vmem:[%s1 + $0x164] sm:$0xf]
      %v262 = vld [vmem:[%s1 + $0x168] sm:$0xf]
      %v263 = vld [vmem:[%s1 + $0x16c] sm:$0xf]
      %v264 = vld [vmem:[%s1 + $0x170] sm:$0xf]
      %v265 = vld [vmem:[%s1 + $0x174] sm:$0xf]
      %v266 = vld [vmem:[%s1 + $0x178] sm:$0xf]
      %v267 = vld [vmem:[%s1 + $0x17c] sm:$0xf]
      %v268 = vld [vmem:[%s1 + $0x180] sm:$0xf]
      %v269 = vld [vmem:[%s1 + $0x184] sm:$0xf]
      %v270 = vld [vmem:[%s1 + $0x188] sm:$0xf]
      %v271 = vld [vmem:[%s1 + $0x18c] sm:$0xf]
      %v272 = vld [vmem:[%s1 + $0x190] sm:$0xf]
      %v273 = vld [vmem:[%s1 + $0x194] sm:$0xf]
      %v274 = vld [vmem:[%s1 + $0x198] sm:$0xf]
      %v275 = vld [vmem:[%s1 + $0x19c] sm:$0xf]
      %v276 = vld [vmem:[%s1 + $0x1a0] sm:$0xf]
      %v277 = vld [vmem:[%s1 + $0x1a4] sm:$0xf]
      %v278 = vld [vmem:[%s1 + $0x1a8] sm:$0xf]
      %v279 = vld [vmem:[%s1 + $0x1ac] sm:$0xf]
      %v280 = vld [vmem:[%s1 + $0x1b0] sm:$0xf]
      %v281 = vld [vmem:[%s1 + $0x1b4] sm:$0xf]
      %v282 = vld [vmem:[%s1 + $0x1b8] sm:$0xf]
      %v283 = vld [vmem:[%s1 + $0x1bc] sm:$0xf]
      %v284 = vld [vmem:[%s1 + $0x1c0] sm:$0xf]
      %v285 = vld [vmem:[%s1 + $0x1c4] sm:$0xf]
      %v286 = vld [vmem:[%s1 + $0x1c8] sm:$0xf]
      %v287 = vld [vmem:[%s1 + $0x1cc] sm:$0xf]
      %v288 = vld [vmem:[%s1 + $0x1d0] sm:$0xf]
      %v289 = vld [vmem:[%s1 + $0x1d4] sm:$0xf]
      %v290 = vld [vmem:[%s1 + $0x1d8] sm:$0xf]
      %v291 = vld [vmem:[%s1 + $0x1dc] sm:$0xf]
      %v292 = vld [vmem:[%s1 + $0x1e0] sm:$0xf]
      %v293 = vld [vmem:[%s1 + $0x1e4] sm:$0xf]
      %v294 = vld [vmem:[%s1 + $0x1e8] sm:$0xf]
      %v295 = vld [vmem:[%s1 + $0x1ec] sm:$0xf]
      %v296 = vld [vmem:[%s1 + $0x1f0] sm:$0xf]
      %v297 = vld [vmem:[%s1 + $0x1f4] sm:$0xf]
      %v298 = vld [vmem:[%s1 + $0x1f8] sm:$0xf]
      %v299 = vld [vmem:[%s1 + $0x1fc] sm:$0xf]
      %v300 = vld [vmem:[%s1 + $0x200] sm:$0xf]
      %v301 = vld [vmem:[%s1 + $0x204] sm:$0xf]
      %v302 = vld [vmem:[%s1 + $0x208] sm:$0xf]
      %v303 = vld [vmem:[%s1 + $0x20c] sm:$0xf]
      %v304 = vld [vmem:[%s1 + $0x210] sm:$0xf]
      %v305 = vld [vmem:[%s1 + $0x214] sm:$0xf]
      %v306 = vld [vmem:[%s1 + $0x218] sm:$0xf]
      %v307 = vld [vmem:[%s1 + $0x21c] sm:$0xf]
      %v308 = vld [vmem:[%s1 + $0x220] sm:$0xf]
      %v309 = vld [vmem:[%s1 + $0x224] sm:$0xf]
      %v310 = vld [vmem:[%s1 + $0x228] sm:$0xf]
      %v311 = vld [vmem:[%s1 + $0x22c] sm:$0xf]
      %v312 = vld [vmem:[%s1 + $0x230] sm:$0xf]
      %v313 = vld [vmem:[%s1 + $0x234] sm:$0xf]
      %v314 = vld [vmem:[%s1 + $0x238] sm:$0xf]
      %v315 = vld [vmem:[%s1 + $0x23c] sm:$0xf]
      %v316 = vld [vmem:[%s2] sm:$0x1]
      %v317 = vld [vmem:[%s165] sm:$0xff]
      %v318 = vld [vmem:[%s165 + $0x8] sm:$0xff]
      %v319 = vld [vmem:[%s165 + $0x10] sm:$0xff]
      %v320 = vld [vmem:[%s165 + $0x18] sm:$0xff]
      %v321 = vld [vmem:[%s165 + $0x20] sm:$0xf]
      %v322 = vld [vmem:[%s165 + $0x24] sm:$0xff]
      %v323 = vld [vmem:[%s165 + $0x2c] sm:$0xff]
      %v324 = vld [vmem:[%s165 + $0x34] sm:$0xff]
      %v325 = vld [vmem:[%s165 + $0x3c] sm:$0xff]
      %v326 = vld [vmem:[%s165 + $0x44] sm:$0xf]
      %v327 = vld [vmem:[%s165 + $0x48] sm:$0xff]
      %v328 = vld [vmem:[%s165 + $0x50] sm:$0xff]
      %v329 = vld [vmem:[%s165 + $0x58] sm:$0xff]
      %v330 = vld [vmem:[%s165 + $0x60] sm:$0xff]
      %v331 = vld [vmem:[%s165 + $0x68] sm:$0xf]
      %v332 = vld [vmem:[%s165 + $0x6c] sm:$0xff]
      %v333 = vld [vmem:[%s165 + $0x74] sm:$0xff]
      %v334 = vld [vmem:[%s165 + $0x7c] sm:$0xff]
      %v335 = vld [vmem:[%s165 + $0x84] sm:$0xff]
      %v336 = vld [vmem:[%s165 + $0x8c] sm:$0xf]
      %v337 = vld [vmem:[%s165 + $0x90] sm:$0xff]
      %v338 = vld [vmem:[%s165 + $0x98] sm:$0xff]
      %v339 = vld [vmem:[%s165 + $0xa0] sm:$0xff]
      %v340 = vld [vmem:[%s165 + $0xa8] sm:$0xff]
      %v341 = vld [vmem:[%s165 + $0xb0] sm:$0xf]
      %v342 = vld [vmem:[%s165 + $0xb4] sm:$0xff]
      %v343 = vld [vmem:[%s165 + $0xbc] sm:$0xff]
      %v344 = vld [vmem:[%s165 + $0xc4] sm:$0xff]
      %v345 = vld [vmem:[%s165 + $0xcc] sm:$0xff]
      %v346 = vld [vmem:[%s165 + $0xd4] sm:$0xf]
      %v347 = vld [vmem:[%s165 + $0xd8] sm:$0xff]
      %v348 = vld [vmem:[%s165 + $0xe0] sm:$0xff]
      %v349 = vld [vmem:[%s165 + $0xe8] sm:$0xff]
      %v350 = vld [vmem:[%s165 + $0xf0] sm:$0xff]
      %v351 = vld [vmem:[%s165 + $0xf8] sm:$0xf]
      %v352 = vld [vmem:[%s165 + $0xfc] sm:$0xff]
      %v353 = vld [vmem:[%s165 + $0x104] sm:$0xff]
      %v354 = vld [vmem:[%s165 + $0x10c] sm:$0xff]
      %v355 = vld [vmem:[%s165 + $0x114] sm:$0xff]
      %v356 = vld [vmem:[%s165 + $0x11c] sm:$0xf]
      %v358 = vlaneseq
      %v359 = vshrl.u32 %v358, 7
      %v360 = vsub.s32 0, %v359
      %v361 = vrot.slane %v316, %v360
      %v403 = vunpack.c.l.b16 %v317
      %v404 = vunpack.c.h.b16 %v317
      %v405 = vunpack.c.l.b16 %v318
      %v406 = vunpack.c.h.b16 %v318
      %v407 = vunpack.c.l.b16 %v319
      %v408 = vunpack.c.h.b16 %v319
      %v409 = vunpack.c.l.b16 %v320
      %v410 = vunpack.c.h.b16 %v320
      %v411 = vunpack.c.l.b16 %v321
      %v412 = vunpack.c.l.b16 %v322
      %v413 = vunpack.c.h.b16 %v322
      %v414 = vunpack.c.l.b16 %v323
      %v415 = vunpack.c.h.b16 %v323
      %v416 = vunpack.c.l.b16 %v324
      %v417 = vunpack.c.h.b16 %v324
      %v418 = vunpack.c.l.b16 %v325
      %v419 = vunpack.c.h.b16 %v325
      %v420 = vunpack.c.l.b16 %v326
      %v421 = vunpack.c.l.b16 %v327
      %v422 = vunpack.c.h.b16 %v327
      %v423 = vunpack.c.l.b16 %v328
      %v424 = vunpack.c.h.b16 %v328
      %v425 = vunpack.c.l.b16 %v329
      %v426 = vunpack.c.h.b16 %v329
      %v427 = vunpack.c.l.b16 %v330
      %v428 = vunpack.c.h.b16 %v330
      %v429 = vunpack.c.l.b16 %v331
      %v430 = vunpack.c.l.b16 %v332
      %v431 = vunpack.c.h.b16 %v332
      %v432 = vunpack.c.l.b16 %v333
      %v433 = vunpack.c.h.b16 %v333
      %v434 = vunpack.c.l.b16 %v334
      %v435 = vunpack.c.h.b16 %v334
      %v436 = vunpack.c.l.b16 %v335
      %v437 = vunpack.c.h.b16 %v335
      %v438 = vunpack.c.l.b16 %v336
      %v439 = vunpack.c.l.b16 %v337
      %v440 = vunpack.c.h.b16 %v337
      %v441 = vunpack.c.l.b16 %v338
      %v442 = vunpack.c.h.b16 %v338
      %v443 = vunpack.c.l.b16 %v339
      %v444 = vunpack.c.h.b16 %v339
      %v445 = vunpack.c.l.b16 %v340
      %v446 = vunpack.c.h.b16 %v340
      %v447 = vunpack.c.l.b16 %v341
      %v448 = vunpack.c.l.b16 %v342
      %v449 = vunpack.c.h.b16 %v342
      %v450 = vunpack.c.l.b16 %v343
      %v451 = vunpack.c.h.b16 %v343
      %v452 = vunpack.c.l.b16 %v344
      %v453 = vunpack.c.h.b16 %v344
      %v454 = vunpack.c.l.b16 %v345
      %v455 = vunpack.c.h.b16 %v345
      %v456 = vunpack.c.l.b16 %v346
      %v457 = vunpack.c.l.b16 %v347
      %v458 = vunpack.c.h.b16 %v347
      %v459 = vunpack.c.l.b16 %v348
      %v460 = vunpack.c.h.b16 %v348
      %v461 = vunpack.c.l.b16 %v349
      %v462 = vunpack.c.h.b16 %v349
      %v463 = vunpack.c.l.b16 %v350
      %v464 = vunpack.c.h.b16 %v350
      %v465 = vunpack.c.l.b16 %v351
      %v466 = vunpack.c.l.b16 %v352
      %v467 = vunpack.c.h.b16 %v352
      %v468 = vunpack.c.l.b16 %v353
      %v469 = vunpack.c.h.b16 %v353
      %v470 = vunpack.c.l.b16 %v354
      %v471 = vunpack.c.h.b16 %v354
      %v472 = vunpack.c.l.b16 %v355
      %v473 = vunpack.c.h.b16 %v355
      %v474 = vunpack.c.l.b16 %v356
      %v475 = vpack.c.b16 %v412, %v403
      %v476 = vpack.c.b16 %v413, %v404
      %v477 = vpack.c.b16 %v414, %v405
      %v478 = vpack.c.b16 %v415, %v406
      %v479 = vpack.c.b16 %v416, %v407
      %v480 = vpack.c.b16 %v417, %v408
      %v481 = vpack.c.b16 %v418, %v409
      %v482 = vpack.c.b16 %v419, %v410
      %v483 = vpack.c.b16 %v420, %v411
      %v484 = vpack.c.b16 %v430, %v421
      %v485 = vpack.c.b16 %v431, %v422
      %v486 = vpack.c.b16 %v432, %v423
      %v487 = vpack.c.b16 %v433, %v424
      %v488 = vpack.c.b16 %v434, %v425
      %v489 = vpack.c.b16 %v435, %v426
      %v490 = vpack.c.b16 %v436, %v427
      %v491 = vpack.c.b16 %v437, %v428
      %v492 = vpack.c.b16 %v438, %v429
      %v493 = vpack.c.b16 %v448, %v439
      %v494 = vpack.c.b16 %v449, %v440
      %v495 = vpack.c.b16 %v450, %v441
      %v496 = vpack.c.b16 %v451, %v442
      %v497 = vpack.c.b16 %v452, %v443
      %v498 = vpack.c.b16 %v453, %v444
      %v499 = vpack.c.b16 %v454, %v445
      %v500 = vpack.c.b16 %v455, %v446
      %v501 = vpack.c.b16 %v456, %v447
      %v502 = vpack.c.b16 %v466, %v457
      %v503 = vpack.c.b16 %v467, %v458
      %v504 = vpack.c.b16 %v468, %v459
      %v505 = vpack.c.b16 %v469, %v460
      %v506 = vpack.c.b16 %v470, %v461
      %v507 = vpack.c.b16 %v471, %v462
      %v508 = vpack.c.b16 %v472, %v463
      %v509 = vpack.c.b16 %v473, %v464
      %v510 = vpack.c.b16 %v474, %v465
      %v691 = vunpack.c.l.b16 %v172
      %v692 = vunpack.c.l.b16 %v173
      %v693 = vunpack.c.l.b16 %v174
      %v694 = vunpack.c.l.b16 %v175
      %v695 = vunpack.c.l.b16 %v176
      %v696 = vunpack.c.l.b16 %v177
      %v697 = vunpack.c.l.b16 %v178
      %v698 = vunpack.c.l.b16 %v179
      %v699 = vunpack.c.l.b16 %v180
      %v700 = vunpack.c.l.b16 %v181
      %v701 = vunpack.c.l.b16 %v182
      %v702 = vunpack.c.l.b16 %v183
      %v703 = vunpack.c.l.b16 %v184
      %v704 = vunpack.c.l.b16 %v185
      %v705 = vunpack.c.l.b16 %v186
      %v706 = vunpack.c.l.b16 %v187
      %v707 = vunpack.c.l.b16 %v188
      %v708 = vunpack.c.l.b16 %v189
      %v709 = vunpack.c.l.b16 %v190
      %v710 = vunpack.c.l.b16 %v191
      %v711 = vunpack.c.l.b16 %v192
      %v712 = vunpack.c.l.b16 %v193
      %v713 = vunpack.c.l.b16 %v194
      %v714 = vunpack.c.l.b16 %v195
      %v715 = vunpack.c.l.b16 %v196
      %v716 = vunpack.c.l.b16 %v197
      %v717 = vunpack.c.l.b16 %v198
      %v718 = vunpack.c.l.b16 %v199
      %v719 = vunpack.c.l.b16 %v200
      %v720 = vunpack.c.l.b16 %v201
      %v721 = vunpack.c.l.b16 %v202
      %v722 = vunpack.c.l.b16 %v203
      %v723 = vunpack.c.l.b16 %v204
      %v724 = vunpack.c.l.b16 %v205
      %v725 = vunpack.c.l.b16 %v206
      %v726 = vunpack.c.l.b16 %v207
      %v727 = vunpack.c.l.b16 %v208
      %v728 = vunpack.c.l.b16 %v209
      %v729 = vunpack.c.l.b16 %v210
      %v730 = vunpack.c.l.b16 %v211
      %v731 = vunpack.c.l.b16 %v212
      %v732 = vunpack.c.l.b16 %v213
      %v733 = vunpack.c.l.b16 %v214
      %v734 = vunpack.c.l.b16 %v215
      %v735 = vunpack.c.l.b16 %v216
      %v736 = vunpack.c.l.b16 %v217
      %v737 = vunpack.c.l.b16 %v218
      %v738 = vunpack.c.l.b16 %v219
      %v739 = vunpack.c.l.b16 %v220
      %v740 = vunpack.c.l.b16 %v221
      %v741 = vunpack.c.l.b16 %v222
      %v742 = vunpack.c.l.b16 %v223
      %v743 = vunpack.c.l.b16 %v224
      %v744 = vunpack.c.l.b16 %v225
      %v745 = vunpack.c.l.b16 %v226
      %v746 = vunpack.c.l.b16 %v227
      %v747 = vunpack.c.l.b16 %v228
      %v748 = vunpack.c.l.b16 %v229
      %v749 = vunpack.c.l.b16 %v230
      %v750 = vunpack.c.l.b16 %v231
      %v751 = vunpack.c.l.b16 %v232
      %v752 = vunpack.c.l.b16 %v233
      %v753 = vunpack.c.l.b16 %v234
      %v754 = vunpack.c.l.b16 %v235
      %v755 = vunpack.c.l.b16 %v236
      %v756 = vunpack.c.l.b16 %v237
      %v757 = vunpack.c.l.b16 %v238
      %v758 = vunpack.c.l.b16 %v239
      %v759 = vunpack.c.l.b16 %v240
      %v760 = vunpack.c.l.b16 %v241
      %v761 = vunpack.c.l.b16 %v242
      %v762 = vunpack.c.l.b16 %v243
      %v763 = vunpack.c.l.b16 %v244
      %v764 = vunpack.c.l.b16 %v245
      %v765 = vunpack.c.l.b16 %v246
      %v766 = vunpack.c.l.b16 %v247
      %v767 = vunpack.c.l.b16 %v248
      %v768 = vunpack.c.l.b16 %v249
      %v769 = vunpack.c.l.b16 %v250
      %v770 = vunpack.c.l.b16 %v251
      %v771 = vunpack.c.l.b16 %v252
      %v772 = vunpack.c.l.b16 %v253
      %v773 = vunpack.c.l.b16 %v254
      %v774 = vunpack.c.l.b16 %v255
      %v775 = vunpack.c.l.b16 %v256
      %v776 = vunpack.c.l.b16 %v257
      %v777 = vunpack.c.l.b16 %v258
      %v778 = vunpack.c.l.b16 %v259
      %v779 = vunpack.c.l.b16 %v260
      %v780 = vunpack.c.l.b16 %v261
      %v781 = vunpack.c.l.b16 %v262
      %v782 = vunpack.c.l.b16 %v263
      %v783 = vunpack.c.l.b16 %v264
      %v784 = vunpack.c.l.b16 %v265
      %v785 = vunpack.c.l.b16 %v266
      %v786 = vunpack.c.l.b16 %v267
      %v787 = vunpack.c.l.b16 %v268
      %v788 = vunpack.c.l.b16 %v269
      %v789 = vunpack.c.l.b16 %v270
      %v790 = vunpack.c.l.b16 %v271
      %v791 = vunpack.c.l.b16 %v272
      %v792 = vunpack.c.l.b16 %v273
      %v793 = vunpack.c.l.b16 %v274
      %v794 = vunpack.c.l.b16 %v275
      %v795 = vunpack.c.l.b16 %v276
      %v796 = vunpack.c.l.b16 %v277
      %v797 = vunpack.c.l.b16 %v278
      %v798 = vunpack.c.l.b16 %v279
      %v799 = vunpack.c.l.b16 %v280
      %v800 = vunpack.c.l.b16 %v281
      %v801 = vunpack.c.l.b16 %v282
      %v802 = vunpack.c.l.b16 %v283
      %v803 = vunpack.c.l.b16 %v284
      %v804 = vunpack.c.l.b16 %v285
      %v805 = vunpack.c.l.b16 %v286
      %v806 = vunpack.c.l.b16 %v287
      %v807 = vunpack.c.l.b16 %v288
      %v808 = vunpack.c.l.b16 %v289
      %v809 = vunpack.c.l.b16 %v290
      %v810 = vunpack.c.l.b16 %v291
      %v811 = vunpack.c.l.b16 %v292
      %v812 = vunpack.c.l.b16 %v293
      %v813 = vunpack.c.l.b16 %v294
      %v814 = vunpack.c.l.b16 %v295
      %v815 = vunpack.c.l.b16 %v296
      %v816 = vunpack.c.l.b16 %v297
      %v817 = vunpack.c.l.b16 %v298
      %v818 = vunpack.c.l.b16 %v299
      %v819 = vunpack.c.l.b16 %v300
      %v820 = vunpack.c.l.b16 %v301
      %v821 = vunpack.c.l.b16 %v302
      %v822 = vunpack.c.l.b16 %v303
      %v823 = vunpack.c.l.b16 %v304
      %v824 = vunpack.c.l.b16 %v305
      %v825 = vunpack.c.l.b16 %v306
      %v826 = vunpack.c.l.b16 %v307
      %v827 = vunpack.c.l.b16 %v308
      %v828 = vunpack.c.l.b16 %v309
      %v829 = vunpack.c.l.b16 %v310
      %v830 = vunpack.c.l.b16 %v311
      %v831 = vunpack.c.l.b16 %v312
      %v832 = vunpack.c.l.b16 %v313
      %v833 = vunpack.c.l.b16 %v314
      %v834 = vunpack.c.l.b16 %v315
      %v835 = vpack.c.b16 %v692, %v691
      %v836 = vpack.c.b16 %v694, %v693
      %v837 = vpack.c.b16 %v696, %v695
      %v838 = vpack.c.b16 %v698, %v697
      %v839 = vpack.c.b16 %v700, %v699
      %v840 = vpack.c.b16 %v702, %v701
      %v841 = vpack.c.b16 %v704, %v703
      %v842 = vpack.c.b16 %v706, %v705
      %v843 = vpack.c.b16 %v708, %v707
      %v844 = vpack.c.b16 %v710, %v709
      %v845 = vpack.c.b16 %v712, %v711
      %v846 = vpack.c.b16 %v714, %v713
      %v847 = vpack.c.b16 %v716, %v715
      %v848 = vpack.c.b16 %v718, %v717
      %v849 = vpack.c.b16 %v720, %v719
      %v850 = vpack.c.b16 %v722, %v721
      %v851 = vpack.c.b16 %v724, %v723
      %v852 = vpack.c.b16 %v726, %v725
      %v853 = vpack.c.b16 %v728, %v727
      %v854 = vpack.c.b16 %v730, %v729
      %v855 = vpack.c.b16 %v732, %v731
      %v856 = vpack.c.b16 %v734, %v733
      %v857 = vpack.c.b16 %v736, %v735
      %v858 = vpack.c.b16 %v738, %v737
      %v859 = vpack.c.b16 %v740, %v739
      %v860 = vpack.c.b16 %v742, %v741
      %v861 = vpack.c.b16 %v744, %v743
      %v862 = vpack.c.b16 %v746, %v745
      %v863 = vpack.c.b16 %v748, %v747
      %v864 = vpack.c.b16 %v750, %v749
      %v865 = vpack.c.b16 %v752, %v751
      %v866 = vpack.c.b16 %v754, %v753
      %v867 = vpack.c.b16 %v756, %v755
      %v868 = vpack.c.b16 %v758, %v757
      %v869 = vpack.c.b16 %v760, %v759
      %v870 = vpack.c.b16 %v762, %v761
      %v871 = vpack.c.b16 %v764, %v763
      %v872 = vpack.c.b16 %v766, %v765
      %v873 = vpack.c.b16 %v768, %v767
      %v874 = vpack.c.b16 %v770, %v769
      %v875 = vpack.c.b16 %v772, %v771
      %v876 = vpack.c.b16 %v774, %v773
      %v877 = vpack.c.b16 %v776, %v775
      %v878 = vpack.c.b16 %v778, %v777
      %v879 = vpack.c.b16 %v780, %v779
      %v880 = vpack.c.b16 %v782, %v781
      %v881 = vpack.c.b16 %v784, %v783
      %v882 = vpack.c.b16 %v786, %v785
      %v883 = vpack.c.b16 %v788, %v787
      %v884 = vpack.c.b16 %v790, %v789
      %v885 = vpack.c.b16 %v792, %v791
      %v886 = vpack.c.b16 %v794, %v793
      %v887 = vpack.c.b16 %v796, %v795
      %v888 = vpack.c.b16 %v798, %v797
      %v889 = vpack.c.b16 %v800, %v799
      %v890 = vpack.c.b16 %v802, %v801
      %v891 = vpack.c.b16 %v804, %v803
      %v892 = vpack.c.b16 %v806, %v805
      %v893 = vpack.c.b16 %v808, %v807
      %v894 = vpack.c.b16 %v810, %v809
      %v895 = vpack.c.b16 %v812, %v811
      %v896 = vpack.c.b16 %v814, %v813
      %v897 = vpack.c.b16 %v816, %v815
      %v898 = vpack.c.b16 %v818, %v817
      %v899 = vpack.c.b16 %v820, %v819
      %v900 = vpack.c.b16 %v822, %v821
      %v901 = vpack.c.b16 %v824, %v823
      %v902 = vpack.c.b16 %v826, %v825
      %v903 = vpack.c.b16 %v828, %v827
      %v904 = vpack.c.b16 %v830, %v829
      %v905 = vpack.c.b16 %v832, %v831
      %v906 = vpack.c.b16 %v834, %v833
      %979 = vmatprep.subr.bf16.mxu0 0
      %980 = vmatpush1.bf16.msra.mxu0 %v835
      %981 = vmatprep.subr.bf16.mxu0 0
      %982 = vmatpush1.bf16.msra.mxu0 %v836
      %983 = vmatprep.subr.bf16.mxu0 0
      %984 = vmatpush1.bf16.msra.mxu0 %v837
      %985 = vmatprep.subr.bf16.mxu0 0
      %986 = vmatpush1.bf16.msra.mxu0 %v838
      %987 = vmatprep.subr.bf16.mxu0 0
      %988 = vmatpush1.bf16.msra.mxu0 %v839
      %989 = vmatprep.subr.bf16.mxu0 0
      %990 = vmatpush1.bf16.msra.mxu0 %v840
      %991 = vmatprep.subr.bf16.mxu0 0
      %992 = vmatpush1.bf16.msra.mxu0 %v841
      %993 = vmatprep.subr.bf16.mxu0 0
      %994 = vmatpush1.bf16.msra.mxu0 %v842
      %995 = vmatprep.subr.bf16.mxu0 0
      %996 = vmatpush1.bf16.msra.mxu0 %v843
      %997 = vmatprep.subr.bf16.mxu0 0
      %998 = vmatpush1.bf16.msra.mxu0 %v844
      %999 = vmatprep.subr.bf16.mxu0 0
      %1000 = vmatpush1.bf16.msra.mxu0 %v845
      %1001 = vmatprep.subr.bf16.mxu0 0
      %1002 = vmatpush1.bf16.msra.mxu0 %v846
      %1003 = vmatprep.subr.bf16.mxu0 0
      %1004 = vmatpush1.bf16.msra.mxu0 %v847
      %1005 = vmatprep.subr.bf16.mxu0 0
      %1006 = vmatpush1.bf16.msra.mxu0 %v848
      %1007 = vmatprep.subr.bf16.mxu0 0
      %1008 = vmatpush1.bf16.msra.mxu0 %v849
      %1009 = vmatprep.subr.bf16.mxu0 0
      %1010 = vmatpush1.bf16.msra.mxu0 %v850
      %1011 = vmatprep.mubr.bf16.mxu0 %v476
      %1012 = vmatmul.mubr.bf16.gmra.mrb[0].mxu0 %v475
      %v1013 = vpop.f32.mrb[0].mxu0
      %v1014 = vadd.f32 %v361, %v1013
      %v1015 = vpop.f32.mrb[0].mxu0
      %v1016 = vpop.f32.mrb[0].mxu0
      %v1017 = vadd.f32 %v361, %v1016
      %v1018 = vpop.f32.mrb[0].mxu0
      %1019 = vmatprep.mubr.bf16.mxu0 %v485
      %1020 = vmatmul.mubr.bf16.gmra.mrb[0].mxu0 %v484
      %v1021 = vpop.f32.mrb[0].mxu0
      %v1022 = vadd.f32 %v361, %v1021
      %v1023 = vpop.f32.mrb[0].mxu0
      %v1024 = vpop.f32.mrb[0].mxu0
      %v1025 = vadd.f32 %v361, %v1024
      %v1026 = vpop.f32.mrb[0].mxu0
      %1027 = vmatprep.mubr.bf16.mxu0 %v494
      %1028 = vmatmul.mubr.bf16.gmra.mrb[0].mxu0 %v493
      %v1029 = vpop.f32.mrb[0].mxu0
      %v1030 = vadd.f32 %v361, %v1029
      %v1031 = vpop.f32.mrb[0].mxu0
      %v1032 = vpop.f32.mrb[0].mxu0
      %v1033 = vadd.f32 %v361, %v1032
      %v1034 = vpop.f32.mrb[0].mxu0
      %1035 = vmatprep.mubr.bf16.mxu0 %v503
      %1036 = vmatmul.mubr.bf16.gmra.mrb[0].mxu0 %v502
      %v1037 = vpop.f32.mrb[0].mxu0
      %v1038 = vadd.f32 %v361, %v1037
      %v1039 = vpop.f32.mrb[0].mxu0
      %v1040 = vpop.f32.mrb[0].mxu0
      %v1041 = vadd.f32 %v361, %v1040
      %v1042 = vpop.f32.mrb[0].mxu0
      %1043 = vdwg.mxu0
      %1044 = vmatprep.subr.bf16.mxu0 0
      %1045 = vmatpush1.bf16.msra.mxu0 %v851
      %1046 = vmatprep.subr.bf16.mxu0 0
      %1047 = vmatpush1.bf16.msra.mxu0 %v852
      %1048 = vmatprep.subr.bf16.mxu0 0
      %1049 = vmatpush1.bf16.msra.mxu0 %v853
      %1050 = vmatprep.subr.bf16.mxu0 0
      %1051 = vmatpush1.bf16.msra.mxu0 %v854
      %1052 = vmatprep.subr.bf16.mxu0 0
      %1053 = vmatpush1.bf16.msra.mxu0 %v855
      %1054 = vmatprep.subr.bf16.mxu0 0
      %1055 = vmatpush1.bf16.msra.mxu0 %v856
      %1056 = vmatprep.subr.bf16.mxu0 0
      %1057 = vmatpush1.bf16.msra.mxu0 %v857
      %1058 = vmatprep.subr.bf16.mxu0 0
      %1059 = vmatpush1.bf16.msra.mxu0 %v858
      %1060 = vmatprep.subr.bf16.mxu0 0
      %1061 = vmatpush1.bf16.msra.mxu0 %v859
      %1062 = vmatprep.subr.bf16.mxu0 0
      %1063 = vmatpush1.bf16.msra.mxu0 %v860
      %1064 = vmatprep.subr.bf16.mxu0 0
      %1065 = vmatpush1.bf16.msra.mxu0 %v861
      %1066 = vmatprep.subr.bf16.mxu0 0
      %1067 = vmatpush1.bf16.msra.mxu0 %v862
      %1068 = vmatprep.subr.bf16.mxu0 0
      %1069 = vmatpush1.bf16.msra.mxu0 %v863
      %1070 = vmatprep.subr.bf16.mxu0 0
      %1071 = vmatpush1.bf16.msra.mxu0 %v864
      %1072 = vmatprep.subr.bf16.mxu0 0
      %1073 = vmatpush1.bf16.msra.mxu0 %v865
      %1074 = vmatprep.subr.bf16.mxu0 0
      %1075 = vmatpush1.bf16.msra.mxu0 %v866
      %1076 = vmatprep.mubr.bf16.mxu0 %v478
      %1077 = vmatmul.mubr.bf16.gmra.mrb[0].mxu0 %v477
      %v1078 = vpop.f32.mrb[0].mxu0
      %v1079 = vadd.f32 %v1014, %v1078
      %v1080 = vpop.f32.mrb[0].mxu0
      %v1081 = vpop.f32.mrb[0].mxu0
      %v1082 = vadd.f32 %v1017, %v1081
      %v1083 = vpop.f32.mrb[0].mxu0
      %1084 = vmatprep.mubr.bf16.mxu0 %v487
      %1085 = vmatmul.mubr.bf16.gmra.mrb[0].mxu0 %v486
      %v1086 = vpop.f32.mrb[0].mxu0
      %v1087 = vadd.f32 %v1022, %v1086
      %v1088 = vpop.f32.mrb[0].mxu0
      %v1089 = vpop.f32.mrb[0].mxu0
      %v1090 = vadd.f32 %v1025, %v1089
      %v1091 = vpop.f32.mrb[0].mxu0
      %1092 = vmatprep.mubr.bf16.mxu0 %v496
      %1093 = vmatmul.mubr.bf16.gmra.mrb[0].mxu0 %v495
      %v1094 = vpop.f32.mrb[0].mxu0
      %v1095 = vadd.f32 %v1030, %v1094
      %v1096 = vpop.f32.mrb[0].mxu0
      %v1097 = vpop.f32.mrb[0].mxu0
      %v1098 = vadd.f32 %v1033, %v1097
      %v1099 = vpop.f32.mrb[0].mxu0
      %1100 = vmatprep.mubr.bf16.mxu0 %v505
      %1101 = vmatmul.mubr.bf16.gmra.mrb[0].mxu0 %v504
      %v1102 = vpop.f32.mrb[0].mxu0
      %v1103 = vadd.f32 %v1038, %v1102
      %v1104 = vpop.f32.mrb[0].mxu0
      %v1105 = vpop.f32.mrb[0].mxu0
      %v1106 = vadd.f32 %v1041, %v1105
      %v1107 = vpop.f32.mrb[0].mxu0
      %1108 = vdwg.mxu0
      %1109 = vmatprep.subr.bf16.mxu0 0
      %1110 = vmatpush1.bf16.msra.mxu0 %v867
      %1111 = vmatprep.subr.bf16.mxu0 0
      %1112 = vmatpush1.bf16.msra.mxu0 %v868
      %1113 = vmatprep.subr.bf16.mxu0 0
      %1114 = vmatpush1.bf16.msra.mxu0 %v869
      %1115 = vmatprep.subr.bf16.mxu0 0
      %1116 = vmatpush1.bf16.msra.mxu0 %v870
      %1117 = vmatprep.subr.bf16.mxu0 0
      %1118 = vmatpush1.bf16.msra.mxu0 %v871
      %1119 = vmatprep.subr.bf16.mxu0 0
      %1120 = vmatpush1.bf16.msra.mxu0 %v872
      %1121 = vmatprep.subr.bf16.mxu0 0
      %1122 = vmatpush1.bf16.msra.mxu0 %v873
      %1123 = vmatprep.subr.bf16.mxu0 0
      %1124 = vmatpush1.bf16.msra.mxu0 %v874
      %1125 = vmatprep.subr.bf16.mxu0 0
      %1126 = vmatpush1.bf16.msra.mxu0 %v875
      %1127 = vmatprep.subr.bf16.mxu0 0
      %1128 = vmatpush1.bf16.msra.mxu0 %v876
      %1129 = vmatprep.subr.bf16.mxu0 0
      %1130 = vmatpush1.bf16.msra.mxu0 %v877
      %1131 = vmatprep.subr.bf16.mxu0 0
      %1132 = vmatpush1.bf16.msra.mxu0 %v878
      %1133 = vmatprep.subr.bf16.mxu0 0
      %1134 = vmatpush1.bf16.msra.mxu0 %v879
      %1135 = vmatprep.subr.bf16.mxu0 0
      %1136 = vmatpush1.bf16.msra.mxu0 %v880
      %1137 = vmatprep.subr.bf16.mxu0 0
      %1138 = vmatpush1.bf16.msra.mxu0 %v881
      %1139 = vmatprep.subr.bf16.mxu0 0
      %1140 = vmatpush1.bf16.msra.mxu0 %v882
      %1141 = vmatprep.mubr.bf16.mxu0 %v480
      %1142 = vmatmul.mubr.bf16.gmra.mrb[0].mxu0 %v479
      %v1143 = vpop.f32.mrb[0].mxu0
      %v1144 = vadd.f32 %v1079, %v1143
      %v1145 = vpop.f32.mrb[0].mxu0
      %v1146 = vpop.f32.mrb[0].mxu0
      %v1147 = vadd.f32 %v1082, %v1146
      %v1148 = vpop.f32.mrb[0].mxu0
      %1149 = vmatprep.mubr.bf16.mxu0 %v489
      %1150 = vmatmul.mubr.bf16.gmra.mrb[0].mxu0 %v488
      %v1151 = vpop.f32.mrb[0].mxu0
      %v1152 = vadd.f32 %v1087, %v1151
      %v1153 = vpop.f32.mrb[0].mxu0
      %v1154 = vpop.f32.mrb[0].mxu0
      %v1155 = vadd.f32 %v1090, %v1154
      %v1156 = vpop.f32.mrb[0].mxu0
      %1157 = vmatprep.mubr.bf16.mxu0 %v498
      %1158 = vmatmul.mubr.bf16.gmra.mrb[0].mxu0 %v497
      %v1159 = vpop.f32.mrb[0].mxu0
      %v1160 = vadd.f32 %v1095, %v1159
      %v1161 = vpop.f32.mrb[0].mxu0
      %v1162 = vpop.f32.mrb[0].mxu0
      %v1163 = vadd.f32 %v1098, %v1162
      %v1164 = vpop.f32.mrb[0].mxu0
      %1165 = vmatprep.mubr.bf16.mxu0 %v507
      %1166 = vmatmul.mubr.bf16.gmra.mrb[0].mxu0 %v506
      %v1167 = vpop.f32.mrb[0].mxu0
      %v1168 = vadd.f32 %v1103, %v1167
      %v1169 = vpop.f32.mrb[0].mxu0
      %v1170 = vpop.f32.mrb[0].mxu0
      %v1171 = vadd.f32 %v1106, %v1170
      %v1172 = vpop.f32.mrb[0].mxu0
      %1173 = vdwg.mxu0
      %1174 = vmatprep.subr.bf16.mxu0 0
      %1175 = vmatpush1.bf16.msra.mxu0 %v883
      %1176 = vmatprep.subr.bf16.mxu0 0
      %1177 = vmatpush1.bf16.msra.mxu0 %v884
      %1178 = vmatprep.subr.bf16.mxu0 0
      %1179 = vmatpush1.bf16.msra.mxu0 %v885
      %1180 = vmatprep.subr.bf16.mxu0 0
      %1181 = vmatpush1.bf16.msra.mxu0 %v886
      %1182 = vmatprep.subr.bf16.mxu0 0
      %1183 = vmatpush1.bf16.msra.mxu0 %v887
      %1184 = vmatprep.subr.bf16.mxu0 0
      %1185 = vmatpush1.bf16.msra.mxu0 %v888
      %1186 = vmatprep.subr.bf16.mxu0 0
      %1187 = vmatpush1.bf16.msra.mxu0 %v889
      %1188 = vmatprep.subr.bf16.mxu0 0
      %1189 = vmatpush1.bf16.msra.mxu0 %v890
      %1190 = vmatprep.subr.bf16.mxu0 0
      %1191 = vmatpush1.bf16.msra.mxu0 %v891
      %1192 = vmatprep.subr.bf16.mxu0 0
      %1193 = vmatpush1.bf16.msra.mxu0 %v892
      %1194 = vmatprep.subr.bf16.mxu0 0
      %1195 = vmatpush1.bf16.msra.mxu0 %v893
      %1196 = vmatprep.subr.bf16.mxu0 0
      %1197 = vmatpush1.bf16.msra.mxu0 %v894
      %1198 = vmatprep.subr.bf16.mxu0 0
      %1199 = vmatpush1.bf16.msra.mxu0 %v895
      %1200 = vmatprep.subr.bf16.mxu0 0
      %1201 = vmatpush1.bf16.msra.mxu0 %v896
      %1202 = vmatprep.subr.bf16.mxu0 0
      %1203 = vmatpush1.bf16.msra.mxu0 %v897
      %1204 = vmatprep.subr.bf16.mxu0 0
      %1205 = vmatpush1.bf16.msra.mxu0 %v898
      %1206 = vmatprep.mubr.bf16.mxu0 %v482
      %1207 = vmatmul.mubr.bf16.gmra.mrb[0].mxu0 %v481
      %v1208 = vpop.f32.mrb[0].mxu0
      %v1209 = vadd.f32 %v1144, %v1208
      %v1210 = vpop.f32.mrb[0].mxu0
      %v1211 = vpop.f32.mrb[0].mxu0
      %v1212 = vadd.f32 %v1147, %v1211
      %v1213 = vpop.f32.mrb[0].mxu0
      %1214 = vmatprep.mubr.bf16.mxu0 %v491
      %1215 = vmatmul.mubr.bf16.gmra.mrb[0].mxu0 %v490
      %v1216 = vpop.f32.mrb[0].mxu0
      %v1217 = vadd.f32 %v1152, %v1216
      %v1218 = vpop.f32.mrb[0].mxu0
      %v1219 = vpop.f32.mrb[0].mxu0
      %v1220 = vadd.f32 %v1155, %v1219
      %v1221 = vpop.f32.mrb[0].mxu0
      %1222 = vmatprep.mubr.bf16.mxu0 %v500
      %1223 = vmatmul.mubr.bf16.gmra.mrb[0].mxu0 %v499
      %v1224 = vpop.f32.mrb[0].mxu0
      %v1225 = vadd.f32 %v1160, %v1224
      %v1226 = vpop.f32.mrb[0].mxu0
      %v1227 = vpop.f32.mrb[0].mxu0
      %v1228 = vadd.f32 %v1163, %v1227
      %v1229 = vpop.f32.mrb[0].mxu0
      %1230 = vmatprep.mubr.bf16.mxu0 %v509
      %1231 = vmatmul.mubr.bf16.gmra.mrb[0].mxu0 %v508
      %v1232 = vpop.f32.mrb[0].mxu0
      %v1233 = vadd.f32 %v1168, %v1232
      %v1234 = vpop.f32.mrb[0].mxu0
      %v1235 = vpop.f32.mrb[0].mxu0
      %v1236 = vadd.f32 %v1171, %v1235
      %v1237 = vpop.f32.mrb[0].mxu0
      %1238 = vdwg.mxu0
      %1239 = vmatprep.subr.bf16.mxu0 0
      %1240 = vmatpush1.bf16.msra.mxu0 %v899
      %1241 = vmatprep.subr.bf16.mxu0 0
      %1242 = vmatpush1.bf16.msra.mxu0 %v900
      %1243 = vmatprep.subr.bf16.mxu0 0
      %1244 = vmatpush1.bf16.msra.mxu0 %v901
      %1245 = vmatprep.subr.bf16.mxu0 0
      %1246 = vmatpush1.bf16.msra.mxu0 %v902
      %1247 = vmatprep.subr.bf16.mxu0 0
      %1248 = vmatpush1.bf16.msra.mxu0 %v903
      %1249 = vmatprep.subr.bf16.mxu0 0
      %1250 = vmatpush1.bf16.msra.mxu0 %v904
      %1251 = vmatprep.subr.bf16.mxu0 0
      %1252 = vmatpush1.bf16.msra.mxu0 %v905
      %1253 = vmatprep.subr.bf16.mxu0 0
      %1254 = vmatpush1.bf16.msra.mxu0 %v906
      %1255 = vmatprep.subr.bf16.mxu0 0
      %1256 = vmatpush1.bf16.msra.mxu0 0
      %1257 = vmatprep.subr.bf16.mxu0 0
      %1258 = vmatpush1.bf16.msra.mxu0 0
      %1259 = vmatprep.subr.bf16.mxu0 0
      %1260 = vmatpush1.bf16.msra.mxu0 0
      %1261 = vmatprep.subr.bf16.mxu0 0
      %1262 = vmatpush1.bf16.msra.mxu0 0
      %1263 = vmatprep.subr.bf16.mxu0 0
      %1264 = vmatpush1.bf16.msra.mxu0 0
      %1265 = vmatprep.subr.bf16.mxu0 0
      %1266 = vmatpush1.bf16.msra.mxu0 0
      %1267 = vmatprep.subr.bf16.mxu0 0
      %1268 = vmatpush1.bf16.msra.mxu0 0
      %1269 = vmatprep.subr.bf16.mxu0 0
      %1270 = vmatpush1.bf16.msra.mxu0 0
      %1271 = vmatprep.mubr.bf16.mxu0 0
      %1272 = vmatmul.mubr.bf16.gmra.mrb[0].mxu0 %v483
      %v1273 = vpop.f32.mrb[0].mxu0
      %v1274 = vadd.f32 %v1209, %v1273
      %v1275 = vpop.f32.mrb[0].mxu0
      %v1276 = vpop.f32.mrb[0].mxu0
      %v1277 = vadd.f32 %v1212, %v1276
      %v1278 = vpop.f32.mrb[0].mxu0
      %1279 = vmatprep.mubr.bf16.mxu0 0
      %1280 = vmatmul.mubr.bf16.gmra.mrb[0].mxu0 %v492
      %v1281 = vpop.f32.mrb[0].mxu0
      %v1282 = vadd.f32 %v1217, %v1281
      %v1283 = vpop.f32.mrb[0].mxu0
      %v1284 = vpop.f32.mrb[0].mxu0
      %v1285 = vadd.f32 %v1220, %v1284
      %v1286 = vpop.f32.mrb[0].mxu0
      %1287 = vmatprep.mubr.bf16.mxu0 0
      %1288 = vmatmul.mubr.bf16.gmra.mrb[0].mxu0 %v501
      %v1289 = vpop.f32.mrb[0].mxu0
      %v1290 = vadd.f32 %v1225, %v1289
      %v1291 = vpop.f32.mrb[0].mxu0
      %v1292 = vpop.f32.mrb[0].mxu0
      %v1293 = vadd.f32 %v1228, %v1292
      %v1294 = vpop.f32.mrb[0].mxu0
      %1295 = vmatprep.mubr.bf16.mxu0 0
      %1296 = vmatmul.mubr.bf16.gmra.mrb[0].mxu0 %v510
      %v1297 = vpop.f32.mrb[0].mxu0
      %v1298 = vadd.f32 %v1233, %v1297
      %v1299 = vpop.f32.mrb[0].mxu0
      %v1300 = vpop.f32.mrb[0].mxu0
      %v1301 = vadd.f32 %v1236, %v1300
      %v1302 = vpop.f32.mrb[0].mxu0
      %1303 = vdwg.mxu0
      %v1304 = vmax.f32 %v1274, 0.0
      %v1305 = vmax.f32 %v1277, 0.0
      %v1306 = vmax.f32 %v1282, 0.0
      %v1307 = vmax.f32 %v1285, 0.0
      %v1308 = vmax.f32 %v1290, 0.0
      %v1309 = vmax.f32 %v1293, 0.0
      %v1310 = vmax.f32 %v1298, 0.0
      %v1311 = vmax.f32 %v1301, 0.0
      %v1312 = vld [vmem:[%s165 + $0x120] sm:$0xff]
      %v1313 = vld [vmem:[%s165 + $0x128] sm:$0xff]
      %v1314 = vld [vmem:[%s165 + $0x130] sm:$0xff]
      %v1315 = vld [vmem:[%s165 + $0x138] sm:$0xff]
      %v1316 = vld [vmem:[%s165 + $0x140] sm:$0xf]
      %v1317 = vld [vmem:[%s165 + $0x144] sm:$0xff]
      %v1318 = vld [vmem:[%s165 + $0x14c] sm:$0xff]
      %v1319 = vld [vmem:[%s165 + $0x154] sm:$0xff]
      %v1320 = vld [vmem:[%s165 + $0x15c] sm:$0xff]
      %v1321 = vld [vmem:[%s165 + $0x164] sm:$0xf]
      %v1322 = vld [vmem:[%s165 + $0x168] sm:$0xff]
      %v1323 = vld [vmem:[%s165 + $0x170] sm:$0xff]
      %v1324 = vld [vmem:[%s165 + $0x178] sm:$0xff]
      %v1325 = vld [vmem:[%s165 + $0x180] sm:$0xff]
      %v1326 = vld [vmem:[%s165 + $0x188] sm:$0xf]
      %v1327 = vld [vmem:[%s165 + $0x18c] sm:$0xff]
      %v1328 = vld [vmem:[%s165 + $0x194] sm:$0xff]
      %v1329 = vld [vmem:[%s165 + $0x19c] sm:$0xff]
      %v1330 = vld [vmem:[%s165 + $0x1a4] sm:$0xff]
      %v1331 = vld [vmem:[%s165 + $0x1ac] sm:$0xf]
      %v1332 = vld [vmem:[%s165 + $0x1b0] sm:$0xff]
      %v1333 = vld [vmem:[%s165 + $0x1b8] sm:$0xff]
      %v1334 = vld [vmem:[%s165 + $0x1c0] sm:$0xff]
      %v1335 = vld [vmem:[%s165 + $0x1c8] sm:$0xff]
      %v1336 = vld [vmem:[%s165 + $0x1d0] sm:$0xf]
      %v1337 = vld [vmem:[%s165 + $0x1d4] sm:$0xff]
      %v1338 = vld [vmem:[%s165 + $0x1dc] sm:$0xff]
      %v1339 = vld [vmem:[%s165 + $0x1e4] sm:$0xff]
      %v1340 = vld [vmem:[%s165 + $0x1ec] sm:$0xff]
      %v1341 = vld [vmem:[%s165 + $0x1f4] sm:$0xf]
      %v1342 = vld [vmem:[%s165 + $0x1f8] sm:$0xff]
      %v1343 = vld [vmem:[%s165 + $0x200] sm:$0xff]
      %v1344 = vld [vmem:[%s165 + $0x208] sm:$0xff]
      %v1345 = vld [vmem:[%s165 + $0x210] sm:$0xff]
      %v1346 = vld [vmem:[%s165 + $0x218] sm:$0xf]
      %v1347 = vld [vmem:[%s165 + $0x21c] sm:$0xff]
      %v1348 = vld [vmem:[%s165 + $0x224] sm:$0xff]
      %v1349 = vld [vmem:[%s165 + $0x22c] sm:$0xff]
      %v1350 = vld [vmem:[%s165 + $0x234] sm:$0xff]
      %v1351 = vld [vmem:[%s165 + $0x23c] sm:$0xf]
      %v1392 = vunpack.c.l.b16 %v1312
      %v1393 = vunpack.c.h.b16 %v1312
      %v1394 = vunpack.c.l.b16 %v1313
      %v1395 = vunpack.c.h.b16 %v1313
      %v1396 = vunpack.c.l.b16 %v1314
      %v1397 = vunpack.c.h.b16 %v1314
      %v1398 = vunpack.c.l.b16 %v1315
      %v1399 = vunpack.c.h.b16 %v1315
      %v1400 = vunpack.c.l.b16 %v1316
      %v1401 = vunpack.c.l.b16 %v1317
      %v1402 = vunpack.c.h.b16 %v1317
      %v1403 = vunpack.c.l.b16 %v1318
      %v1404 = vunpack.c.h.b16 %v1318
      %v1405 = vunpack.c.l.b16 %v1319
      %v1406 = vunpack.c.h.b16 %v1319
      %v1407 = vunpack.c.l.b16 %v1320
      %v1408 = vunpack.c.h.b16 %v1320
      %v1409 = vunpack.c.l.b16 %v1321
      %v1410 = vunpack.c.l.b16 %v1322
      %v1411 = vunpack.c.h.b16 %v1322
      %v1412 = vunpack.c.l.b16 %v1323
      %v1413 = vunpack.c.h.b16 %v1323
      %v1414 = vunpack.c.l.b16 %v1324
      %v1415 = vunpack.c.h.b16 %v1324
      %v1416 = vunpack.c.l.b16 %v1325
      %v1417 = vunpack.c.h.b16 %v1325
      %v1418 = vunpack.c.l.b16 %v1326
      %v1419 = vunpack.c.l.b16 %v1327
      %v1420 = vunpack.c.h.b16 %v1327
      %v1421 = vunpack.c.l.b16 %v1328
      %v1422 = vunpack.c.h.b16 %v1328
      %v1423 = vunpack.c.l.b16 %v1329
      %v1424 = vunpack.c.h.b16 %v1329
      %v1425 = vunpack.c.l.b16 %v1330
      %v1426 = vunpack.c.h.b16 %v1330
      %v1427 = vunpack.c.l.b16 %v1331
      %v1428 = vunpack.c.l.b16 %v1332
      %v1429 = vunpack.c.h.b16 %v1332
      %v1430 = vunpack.c.l.b16 %v1333
      %v1431 = vunpack.c.h.b16 %v1333
      %v1432 = vunpack.c.l.b16 %v1334
      %v1433 = vunpack.c.h.b16 %v1334
      %v1434 = vunpack.c.l.b16 %v1335
      %v1435 = vunpack.c.h.b16 %v1335
      %v1436 = vunpack.c.l.b16 %v1336
      %v1437 = vunpack.c.l.b16 %v1337
      %v1438 = vunpack.c.h.b16 %v1337
      %v1439 = vunpack.c.l.b16 %v1338
      %v1440 = vunpack.c.h.b16 %v1338
      %v1441 = vunpack.c.l.b16 %v1339
      %v1442 = vunpack.c.h.b16 %v1339
      %v1443 = vunpack.c.l.b16 %v1340
      %v1444 = vunpack.c.h.b16 %v1340
      %v1445 = vunpack.c.l.b16 %v1341
      %v1446 = vunpack.c.l.b16 %v1342
      %v1447 = vunpack.c.h.b16 %v1342
      %v1448 = vunpack.c.l.b16 %v1343
      %v1449 = vunpack.c.h.b16 %v1343
      %v1450 = vunpack.c.l.b16 %v1344
      %v1451 = vunpack.c.h.b16 %v1344
      %v1452 = vunpack.c.l.b16 %v1345
      %v1453 = vunpack.c.h.b16 %v1345
      %v1454 = vunpack.c.l.b16 %v1346
      %v1455 = vunpack.c.l.b16 %v1347
      %v1456 = vunpack.c.h.b16 %v1347
      %v1457 = vunpack.c.l.b16 %v1348
      %v1458 = vunpack.c.h.b16 %v1348
      %v1459 = vunpack.c.l.b16 %v1349
      %v1460 = vunpack.c.h.b16 %v1349
      %v1461 = vunpack.c.l.b16 %v1350
      %v1462 = vunpack.c.h.b16 %v1350
      %v1463 = vunpack.c.l.b16 %v1351
      %v1464 = vpack.c.b16 %v1401, %v1392
      %v1465 = vpack.c.b16 %v1402, %v1393
      %v1466 = vpack.c.b16 %v1403, %v1394
      %v1467 = vpack.c.b16 %v1404, %v1395
      %v1468 = vpack.c.b16 %v1405, %v1396
      %v1469 = vpack.c.b16 %v1406, %v1397
      %v1470 = vpack.c.b16 %v1407, %v1398
      %v1471 = vpack.c.b16 %v1408, %v1399
      %v1472 = vpack.c.b16 %v1409, %v1400
      %v1473 = vpack.c.b16 %v1419, %v1410
      %v1474 = vpack.c.b16 %v1420, %v1411
      %v1475 = vpack.c.b16 %v1421, %v1412
      %v1476 = vpack.c.b16 %v1422, %v1413
      %v1477 = vpack.c.b16 %v1423, %v1414
      %v1478 = vpack.c.b16 %v1424, %v1415
      %v1479 = vpack.c.b16 %v1425, %v1416
      %v1480 = vpack.c.b16 %v1426, %v1417
      %v1481 = vpack.c.b16 %v1427, %v1418
      %v1482 = vpack.c.b16 %v1437, %v1428
      %v1483 = vpack.c.b16 %v1438, %v1429
      %v1484 = vpack.c.b16 %v1439, %v1430
      %v1485 = vpack.c.b16 %v1440, %v1431
      %v1486 = vpack.c.b16 %v1441, %v1432
      %v1487 = vpack.c.b16 %v1442, %v1433
      %v1488 = vpack.c.b16 %v1443, %v1434
      %v1489 = vpack.c.b16 %v1444, %v1435
      %v1490 = vpack.c.b16 %v1445, %v1436
      %v1491 = vpack.c.b16 %v1455, %v1446
      %v1492 = vpack.c.b16 %v1456, %v1447
      %v1493 = vpack.c.b16 %v1457, %v1448
      %v1494 = vpack.c.b16 %v1458, %v1449
      %v1495 = vpack.c.b16 %v1459, %v1450
      %v1496 = vpack.c.b16 %v1460, %v1451
      %v1497 = vpack.c.b16 %v1461, %v1452
      %v1498 = vpack.c.b16 %v1462, %v1453
      %v1499 = vpack.c.b16 %v1463, %v1454
      %1536 = vmatprep.subr.bf16.mxu0 0
      %1537 = vmatpush1.bf16.msra.mxu0 %v835
      %1538 = vmatprep.subr.bf16.mxu0 0
      %1539 = vmatpush1.bf16.msra.mxu0 %v836
      %1540 = vmatprep.subr.bf16.mxu0 0
      %1541 = vmatpush1.bf16.msra.mxu0 %v837
      %1542 = vmatprep.subr.bf16.mxu0 0
      %1543 = vmatpush1.bf16.msra.mxu0 %v838
      %1544 = vmatprep.subr.bf16.mxu0 0
      %1545 = vmatpush1.bf16.msra.mxu0 %v839
      %1546 = vmatprep.subr.bf16.mxu0 0
      %1547 = vmatpush1.bf16.msra.mxu0 %v840
      %1548 = vmatprep.subr.bf16.mxu0 0
      %1549 = vmatpush1.bf16.msra.mxu0 %v841
      %1550 = vmatprep.subr.bf16.mxu0 0
      %1551 = vmatpush1.bf16.msra.mxu0 %v842
      %1552 = vmatprep.subr.bf16.mxu0 0
      %1553 = vmatpush1.bf16.msra.mxu0 %v843
      %1554 = vmatprep.subr.bf16.mxu0 0
      %1555 = vmatpush1.bf16.msra.mxu0 %v844
      %1556 = vmatprep.subr.bf16.mxu0 0
      %1557 = vmatpush1.bf16.msra.mxu0 %v845
      %1558 = vmatprep.subr.bf16.mxu0 0
      %1559 = vmatpush1.bf16.msra.mxu0 %v846
      %1560 = vmatprep.subr.bf16.mxu0 0
      %1561 = vmatpush1.bf16.msra.mxu0 %v847
      %1562 = vmatprep.subr.bf16.mxu0 0
      %1563 = vmatpush1.bf16.msra.mxu0 %v848
      %1564 = vmatprep.subr.bf16.mxu0 0
      %1565 = vmatpush1.bf16.msra.mxu0 %v849
      %1566 = vmatprep.subr.bf16.mxu0 0
      %1567 = vmatpush1.bf16.msra.mxu0 %v850
      %1568 = vmatprep.mubr.bf16.mxu0 %v1465
      %1569 = vmatmul.mubr.bf16.gmra.mrb[0].mxu0 %v1464
      %v1570 = vpop.f32.mrb[0].mxu0
      %v1571 = vadd.f32 %v361, %v1570
      %v1572 = vpop.f32.mrb[0].mxu0
      %v1573 = vpop.f32.mrb[0].mxu0
      %v1574 = vadd.f32 %v361, %v1573
      %v1575 = vpop.f32.mrb[0].mxu0
      %1576 = vmatprep.mubr.bf16.mxu0 %v1474
      %1577 = vmatmul.mubr.bf16.gmra.mrb[0].mxu0 %v1473
      %v1578 = vpop.f32.mrb[0].mxu0
      %v1579 = vadd.f32 %v361, %v1578
      %v1580 = vpop.f32.mrb[0].mxu0
      %v1581 = vpop.f32.mrb[0].mxu0
      %v1582 = vadd.f32 %v361, %v1581
      %v1583 = vpop.f32.mrb[0].mxu0
      %1584 = vmatprep.mubr.bf16.mxu0 %v1483
      %1585 = vmatmul.mubr.bf16.gmra.mrb[0].mxu0 %v1482
      %v1586 = vpop.f32.mrb[0].mxu0
      %v1587 = vadd.f32 %v361, %v1586
      %v1588 = vpop.f32.mrb[0].mxu0
      %v1589 = vpop.f32.mrb[0].mxu0
      %v1590 = vadd.f32 %v361, %v1589
      %v1591 = vpop.f32.mrb[0].mxu0
      %1592 = vmatprep.mubr.bf16.mxu0 %v1492
      %1593 = vmatmul.mubr.bf16.gmra.mrb[0].mxu0 %v1491
      %v1594 = vpop.f32.mrb[0].mxu0
      %v1595 = vadd.f32 %v361, %v1594
      %v1596 = vpop.f32.mrb[0].mxu0
      %v1597 = vpop.f32.mrb[0].mxu0
      %v1598 = vadd.f32 %v361, %v1597
      %v1599 = vpop.f32.mrb[0].mxu0
      %1600 = vdwg.mxu0
      %1601 = vmatprep.subr.bf16.mxu0 0
      %1602 = vmatpush1.bf16.msra.mxu0 %v851
      %1603 = vmatprep.subr.bf16.mxu0 0
      %1604 = vmatpush1.bf16.msra.mxu0 %v852
      %1605 = vmatprep.subr.bf16.mxu0 0
      %1606 = vmatpush1.bf16.msra.mxu0 %v853
      %1607 = vmatprep.subr.bf16.mxu0 0
      %1608 = vmatpush1.bf16.msra.mxu0 %v854
      %1609 = vmatprep.subr.bf16.mxu0 0
      %1610 = vmatpush1.bf16.msra.mxu0 %v855
      %1611 = vmatprep.subr.bf16.mxu0 0
      %1612 = vmatpush1.bf16.msra.mxu0 %v856
      %1613 = vmatprep.subr.bf16.mxu0 0
      %1614 = vmatpush1.bf16.msra.mxu0 %v857
      %1615 = vmatprep.subr.bf16.mxu0 0
      %1616 = vmatpush1.bf16.msra.mxu0 %v858
      %1617 = vmatprep.subr.bf16.mxu0 0
      %1618 = vmatpush1.bf16.msra.mxu0 %v859
      %1619 = vmatprep.subr.bf16.mxu0 0
      %1620 = vmatpush1.bf16.msra.mxu0 %v860
      %1621 = vmatprep.subr.bf16.mxu0 0
      %1622 = vmatpush1.bf16.msra.mxu0 %v861
      %1623 = vmatprep.subr.bf16.mxu0 0
      %1624 = vmatpush1.bf16.msra.mxu0 %v862
      %1625 = vmatprep.subr.bf16.mxu0 0
      %1626 = vmatpush1.bf16.msra.mxu0 %v863
      %1627 = vmatprep.subr.bf16.mxu0 0
      %1628 = vmatpush1.bf16.msra.mxu0 %v864
      %1629 = vmatprep.subr.bf16.mxu0 0
      %1630 = vmatpush1.bf16.msra.mxu0 %v865
      %1631 = vmatprep.subr.bf16.mxu0 0
      %1632 = vmatpush1.bf16.msra.mxu0 %v866
      %1633 = vmatprep.mubr.bf16.mxu0 %v1467
      %1634 = vmatmul.mubr.bf16.gmra.mrb[0].mxu0 %v1466
      %v1635 = vpop.f32.mrb[0].mxu0
      %v1636 = vadd.f32 %v1571, %v1635
      %v1637 = vpop.f32.mrb[0].mxu0
      %v1638 = vpop.f32.mrb[0].mxu0
      %v1639 = vadd.f32 %v1574, %v1638
      %v1640 = vpop.f32.mrb[0].mxu0
      %1641 = vmatprep.mubr.bf16.mxu0 %v1476
      %1642 = vmatmul.mubr.bf16.gmra.mrb[0].mxu0 %v1475
      %v1643 = vpop.f32.mrb[0].mxu0
      %v1644 = vadd.f32 %v1579, %v1643
      %v1645 = vpop.f32.mrb[0].mxu0
      %v1646 = vpop.f32.mrb[0].mxu0
      %v1647 = vadd.f32 %v1582, %v1646
      %v1648 = vpop.f32.mrb[0].mxu0
      %1649 = vmatprep.mubr.bf16.mxu0 %v1485
      %1650 = vmatmul.mubr.bf16.gmra.mrb[0].mxu0 %v1484
      %v1651 = vpop.f32.mrb[0].mxu0
      %v1652 = vadd.f32 %v1587, %v1651
      %v1653 = vpop.f32.mrb[0].mxu0
      %v1654 = vpop.f32.mrb[0].mxu0
      %v1655 = vadd.f32 %v1590, %v1654
      %v1656 = vpop.f32.mrb[0].mxu0
      %1657 = vmatprep.mubr.bf16.mxu0 %v1494
      %1658 = vmatmul.mubr.bf16.gmra.mrb[0].mxu0 %v1493
      %v1659 = vpop.f32.mrb[0].mxu0
      %v1660 = vadd.f32 %v1595, %v1659
      %v1661 = vpop.f32.mrb[0].mxu0
      %v1662 = vpop.f32.mrb[0].mxu0
      %v1663 = vadd.f32 %v1598, %v1662
      %v1664 = vpop.f32.mrb[0].mxu0
      %1665 = vdwg.mxu0
      %1666 = vmatprep.subr.bf16.mxu0 0
      %1667 = vmatpush1.bf16.msra.mxu0 %v867
      %1668 = vmatprep.subr.bf16.mxu0 0
      %1669 = vmatpush1.bf16.msra.mxu0 %v868
      %1670 = vmatprep.subr.bf16.mxu0 0
      %1671 = vmatpush1.bf16.msra.mxu0 %v869
      %1672 = vmatprep.subr.bf16.mxu0 0
      %1673 = vmatpush1.bf16.msra.mxu0 %v870
      %1674 = vmatprep.subr.bf16.mxu0 0
      %1675 = vmatpush1.bf16.msra.mxu0 %v871
      %1676 = vmatprep.subr.bf16.mxu0 0
      %1677 = vmatpush1.bf16.msra.mxu0 %v872
      %1678 = vmatprep.subr.bf16.mxu0 0
      %1679 = vmatpush1.bf16.msra.mxu0 %v873
      %1680 = vmatprep.subr.bf16.mxu0 0
      %1681 = vmatpush1.bf16.msra.mxu0 %v874
      %1682 = vmatprep.subr.bf16.mxu0 0
      %1683 = vmatpush1.bf16.msra.mxu0 %v875
      %1684 = vmatprep.subr.bf16.mxu0 0
      %1685 = vmatpush1.bf16.msra.mxu0 %v876
      %1686 = vmatprep.subr.bf16.mxu0 0
      %1687 = vmatpush1.bf16.msra.mxu0 %v877
      %1688 = vmatprep.subr.bf16.mxu0 0
      %1689 = vmatpush1.bf16.msra.mxu0 %v878
      %1690 = vmatprep.subr.bf16.mxu0 0
      %1691 = vmatpush1.bf16.msra.mxu0 %v879
      %1692 = vmatprep.subr.bf16.mxu0 0
      %1693 = vmatpush1.bf16.msra.mxu0 %v880
      %1694 = vmatprep.subr.bf16.mxu0 0
      %1695 = vmatpush1.bf16.msra.mxu0 %v881
      %1696 = vmatprep.subr.bf16.mxu0 0
      %1697 = vmatpush1.bf16.msra.mxu0 %v882
      %1698 = vmatprep.mubr.bf16.mxu0 %v1469
      %1699 = vmatmul.mubr.bf16.gmra.mrb[0].mxu0 %v1468
      %v1700 = vpop.f32.mrb[0].mxu0
      %v1701 = vadd.f32 %v1636, %v1700
      %v1702 = vpop.f32.mrb[0].mxu0
      %v1703 = vpop.f32.mrb[0].mxu0
      %v1704 = vadd.f32 %v1639, %v1703
      %v1705 = vpop.f32.mrb[0].mxu0
      %1706 = vmatprep.mubr.bf16.mxu0 %v1478
      %1707 = vmatmul.mubr.bf16.gmra.mrb[0].mxu0 %v1477
      %v1708 = vpop.f32.mrb[0].mxu0
      %v1709 = vadd.f32 %v1644, %v1708
      %v1710 = vpop.f32.mrb[0].mxu0
      %v1711 = vpop.f32.mrb[0].mxu0
      %v1712 = vadd.f32 %v1647, %v1711
      %v1713 = vpop.f32.mrb[0].mxu0
      %1714 = vmatprep.mubr.bf16.mxu0 %v1487
      %1715 = vmatmul.mubr.bf16.gmra.mrb[0].mxu0 %v1486
      %v1716 = vpop.f32.mrb[0].mxu0
      %v1717 = vadd.f32 %v1652, %v1716
      %v1718 = vpop.f32.mrb[0].mxu0
      %v1719 = vpop.f32.mrb[0].mxu0
      %v1720 = vadd.f32 %v1655, %v1719
      %v1721 = vpop.f32.mrb[0].mxu0
      %1722 = vmatprep.mubr.bf16.mxu0 %v1496
      %1723 = vmatmul.mubr.bf16.gmra.mrb[0].mxu0 %v1495
      %v1724 = vpop.f32.mrb[0].mxu0
      %v1725 = vadd.f32 %v1660, %v1724
      %v1726 = vpop.f32.mrb[0].mxu0
      %v1727 = vpop.f32.mrb[0].mxu0
      %v1728 = vadd.f32 %v1663, %v1727
      %v1729 = vpop.f32.mrb[0].mxu0
      %1730 = vdwg.mxu0
      %1731 = vmatprep.subr.bf16.mxu0 0
      %1732 = vmatpush1.bf16.msra.mxu0 %v883
      %1733 = vmatprep.subr.bf16.mxu0 0
      %1734 = vmatpush1.bf16.msra.mxu0 %v884
      %1735 = vmatprep.subr.bf16.mxu0 0
      %1736 = vmatpush1.bf16.msra.mxu0 %v885
      %1737 = vmatprep.subr.bf16.mxu0 0
      %1738 = vmatpush1.bf16.msra.mxu0 %v886
      %1739 = vmatprep.subr.bf16.mxu0 0
      %1740 = vmatpush1.bf16.msra.mxu0 %v887
      %1741 = vmatprep.subr.bf16.mxu0 0
      %1742 = vmatpush1.bf16.msra.mxu0 %v888
      %1743 = vmatprep.subr.bf16.mxu0 0
      %1744 = vmatpush1.bf16.msra.mxu0 %v889
      %1745 = vmatprep.subr.bf16.mxu0 0
      %1746 = vmatpush1.bf16.msra.mxu0 %v890
      %1747 = vmatprep.subr.bf16.mxu0 0
      %1748 = vmatpush1.bf16.msra.mxu0 %v891
      %1749 = vmatprep.subr.bf16.mxu0 0
      %1750 = vmatpush1.bf16.msra.mxu0 %v892
      %1751 = vmatprep.subr.bf16.mxu0 0
      %1752 = vmatpush1.bf16.msra.mxu0 %v893
      %1753 = vmatprep.subr.bf16.mxu0 0
      %1754 = vmatpush1.bf16.msra.mxu0 %v894
      %1755 = vmatprep.subr.bf16.mxu0 0
      %1756 = vmatpush1.bf16.msra.mxu0 %v895
      %1757 = vmatprep.subr.bf16.mxu0 0
      %1758 = vmatpush1.bf16.msra.mxu0 %v896
      %1759 = vmatprep.subr.bf16.mxu0 0
      %1760 = vmatpush1.bf16.msra.mxu0 %v897
      %1761 = vmatprep.subr.bf16.mxu0 0
      %1762 = vmatpush1.bf16.msra.mxu0 %v898
      %1763 = vmatprep.mubr.bf16.mxu0 %v1471
      %1764 = vmatmul.mubr.bf16.gmra.mrb[0].mxu0 %v1470
      %v1765 = vpop.f32.mrb[0].mxu0
      %v1766 = vadd.f32 %v1701, %v1765
      %v1767 = vpop.f32.mrb[0].mxu0
      %v1768 = vpop.f32.mrb[0].mxu0
      %v1769 = vadd.f32 %v1704, %v1768
      %v1770 = vpop.f32.mrb[0].mxu0
      %1771 = vmatprep.mubr.bf16.mxu0 %v1480
      %1772 = vmatmul.mubr.bf16.gmra.mrb[0].mxu0 %v1479
      %v1773 = vpop.f32.mrb[0].mxu0
      %v1774 = vadd.f32 %v1709, %v1773
      %v1775 = vpop.f32.mrb[0].mxu0
      %v1776 = vpop.f32.mrb[0].mxu0
      %v1777 = vadd.f32 %v1712, %v1776
      %v1778 = vpop.f32.mrb[0].mxu0
      %1779 = vmatprep.mubr.bf16.mxu0 %v1489
      %1780 = vmatmul.mubr.bf16.gmra.mrb[0].mxu0 %v1488
      %v1781 = vpop.f32.mrb[0].mxu0
      %v1782 = vadd.f32 %v1717, %v1781
      %v1783 = vpop.f32.mrb[0].mxu0
      %v1784 = vpop.f32.mrb[0].mxu0
      %v1785 = vadd.f32 %v1720, %v1784
      %v1786 = vpop.f32.mrb[0].mxu0
      %1787 = vmatprep.mubr.bf16.mxu0 %v1498
      %1788 = vmatmul.mubr.bf16.gmra.mrb[0].mxu0 %v1497
      %v1789 = vpop.f32.mrb[0].mxu0
      %v1790 = vadd.f32 %v1725, %v1789
      %v1791 = vpop.f32.mrb[0].mxu0
      %v1792 = vpop.f32.mrb[0].mxu0
      %v1793 = vadd.f32 %v1728, %v1792
      %v1794 = vpop.f32.mrb[0].mxu0
      %1795 = vdwg.mxu0
      %1796 = vmatprep.subr.bf16.mxu0 0
      %1797 = vmatpush1.bf16.msra.mxu0 %v899
      %1798 = vmatprep.subr.bf16.mxu0 0
      %1799 = vmatpush1.bf16.msra.mxu0 %v900
      %1800 = vmatprep.subr.bf16.mxu0 0
      %1801 = vmatpush1.bf16.msra.mxu0 %v901
      %1802 = vmatprep.subr.bf16.mxu0 0
      %1803 = vmatpush1.bf16.msra.mxu0 %v902
      %1804 = vmatprep.subr.bf16.mxu0 0
      %1805 = vmatpush1.bf16.msra.mxu0 %v903
      %1806 = vmatprep.subr.bf16.mxu0 0
      %1807 = vmatpush1.bf16.msra.mxu0 %v904
      %1808 = vmatprep.subr.bf16.mxu0 0
      %1809 = vmatpush1.bf16.msra.mxu0 %v905
      %1810 = vmatprep.subr.bf16.mxu0 0
      %1811 = vmatpush1.bf16.msra.mxu0 %v906
      %1812 = vmatprep.subr.bf16.mxu0 0
      %1813 = vmatpush1.bf16.msra.mxu0 0
      %1814 = vmatprep.subr.bf16.mxu0 0
      %1815 = vmatpush1.bf16.msra.mxu0 0
      %1816 = vmatprep.subr.bf16.mxu0 0
      %1817 = vmatpush1.bf16.msra.mxu0 0
      %1818 = vmatprep.subr.bf16.mxu0 0
      %1819 = vmatpush1.bf16.msra.mxu0 0
      %1820 = vmatprep.subr.bf16.mxu0 0
      %1821 = vmatpush1.bf16.msra.mxu0 0
      %1822 = vmatprep.subr.bf16.mxu0 0
      %1823 = vmatpush1.bf16.msra.mxu0 0
      %1824 = vmatprep.subr.bf16.mxu0 0
      %1825 = vmatpush1.bf16.msra.mxu0 0
      %1826 = vmatprep.subr.bf16.mxu0 0
      %1827 = vmatpush1.bf16.msra.mxu0 0
      %1828 = vmatprep.mubr.bf16.mxu0 0
      %1829 = vmatmul.mubr.bf16.gmra.mrb[0].mxu0 %v1472
      %v1830 = vpop.f32.mrb[0].mxu0
      %v1831 = vadd.f32 %v1766, %v1830
      %v1832 = vpop.f32.mrb[0].mxu0
      %v1833 = vpop.f32.mrb[0].mxu0
      %v1834 = vadd.f32 %v1769, %v1833
      %v1835 = vpop.f32.mrb[0].mxu0
      %1836 = vmatprep.mubr.bf16.mxu0 0
      %1837 = vmatmul.mubr.bf16.gmra.mrb[0].mxu0 %v1481
      %v1838 = vpop.f32.mrb[0].mxu0
      %v1839 = vadd.f32 %v1774, %v1838
      %v1840 = vpop.f32.mrb[0].mxu0
      %v1841 = vpop.f32.mrb[0].mxu0
      %v1842 = vadd.f32 %v1777, %v1841
      %v1843 = vpop.f32.mrb[0].mxu0
      %1844 = vmatprep.mubr.bf16.mxu0 0
      %1845 = vmatmul.mubr.bf16.gmra.mrb[0].mxu0 %v1490
      %v1846 = vpop.f32.mrb[0].mxu0
      %v1847 = vadd.f32 %v1782, %v1846
      %v1848 = vpop.f32.mrb[0].mxu0
      %v1849 = vpop.f32.mrb[0].mxu0
      %v1850 = vadd.f32 %v1785, %v1849
      %v1851 = vpop.f32.mrb[0].mxu0
      %1852 = vmatprep.mubr.bf16.mxu0 0
      %1853 = vmatmul.mubr.bf16.gmra.mrb[0].mxu0 %v1499
      %v1854 = vpop.f32.mrb[0].mxu0
      %v1855 = vadd.f32 %v1790, %v1854
      %v1856 = vpop.f32.mrb[0].mxu0
      %v1857 = vpop.f32.mrb[0].mxu0
      %v1858 = vadd.f32 %v1793, %v1857
      %v1859 = vpop.f32.mrb[0].mxu0
      %1860 = vdwg.mxu0
      %v1861 = vmax.f32 %v1831, 0.0
      %v1862 = vmax.f32 %v1834, 0.0
      %v1863 = vmax.f32 %v1839, 0.0
      %v1864 = vmax.f32 %v1842, 0.0
      %v1865 = vmax.f32 %v1847, 0.0
      %v1866 = vmax.f32 %v1850, 0.0
      %v1867 = vmax.f32 %v1855, 0.0
      %v1868 = vmax.f32 %v1858, 0.0
      %v1869 = vmax.f32 %v1304, %v1861
      %v1870 = vmax.f32 %v1305, %v1862
      %v1871 = vmax.f32 %v1306, %v1863
      %v1872 = vmax.f32 %v1307, %v1864
      %v1873 = vmax.f32 %v1308, %v1865
      %v1874 = vmax.f32 %v1309, %v1866
      %v1875 = vmax.f32 %v1310, %v1867
      %v1876 = vmax.f32 %v1311, %v1868
      %v1877 = vld [vmem:[%s165 + $0x240] sm:$0xff]
      %v1878 = vld [vmem:[%s165 + $0x248] sm:$0xff]
      %v1879 = vld [vmem:[%s165 + $0x250] sm:$0xff]
      %v1880 = vld [vmem:[%s165 + $0x258] sm:$0xff]
      %v1881 = vld [vmem:[%s165 + $0x260] sm:$0xf]
      %v1882 = vld [vmem:[%s165 + $0x264] sm:$0xff]
      %v1883 = vld [vmem:[%s165 + $0x26c] sm:$0xff]
      %v1884 = vld [vmem:[%s165 + $0x274] sm:$0xff]
      %v1885 = vld [vmem:[%s165 + $0x27c] sm:$0xff]
      %v1886 = vld [vmem:[%s165 + $0x284] sm:$0xf]
      %v1887 = vld [vmem:[%s165 + $0x288] sm:$0xff]
      %v1888 = vld [vmem:[%s165 + $0x290] sm:$0xff]
      %v1889 = vld [vmem:[%s165 + $0x298] sm:$0xff]
      %v1890 = vld [vmem:[%s165 + $0x2a0] sm:$0xff]
      %v1891 = vld [vmem:[%s165 + $0x2a8] sm:$0xf]
      %v1892 = vld [vmem:[%s165 + $0x2ac] sm:$0xff]
      %v1893 = vld [vmem:[%s165 + $0x2b4] sm:$0xff]
      %v1894 = vld [vmem:[%s165 + $0x2bc] sm:$0xff]
      %v1895 = vld [vmem:[%s165 + $0x2c4] sm:$0xff]
      %v1896 = vld [vmem:[%s165 + $0x2cc] sm:$0xf]
      %v1897 = vld [vmem:[%s165 + $0x2d0] sm:$0xff]
      %v1898 = vld [vmem:[%s165 + $0x2d8] sm:$0xff]
      %v1899 = vld [vmem:[%s165 + $0x2e0] sm:$0xff]
      %v1900 = vld [vmem:[%s165 + $0x2e8] sm:$0xff]
      %v1901 = vld [vmem:[%s165 + $0x2f0] sm:$0xf]
      %v1902 = vld [vmem:[%s165 + $0x2f4] sm:$0xff]
      %v1903 = vld [vmem:[%s165 + $0x2fc] sm:$0xff]
      %v1904 = vld [vmem:[%s165 + $0x304] sm:$0xff]
      %v1905 = vld [vmem:[%s165 + $0x30c] sm:$0xff]
      %v1906 = vld [vmem:[%s165 + $0x314] sm:$0xf]
      %v1907 = vld [vmem:[%s165 + $0x318] sm:$0xff]
      %v1908 = vld [vmem:[%s165 + $0x320] sm:$0xff]
      %v1909 = vld [vmem:[%s165 + $0x328] sm:$0xff]
      %v1910 = vld [vmem:[%s165 + $0x330] sm:$0xff]
      %v1911 = vld [vmem:[%s165 + $0x338] sm:$0xf]
      %v1912 = vld [vmem:[%s165 + $0x33c] sm:$0xff]
      %v1913 = vld [vmem:[%s165 + $0x344] sm:$0xff]
      %v1914 = vld [vmem:[%s165 + $0x34c] sm:$0xff]
      %v1915 = vld [vmem:[%s165 + $0x354] sm:$0xff]
      %v1916 = vld [vmem:[%s165 + $0x35c] sm:$0xf]
      %v1957 = vunpack.c.l.b16 %v1877
      %v1958 = vunpack.c.h.b16 %v1877
      %v1959 = vunpack.c.l.b16 %v1878
      %v1960 = vunpack.c.h.b16 %v1878
      %v1961 = vunpack.c.l.b16 %v1879
      %v1962 = vunpack.c.h.b16 %v1879
      %v1963 = vunpack.c.l.b16 %v1880
      %v1964 = vunpack.c.h.b16 %v1880
      %v1965 = vunpack.c.l.b16 %v1881
      %v1966 = vunpack.c.l.b16 %v1882
      %v1967 = vunpack.c.h.b16 %v1882
      %v1968 = vunpack.c.l.b16 %v1883
      %v1969 = vunpack.c.h.b16 %v1883
      %v1970 = vunpack.c.l.b16 %v1884
      %v1971 = vunpack.c.h.b16 %v1884
      %v1972 = vunpack.c.l.b16 %v1885
      %v1973 = vunpack.c.h.b16 %v1885
      %v1974 = vunpack.c.l.b16 %v1886
      %v1975 = vunpack.c.l.b16 %v1887
      %v1976 = vunpack.c.h.b16 %v1887
      %v1977 = vunpack.c.l.b16 %v1888
      %v1978 = vunpack.c.h.b16 %v1888
      %v1979 = vunpack.c.l.b16 %v1889
      %v1980 = vunpack.c.h.b16 %v1889
      %v1981 = vunpack.c.l.b16 %v1890
      %v1982 = vunpack.c.h.b16 %v1890
      %v1983 = vunpack.c.l.b16 %v1891
      %v1984 = vunpack.c.l.b16 %v1892
      %v1985 = vunpack.c.h.b16 %v1892
      %v1986 = vunpack.c.l.b16 %v1893
      %v1987 = vunpack.c.h.b16 %v1893
      %v1988 = vunpack.c.l.b16 %v1894
      %v1989 = vunpack.c.h.b16 %v1894
      %v1990 = vunpack.c.l.b16 %v1895
      %v1991 = vunpack.c.h.b16 %v1895
      %v1992 = vunpack.c.l.b16 %v1896
      %v1993 = vunpack.c.l.b16 %v1897
      %v1994 = vunpack.c.h.b16 %v1897
      %v1995 = vunpack.c.l.b16 %v1898
      %v1996 = vunpack.c.h.b16 %v1898
      %v1997 = vunpack.c.l.b16 %v1899
      %v1998 = vunpack.c.h.b16 %v1899
      %v1999 = vunpack.c.l.b16 %v1900
      %v2000 = vunpack.c.h.b16 %v1900
      %v2001 = vunpack.c.l.b16 %v1901
      %v2002 = vunpack.c.l.b16 %v1902
      %v2003 = vunpack.c.h.b16 %v1902
      %v2004 = vunpack.c.l.b16 %v1903
      %v2005 = vunpack.c.h.b16 %v1903
      %v2006 = vunpack.c.l.b16 %v1904
      %v2007 = vunpack.c.h.b16 %v1904
      %v2008 = vunpack.c.l.b16 %v1905
      %v2009 = vunpack.c.h.b16 %v1905
      %v2010 = vunpack.c.l.b16 %v1906
      %v2011 = vunpack.c.l.b16 %v1907
      %v2012 = vunpack.c.h.b16 %v1907
      %v2013 = vunpack.c.l.b16 %v1908
      %v2014 = vunpack.c.h.b16 %v1908
      %v2015 = vunpack.c.l.b16 %v1909
      %v2016 = vunpack.c.h.b16 %v1909
      %v2017 = vunpack.c.l.b16 %v1910
      %v2018 = vunpack.c.h.b16 %v1910
      %v2019 = vunpack.c.l.b16 %v1911
      %v2020 = vunpack.c.l.b16 %v1912
      %v2021 = vunpack.c.h.b16 %v1912
      %v2022 = vunpack.c.l.b16 %v1913
      %v2023 = vunpack.c.h.b16 %v1913
      %v2024 = vunpack.c.l.b16 %v1914
      %v2025 = vunpack.c.h.b16 %v1914
      %v2026 = vunpack.c.l.b16 %v1915
      %v2027 = vunpack.c.h.b16 %v1915
      %v2028 = vunpack.c.l.b16 %v1916
      %v2029 = vpack.c.b16 %v1966, %v1957
      %v2030 = vpack.c.b16 %v1967, %v1958
      %v2031 = vpack.c.b16 %v1968, %v1959
      %v2032 = vpack.c.b16 %v1969, %v1960
      %v2033 = vpack.c.b16 %v1970, %v1961
      %v2034 = vpack.c.b16 %v1971, %v1962
      %v2035 = vpack.c.b16 %v1972, %v1963
      %v2036 = vpack.c.b16 %v1973, %v1964
      %v2037 = vpack.c.b16 %v1974, %v1965
      %v2038 = vpack.c.b16 %v1984, %v1975
      %v2039 = vpack.c.b16 %v1985, %v1976
      %v2040 = vpack.c.b16 %v1986, %v1977
      %v2041 = vpack.c.b16 %v1987, %v1978
      %v2042 = vpack.c.b16 %v1988, %v1979
      %v2043 = vpack.c.b16 %v1989, %v1980
      %v2044 = vpack.c.b16 %v1990, %v1981
      %v2045 = vpack.c.b16 %v1991, %v1982
      %v2046 = vpack.c.b16 %v1992, %v1983
      %v2047 = vpack.c.b16 %v2002, %v1993
      %v2048 = vpack.c.b16 %v2003, %v1994
      %v2049 = vpack.c.b16 %v2004, %v1995
      %v2050 = vpack.c.b16 %v2005, %v1996
      %v2051 = vpack.c.b16 %v2006, %v1997
      %v2052 = vpack.c.b16 %v2007, %v1998
      %v2053 = vpack.c.b16 %v2008, %v1999
      %v2054 = vpack.c.b16 %v2009, %v2000
      %v2055 = vpack.c.b16 %v2010, %v2001
      %v2056 = vpack.c.b16 %v2020, %v2011
      %v2057 = vpack.c.b16 %v2021, %v2012
      %v2058 = vpack.c.b16 %v2022, %v2013
      %v2059 = vpack.c.b16 %v2023, %v2014
      %v2060 = vpack.c.b16 %v2024, %v2015
      %v2061 = vpack.c.b16 %v2025, %v2016
      %v2062 = vpack.c.b16 %v2026, %v2017
      %v2063 = vpack.c.b16 %v2027, %v2018
      %v2064 = vpack.c.b16 %v2028, %v2019
      %2101 = vmatprep.subr.bf16.mxu0 0
      %2102 = vmatpush1.bf16.msra.mxu0 %v835
      %2103 = vmatprep.subr.bf16.mxu0 0
      %2104 = vmatpush1.bf16.msra.mxu0 %v836
      %2105 = vmatprep.subr.bf16.mxu0 0
      %2106 = vmatpush1.bf16.msra.mxu0 %v837
      %2107 = vmatprep.subr.bf16.mxu0 0
      %2108 = vmatpush1.bf16.msra.mxu0 %v838
      %2109 = vmatprep.subr.bf16.mxu0 0
      %2110 = vmatpush1.bf16.msra.mxu0 %v839
      %2111 = vmatprep.subr.bf16.mxu0 0
      %2112 = vmatpush1.bf16.msra.mxu0 %v840
      %2113 = vmatprep.subr.bf16.mxu0 0
      %2114 = vmatpush1.bf16.msra.mxu0 %v841
      %2115 = vmatprep.subr.bf16.mxu0 0
      %2116 = vmatpush1.bf16.msra.mxu0 %v842
      %2117 = vmatprep.subr.bf16.mxu0 0
      %2118 = vmatpush1.bf16.msra.mxu0 %v843
      %2119 = vmatprep.subr.bf16.mxu0 0
      %2120 = vmatpush1.bf16.msra.mxu0 %v844
      %2121 = vmatprep.subr.bf16.mxu0 0
      %2122 = vmatpush1.bf16.msra.mxu0 %v845
      %2123 = vmatprep.subr.bf16.mxu0 0
      %2124 = vmatpush1.bf16.msra.mxu0 %v846
      %2125 = vmatprep.subr.bf16.mxu0 0
      %2126 = vmatpush1.bf16.msra.mxu0 %v847
      %2127 = vmatprep.subr.bf16.mxu0 0
      %2128 = vmatpush1.bf16.msra.mxu0 %v848
      %2129 = vmatprep.subr.bf16.mxu0 0
      %2130 = vmatpush1.bf16.msra.mxu0 %v849
      %2131 = vmatprep.subr.bf16.mxu0 0
      %2132 = vmatpush1.bf16.msra.mxu0 %v850
      %2133 = vmatprep.mubr.bf16.mxu0 %v2030
      %2134 = vmatmul.mubr.bf16.gmra.mrb[0].mxu0 %v2029
      %v2135 = vpop.f32.mrb[0].mxu0
      %v2136 = vadd.f32 %v361, %v2135
      %v2137 = vpop.f32.mrb[0].mxu0
      %v2138 = vpop.f32.mrb[0].mxu0
      %v2139 = vadd.f32 %v361, %v2138
      %v2140 = vpop.f32.mrb[0].mxu0
      %2141 = vmatprep.mubr.bf16.mxu0 %v2039
      %2142 = vmatmul.mubr.bf16.gmra.mrb[0].mxu0 %v2038
      %v2143 = vpop.f32.mrb[0].mxu0
      %v2144 = vadd.f32 %v361, %v2143
      %v2145 = vpop.f32.mrb[0].mxu0
      %v2146 = vpop.f32.mrb[0].mxu0
      %v2147 = vadd.f32 %v361, %v2146
      %v2148 = vpop.f32.mrb[0].mxu0
      %2149 = vmatprep.mubr.bf16.mxu0 %v2048
      %2150 = vmatmul.mubr.bf16.gmra.mrb[0].mxu0 %v2047
      %v2151 = vpop.f32.mrb[0].mxu0
      %v2152 = vadd.f32 %v361, %v2151
      %v2153 = vpop.f32.mrb[0].mxu0
      %v2154 = vpop.f32.mrb[0].mxu0
      %v2155 = vadd.f32 %v361, %v2154
      %v2156 = vpop.f32.mrb[0].mxu0
      %2157 = vmatprep.mubr.bf16.mxu0 %v2057
      %2158 = vmatmul.mubr.bf16.gmra.mrb[0].mxu0 %v2056
      %v2159 = vpop.f32.mrb[0].mxu0
      %v2160 = vadd.f32 %v361, %v2159
      %v2161 = vpop.f32.mrb[0].mxu0
      %v2162 = vpop.f32.mrb[0].mxu0
      %v2163 = vadd.f32 %v361, %v2162
      %v2164 = vpop.f32.mrb[0].mxu0
      %2165 = vdwg.mxu0
      %2166 = vmatprep.subr.bf16.mxu0 0
      %2167 = vmatpush1.bf16.msra.mxu0 %v851
      %2168 = vmatprep.subr.bf16.mxu0 0
      %2169 = vmatpush1.bf16.msra.mxu0 %v852
      %2170 = vmatprep.subr.bf16.mxu0 0
      %2171 = vmatpush1.bf16.msra.mxu0 %v853
      %2172 = vmatprep.subr.bf16.mxu0 0
      %2173 = vmatpush1.bf16.msra.mxu0 %v854
      %2174 = vmatprep.subr.bf16.mxu0 0
      %2175 = vmatpush1.bf16.msra.mxu0 %v855
      %2176 = vmatprep.subr.bf16.mxu0 0
      %2177 = vmatpush1.bf16.msra.mxu0 %v856
      %2178 = vmatprep.subr.bf16.mxu0 0
      %2179 = vmatpush1.bf16.msra.mxu0 %v857
      %2180 = vmatprep.subr.bf16.mxu0 0
      %2181 = vmatpush1.bf16.msra.mxu0 %v858
      %2182 = vmatprep.subr.bf16.mxu0 0
      %2183 = vmatpush1.bf16.msra.mxu0 %v859
      %2184 = vmatprep.subr.bf16.mxu0 0
      %2185 = vmatpush1.bf16.msra.mxu0 %v860
      %2186 = vmatprep.subr.bf16.mxu0 0
      %2187 = vmatpush1.bf16.msra.mxu0 %v861
      %2188 = vmatprep.subr.bf16.mxu0 0
      %2189 = vmatpush1.bf16.msra.mxu0 %v862
      %2190 = vmatprep.subr.bf16.mxu0 0
      %2191 = vmatpush1.bf16.msra.mxu0 %v863
      %2192 = vmatprep.subr.bf16.mxu0 0
      %2193 = vmatpush1.bf16.msra.mxu0 %v864
      %2194 = vmatprep.subr.bf16.mxu0 0
      %2195 = vmatpush1.bf16.msra.mxu0 %v865
      %2196 = vmatprep.subr.bf16.mxu0 0
      %2197 = vmatpush1.bf16.msra.mxu0 %v866
      %2198 = vmatprep.mubr.bf16.mxu0 %v2032
      %2199 = vmatmul.mubr.bf16.gmra.mrb[0].mxu0 %v2031
      %v2200 = vpop.f32.mrb[0].mxu0
      %v2201 = vadd.f32 %v2136, %v2200
      %v2202 = vpop.f32.mrb[0].mxu0
      %v2203 = vpop.f32.mrb[0].mxu0
      %v2204 = vadd.f32 %v2139, %v2203
      %v2205 = vpop.f32.mrb[0].mxu0
      %2206 = vmatprep.mubr.bf16.mxu0 %v2041
      %2207 = vmatmul.mubr.bf16.gmra.mrb[0].mxu0 %v2040
      %v2208 = vpop.f32.mrb[0].mxu0
      %v2209 = vadd.f32 %v2144, %v2208
      %v2210 = vpop.f32.mrb[0].mxu0
      %v2211 = vpop.f32.mrb[0].mxu0
      %v2212 = vadd.f32 %v2147, %v2211
      %v2213 = vpop.f32.mrb[0].mxu0
      %2214 = vmatprep.mubr.bf16.mxu0 %v2050
      %2215 = vmatmul.mubr.bf16.gmra.mrb[0].mxu0 %v2049
      %v2216 = vpop.f32.mrb[0].mxu0
      %v2217 = vadd.f32 %v2152, %v2216
      %v2218 = vpop.f32.mrb[0].mxu0
      %v2219 = vpop.f32.mrb[0].mxu0
      %v2220 = vadd.f32 %v2155, %v2219
      %v2221 = vpop.f32.mrb[0].mxu0
      %2222 = vmatprep.mubr.bf16.mxu0 %v2059
      %2223 = vmatmul.mubr.bf16.gmra.mrb[0].mxu0 %v2058
      %v2224 = vpop.f32.mrb[0].mxu0
      %v2225 = vadd.f32 %v2160, %v2224
      %v2226 = vpop.f32.mrb[0].mxu0
      %v2227 = vpop.f32.mrb[0].mxu0
      %v2228 = vadd.f32 %v2163, %v2227
      %v2229 = vpop.f32.mrb[0].mxu0
      %2230 = vdwg.mxu0
      %2231 = vmatprep.subr.bf16.mxu0 0
      %2232 = vmatpush1.bf16.msra.mxu0 %v867
      %2233 = vmatprep.subr.bf16.mxu0 0
      %2234 = vmatpush1.bf16.msra.mxu0 %v868
      %2235 = vmatprep.subr.bf16.mxu0 0
      %2236 = vmatpush1.bf16.msra.mxu0 %v869
      %2237 = vmatprep.subr.bf16.mxu0 0
      %2238 = vmatpush1.bf16.msra.mxu0 %v870
      %2239 = vmatprep.subr.bf16.mxu0 0
      %2240 = vmatpush1.bf16.msra.mxu0 %v871
      %2241 = vmatprep.subr.bf16.mxu0 0
      %2242 = vmatpush1.bf16.msra.mxu0 %v872
      %2243 = vmatprep.subr.bf16.mxu0 0
      %2244 = vmatpush1.bf16.msra.mxu0 %v873
      %2245 = vmatprep.subr.bf16.mxu0 0
      %2246 = vmatpush1.bf16.msra.mxu0 %v874
      %2247 = vmatprep.subr.bf16.mxu0 0
      %2248 = vmatpush1.bf16.msra.mxu0 %v875
      %2249 = vmatprep.subr.bf16.mxu0 0
      %2250 = vmatpush1.bf16.msra.mxu0 %v876
      %2251 = vmatprep.subr.bf16.mxu0 0
      %2252 = vmatpush1.bf16.msra.mxu0 %v877
      %2253 = vmatprep.subr.bf16.mxu0 0
      %2254 = vmatpush1.bf16.msra.mxu0 %v878
      %2255 = vmatprep.subr.bf16.mxu0 0
      %2256 = vmatpush1.bf16.msra.mxu0 %v879
      %2257 = vmatprep.subr.bf16.mxu0 0
      %2258 = vmatpush1.bf16.msra.mxu0 %v880
      %2259 = vmatprep.subr.bf16.mxu0 0
      %2260 = vmatpush1.bf16.msra.mxu0 %v881
      %2261 = vmatprep.subr.bf16.mxu0 0
      %2262 = vmatpush1.bf16.msra.mxu0 %v882
      %2263 = vmatprep.mubr.bf16.mxu0 %v2034
      %2264 = vmatmul.mubr.bf16.gmra.mrb[0].mxu0 %v2033
      %v2265 = vpop.f32.mrb[0].mxu0
      %v2266 = vadd.f32 %v2201, %v2265
      %v2267 = vpop.f32.mrb[0].mxu0
      %v2268 = vpop.f32.mrb[0].mxu0
      %v2269 = vadd.f32 %v2204, %v2268
      %v2270 = vpop.f32.mrb[0].mxu0
      %2271 = vmatprep.mubr.bf16.mxu0 %v2043
      %2272 = vmatmul.mubr.bf16.gmra.mrb[0].mxu0 %v2042
      %v2273 = vpop.f32.mrb[0].mxu0
      %v2274 = vadd.f32 %v2209, %v2273
      %v2275 = vpop.f32.mrb[0].mxu0
      %v2276 = vpop.f32.mrb[0].mxu0
      %v2277 = vadd.f32 %v2212, %v2276
      %v2278 = vpop.f32.mrb[0].mxu0
      %2279 = vmatprep.mubr.bf16.mxu0 %v2052
      %2280 = vmatmul.mubr.bf16.gmra.mrb[0].mxu0 %v2051
      %v2281 = vpop.f32.mrb[0].mxu0
      %v2282 = vadd.f32 %v2217, %v2281
      %v2283 = vpop.f32.mrb[0].mxu0
      %v2284 = vpop.f32.mrb[0].mxu0
      %v2285 = vadd.f32 %v2220, %v2284
      %v2286 = vpop.f32.mrb[0].mxu0
      %2287 = vmatprep.mubr.bf16.mxu0 %v2061
      %2288 = vmatmul.mubr.bf16.gmra.mrb[0].mxu0 %v2060
      %v2289 = vpop.f32.mrb[0].mxu0
      %v2290 = vadd.f32 %v2225, %v2289
      %v2291 = vpop.f32.mrb[0].mxu0
      %v2292 = vpop.f32.mrb[0].mxu0
      %v2293 = vadd.f32 %v2228, %v2292
      %v2294 = vpop.f32.mrb[0].mxu0
      %2295 = vdwg.mxu0
      %2296 = vmatprep.subr.bf16.mxu0 0
      %2297 = vmatpush1.bf16.msra.mxu0 %v883
      %2298 = vmatprep.subr.bf16.mxu0 0
      %2299 = vmatpush1.bf16.msra.mxu0 %v884
      %2300 = vmatprep.subr.bf16.mxu0 0
      %2301 = vmatpush1.bf16.msra.mxu0 %v885
      %2302 = vmatprep.subr.bf16.mxu0 0
      %2303 = vmatpush1.bf16.msra.mxu0 %v886
      %2304 = vmatprep.subr.bf16.mxu0 0
      %2305 = vmatpush1.bf16.msra.mxu0 %v887
      %2306 = vmatprep.subr.bf16.mxu0 0
      %2307 = vmatpush1.bf16.msra.mxu0 %v888
      %2308 = vmatprep.subr.bf16.mxu0 0
      %2309 = vmatpush1.bf16.msra.mxu0 %v889
      %2310 = vmatprep.subr.bf16.mxu0 0
      %2311 = vmatpush1.bf16.msra.mxu0 %v890
      %2312 = vmatprep.subr.bf16.mxu0 0
      %2313 = vmatpush1.bf16.msra.mxu0 %v891
      %2314 = vmatprep.subr.bf16.mxu0 0
      %2315 = vmatpush1.bf16.msra.mxu0 %v892
      %2316 = vmatprep.subr.bf16.mxu0 0
      %2317 = vmatpush1.bf16.msra.mxu0 %v893
      %2318 = vmatprep.subr.bf16.mxu0 0
      %2319 = vmatpush1.bf16.msra.mxu0 %v894
      %2320 = vmatprep.subr.bf16.mxu0 0
      %2321 = vmatpush1.bf16.msra.mxu0 %v895
      %2322 = vmatprep.subr.bf16.mxu0 0
      %2323 = vmatpush1.bf16.msra.mxu0 %v896
      %2324 = vmatprep.subr.bf16.mxu0 0
      %2325 = vmatpush1.bf16.msra.mxu0 %v897
      %2326 = vmatprep.subr.bf16.mxu0 0
      %2327 = vmatpush1.bf16.msra.mxu0 %v898
      %2328 = vmatprep.mubr.bf16.mxu0 %v2036
      %2329 = vmatmul.mubr.bf16.gmra.mrb[0].mxu0 %v2035
      %v2330 = vpop.f32.mrb[0].mxu0
      %v2331 = vadd.f32 %v2266, %v2330
      %v2332 = vpop.f32.mrb[0].mxu0
      %v2333 = vpop.f32.mrb[0].mxu0
      %v2334 = vadd.f32 %v2269, %v2333
      %v2335 = vpop.f32.mrb[0].mxu0
      %2336 = vmatprep.mubr.bf16.mxu0 %v2045
      %2337 = vmatmul.mubr.bf16.gmra.mrb[0].mxu0 %v2044
      %v2338 = vpop.f32.mrb[0].mxu0
      %v2339 = vadd.f32 %v2274, %v2338
      %v2340 = vpop.f32.mrb[0].mxu0
      %v2341 = vpop.f32.mrb[0].mxu0
      %v2342 = vadd.f32 %v2277, %v2341
      %v2343 = vpop.f32.mrb[0].mxu0
      %2344 = vmatprep.mubr.bf16.mxu0 %v2054
      %2345 = vmatmul.mubr.bf16.gmra.mrb[0].mxu0 %v2053
      %v2346 = vpop.f32.mrb[0].mxu0
      %v2347 = vadd.f32 %v2282, %v2346
      %v2348 = vpop.f32.mrb[0].mxu0
      %v2349 = vpop.f32.mrb[0].mxu0
      %v2350 = vadd.f32 %v2285, %v2349
      %v2351 = vpop.f32.mrb[0].mxu0
      %2352 = vmatprep.mubr.bf16.mxu0 %v2063
      %2353 = vmatmul.mubr.bf16.gmra.mrb[0].mxu0 %v2062
      %v2354 = vpop.f32.mrb[0].mxu0
      %v2355 = vadd.f32 %v2290, %v2354
      %v2356 = vpop.f32.mrb[0].mxu0
      %v2357 = vpop.f32.mrb[0].mxu0
      %v2358 = vadd.f32 %v2293, %v2357
      %v2359 = vpop.f32.mrb[0].mxu0
      %2360 = vdwg.mxu0
      %2361 = vmatprep.subr.bf16.mxu0 0
      %2362 = vmatpush1.bf16.msra.mxu0 %v899
      %2363 = vmatprep.subr.bf16.mxu0 0
      %2364 = vmatpush1.bf16.msra.mxu0 %v900
      %2365 = vmatprep.subr.bf16.mxu0 0
      %2366 = vmatpush1.bf16.msra.mxu0 %v901
      %2367 = vmatprep.subr.bf16.mxu0 0
      %2368 = vmatpush1.bf16.msra.mxu0 %v902
      %2369 = vmatprep.subr.bf16.mxu0 0
      %2370 = vmatpush1.bf16.msra.mxu0 %v903
      %2371 = vmatprep.subr.bf16.mxu0 0
      %2372 = vmatpush1.bf16.msra.mxu0 %v904
      %2373 = vmatprep.subr.bf16.mxu0 0
      %2374 = vmatpush1.bf16.msra.mxu0 %v905
      %2375 = vmatprep.subr.bf16.mxu0 0
      %2376 = vmatpush1.bf16.msra.mxu0 %v906
      %2377 = vmatprep.subr.bf16.mxu0 0
      %2378 = vmatpush1.bf16.msra.mxu0 0
      %2379 = vmatprep.subr.bf16.mxu0 0
      %2380 = vmatpush1.bf16.msra.mxu0 0
      %2381 = vmatprep.subr.bf16.mxu0 0
      %2382 = vmatpush1.bf16.msra.mxu0 0
      %2383 = vmatprep.subr.bf16.mxu0 0
      %2384 = vmatpush1.bf16.msra.mxu0 0
      %2385 = vmatprep.subr.bf16.mxu0 0
      %2386 = vmatpush1.bf16.msra.mxu0 0
      %2387 = vmatprep.subr.bf16.mxu0 0
      %2388 = vmatpush1.bf16.msra.mxu0 0
      %2389 = vmatprep.subr.bf16.mxu0 0
      %2390 = vmatpush1.bf16.msra.mxu0 0
      %2391 = vmatprep.subr.bf16.mxu0 0
      %2392 = vmatpush1.bf16.msra.mxu0 0
      %2393 = vmatprep.mubr.bf16.mxu0 0
      %2394 = vmatmul.mubr.bf16.gmra.mrb[0].mxu0 %v2037
      %v2395 = vpop.f32.mrb[0].mxu0
      %v2396 = vadd.f32 %v2331, %v2395
      %v2397 = vpop.f32.mrb[0].mxu0
      %v2398 = vpop.f32.mrb[0].mxu0
      %v2399 = vadd.f32 %v2334, %v2398
      %v2400 = vpop.f32.mrb[0].mxu0
      %2401 = vmatprep.mubr.bf16.mxu0 0
      %2402 = vmatmul.mubr.bf16.gmra.mrb[0].mxu0 %v2046
      %v2403 = vpop.f32.mrb[0].mxu0
      %v2404 = vadd.f32 %v2339, %v2403
      %v2405 = vpop.f32.mrb[0].mxu0
      %v2406 = vpop.f32.mrb[0].mxu0
      %v2407 = vadd.f32 %v2342, %v2406
      %v2408 = vpop.f32.mrb[0].mxu0
      %2409 = vmatprep.mubr.bf16.mxu0 0
      %2410 = vmatmul.mubr.bf16.gmra.mrb[0].mxu0 %v2055
      %v2411 = vpop.f32.mrb[0].mxu0
      %v2412 = vadd.f32 %v2347, %v2411
      %v2413 = vpop.f32.mrb[0].mxu0
      %v2414 = vpop.f32.mrb[0].mxu0
      %v2415 = vadd.f32 %v2350, %v2414
      %v2416 = vpop.f32.mrb[0].mxu0
      %2417 = vmatprep.mubr.bf16.mxu0 0
      %2418 = vmatmul.mubr.bf16.gmra.mrb[0].mxu0 %v2064
      %v2419 = vpop.f32.mrb[0].mxu0
      %v2420 = vadd.f32 %v2355, %v2419
      %v2421 = vpop.f32.mrb[0].mxu0
      %v2422 = vpop.f32.mrb[0].mxu0
      %v2423 = vadd.f32 %v2358, %v2422
      %v2424 = vpop.f32.mrb[0].mxu0
      %2425 = vdwg.mxu0
      %v2426 = vmax.f32 %v2396, 0.0
      %v2427 = vmax.f32 %v2399, 0.0
      %v2428 = vmax.f32 %v2404, 0.0
      %v2429 = vmax.f32 %v2407, 0.0
      %v2430 = vmax.f32 %v2412, 0.0
      %v2431 = vmax.f32 %v2415, 0.0
      %v2432 = vmax.f32 %v2420, 0.0
      %v2433 = vmax.f32 %v2423, 0.0
      %v2434 = vld [vmem:[%s165 + $0x360] sm:$0xff]
      %v2435 = vld [vmem:[%s165 + $0x368] sm:$0xff]
      %v2436 = vld [vmem:[%s165 + $0x370] sm:$0xff]
      %v2437 = vld [vmem:[%s165 + $0x378] sm:$0xff]
      %v2438 = vld [vmem:[%s165 + $0x380] sm:$0xf]
      %v2439 = vld [vmem:[%s165 + $0x384] sm:$0xff]
      %v2440 = vld [vmem:[%s165 + $0x38c] sm:$0xff]
      %v2441 = vld [vmem:[%s165 + $0x394] sm:$0xff]
      %v2442 = vld [vmem:[%s165 + $0x39c] sm:$0xff]
      %v2443 = vld [vmem:[%s165 + $0x3a4] sm:$0xf]
      %v2444 = vld [vmem:[%s165 + $0x3a8] sm:$0xff]
      %v2445 = vld [vmem:[%s165 + $0x3b0] sm:$0xff]
      %v2446 = vld [vmem:[%s165 + $0x3b8] sm:$0xff]
      %v2447 = vld [vmem:[%s165 + $0x3c0] sm:$0xff]
      %v2448 = vld [vmem:[%s165 + $0x3c8] sm:$0xf]
      %v2449 = vld [vmem:[%s165 + $0x3cc] sm:$0xff]
      %v2450 = vld [vmem:[%s165 + $0x3d4] sm:$0xff]
      %v2451 = vld [vmem:[%s165 + $0x3dc] sm:$0xff]
      %v2452 = vld [vmem:[%s165 + $0x3e4] sm:$0xff]
      %v2453 = vld [vmem:[%s165 + $0x3ec] sm:$0xf]
      %v2454 = vld [vmem:[%s165 + $0x3f0] sm:$0xff]
      %v2455 = vld [vmem:[%s165 + $0x3f8] sm:$0xff]
      %v2456 = vld [vmem:[%s165 + $0x400] sm:$0xff]
      %v2457 = vld [vmem:[%s165 + $0x408] sm:$0xff]
      %v2458 = vld [vmem:[%s165 + $0x410] sm:$0xf]
      %v2459 = vld [vmem:[%s165 + $0x414] sm:$0xff]
      %v2460 = vld [vmem:[%s165 + $0x41c] sm:$0xff]
      %v2461 = vld [vmem:[%s165 + $0x424] sm:$0xff]
      %v2462 = vld [vmem:[%s165 + $0x42c] sm:$0xff]
      %v2463 = vld [vmem:[%s165 + $0x434] sm:$0xf]
      %v2464 = vld [vmem:[%s165 + $0x438] sm:$0xff]
      %v2465 = vld [vmem:[%s165 + $0x440] sm:$0xff]
      %v2466 = vld [vmem:[%s165 + $0x448] sm:$0xff]
      %v2467 = vld [vmem:[%s165 + $0x450] sm:$0xff]
      %v2468 = vld [vmem:[%s165 + $0x458] sm:$0xf]
      %v2469 = vld [vmem:[%s165 + $0x45c] sm:$0xff]
      %v2470 = vld [vmem:[%s165 + $0x464] sm:$0xff]
      %v2471 = vld [vmem:[%s165 + $0x46c] sm:$0xff]
      %v2472 = vld [vmem:[%s165 + $0x474] sm:$0xff]
      %v2473 = vld [vmem:[%s165 + $0x47c] sm:$0xf]
      %v2514 = vunpack.c.l.b16 %v2434
      %v2515 = vunpack.c.h.b16 %v2434
      %v2516 = vunpack.c.l.b16 %v2435
      %v2517 = vunpack.c.h.b16 %v2435
      %v2518 = vunpack.c.l.b16 %v2436
      %v2519 = vunpack.c.h.b16 %v2436
      %v2520 = vunpack.c.l.b16 %v2437
      %v2521 = vunpack.c.h.b16 %v2437
      %v2522 = vunpack.c.l.b16 %v2438
      %v2523 = vunpack.c.l.b16 %v2439
      %v2524 = vunpack.c.h.b16 %v2439
      %v2525 = vunpack.c.l.b16 %v2440
      %v2526 = vunpack.c.h.b16 %v2440
      %v2527 = vunpack.c.l.b16 %v2441
      %v2528 = vunpack.c.h.b16 %v2441
      %v2529 = vunpack.c.l.b16 %v2442
      %v2530 = vunpack.c.h.b16 %v2442
      %v2531 = vunpack.c.l.b16 %v2443
      %v2532 = vunpack.c.l.b16 %v2444
      %v2533 = vunpack.c.h.b16 %v2444
      %v2534 = vunpack.c.l.b16 %v2445
      %v2535 = vunpack.c.h.b16 %v2445
      %v2536 = vunpack.c.l.b16 %v2446
      %v2537 = vunpack.c.h.b16 %v2446
      %v2538 = vunpack.c.l.b16 %v2447
      %v2539 = vunpack.c.h.b16 %v2447
      %v2540 = vunpack.c.l.b16 %v2448
      %v2541 = vunpack.c.l.b16 %v2449
      %v2542 = vunpack.c.h.b16 %v2449
      %v2543 = vunpack.c.l.b16 %v2450
      %v2544 = vunpack.c.h.b16 %v2450
      %v2545 = vunpack.c.l.b16 %v2451
      %v2546 = vunpack.c.h.b16 %v2451
      %v2547 = vunpack.c.l.b16 %v2452
      %v2548 = vunpack.c.h.b16 %v2452
      %v2549 = vunpack.c.l.b16 %v2453
      %v2550 = vunpack.c.l.b16 %v2454
      %v2551 = vunpack.c.h.b16 %v2454
      %v2552 = vunpack.c.l.b16 %v2455
      %v2553 = vunpack.c.h.b16 %v2455
      %v2554 = vunpack.c.l.b16 %v2456
      %v2555 = vunpack.c.h.b16 %v2456
      %v2556 = vunpack.c.l.b16 %v2457
      %v2557 = vunpack.c.h.b16 %v2457
      %v2558 = vunpack.c.l.b16 %v2458
      %v2559 = vunpack.c.l.b16 %v2459
      %v2560 = vunpack.c.h.b16 %v2459
      %v2561 = vunpack.c.l.b16 %v2460
      %v2562 = vunpack.c.h.b16 %v2460
      %v2563 = vunpack.c.l.b16 %v2461
      %v2564 = vunpack.c.h.b16 %v2461
      %v2565 = vunpack.c.l.b16 %v2462
      %v2566 = vunpack.c.h.b16 %v2462
      %v2567 = vunpack.c.l.b16 %v2463
      %v2568 = vunpack.c.l.b16 %v2464
      %v2569 = vunpack.c.h.b16 %v2464
      %v2570 = vunpack.c.l.b16 %v2465
      %v2571 = vunpack.c.h.b16 %v2465
      %v2572 = vunpack.c.l.b16 %v2466
      %v2573 = vunpack.c.h.b16 %v2466
      %v2574 = vunpack.c.l.b16 %v2467
      %v2575 = vunpack.c.h.b16 %v2467
      %v2576 = vunpack.c.l.b16 %v2468
      %v2577 = vunpack.c.l.b16 %v2469
      %v2578 = vunpack.c.h.b16 %v2469
      %v2579 = vunpack.c.l.b16 %v2470
      %v2580 = vunpack.c.h.b16 %v2470
      %v2581 = vunpack.c.l.b16 %v2471
      %v2582 = vunpack.c.h.b16 %v2471
      %v2583 = vunpack.c.l.b16 %v2472
      %v2584 = vunpack.c.h.b16 %v2472
      %v2585 = vunpack.c.l.b16 %v2473
      %v2586 = vpack.c.b16 %v2523, %v2514
      %v2587 = vpack.c.b16 %v2524, %v2515
      %v2588 = vpack.c.b16 %v2525, %v2516
      %v2589 = vpack.c.b16 %v2526, %v2517
      %v2590 = vpack.c.b16 %v2527, %v2518
      %v2591 = vpack.c.b16 %v2528, %v2519
      %v2592 = vpack.c.b16 %v2529, %v2520
      %v2593 = vpack.c.b16 %v2530, %v2521
      %v2594 = vpack.c.b16 %v2531, %v2522
      %v2595 = vpack.c.b16 %v2541, %v2532
      %v2596 = vpack.c.b16 %v2542, %v2533
      %v2597 = vpack.c.b16 %v2543, %v2534
      %v2598 = vpack.c.b16 %v2544, %v2535
      %v2599 = vpack.c.b16 %v2545, %v2536
      %v2600 = vpack.c.b16 %v2546, %v2537
      %v2601 = vpack.c.b16 %v2547, %v2538
      %v2602 = vpack.c.b16 %v2548, %v2539
      %v2603 = vpack.c.b16 %v2549, %v2540
      %v2604 = vpack.c.b16 %v2559, %v2550
      %v2605 = vpack.c.b16 %v2560, %v2551
      %v2606 = vpack.c.b16 %v2561, %v2552
      %v2607 = vpack.c.b16 %v2562, %v2553
      %v2608 = vpack.c.b16 %v2563, %v2554
      %v2609 = vpack.c.b16 %v2564, %v2555
      %v2610 = vpack.c.b16 %v2565, %v2556
      %v2611 = vpack.c.b16 %v2566, %v2557
      %v2612 = vpack.c.b16 %v2567, %v2558
      %v2613 = vpack.c.b16 %v2577, %v2568
      %v2614 = vpack.c.b16 %v2578, %v2569
      %v2615 = vpack.c.b16 %v2579, %v2570
      %v2616 = vpack.c.b16 %v2580, %v2571
      %v2617 = vpack.c.b16 %v2581, %v2572
      %v2618 = vpack.c.b16 %v2582, %v2573
      %v2619 = vpack.c.b16 %v2583, %v2574
      %v2620 = vpack.c.b16 %v2584, %v2575
      %v2621 = vpack.c.b16 %v2585, %v2576
      %2658 = vmatprep.subr.bf16.mxu0 0
      %2659 = vmatpush1.bf16.msra.mxu0 %v835
      %2660 = vmatprep.subr.bf16.mxu0 0
      %2661 = vmatpush1.bf16.msra.mxu0 %v836
      %2662 = vmatprep.subr.bf16.mxu0 0
      %2663 = vmatpush1.bf16.msra.mxu0 %v837
      %2664 = vmatprep.subr.bf16.mxu0 0
      %2665 = vmatpush1.bf16.msra.mxu0 %v838
      %2666 = vmatprep.subr.bf16.mxu0 0
      %2667 = vmatpush1.bf16.msra.mxu0 %v839
      %2668 = vmatprep.subr.bf16.mxu0 0
      %2669 = vmatpush1.bf16.msra.mxu0 %v840
      %2670 = vmatprep.subr.bf16.mxu0 0
      %2671 = vmatpush1.bf16.msra.mxu0 %v841
      %2672 = vmatprep.subr.bf16.mxu0 0
      %2673 = vmatpush1.bf16.msra.mxu0 %v842
      %2674 = vmatprep.subr.bf16.mxu0 0
      %2675 = vmatpush1.bf16.msra.mxu0 %v843
      %2676 = vmatprep.subr.bf16.mxu0 0
      %2677 = vmatpush1.bf16.msra.mxu0 %v844
      %2678 = vmatprep.subr.bf16.mxu0 0
      %2679 = vmatpush1.bf16.msra.mxu0 %v845
      %2680 = vmatprep.subr.bf16.mxu0 0
      %2681 = vmatpush1.bf16.msra.mxu0 %v846
      %2682 = vmatprep.subr.bf16.mxu0 0
      %2683 = vmatpush1.bf16.msra.mxu0 %v847
      %2684 = vmatprep.subr.bf16.mxu0 0
      %2685 = vmatpush1.bf16.msra.mxu0 %v848
      %2686 = vmatprep.subr.bf16.mxu0 0
      %2687 = vmatpush1.bf16.msra.mxu0 %v849
      %2688 = vmatprep.subr.bf16.mxu0 0
      %2689 = vmatpush1.bf16.msra.mxu0 %v850
      %2690 = vmatprep.mubr.bf16.mxu0 %v2587
      %2691 = vmatmul.mubr.bf16.gmra.mrb[0].mxu0 %v2586
      %v2692 = vpop.f32.mrb[0].mxu0
      %v2693 = vadd.f32 %v361, %v2692
      %v2694 = vpop.f32.mrb[0].mxu0
      %v2695 = vpop.f32.mrb[0].mxu0
      %v2696 = vadd.f32 %v361, %v2695
      %v2697 = vpop.f32.mrb[0].mxu0
      %2698 = vmatprep.mubr.bf16.mxu0 %v2596
      %2699 = vmatmul.mubr.bf16.gmra.mrb[0].mxu0 %v2595
      %v2700 = vpop.f32.mrb[0].mxu0
      %v2701 = vadd.f32 %v361, %v2700
      %v2702 = vpop.f32.mrb[0].mxu0
      %v2703 = vpop.f32.mrb[0].mxu0
      %v2704 = vadd.f32 %v361, %v2703
      %v2705 = vpop.f32.mrb[0].mxu0
      %2706 = vmatprep.mubr.bf16.mxu0 %v2605
      %2707 = vmatmul.mubr.bf16.gmra.mrb[0].mxu0 %v2604
      %v2708 = vpop.f32.mrb[0].mxu0
      %v2709 = vadd.f32 %v361, %v2708
      %v2710 = vpop.f32.mrb[0].mxu0
      %v2711 = vpop.f32.mrb[0].mxu0
      %v2712 = vadd.f32 %v361, %v2711
      %v2713 = vpop.f32.mrb[0].mxu0
      %2714 = vmatprep.mubr.bf16.mxu0 %v2614
      %2715 = vmatmul.mubr.bf16.gmra.mrb[0].mxu0 %v2613
      %v2716 = vpop.f32.mrb[0].mxu0
      %v2717 = vadd.f32 %v361, %v2716
      %v2718 = vpop.f32.mrb[0].mxu0
      %v2719 = vpop.f32.mrb[0].mxu0
      %v2720 = vadd.f32 %v361, %v2719
      %v2721 = vpop.f32.mrb[0].mxu0
      %2722 = vdwg.mxu0
      %2723 = vmatprep.subr.bf16.mxu0 0
      %2724 = vmatpush1.bf16.msra.mxu0 %v851
      %2725 = vmatprep.subr.bf16.mxu0 0
      %2726 = vmatpush1.bf16.msra.mxu0 %v852
      %2727 = vmatprep.subr.bf16.mxu0 0
      %2728 = vmatpush1.bf16.msra.mxu0 %v853
      %2729 = vmatprep.subr.bf16.mxu0 0
      %2730 = vmatpush1.bf16.msra.mxu0 %v854
      %2731 = vmatprep.subr.bf16.mxu0 0
      %2732 = vmatpush1.bf16.msra.mxu0 %v855
      %2733 = vmatprep.subr.bf16.mxu0 0
      %2734 = vmatpush1.bf16.msra.mxu0 %v856
      %2735 = vmatprep.subr.bf16.mxu0 0
      %2736 = vmatpush1.bf16.msra.mxu0 %v857
      %2737 = vmatprep.subr.bf16.mxu0 0
      %2738 = vmatpush1.bf16.msra.mxu0 %v858
      %2739 = vmatprep.subr.bf16.mxu0 0
      %2740 = vmatpush1.bf16.msra.mxu0 %v859
      %2741 = vmatprep.subr.bf16.mxu0 0
      %2742 = vmatpush1.bf16.msra.mxu0 %v860
      %2743 = vmatprep.subr.bf16.mxu0 0
      %2744 = vmatpush1.bf16.msra.mxu0 %v861
      %2745 = vmatprep.subr.bf16.mxu0 0
      %2746 = vmatpush1.bf16.msra.mxu0 %v862
      %2747 = vmatprep.subr.bf16.mxu0 0
      %2748 = vmatpush1.bf16.msra.mxu0 %v863
      %2749 = vmatprep.subr.bf16.mxu0 0
      %2750 = vmatpush1.bf16.msra.mxu0 %v864
      %2751 = vmatprep.subr.bf16.mxu0 0
      %2752 = vmatpush1.bf16.msra.mxu0 %v865
      %2753 = vmatprep.subr.bf16.mxu0 0
      %2754 = vmatpush1.bf16.msra.mxu0 %v866
      %2755 = vmatprep.mubr.bf16.mxu0 %v2589
      %2756 = vmatmul.mubr.bf16.gmra.mrb[0].mxu0 %v2588
      %v2757 = vpop.f32.mrb[0].mxu0
      %v2758 = vadd.f32 %v2693, %v2757
      %v2759 = vpop.f32.mrb[0].mxu0
      %v2760 = vpop.f32.mrb[0].mxu0
      %v2761 = vadd.f32 %v2696, %v2760
      %v2762 = vpop.f32.mrb[0].mxu0
      %2763 = vmatprep.mubr.bf16.mxu0 %v2598
      %2764 = vmatmul.mubr.bf16.gmra.mrb[0].mxu0 %v2597
      %v2765 = vpop.f32.mrb[0].mxu0
      %v2766 = vadd.f32 %v2701, %v2765
      %v2767 = vpop.f32.mrb[0].mxu0
      %v2768 = vpop.f32.mrb[0].mxu0
      %v2769 = vadd.f32 %v2704, %v2768
      %v2770 = vpop.f32.mrb[0].mxu0
      %2771 = vmatprep.mubr.bf16.mxu0 %v2607
      %2772 = vmatmul.mubr.bf16.gmra.mrb[0].mxu0 %v2606
      %v2773 = vpop.f32.mrb[0].mxu0
      %v2774 = vadd.f32 %v2709, %v2773
      %v2775 = vpop.f32.mrb[0].mxu0
      %v2776 = vpop.f32.mrb[0].mxu0
      %v2777 = vadd.f32 %v2712, %v2776
      %v2778 = vpop.f32.mrb[0].mxu0
      %2779 = vmatprep.mubr.bf16.mxu0 %v2616
      %2780 = vmatmul.mubr.bf16.gmra.mrb[0].mxu0 %v2615
      %v2781 = vpop.f32.mrb[0].mxu0
      %v2782 = vadd.f32 %v2717, %v2781
      %v2783 = vpop.f32.mrb[0].mxu0
      %v2784 = vpop.f32.mrb[0].mxu0
      %v2785 = vadd.f32 %v2720, %v2784
      %v2786 = vpop.f32.mrb[0].mxu0
      %2787 = vdwg.mxu0
      %2788 = vmatprep.subr.bf16.mxu0 0
      %2789 = vmatpush1.bf16.msra.mxu0 %v867
      %2790 = vmatprep.subr.bf16.mxu0 0
      %2791 = vmatpush1.bf16.msra.mxu0 %v868
      %2792 = vmatprep.subr.bf16.mxu0 0
      %2793 = vmatpush1.bf16.msra.mxu0 %v869
      %2794 = vmatprep.subr.bf16.mxu0 0
      %2795 = vmatpush1.bf16.msra.mxu0 %v870
      %2796 = vmatprep.subr.bf16.mxu0 0
      %2797 = vmatpush1.bf16.msra.mxu0 %v871
      %2798 = vmatprep.subr.bf16.mxu0 0
      %2799 = vmatpush1.bf16.msra.mxu0 %v872
      %2800 = vmatprep.subr.bf16.mxu0 0
      %2801 = vmatpush1.bf16.msra.mxu0 %v873
      %2802 = vmatprep.subr.bf16.mxu0 0
      %2803 = vmatpush1.bf16.msra.mxu0 %v874
      %2804 = vmatprep.subr.bf16.mxu0 0
      %2805 = vmatpush1.bf16.msra.mxu0 %v875
      %2806 = vmatprep.subr.bf16.mxu0 0
      %2807 = vmatpush1.bf16.msra.mxu0 %v876
      %2808 = vmatprep.subr.bf16.mxu0 0
      %2809 = vmatpush1.bf16.msra.mxu0 %v877
      %2810 = vmatprep.subr.bf16.mxu0 0
      %2811 = vmatpush1.bf16.msra.mxu0 %v878
      %2812 = vmatprep.subr.bf16.mxu0 0
      %2813 = vmatpush1.bf16.msra.mxu0 %v879
      %2814 = vmatprep.subr.bf16.mxu0 0
      %2815 = vmatpush1.bf16.msra.mxu0 %v880
      %2816 = vmatprep.subr.bf16.mxu0 0
      %2817 = vmatpush1.bf16.msra.mxu0 %v881
      %2818 = vmatprep.subr.bf16.mxu0 0
      %2819 = vmatpush1.bf16.msra.mxu0 %v882
      %2820 = vmatprep.mubr.bf16.mxu0 %v2591
      %2821 = vmatmul.mubr.bf16.gmra.mrb[0].mxu0 %v2590
      %v2822 = vpop.f32.mrb[0].mxu0
      %v2823 = vadd.f32 %v2758, %v2822
      %v2824 = vpop.f32.mrb[0].mxu0
      %v2825 = vpop.f32.mrb[0].mxu0
      %v2826 = vadd.f32 %v2761, %v2825
      %v2827 = vpop.f32.mrb[0].mxu0
      %2828 = vmatprep.mubr.bf16.mxu0 %v2600
      %2829 = vmatmul.mubr.bf16.gmra.mrb[0].mxu0 %v2599
      %v2830 = vpop.f32.mrb[0].mxu0
      %v2831 = vadd.f32 %v2766, %v2830
      %v2832 = vpop.f32.mrb[0].mxu0
      %v2833 = vpop.f32.mrb[0].mxu0
      %v2834 = vadd.f32 %v2769, %v2833
      %v2835 = vpop.f32.mrb[0].mxu0
      %2836 = vmatprep.mubr.bf16.mxu0 %v2609
      %2837 = vmatmul.mubr.bf16.gmra.mrb[0].mxu0 %v2608
      %v2838 = vpop.f32.mrb[0].mxu0
      %v2839 = vadd.f32 %v2774, %v2838
      %v2840 = vpop.f32.mrb[0].mxu0
      %v2841 = vpop.f32.mrb[0].mxu0
      %v2842 = vadd.f32 %v2777, %v2841
      %v2843 = vpop.f32.mrb[0].mxu0
      %2844 = vmatprep.mubr.bf16.mxu0 %v2618
      %2845 = vmatmul.mubr.bf16.gmra.mrb[0].mxu0 %v2617
      %v2846 = vpop.f32.mrb[0].mxu0
      %v2847 = vadd.f32 %v2782, %v2846
      %v2848 = vpop.f32.mrb[0].mxu0
      %v2849 = vpop.f32.mrb[0].mxu0
      %v2850 = vadd.f32 %v2785, %v2849
      %v2851 = vpop.f32.mrb[0].mxu0
      %2852 = vdwg.mxu0
      %2853 = vmatprep.subr.bf16.mxu0 0
      %2854 = vmatpush1.bf16.msra.mxu0 %v883
      %2855 = vmatprep.subr.bf16.mxu0 0
      %2856 = vmatpush1.bf16.msra.mxu0 %v884
      %2857 = vmatprep.subr.bf16.mxu0 0
      %2858 = vmatpush1.bf16.msra.mxu0 %v885
      %2859 = vmatprep.subr.bf16.mxu0 0
      %2860 = vmatpush1.bf16.msra.mxu0 %v886
      %2861 = vmatprep.subr.bf16.mxu0 0
      %2862 = vmatpush1.bf16.msra.mxu0 %v887
      %2863 = vmatprep.subr.bf16.mxu0 0
      %2864 = vmatpush1.bf16.msra.mxu0 %v888
      %2865 = vmatprep.subr.bf16.mxu0 0
      %2866 = vmatpush1.bf16.msra.mxu0 %v889
      %2867 = vmatprep.subr.bf16.mxu0 0
      %2868 = vmatpush1.bf16.msra.mxu0 %v890
      %2869 = vmatprep.subr.bf16.mxu0 0
      %2870 = vmatpush1.bf16.msra.mxu0 %v891
      %2871 = vmatprep.subr.bf16.mxu0 0
      %2872 = vmatpush1.bf16.msra.mxu0 %v892
      %2873 = vmatprep.subr.bf16.mxu0 0
      %2874 = vmatpush1.bf16.msra.mxu0 %v893
      %2875 = vmatprep.subr.bf16.mxu0 0
      %2876 = vmatpush1.bf16.msra.mxu0 %v894
      %2877 = vmatprep.subr.bf16.mxu0 0
      %2878 = vmatpush1.bf16.msra.mxu0 %v895
      %2879 = vmatprep.subr.bf16.mxu0 0
      %2880 = vmatpush1.bf16.msra.mxu0 %v896
      %2881 = vmatprep.subr.bf16.mxu0 0
      %2882 = vmatpush1.bf16.msra.mxu0 %v897
      %2883 = vmatprep.subr.bf16.mxu0 0
      %2884 = vmatpush1.bf16.msra.mxu0 %v898
      %2885 = vmatprep.mubr.bf16.mxu0 %v2593
      %2886 = vmatmul.mubr.bf16.gmra.mrb[0].mxu0 %v2592
      %v2887 = vpop.f32.mrb[0].mxu0
      %v2888 = vadd.f32 %v2823, %v2887
      %v2889 = vpop.f32.mrb[0].mxu0
      %v2890 = vpop.f32.mrb[0].mxu0
      %v2891 = vadd.f32 %v2826, %v2890
      %v2892 = vpop.f32.mrb[0].mxu0
      %2893 = vmatprep.mubr.bf16.mxu0 %v2602
      %2894 = vmatmul.mubr.bf16.gmra.mrb[0].mxu0 %v2601
      %v2895 = vpop.f32.mrb[0].mxu0
      %v2896 = vadd.f32 %v2831, %v2895
      %v2897 = vpop.f32.mrb[0].mxu0
      %v2898 = vpop.f32.mrb[0].mxu0
      %v2899 = vadd.f32 %v2834, %v2898
      %v2900 = vpop.f32.mrb[0].mxu0
      %2901 = vmatprep.mubr.bf16.mxu0 %v2611
      %2902 = vmatmul.mubr.bf16.gmra.mrb[0].mxu0 %v2610
      %v2903 = vpop.f32.mrb[0].mxu0
      %v2904 = vadd.f32 %v2839, %v2903
      %v2905 = vpop.f32.mrb[0].mxu0
      %v2906 = vpop.f32.mrb[0].mxu0
      %v2907 = vadd.f32 %v2842, %v2906
      %v2908 = vpop.f32.mrb[0].mxu0
      %2909 = vmatprep.mubr.bf16.mxu0 %v2620
      %2910 = vmatmul.mubr.bf16.gmra.mrb[0].mxu0 %v2619
      %v2911 = vpop.f32.mrb[0].mxu0
      %v2912 = vadd.f32 %v2847, %v2911
      %v2913 = vpop.f32.mrb[0].mxu0
      %v2914 = vpop.f32.mrb[0].mxu0
      %v2915 = vadd.f32 %v2850, %v2914
      %v2916 = vpop.f32.mrb[0].mxu0
      %2917 = vdwg.mxu0
      %2918 = vmatprep.subr.bf16.mxu0 0
      %2919 = vmatpush1.bf16.msra.mxu0 %v899
      %2920 = vmatprep.subr.bf16.mxu0 0
      %2921 = vmatpush1.bf16.msra.mxu0 %v900
      %2922 = vmatprep.subr.bf16.mxu0 0
      %2923 = vmatpush1.bf16.msra.mxu0 %v901
      %2924 = vmatprep.subr.bf16.mxu0 0
      %2925 = vmatpush1.bf16.msra.mxu0 %v902
      %2926 = vmatprep.subr.bf16.mxu0 0
      %2927 = vmatpush1.bf16.msra.mxu0 %v903
      %2928 = vmatprep.subr.bf16.mxu0 0
      %2929 = vmatpush1.bf16.msra.mxu0 %v904
      %2930 = vmatprep.subr.bf16.mxu0 0
      %2931 = vmatpush1.bf16.msra.mxu0 %v905
      %2932 = vmatprep.subr.bf16.mxu0 0
      %2933 = vmatpush1.bf16.msra.mxu0 %v906
      %2934 = vmatprep.subr.bf16.mxu0 0
      %2935 = vmatpush1.bf16.msra.mxu0 0
      %2936 = vmatprep.subr.bf16.mxu0 0
      %2937 = vmatpush1.bf16.msra.mxu0 0
      %2938 = vmatprep.subr.bf16.mxu0 0
      %2939 = vmatpush1.bf16.msra.mxu0 0
      %2940 = vmatprep.subr.bf16.mxu0 0
      %2941 = vmatpush1.bf16.msra.mxu0 0
      %2942 = vmatprep.subr.bf16.mxu0 0
      %2943 = vmatpush1.bf16.msra.mxu0 0
      %2944 = vmatprep.subr.bf16.mxu0 0
      %2945 = vmatpush1.bf16.msra.mxu0 0
      %2946 = vmatprep.subr.bf16.mxu0 0
      %2947 = vmatpush1.bf16.msra.mxu0 0
      %2948 = vmatprep.subr.bf16.mxu0 0
      %2949 = vmatpush1.bf16.msra.mxu0 0
      %2950 = vmatprep.mubr.bf16.mxu0 0
      %2951 = vmatmul.mubr.bf16.gmra.mrb[0].mxu0 %v2594
      %v2952 = vpop.f32.mrb[0].mxu0
      %v2953 = vadd.f32 %v2888, %v2952
      %v2954 = vpop.f32.mrb[0].mxu0
      %v2955 = vpop.f32.mrb[0].mxu0
      %v2956 = vadd.f32 %v2891, %v2955
      %v2957 = vpop.f32.mrb[0].mxu0
      %2958 = vmatprep.mubr.bf16.mxu0 0
      %2959 = vmatmul.mubr.bf16.gmra.mrb[0].mxu0 %v2603
      %v2960 = vpop.f32.mrb[0].mxu0
      %v2961 = vadd.f32 %v2896, %v2960
      %v2962 = vpop.f32.mrb[0].mxu0
      %v2963 = vpop.f32.mrb[0].mxu0
      %v2964 = vadd.f32 %v2899, %v2963
      %v2965 = vpop.f32.mrb[0].mxu0
      %2966 = vmatprep.mubr.bf16.mxu0 0
      %2967 = vmatmul.mubr.bf16.gmra.mrb[0].mxu0 %v2612
      %v2968 = vpop.f32.mrb[0].mxu0
      %v2969 = vadd.f32 %v2904, %v2968
      %v2970 = vpop.f32.mrb[0].mxu0
      %v2971 = vpop.f32.mrb[0].mxu0
      %v2972 = vadd.f32 %v2907, %v2971
      %v2973 = vpop.f32.mrb[0].mxu0
      %2974 = vmatprep.mubr.bf16.mxu0 0
      %2975 = vmatmul.mubr.bf16.gmra.mrb[0].mxu0 %v2621
      %v2976 = vpop.f32.mrb[0].mxu0
      %v2977 = vadd.f32 %v2912, %v2976
      %v2978 = vpop.f32.mrb[0].mxu0
      %v2979 = vpop.f32.mrb[0].mxu0
      %v2980 = vadd.f32 %v2915, %v2979
      %v2981 = vpop.f32.mrb[0].mxu0
      %2982 = vdwg.mxu0
      %v2983 = vmax.f32 %v2953, 0.0
      %v2984 = vmax.f32 %v2956, 0.0
      %v2985 = vmax.f32 %v2961, 0.0
      %v2986 = vmax.f32 %v2964, 0.0
      %v2987 = vmax.f32 %v2969, 0.0
      %v2988 = vmax.f32 %v2972, 0.0
      %v2989 = vmax.f32 %v2977, 0.0
      %v2990 = vmax.f32 %v2980, 0.0
      %v2991 = vmax.f32 %v2426, %v2983
      %v2992 = vmax.f32 %v2427, %v2984
      %v2993 = vmax.f32 %v2428, %v2985
      %v2994 = vmax.f32 %v2429, %v2986
      %v2995 = vmax.f32 %v2430, %v2987
      %v2996 = vmax.f32 %v2431, %v2988
      %v2997 = vmax.f32 %v2432, %v2989
      %v2998 = vmax.f32 %v2433, %v2990
      %v2999 = vmax.f32 %v1869, %v2991
      %v3000 = vmax.f32 %v1870, %v2992
      %v3001 = vmax.f32 %v1871, %v2993
      %v3002 = vmax.f32 %v1872, %v2994
      %v3003 = vmax.f32 %v1873, %v2995
      %v3004 = vmax.f32 %v1874, %v2996
      %v3005 = vmax.f32 %v1875, %v2997
      %v3006 = vmax.f32 %v1876, %v2998
      %3007 = vst [vmem:[%s170] sm:$0xff] %v2999
      %3008 = vst [vmem:[%s170 + $0x8] sm:$0xff] %v3000
      %3009 = vst [vmem:[%s170 + $0x10] sm:$0xff] %v3001
      %3010 = vst [vmem:[%s170 + $0x18] sm:$0xff] %v3002
      %3011 = vst [vmem:[%s170 + $0x20] sm:$0xff] %v3003
      %3012 = vst [vmem:[%s170 + $0x28] sm:$0xff] %v3004
      %3013 = vst [vmem:[%s170 + $0x30] sm:$0xff] %v3005
      %3014 = vst [vmem:[%s170 + $0x38] sm:$0xff] %v3006
      %p3015 = scmp.lt.s32.totalorder %s14, 1
      %s3016 = scalar_select %p3015, %s14, 1
      %s3017 = smul.addr %s3016, 8
      %s3018 = smul.addr %s3017, 8
      %s3019 = scalar_lea.vmem %s3, %s3018
      // Predicated region
      $region33: #{encoder_forward.6} parent=31 // pred_check
        %p3020 = pneg %p100
      $region34: #{encoder_forward.6} parent=31 // pred_check_branch
        %3022 = sbr.rel (%p3020) target = $region36
      $region35: #{encoder_forward.6} parent=31 // pred_region
        _
      $region36: #{encoder_forward.6} parent=31 // pred_fallthru
        _
    $region32: #{encoder_forward.6} parent=5 // pred_fallthru
      _
    %p3023 = scmp.le.s32.totalorder 2, %s9
    // Predicated region
    $region37: #{encoder_forward.6} parent=5 // pred_check
      %p3024 = pneg %p3023
    $region38: #{encoder_forward.6} parent=5 // pred_check_branch
      %3026 = sbr.rel (%p3024) target = $region40
    $region39: #{encoder_forward.6} parent=5 // pred_region
      %s3027 = ssub.s32 %s9, 2
      // Predicated region
      $region41: #{encoder_forward.6} parent=39 // pred_check
        %p3028 = pneg %p106
      $region42: #{encoder_forward.6} parent=39 // pred_check_branch
        %3030 = sbr.rel (%p3028) target = $region44
      $region43: #{encoder_forward.6} parent=39 // pred_region
        %p3031 = scmp.lt.s32.totalorder %s15, 1
        %s3032 = scalar_select %p3031, %s15, 1
        %s3033 = smul.addr %s3032, 8
        %s3034 = smul.addr %s3033, 8
        %s3035 = scalar_lea.vmem %s3, %s3034
      $region44: #{encoder_forward.6} parent=39 // pred_fallthru
        _
    $region40: #{encoder_forward.6} parent=5 // pred_fallthru
      _
  $region6: #{encoder_forward.6} parent=0 // loop_footer
    %s13 = sadd.s32 1, %s9
  $region7: #{encoder_forward.6} parent=0 // loop_footer_branch
    %8 = sbr.rel target = $region3
  $region8: #{encoder_forward.6} parent=0 // loop_exit
    _

// kernel: encoder_forward.7
$region0: #{encoder_forward.7}
  #allocation0 [shape = 'u32[]', space=smem, size = 0x4, offset = 0x4, fixed_abs, tag = 'smem constant byte address 0x4 - core index']
  #allocation1 [shape = 'u32[144,128]{1,0:T(1,128)}', space=vmem, size = 0x12000, scoped, tag = 'internal scratch']
  %s0 = inlined_call_operand.vmem [shape: bf16[2,64,1152], index: 0, kind: input, shape index: {}]
  %s1 = inlined_call_operand.vmem [shape: bf16[1152,128], index: 1, kind: input, shape index: {}]
  %s2 = inlined_call_operand.vmem [shape: f32[1,128], index: 2, kind: input, shape index: {}]
  %s3 = inlined_call_operand.vmem [shape: f32[2,16,128], index: 3, kind: output, shape index: {}]
  %s4 = sld [smem:[#allocation0]]
  $region45: #{encoder_forward.7} parent=0
    _
  %s6 = ssub.s32 1, %s4
  %s7 = scalar_select 0, %s6, %s4
  loop: start=0, step=1, limit=4
  $region2: #{encoder_forward.7} parent=0 // loop_pre_header
    _
  $region3: #{encoder_forward.7} parent=0 // loop_header
    %s9 = sphi 0, %s13
    %p10 = scmp.ge.s32.totalorder %s9, 4
    %s19 = sphi 0, %s21
    %s22 = sphi 0, %s19
    %s23 = sphi 0, %s22
    %s39 = sphi 0, %s23
    %s43 = sphi 0, %s43
    %s45 = sphi 0, %s43
    %s46 = sphi 0, %s45
    %s60 = sphi 0, %s46
    %s64 = sphi 0, %s64
    %s66 = sphi 0, %s64
    %s67 = sphi 0, %s66
    %s81 = sphi 0, %s67
    %s87 = sphi 0, %s89
    %s90 = sphi 0, %s87
    %s91 = sphi 0, %s90
    %s107 = sphi 0, %s91
  $region4: #{encoder_forward.7} parent=0 // loop_header_branch
    %12 = sbr.rel (%p10) target = $region8
  $region5: #{encoder_forward.7} parent=0 // loop_body
    %s14 = ssub.s32 %s9, 1
    %s15 = ssub.s32 %s9, 2
    %s16 = sadd.s32 %s9, 1
    %s17 = ssub.s32 %s9, %s16
    %p18 = scmp.eq.s32.totalorder %s17, 0
    %s20 = sadd.s32 %s19, 1
    %s21 = scalar_select %p18, %s19, %s20
    %p24 = pneg %p18
    %p25 = scmp.eq.s32.totalorder %s9, 1
    %p26 = por %p24, %p25
    %p27 = scmp.ne.s32.totalorder %s19, %s22
    %p28 = scmp.eq.s32.totalorder %s9, 0
    %p29 = por %p27, %p28
    %p30 = scmp.ne.s32.totalorder %s19, %s22
    %p31 = scmp.eq.s32.totalorder %s14, 1
    %p32 = por %p30, %p31
    %p33 = scmp.ne.s32.totalorder %s22, %s23
    %p34 = scmp.eq.s32.totalorder %s14, 0
    %p35 = por %p33, %p34
    %p36 = scmp.ne.s32.totalorder %s22, %s23
    %p37 = scmp.eq.s32.totalorder %s15, 1
    %p38 = por %p36, %p37
    %p40 = scmp.ne.s32.totalorder %s23, %s39
    %p41 = scmp.eq.s32.totalorder %s15, 0
    %p42 = por %p40, %p41
    %s44 = sadd.s32 %s43, 1
    %p47 = scmp.eq.s32.totalorder %s9, 1
    %p48 = scmp.ne.s32.totalorder %s43, %s45
    %p49 = scmp.eq.s32.totalorder %s9, 0
    %p50 = por %p48, %p49
    %p51 = scmp.ne.s32.totalorder %s43, %s45
    %p52 = scmp.eq.s32.totalorder %s14, 1
    %p53 = por %p51, %p52
    %p54 = scmp.ne.s32.totalorder %s45, %s46
    %p55 = scmp.eq.s32.totalorder %s14, 0
    %p56 = por %p54, %p55
    %p57 = scmp.ne.s32.totalorder %s45, %s46
    %p58 = scmp.eq.s32.totalorder %s15, 1
    %p59 = por %p57, %p58
    %p61 = scmp.ne.s32.totalorder %s46, %s60
    %p62 = scmp.eq.s32.totalorder %s15, 0
    %p63 = por %p61, %p62
    %s65 = sadd.s32 %s64, 1
    %p68 = scmp.eq.s32.totalorder %s9, 1
    %p69 = scmp.ne.s32.totalorder %s64, %s66
    %p70 = scmp.eq.s32.totalorder %s9, 0
    %p71 = por %p69, %p70
    %p72 = scmp.ne.s32.totalorder %s64, %s66
    %p73 = scmp.eq.s32.totalorder %s14, 1
    %p74 = por %p72, %p73
    %p75 = scmp.ne.s32.totalorder %s66, %s67
    %p76 = scmp.eq.s32.totalorder %s14, 0
    %p77 = por %p75, %p76
    %p78 = scmp.ne.s32.totalorder %s66, %s67
    %p79 = scmp.eq.s32.totalorder %s15, 1
    %p80 = por %p78, %p79
    %p82 = scmp.ne.s32.totalorder %s67, %s81
    %p83 = scmp.eq.s32.totalorder %s15, 0
    %p84 = por %p82, %p83
    %s85 = ssub.s32 %s9, %s16
    %p86 = scmp.eq.s32.totalorder %s85, 0
    %s88 = sadd.s32 %s87, 1
    %s89 = scalar_select %p86, %s87, %s88
    %p92 = pneg %p86
    %p93 = scmp.eq.s32.totalorder %s9, 1
    %p94 = por %p92, %p93
    %p95 = scmp.ne.s32.totalorder %s87, %s90
    %p96 = scmp.eq.s32.totalorder %s9, 0
    %p97 = por %p95, %p96
    %p98 = scmp.ne.s32.totalorder %s87, %s90
    %p99 = scmp.eq.s32.totalorder %s14, 1
    %p100 = por %p98, %p99
    %p101 = scmp.ne.s32.totalorder %s90, %s91
    %p102 = scmp.eq.s32.totalorder %s14, 0
    %p103 = por %p101, %p102
    %p104 = scmp.ne.s32.totalorder %s90, %s91
    %p105 = scmp.eq.s32.totalorder %s15, 1
    %p106 = por %p104, %p105
    %p108 = scmp.ne.s32.totalorder %s91, %s107
    %p109 = scmp.eq.s32.totalorder %s15, 0
    %p110 = por %p108, %p109
    %p111 = scmp.le.s32.totalorder 1, %s9
    %p112 = scmp.lt.s32.totalorder %s9, 3
    %p113 = pnand %p111, %p112
    %p114 = pneg %p113
    // Predicated region
    $region9: #{encoder_forward.7} parent=5 // pred_check
      _
    $region10: #{encoder_forward.7} parent=5 // pred_check_branch
      %116 = sbr.rel (%p113) target = $region12
    $region11: #{encoder_forward.7} parent=5 // pred_region
      %s117 = ssub.s32 %s9, 1
      // Predicated region
      $region13: #{encoder_forward.7} parent=11 // pred_check
        %p118 = pneg %p56
      $region14: #{encoder_forward.7} parent=11 // pred_check_branch
        %120 = sbr.rel (%p118) target = $region16
      $region15: #{encoder_forward.7} parent=11 // pred_region
        _
      $region16: #{encoder_forward.7} parent=11 // pred_fallthru
        _
      // Predicated region
      $region17: #{encoder_forward.7} parent=11 // pred_check
        %p121 = pneg %p77
      $region18: #{encoder_forward.7} parent=11 // pred_check_branch
        %123 = sbr.rel (%p121) target = $region20
      $region19: #{encoder_forward.7} parent=11 // pred_region
        _
      $region20: #{encoder_forward.7} parent=11 // pred_fallthru
        _
    $region12: #{encoder_forward.7} parent=5 // pred_fallthru
      _
    %p124 = scmp.lt.s32.totalorder %s9, 2
    // Predicated region
    $region21: #{encoder_forward.7} parent=5 // pred_check
      %p125 = pneg %p124
    $region22: #{encoder_forward.7} parent=5 // pred_check_branch
      %127 = sbr.rel (%p125) target = $region24
    $region23: #{encoder_forward.7} parent=5 // pred_region
      // Predicated region
      $region25: #{encoder_forward.7} parent=23 // pred_check
        %p128 = pneg %p29
      $region26: #{encoder_forward.7} parent=23 // pred_check_branch
        %130 = sbr.rel (%p128) target = $region28
      $region27: #{encoder_forward.7} parent=23 // pred_region
        %p131 = scmp.lt.s32.totalorder %s9, 1
        %s132 = scalar_select %p131, %s9, 1
        %s133 = smul.addr %s132, 72
        %s134 = smul.addr %s133, 4
        %s135 = scalar_lea.vmem %s0, %s134
      $region28: #{encoder_forward.7} parent=23 // pred_fallthru
        _
    $region24: #{encoder_forward.7} parent=5 // pred_fallthru
      _
    %p136 = scmp.le.s32.totalorder 1, %s9
    %p137 = scmp.lt.s32.totalorder %s9, 3
    %p138 = pnand %p136, %p137
    %p139 = pneg %p138
    // Predicated region
    $region29: #{encoder_forward.7} parent=5 // pred_check
      _
    $region30: #{encoder_forward.7} parent=5 // pred_check_branch
      %141 = sbr.rel (%p138) target = $region32
    $region31: #{encoder_forward.7} parent=5 // pred_region
      %s142 = ssub.s32 %s9, 1
      %p143 = scmp.lt.s32.totalorder %s14, 1
      %s144 = scalar_select %p143, %s14, 1
      %s145 = smul.addr %s144, 72
      %s146 = smul.addr %s145, 4
      %s147 = scalar_lea.vmem %s0, %s146
      %p148 = pneg %p35
      %p149 = pneg %p32
      %p150 = pneg %p56
      %p151 = pneg %p53
      %p152 = pneg %p77
      %p153 = pneg %p74
      %p154 = pneg %p103
      %p155 = pneg %p100
      %p156 = scmp.lt.s32.totalorder %s14, 1
      %s157 = scalar_select %p156, %s14, 1
      %s158 = smul.addr %s157, 2
      %s159 = smul.addr %s158, 8
      %s160 = scalar_lea.vmem %s3, %s159
      %p161 = scmp.lt.s32.totalorder %s14, 1
      %s162 = scalar_select %p161, %s14, 1
      %s163 = smul.addr %s162, 72
      %s164 = smul.addr %s163, 4
      %s165 = scalar_lea.vmem %s0, %s164
      %p166 = scmp.lt.s32.totalorder %s14, 1
      %s167 = scalar_select %p166, %s14, 1
      %s168 = smul.addr %s167, 2
      %s169 = smul.addr %s168, 8
      %s170 = scalar_lea.vmem %s3, %s169
      %v172 = vld [vmem:[%s1] sm:$0xf]
      %v173 = vld [vmem:[%s1 + $0x4] sm:$0xf]
      %v174 = vld [vmem:[%s1 + $0x8] sm:$0xf]
      %v175 = vld [vmem:[%s1 + $0xc] sm:$0xf]
      %v176 = vld [vmem:[%s1 + $0x10] sm:$0xf]
      %v177 = vld [vmem:[%s1 + $0x14] sm:$0xf]
      %v178 = vld [vmem:[%s1 + $0x18] sm:$0xf]
      %v179 = vld [vmem:[%s1 + $0x1c] sm:$0xf]
      %v180 = vld [vmem:[%s1 + $0x20] sm:$0xf]
      %v181 = vld [vmem:[%s1 + $0x24] sm:$0xf]
      %v182 = vld [vmem:[%s1 + $0x28] sm:$0xf]
      %v183 = vld [vmem:[%s1 + $0x2c] sm:$0xf]
      %v184 = vld [vmem:[%s1 + $0x30] sm:$0xf]
      %v185 = vld [vmem:[%s1 + $0x34] sm:$0xf]
      %v186 = vld [vmem:[%s1 + $0x38] sm:$0xf]
      %v187 = vld [vmem:[%s1 + $0x3c] sm:$0xf]
      %v188 = vld [vmem:[%s1 + $0x40] sm:$0xf]
      %v189 = vld [vmem:[%s1 + $0x44] sm:$0xf]
      %v190 = vld [vmem:[%s1 + $0x48] sm:$0xf]
      %v191 = vld [vmem:[%s1 + $0x4c] sm:$0xf]
      %v192 = vld [vmem:[%s1 + $0x50] sm:$0xf]
      %v193 = vld [vmem:[%s1 + $0x54] sm:$0xf]
      %v194 = vld [vmem:[%s1 + $0x58] sm:$0xf]
      %v195 = vld [vmem:[%s1 + $0x5c] sm:$0xf]
      %v196 = vld [vmem:[%s1 + $0x60] sm:$0xf]
      %v197 = vld [vmem:[%s1 + $0x64] sm:$0xf]
      %v198 = vld [vmem:[%s1 + $0x68] sm:$0xf]
      %v199 = vld [vmem:[%s1 + $0x6c] sm:$0xf]
      %v200 = vld [vmem:[%s1 + $0x70] sm:$0xf]
      %v201 = vld [vmem:[%s1 + $0x74] sm:$0xf]
      %v202 = vld [vmem:[%s1 + $0x78] sm:$0xf]
      %v203 = vld [vmem:[%s1 + $0x7c] sm:$0xf]
      %v204 = vld [vmem:[%s1 + $0x80] sm:$0xf]
      %v205 = vld [vmem:[%s1 + $0x84] sm:$0xf]
      %v206 = vld [vmem:[%s1 + $0x88] sm:$0xf]
      %v207 = vld [vmem:[%s1 + $0x8c] sm:$0xf]
      %v208 = vld [vmem:[%s1 + $0x90] sm:$0xf]
      %v209 = vld [vmem:[%s1 + $0x94] sm:$0xf]
      %v210 = vld [vmem:[%s1 + $0x98] sm:$0xf]
      %v211 = vld [vmem:[%s1 + $0x9c] sm:$0xf]
      %v212 = vld [vmem:[%s1 + $0xa0] sm:$0xf]
      %v213 = vld [vmem:[%s1 + $0xa4] sm:$0xf]
      %v214 = vld [vmem:[%s1 + $0xa8] sm:$0xf]
      %v215 = vld [vmem:[%s1 + $0xac] sm:$0xf]
      %v216 = vld [vmem:[%s1 + $0xb0] sm:$0xf]
      %v217 = vld [vmem:[%s1 + $0xb4] sm:$0xf]
      %v218 = vld [vmem:[%s1 + $0xb8] sm:$0xf]
      %v219 = vld [vmem:[%s1 + $0xbc] sm:$0xf]
      %v220 = vld [vmem:[%s1 + $0xc0] sm:$0xf]
      %v221 = vld [vmem:[%s1 + $0xc4] sm:$0xf]
      %v222 = vld [vmem:[%s1 + $0xc8] sm:$0xf]
      %v223 = vld [vmem:[%s1 + $0xcc] sm:$0xf]
      %v224 = vld [vmem:[%s1 + $0xd0] sm:$0xf]
      %v225 = vld [vmem:[%s1 + $0xd4] sm:$0xf]
      %v226 = vld [vmem:[%s1 + $0xd8] sm:$0xf]
      %v227 = vld [vmem:[%s1 + $0xdc] sm:$0xf]
      %v228 = vld [vmem:[%s1 + $0xe0] sm:$0xf]
      %v229 = vld [vmem:[%s1 + $0xe4] sm:$0xf]
      %v230 = vld [vmem:[%s1 + $0xe8] sm:$0xf]
      %v231 = vld [vmem:[%s1 + $0xec] sm:$0xf]
      %v232 = vld [vmem:[%s1 + $0xf0] sm:$0xf]
      %v233 = vld [vmem:[%s1 + $0xf4] sm:$0xf]
      %v234 = vld [vmem:[%s1 + $0xf8] sm:$0xf]
      %v235 = vld [vmem:[%s1 + $0xfc] sm:$0xf]
      %v236 = vld [vmem:[%s1 + $0x100] sm:$0xf]
      %v237 = vld [vmem:[%s1 + $0x104] sm:$0xf]
      %v238 = vld [vmem:[%s1 + $0x108] sm:$0xf]
      %v239 = vld [vmem:[%s1 + $0x10c] sm:$0xf]
      %v240 = vld [vmem:[%s1 + $0x110] sm:$0xf]
      %v241 = vld [vmem:[%s1 + $0x114] sm:$0xf]
      %v242 = vld [vmem:[%s1 + $0x118] sm:$0xf]
      %v243 = vld [vmem:[%s1 + $0x11c] sm:$0xf]
      %v244 = vld [vmem:[%s1 + $0x120] sm:$0xf]
      %v245 = vld [vmem:[%s1 + $0x124] sm:$0xf]
      %v246 = vld [vmem:[%s1 + $0x128] sm:$0xf]
      %v247 = vld [vmem:[%s1 + $0x12c] sm:$0xf]
      %v248 = vld [vmem:[%s1 + $0x130] sm:$0xf]
      %v249 = vld [vmem:[%s1 + $0x134] sm:$0xf]
      %v250 = vld [vmem:[%s1 + $0x138] sm:$0xf]
      %v251 = vld [vmem:[%s1 + $0x13c] sm:$0xf]
      %v252 = vld [vmem:[%s1 + $0x140] sm:$0xf]
      %v253 = vld [vmem:[%s1 + $0x144] sm:$0xf]
      %v254 = vld [vmem:[%s1 + $0x148] sm:$0xf]
      %v255 = vld [vmem:[%s1 + $0x14c] sm:$0xf]
      %v256 = vld [vmem:[%s1 + $0x150] sm:$0xf]
      %v257 = vld [vmem:[%s1 + $0x154] sm:$0xf]
      %v258 = vld [vmem:[%s1 + $0x158] sm:$0xf]
      %v259 = vld [vmem:[%s1 + $0x15c] sm:$0xf]
      %v260 = vld [vmem:[%s1 + $0x160] sm:$0xf]
      %v261 = vld [vmem:[%s1 + $0x164] sm:$0xf]
      %v262 = vld [vmem:[%s1 + $0x168] sm:$0xf]
      %v263 = vld [vmem:[%s1 + $0x16c] sm:$0xf]
      %v264 = vld [vmem:[%s1 + $0x170] sm:$0xf]
      %v265 = vld [vmem:[%s1 + $0x174] sm:$0xf]
      %v266 = vld [vmem:[%s1 + $0x178] sm:$0xf]
      %v267 = vld [vmem:[%s1 + $0x17c] sm:$0xf]
      %v268 = vld [vmem:[%s1 + $0x180] sm:$0xf]
      %v269 = vld [vmem:[%s1 + $0x184] sm:$0xf]
      %v270 = vld [vmem:[%s1 + $0x188] sm:$0xf]
      %v271 = vld [vmem:[%s1 + $0x18c] sm:$0xf]
      %v272 = vld [vmem:[%s1 + $0x190] sm:$0xf]
      %v273 = vld [vmem:[%s1 + $0x194] sm:$0xf]
      %v274 = vld [vmem:[%s1 + $0x198] sm:$0xf]
      %v275 = vld [vmem:[%s1 + $0x19c] sm:$0xf]
      %v276 = vld [vmem:[%s1 + $0x1a0] sm:$0xf]
      %v277 = vld [vmem:[%s1 + $0x1a4] sm:$0xf]
      %v278 = vld [vmem:[%s1 + $0x1a8] sm:$0xf]
      %v279 = vld [vmem:[%s1 + $0x1ac] sm:$0xf]
      %v280 = vld [vmem:[%s1 + $0x1b0] sm:$0xf]
      %v281 = vld [vmem:[%s1 + $0x1b4] sm:$0xf]
      %v282 = vld [vmem:[%s1 + $0x1b8] sm:$0xf]
      %v283 = vld [vmem:[%s1 + $0x1bc] sm:$0xf]
      %v284 = vld [vmem:[%s1 + $0x1c0] sm:$0xf]
      %v285 = vld [vmem:[%s1 + $0x1c4] sm:$0xf]
      %v286 = vld [vmem:[%s1 + $0x1c8] sm:$0xf]
      %v287 = vld [vmem:[%s1 + $0x1cc] sm:$0xf]
      %v288 = vld [vmem:[%s1 + $0x1d0] sm:$0xf]
      %v289 = vld [vmem:[%s1 + $0x1d4] sm:$0xf]
      %v290 = vld [vmem:[%s1 + $0x1d8] sm:$0xf]
      %v291 = vld [vmem:[%s1 + $0x1dc] sm:$0xf]
      %v292 = vld [vmem:[%s1 + $0x1e0] sm:$0xf]
      %v293 = vld [vmem:[%s1 + $0x1e4] sm:$0xf]
      %v294 = vld [vmem:[%s1 + $0x1e8] sm:$0xf]
      %v295 = vld [vmem:[%s1 + $0x1ec] sm:$0xf]
      %v296 = vld [vmem:[%s1 + $0x1f0] sm:$0xf]
      %v297 = vld [vmem:[%s1 + $0x1f4] sm:$0xf]
      %v298 = vld [vmem:[%s1 + $0x1f8] sm:$0xf]
      %v299 = vld [vmem:[%s1 + $0x1fc] sm:$0xf]
      %v300 = vld [vmem:[%s1 + $0x200] sm:$0xf]
      %v301 = vld [vmem:[%s1 + $0x204] sm:$0xf]
      %v302 = vld [vmem:[%s1 + $0x208] sm:$0xf]
      %v303 = vld [vmem:[%s1 + $0x20c] sm:$0xf]
      %v304 = vld [vmem:[%s1 + $0x210] sm:$0xf]
      %v305 = vld [vmem:[%s1 + $0x214] sm:$0xf]
      %v306 = vld [vmem:[%s1 + $0x218] sm:$0xf]
      %v307 = vld [vmem:[%s1 + $0x21c] sm:$0xf]
      %v308 = vld [vmem:[%s1 + $0x220] sm:$0xf]
      %v309 = vld [vmem:[%s1 + $0x224] sm:$0xf]
      %v310 = vld [vmem:[%s1 + $0x228] sm:$0xf]
      %v311 = vld [vmem:[%s1 + $0x22c] sm:$0xf]
      %v312 = vld [vmem:[%s1 + $0x230] sm:$0xf]
      %v313 = vld [vmem:[%s1 + $0x234] sm:$0xf]
      %v314 = vld [vmem:[%s1 + $0x238] sm:$0xf]
      %v315 = vld [vmem:[%s1 + $0x23c] sm:$0xf]
      %v316 = vld [vmem:[%s2] sm:$0x1]
      %v317 = vld [vmem:[%s165] sm:$0xff]
      %v318 = vld [vmem:[%s165 + $0x8] sm:$0xff]
      %v319 = vld [vmem:[%s165 + $0x10] sm:$0xff]
      %v320 = vld [vmem:[%s165 + $0x18] sm:$0xff]
      %v321 = vld [vmem:[%s165 + $0x20] sm:$0xf]
      %v322 = vld [vmem:[%s165 + $0x24] sm:$0xff]
      %v323 = vld [vmem:[%s165 + $0x2c] sm:$0xff]
      %v324 = vld [vmem:[%s165 + $0x34] sm:$0xff]
      %v325 = vld [vmem:[%s165 + $0x3c] sm:$0xff]
      %v326 = vld [vmem:[%s165 + $0x44] sm:$0xf]
      %v328 = vlaneseq
      %v329 = vshrl.u32 %v328, 7
      %v330 = vsub.s32 0, %v329
      %v331 = vrot.slane %v316, %v330
      %v343 = vunpack.c.l.b16 %v317
      %v344 = vunpack.c.h.b16 %v317
      %v345 = vunpack.c.l.b16 %v318
      %v346 = vunpack.c.h.b16 %v318
      %v347 = vunpack.c.l.b16 %v319
      %v348 = vunpack.c.h.b16 %v319
      %v349 = vunpack.c.l.b16 %v320
      %v350 = vunpack.c.h.b16 %v320
      %v351 = vunpack.c.l.b16 %v321
      %v352 = vunpack.c.l.b16 %v322
      %v353 = vunpack.c.h.b16 %v322
      %v354 = vunpack.c.l.b16 %v323
      %v355 = vunpack.c.h.b16 %v323
      %v356 = vunpack.c.l.b16 %v324
      %v357 = vunpack.c.h.b16 %v324
      %v358 = vunpack.c.l.b16 %v325
      %v359 = vunpack.c.h.b16 %v325
      %v360 = vunpack.c.l.b16 %v326
      %v361 = vpack.c.b16 %v352, %v343
      %v362 = vpack.c.b16 %v353, %v344
      %v363 = vpack.c.b16 %v354, %v345
      %v364 = vpack.c.b16 %v355, %v346
      %v365 = vpack.c.b16 %v356, %v347
      %v366 = vpack.c.b16 %v357, %v348
      %v367 = vpack.c.b16 %v358, %v349
      %v368 = vpack.c.b16 %v359, %v350
      %v369 = vpack.c.b16 %v360, %v351
      %v523 = vunpack.c.l.b16 %v172
      %v524 = vunpack.c.l.b16 %v173
      %v525 = vunpack.c.l.b16 %v174
      %v526 = vunpack.c.l.b16 %v175
      %v527 = vunpack.c.l.b16 %v176
      %v528 = vunpack.c.l.b16 %v177
      %v529 = vunpack.c.l.b16 %v178
      %v530 = vunpack.c.l.b16 %v179
      %v531 = vunpack.c.l.b16 %v180
      %v532 = vunpack.c.l.b16 %v181
      %v533 = vunpack.c.l.b16 %v182
      %v534 = vunpack.c.l.b16 %v183
      %v535 = vunpack.c.l.b16 %v184
      %v536 = vunpack.c.l.b16 %v185
      %v537 = vunpack.c.l.b16 %v186
      %v538 = vunpack.c.l.b16 %v187
      %v539 = vunpack.c.l.b16 %v188
      %v540 = vunpack.c.l.b16 %v189
      %v541 = vunpack.c.l.b16 %v190
      %v542 = vunpack.c.l.b16 %v191
      %v543 = vunpack.c.l.b16 %v192
      %v544 = vunpack.c.l.b16 %v193
      %v545 = vunpack.c.l.b16 %v194
      %v546 = vunpack.c.l.b16 %v195
      %v547 = vunpack.c.l.b16 %v196
      %v548 = vunpack.c.l.b16 %v197
      %v549 = vunpack.c.l.b16 %v198
      %v550 = vunpack.c.l.b16 %v199
      %v551 = vunpack.c.l.b16 %v200
      %v552 = vunpack.c.l.b16 %v201
      %v553 = vunpack.c.l.b16 %v202
      %v554 = vunpack.c.l.b16 %v203
      %v555 = vunpack.c.l.b16 %v204
      %v556 = vunpack.c.l.b16 %v205
      %v557 = vunpack.c.l.b16 %v206
      %v558 = vunpack.c.l.b16 %v207
      %v559 = vunpack.c.l.b16 %v208
      %v560 = vunpack.c.l.b16 %v209
      %v561 = vunpack.c.l.b16 %v210
      %v562 = vunpack.c.l.b16 %v211
      %v563 = vunpack.c.l.b16 %v212
      %v564 = vunpack.c.l.b16 %v213
      %v565 = vunpack.c.l.b16 %v214
      %v566 = vunpack.c.l.b16 %v215
      %v567 = vunpack.c.l.b16 %v216
      %v568 = vunpack.c.l.b16 %v217
      %v569 = vunpack.c.l.b16 %v218
      %v570 = vunpack.c.l.b16 %v219
      %v571 = vunpack.c.l.b16 %v220
      %v572 = vunpack.c.l.b16 %v221
      %v573 = vunpack.c.l.b16 %v222
      %v574 = vunpack.c.l.b16 %v223
      %v575 = vunpack.c.l.b16 %v224
      %v576 = vunpack.c.l.b16 %v225
      %v577 = vunpack.c.l.b16 %v226
      %v578 = vunpack.c.l.b16 %v227
      %v579 = vunpack.c.l.b16 %v228
      %v580 = vunpack.c.l.b16 %v229
      %v581 = vunpack.c.l.b16 %v230
      %v582 = vunpack.c.l.b16 %v231
      %v583 = vunpack.c.l.b16 %v232
      %v584 = vunpack.c.l.b16 %v233
      %v585 = vunpack.c.l.b16 %v234
      %v586 = vunpack.c.l.b16 %v235
      %v587 = vunpack.c.l.b16 %v236
      %v588 = vunpack.c.l.b16 %v237
      %v589 = vunpack.c.l.b16 %v238
      %v590 = vunpack.c.l.b16 %v239
      %v591 = vunpack.c.l.b16 %v240
      %v592 = vunpack.c.l.b16 %v241
      %v593 = vunpack.c.l.b16 %v242
      %v594 = vunpack.c.l.b16 %v243
      %v595 = vunpack.c.l.b16 %v244
      %v596 = vunpack.c.l.b16 %v245
      %v597 = vunpack.c.l.b16 %v246
      %v598 = vunpack.c.l.b16 %v247
      %v599 = vunpack.c.l.b16 %v248
      %v600 = vunpack.c.l.b16 %v249
      %v601 = vunpack.c.l.b16 %v250
      %v602 = vunpack.c.l.b16 %v251
      %v603 = vunpack.c.l.b16 %v252
      %v604 = vunpack.c.l.b16 %v253
      %v605 = vunpack.c.l.b16 %v254
      %v606 = vunpack.c.l.b16 %v255
      %v607 = vunpack.c.l.b16 %v256
      %v608 = vunpack.c.l.b16 %v257
      %v609 = vunpack.c.l.b16 %v258
      %v610 = vunpack.c.l.b16 %v259
      %v611 = vunpack.c.l.b16 %v260
      %v612 = vunpack.c.l.b16 %v261
      %v613 = vunpack.c.l.b16 %v262
      %v614 = vunpack.c.l.b16 %v263
      %v615 = vunpack.c.l.b16 %v264
      %v616 = vunpack.c.l.b16 %v265
      %v617 = vunpack.c.l.b16 %v266
      %v618 = vunpack.c.l.b16 %v267
      %v619 = vunpack.c.l.b16 %v268
      %v620 = vunpack.c.l.b16 %v269
      %v621 = vunpack.c.l.b16 %v270
      %v622 = vunpack.c.l.b16 %v271
      %v623 = vunpack.c.l.b16 %v272
      %v624 = vunpack.c.l.b16 %v273
      %v625 = vunpack.c.l.b16 %v274
      %v626 = vunpack.c.l.b16 %v275
      %v627 = vunpack.c.l.b16 %v276
      %v628 = vunpack.c.l.b16 %v277
      %v629 = vunpack.c.l.b16 %v278
      %v630 = vunpack.c.l.b16 %v279
      %v631 = vunpack.c.l.b16 %v280
      %v632 = vunpack.c.l.b16 %v281
      %v633 = vunpack.c.l.b16 %v282
      %v634 = vunpack.c.l.b16 %v283
      %v635 = vunpack.c.l.b16 %v284
      %v636 = vunpack.c.l.b16 %v285
      %v637 = vunpack.c.l.b16 %v286
      %v638 = vunpack.c.l.b16 %v287
      %v639 = vunpack.c.l.b16 %v288
      %v640 = vunpack.c.l.b16 %v289
      %v641 = vunpack.c.l.b16 %v290
      %v642 = vunpack.c.l.b16 %v291
      %v643 = vunpack.c.l.b16 %v292
      %v644 = vunpack.c.l.b16 %v293
      %v645 = vunpack.c.l.b16 %v294
      %v646 = vunpack.c.l.b16 %v295
      %v647 = vunpack.c.l.b16 %v296
      %v648 = vunpack.c.l.b16 %v297
      %v649 = vunpack.c.l.b16 %v298
      %v650 = vunpack.c.l.b16 %v299
      %v651 = vunpack.c.l.b16 %v300
      %v652 = vunpack.c.l.b16 %v301
      %v653 = vunpack.c.l.b16 %v302
      %v654 = vunpack.c.l.b16 %v303
      %v655 = vunpack.c.l.b16 %v304
      %v656 = vunpack.c.l.b16 %v305
      %v657 = vunpack.c.l.b16 %v306
      %v658 = vunpack.c.l.b16 %v307
      %v659 = vunpack.c.l.b16 %v308
      %v660 = vunpack.c.l.b16 %v309
      %v661 = vunpack.c.l.b16 %v310
      %v662 = vunpack.c.l.b16 %v311
      %v663 = vunpack.c.l.b16 %v312
      %v664 = vunpack.c.l.b16 %v313
      %v665 = vunpack.c.l.b16 %v314
      %v666 = vunpack.c.l.b16 %v315
      %v667 = vpack.c.b16 %v524, %v523
      %v668 = vpack.c.b16 %v526, %v525
      %v669 = vpack.c.b16 %v528, %v527
      %v670 = vpack.c.b16 %v530, %v529
      %v671 = vpack.c.b16 %v532, %v531
      %v672 = vpack.c.b16 %v534, %v533
      %v673 = vpack.c.b16 %v536, %v535
      %v674 = vpack.c.b16 %v538, %v537
      %v675 = vpack.c.b16 %v540, %v539
      %v676 = vpack.c.b16 %v542, %v541
      %v677 = vpack.c.b16 %v544, %v543
      %v678 = vpack.c.b16 %v546, %v545
      %v679 = vpack.c.b16 %v548, %v547
      %v680 = vpack.c.b16 %v550, %v549
      %v681 = vpack.c.b16 %v552, %v551
      %v682 = vpack.c.b16 %v554, %v553
      %v683 = vpack.c.b16 %v556, %v555
      %v684 = vpack.c.b16 %v558, %v557
      %v685 = vpack.c.b16 %v560, %v559
      %v686 = vpack.c.b16 %v562, %v561
      %v687 = vpack.c.b16 %v564, %v563
      %v688 = vpack.c.b16 %v566, %v565
      %v689 = vpack.c.b16 %v568, %v567
      %v690 = vpack.c.b16 %v570, %v569
      %v691 = vpack.c.b16 %v572, %v571
      %v692 = vpack.c.b16 %v574, %v573
      %v693 = vpack.c.b16 %v576, %v575
      %v694 = vpack.c.b16 %v578, %v577
      %v695 = vpack.c.b16 %v580, %v579
      %v696 = vpack.c.b16 %v582, %v581
      %v697 = vpack.c.b16 %v584, %v583
      %v698 = vpack.c.b16 %v586, %v585
      %v699 = vpack.c.b16 %v588, %v587
      %v700 = vpack.c.b16 %v590, %v589
      %v701 = vpack.c.b16 %v592, %v591
      %v702 = vpack.c.b16 %v594, %v593
      %v703 = vpack.c.b16 %v596, %v595
      %v704 = vpack.c.b16 %v598, %v597
      %v705 = vpack.c.b16 %v600, %v599
      %v706 = vpack.c.b16 %v602, %v601
      %v707 = vpack.c.b16 %v604, %v603
      %v708 = vpack.c.b16 %v606, %v605
      %v709 = vpack.c.b16 %v608, %v607
      %v710 = vpack.c.b16 %v610, %v609
      %v711 = vpack.c.b16 %v612, %v611
      %v712 = vpack.c.b16 %v614, %v613
      %v713 = vpack.c.b16 %v616, %v615
      %v714 = vpack.c.b16 %v618, %v617
      %v715 = vpack.c.b16 %v620, %v619
      %v716 = vpack.c.b16 %v622, %v621
      %v717 = vpack.c.b16 %v624, %v623
      %v718 = vpack.c.b16 %v626, %v625
      %v719 = vpack.c.b16 %v628, %v627
      %v720 = vpack.c.b16 %v630, %v629
      %v721 = vpack.c.b16 %v632, %v631
      %v722 = vpack.c.b16 %v634, %v633
      %v723 = vpack.c.b16 %v636, %v635
      %v724 = vpack.c.b16 %v638, %v637
      %v725 = vpack.c.b16 %v640, %v639
      %v726 = vpack.c.b16 %v642, %v641
      %v727 = vpack.c.b16 %v644, %v643
      %v728 = vpack.c.b16 %v646, %v645
      %v729 = vpack.c.b16 %v648, %v647
      %v730 = vpack.c.b16 %v650, %v649
      %v731 = vpack.c.b16 %v652, %v651
      %v732 = vpack.c.b16 %v654, %v653
      %v733 = vpack.c.b16 %v656, %v655
      %v734 = vpack.c.b16 %v658, %v657
      %v735 = vpack.c.b16 %v660, %v659
      %v736 = vpack.c.b16 %v662, %v661
      %v737 = vpack.c.b16 %v664, %v663
      %v738 = vpack.c.b16 %v666, %v665
      %811 = vmatprep.subr.bf16.mxu0 0
      %812 = vmatpush1.bf16.msra.mxu0 %v667
      %813 = vmatprep.subr.bf16.mxu0 0
      %814 = vmatpush1.bf16.msra.mxu0 %v668
      %815 = vmatprep.subr.bf16.mxu0 0
      %816 = vmatpush1.bf16.msra.mxu0 %v669
      %817 = vmatprep.subr.bf16.mxu0 0
      %818 = vmatpush1.bf16.msra.mxu0 %v670
      %819 = vmatprep.subr.bf16.mxu0 0
      %820 = vmatpush1.bf16.msra.mxu0 %v671
      %821 = vmatprep.subr.bf16.mxu0 0
      %822 = vmatpush1.bf16.msra.mxu0 %v672
      %823 = vmatprep.subr.bf16.mxu0 0
      %824 = vmatpush1.bf16.msra.mxu0 %v673
      %825 = vmatprep.subr.bf16.mxu0 0
      %826 = vmatpush1.bf16.msra.mxu0 %v674
      %827 = vmatprep.subr.bf16.mxu0 0
      %828 = vmatpush1.bf16.msra.mxu0 %v675
      %829 = vmatprep.subr.bf16.mxu0 0
      %830 = vmatpush1.bf16.msra.mxu0 %v676
      %831 = vmatprep.subr.bf16.mxu0 0
      %832 = vmatpush1.bf16.msra.mxu0 %v677
      %833 = vmatprep.subr.bf16.mxu0 0
      %834 = vmatpush1.bf16.msra.mxu0 %v678
      %835 = vmatprep.subr.bf16.mxu0 0
      %836 = vmatpush1.bf16.msra.mxu0 %v679
      %837 = vmatprep.subr.bf16.mxu0 0
      %838 = vmatpush1.bf16.msra.mxu0 %v680
      %839 = vmatprep.subr.bf16.mxu0 0
      %840 = vmatpush1.bf16.msra.mxu0 %v681
      %841 = vmatprep.subr.bf16.mxu0 0
      %842 = vmatpush1.bf16.msra.mxu0 %v682
      %843 = vmatprep.mubr.bf16.mxu0 %v362
      %844 = vmatmul.mubr.bf16.gmra.mrb[0].mxu0 %v361
      %v845 = vpop.f32.mrb[0].mxu0
      %v846 = vadd.f32 %v331, %v845
      %v847 = vpop.f32.mrb[0].mxu0
      %v848 = vpop.f32.mrb[0].mxu0
      %v849 = vadd.f32 %v331, %v848
      %v850 = vpop.f32.mrb[0].mxu0
      %851 = vdwg.mxu0
      %852 = vmatprep.subr.bf16.mxu0 0
      %853 = vmatpush1.bf16.msra.mxu0 %v683
      %854 = vmatprep.subr.bf16.mxu0 0
      %855 = vmatpush1.bf16.msra.mxu0 %v684
      %856 = vmatprep.subr.bf16.mxu0 0
      %857 = vmatpush1.bf16.msra.mxu0 %v685
      %858 = vmatprep.subr.bf16.mxu0 0
      %859 = vmatpush1.bf16.msra.mxu0 %v686
      %860 = vmatprep.subr.bf16.mxu0 0
      %861 = vmatpush1.bf16.msra.mxu0 %v687
      %862 = vmatprep.subr.bf16.mxu0 0
      %863 = vmatpush1.bf16.msra.mxu0 %v688
      %864 = vmatprep.subr.bf16.mxu0 0
      %865 = vmatpush1.bf16.msra.mxu0 %v689
      %866 = vmatprep.subr.bf16.mxu0 0
      %867 = vmatpush1.bf16.msra.mxu0 %v690
      %868 = vmatprep.subr.bf16.mxu0 0
      %869 = vmatpush1.bf16.msra.mxu0 %v691
      %870 = vmatprep.subr.bf16.mxu0 0
      %871 = vmatpush1.bf16.msra.mxu0 %v692
      %872 = vmatprep.subr.bf16.mxu0 0
      %873 = vmatpush1.bf16.msra.mxu0 %v693
      %874 = vmatprep.subr.bf16.mxu0 0
      %875 = vmatpush1.bf16.msra.mxu0 %v694
      %876 = vmatprep.subr.bf16.mxu0 0
      %877 = vmatpush1.bf16.msra.mxu0 %v695
      %878 = vmatprep.subr.bf16.mxu0 0
      %879 = vmatpush1.bf16.msra.mxu0 %v696
      %880 = vmatprep.subr.bf16.mxu0 0
      %881 = vmatpush1.bf16.msra.mxu0 %v697
      %882 = vmatprep.subr.bf16.mxu0 0
      %883 = vmatpush1.bf16.msra.mxu0 %v698
      %884 = vmatprep.mubr.bf16.mxu0 %v364
      %885 = vmatmul.mubr.bf16.gmra.mrb[0].mxu0 %v363
      %v886 = vpop.f32.mrb[0].mxu0
      %v887 = vadd.f32 %v846, %v886
      %v888 = vpop.f32.mrb[0].mxu0
      %v889 = vpop.f32.mrb[0].mxu0
      %v890 = vadd.f32 %v849, %v889
      %v891 = vpop.f32.mrb[0].mxu0
      %892 = vdwg.mxu0
      %893 = vmatprep.subr.bf16.mxu0 0
      %894 = vmatpush1.bf16.msra.mxu0 %v699
      %895 = vmatprep.subr.bf16.mxu0 0
      %896 = vmatpush1.bf16.msra.mxu0 %v700
      %897 = vmatprep.subr.bf16.mxu0 0
      %898 = vmatpush1.bf16.msra.mxu0 %v701
      %899 = vmatprep.subr.bf16.mxu0 0
      %900 = vmatpush1.bf16.msra.mxu0 %v702
      %901 = vmatprep.subr.bf16.mxu0 0
      %902 = vmatpush1.bf16.msra.mxu0 %v703
      %903 = vmatprep.subr.bf16.mxu0 0
      %904 = vmatpush1.bf16.msra.mxu0 %v704
      %905 = vmatprep.subr.bf16.mxu0 0
      %906 = vmatpush1.bf16.msra.mxu0 %v705
      %907 = vmatprep.subr.bf16.mxu0 0
      %908 = vmatpush1.bf16.msra.mxu0 %v706
      %909 = vmatprep.subr.bf16.mxu0 0
      %910 = vmatpush1.bf16.msra.mxu0 %v707
      %911 = vmatprep.subr.bf16.mxu0 0
      %912 = vmatpush1.bf16.msra.mxu0 %v708
      %913 = vmatprep.subr.bf16.mxu0 0
      %914 = vmatpush1.bf16.msra.mxu0 %v709
      %915 = vmatprep.subr.bf16.mxu0 0
      %916 = vmatpush1.bf16.msra.mxu0 %v710
      %917 = vmatprep.subr.bf16.mxu0 0
      %918 = vmatpush1.bf16.msra.mxu0 %v711
      %919 = vmatprep.subr.bf16.mxu0 0
      %920 = vmatpush1.bf16.msra.mxu0 %v712
      %921 = vmatprep.subr.bf16.mxu0 0
      %922 = vmatpush1.bf16.msra.mxu0 %v713
      %923 = vmatprep.subr.bf16.mxu0 0
      %924 = vmatpush1.bf16.msra.mxu0 %v714
      %925 = vmatprep.mubr.bf16.mxu0 %v366
      %926 = vmatmul.mubr.bf16.gmra.mrb[0].mxu0 %v365
      %v927 = vpop.f32.mrb[0].mxu0
      %v928 = vadd.f32 %v887, %v927
      %v929 = vpop.f32.mrb[0].mxu0
      %v930 = vpop.f32.mrb[0].mxu0
      %v931 = vadd.f32 %v890, %v930
      %v932 = vpop.f32.mrb[0].mxu0
      %933 = vdwg.mxu0
      %934 = vmatprep.subr.bf16.mxu0 0
      %935 = vmatpush1.bf16.msra.mxu0 %v715
      %936 = vmatprep.subr.bf16.mxu0 0
      %937 = vmatpush1.bf16.msra.mxu0 %v716
      %938 = vmatprep.subr.bf16.mxu0 0
      %939 = vmatpush1.bf16.msra.mxu0 %v717
      %940 = vmatprep.subr.bf16.mxu0 0
      %941 = vmatpush1.bf16.msra.mxu0 %v718
      %942 = vmatprep.subr.bf16.mxu0 0
      %943 = vmatpush1.bf16.msra.mxu0 %v719
      %944 = vmatprep.subr.bf16.mxu0 0
      %945 = vmatpush1.bf16.msra.mxu0 %v720
      %946 = vmatprep.subr.bf16.mxu0 0
      %947 = vmatpush1.bf16.msra.mxu0 %v721
      %948 = vmatprep.subr.bf16.mxu0 0
      %949 = vmatpush1.bf16.msra.mxu0 %v722
      %950 = vmatprep.subr.bf16.mxu0 0
      %951 = vmatpush1.bf16.msra.mxu0 %v723
      %952 = vmatprep.subr.bf16.mxu0 0
      %953 = vmatpush1.bf16.msra.mxu0 %v724
      %954 = vmatprep.subr.bf16.mxu0 0
      %955 = vmatpush1.bf16.msra.mxu0 %v725
      %956 = vmatprep.subr.bf16.mxu0 0
      %957 = vmatpush1.bf16.msra.mxu0 %v726
      %958 = vmatprep.subr.bf16.mxu0 0
      %959 = vmatpush1.bf16.msra.mxu0 %v727
      %960 = vmatprep.subr.bf16.mxu0 0
      %961 = vmatpush1.bf16.msra.mxu0 %v728
      %962 = vmatprep.subr.bf16.mxu0 0
      %963 = vmatpush1.bf16.msra.mxu0 %v729
      %964 = vmatprep.subr.bf16.mxu0 0
      %965 = vmatpush1.bf16.msra.mxu0 %v730
      %966 = vmatprep.mubr.bf16.mxu0 %v368
      %967 = vmatmul.mubr.bf16.gmra.mrb[0].mxu0 %v367
      %v968 = vpop.f32.mrb[0].mxu0
      %v969 = vadd.f32 %v928, %v968
      %v970 = vpop.f32.mrb[0].mxu0
      %v971 = vpop.f32.mrb[0].mxu0
      %v972 = vadd.f32 %v931, %v971
      %v973 = vpop.f32.mrb[0].mxu0
      %974 = vdwg.mxu0
      %975 = vmatprep.subr.bf16.mxu0 0
      %976 = vmatpush1.bf16.msra.mxu0 %v731
      %977 = vmatprep.subr.bf16.mxu0 0
      %978 = vmatpush1.bf16.msra.mxu0 %v732
      %979 = vmatprep.subr.bf16.mxu0 0
      %980 = vmatpush1.bf16.msra.mxu0 %v733
      %981 = vmatprep.subr.bf16.mxu0 0
      %982 = vmatpush1.bf16.msra.mxu0 %v734
      %983 = vmatprep.subr.bf16.mxu0 0
      %984 = vmatpush1.bf16.msra.mxu0 %v735
      %985 = vmatprep.subr.bf16.mxu0 0
      %986 = vmatpush1.bf16.msra.mxu0 %v736
      %987 = vmatprep.subr.bf16.mxu0 0
      %988 = vmatpush1.bf16.msra.mxu0 %v737
      %989 = vmatprep.subr.bf16.mxu0 0
      %990 = vmatpush1.bf16.msra.mxu0 %v738
      %991 = vmatprep.subr.bf16.mxu0 0
      %992 = vmatpush1.bf16.msra.mxu0 0
      %993 = vmatprep.subr.bf16.mxu0 0
      %994 = vmatpush1.bf16.msra.mxu0 0
      %995 = vmatprep.subr.bf16.mxu0 0
      %996 = vmatpush1.bf16.msra.mxu0 0
      %997 = vmatprep.subr.bf16.mxu0 0
      %998 = vmatpush1.bf16.msra.mxu0 0
      %999 = vmatprep.subr.bf16.mxu0 0
      %1000 = vmatpush1.bf16.msra.mxu0 0
      %1001 = vmatprep.subr.bf16.mxu0 0
      %1002 = vmatpush1.bf16.msra.mxu0 0
      %1003 = vmatprep.subr.bf16.mxu0 0
      %1004 = vmatpush1.bf16.msra.mxu0 0
      %1005 = vmatprep.subr.bf16.mxu0 0
      %1006 = vmatpush1.bf16.msra.mxu0 0
      %1007 = vmatprep.mubr.bf16.mxu0 0
      %1008 = vmatmul.mubr.bf16.gmra.mrb[0].mxu0 %v369
      %v1009 = vpop.f32.mrb[0].mxu0
      %v1010 = vadd.f32 %v969, %v1009
      %v1011 = vpop.f32.mrb[0].mxu0
      %v1012 = vpop.f32.mrb[0].mxu0
      %v1013 = vadd.f32 %v972, %v1012
      %v1014 = vpop.f32.mrb[0].mxu0
      %1015 = vdwg.mxu0
      %v1016 = vmax.f32 %v1010, 0.0
      %v1017 = vmax.f32 %v1013, 0.0
      %v1018 = vld [vmem:[%s165 + $0x48] sm:$0xff]
      %v1019 = vld [vmem:[%s165 + $0x50] sm:$0xff]
      %v1020 = vld [vmem:[%s165 + $0x58] sm:$0xff]
      %v1021 = vld [vmem:[%s165 + $0x60] sm:$0xff]
      %v1022 = vld [vmem:[%s165 + $0x68] sm:$0xf]
      %v1023 = vld [vmem:[%s165 + $0x6c] sm:$0xff]
      %v1024 = vld [vmem:[%s165 + $0x74] sm:$0xff]
      %v1025 = vld [vmem:[%s165 + $0x7c] sm:$0xff]
      %v1026 = vld [vmem:[%s165 + $0x84] sm:$0xff]
      %v1027 = vld [vmem:[%s165 + $0x8c] sm:$0xf]
      %v1038 = vunpack.c.l.b16 %v1018
      %v1039 = vunpack.c.h.b16 %v1018
      %v1040 = vunpack.c.l.b16 %v1019
      %v1041 = vunpack.c.h.b16 %v1019
      %v1042 = vunpack.c.l.b16 %v1020
      %v1043 = vunpack.c.h.b16 %v1020
      %v1044 = vunpack.c.l.b16 %v1021
      %v1045 = vunpack.c.h.b16 %v1021
      %v1046 = vunpack.c.l.b16 %v1022
      %v1047 = vunpack.c.l.b16 %v1023
      %v1048 = vunpack.c.h.b16 %v1023
      %v1049 = vunpack.c.l.b16 %v1024
      %v1050 = vunpack.c.h.b16 %v1024
      %v1051 = vunpack.c.l.b16 %v1025
      %v1052 = vunpack.c.h.b16 %v1025
      %v1053 = vunpack.c.l.b16 %v1026
      %v1054 = vunpack.c.h.b16 %v1026
      %v1055 = vunpack.c.l.b16 %v1027
      %v1056 = vpack.c.b16 %v1047, %v1038
      %v1057 = vpack.c.b16 %v1048, %v1039
      %v1058 = vpack.c.b16 %v1049, %v1040
      %v1059 = vpack.c.b16 %v1050, %v1041
      %v1060 = vpack.c.b16 %v1051, %v1042
      %v1061 = vpack.c.b16 %v1052, %v1043
      %v1062 = vpack.c.b16 %v1053, %v1044
      %v1063 = vpack.c.b16 %v1054, %v1045
      %v1064 = vpack.c.b16 %v1055, %v1046
      %1074 = vmatprep.subr.bf16.mxu0 0
      %1075 = vmatpush1.bf16.msra.mxu0 %v667
      %1076 = vmatprep.subr.bf16.mxu0 0
      %1077 = vmatpush1.bf16.msra.mxu0 %v668
      %1078 = vmatprep.subr.bf16.mxu0 0
      %1079 = vmatpush1.bf16.msra.mxu0 %v669
      %1080 = vmatprep.subr.bf16.mxu0 0
      %1081 = vmatpush1.bf16.msra.mxu0 %v670
      %1082 = vmatprep.subr.bf16.mxu0 0
      %1083 = vmatpush1.bf16.msra.mxu0 %v671
      %1084 = vmatprep.subr.bf16.mxu0 0
      %1085 = vmatpush1.bf16.msra.mxu0 %v672
      %1086 = vmatprep.subr.bf16.mxu0 0
      %1087 = vmatpush1.bf16.msra.mxu0 %v673
      %1088 = vmatprep.subr.bf16.mxu0 0
      %1089 = vmatpush1.bf16.msra.mxu0 %v674
      %1090 = vmatprep.subr.bf16.mxu0 0
      %1091 = vmatpush1.bf16.msra.mxu0 %v675
      %1092 = vmatprep.subr.bf16.mxu0 0
      %1093 = vmatpush1.bf16.msra.mxu0 %v676
      %1094 = vmatprep.subr.bf16.mxu0 0
      %1095 = vmatpush1.bf16.msra.mxu0 %v677
      %1096 = vmatprep.subr.bf16.mxu0 0
      %1097 = vmatpush1.bf16.msra.mxu0 %v678
      %1098 = vmatprep.subr.bf16.mxu0 0
      %1099 = vmatpush1.bf16.msra.mxu0 %v679
      %1100 = vmatprep.subr.bf16.mxu0 0
      %1101 = vmatpush1.bf16.msra.mxu0 %v680
      %1102 = vmatprep.subr.bf16.mxu0 0
      %1103 = vmatpush1.bf16.msra.mxu0 %v681
      %1104 = vmatprep.subr.bf16.mxu0 0
      %1105 = vmatpush1.bf16.msra.mxu0 %v682
      %1106 = vmatprep.mubr.bf16.mxu0 %v1057
      %1107 = vmatmul.mubr.bf16.gmra.mrb[0].mxu0 %v1056
      %v1108 = vpop.f32.mrb[0].mxu0
      %v1109 = vadd.f32 %v331, %v1108
      %v1110 = vpop.f32.mrb[0].mxu0
      %v1111 = vpop.f32.mrb[0].mxu0
      %v1112 = vadd.f32 %v331, %v1111
      %v1113 = vpop.f32.mrb[0].mxu0
      %1114 = vdwg.mxu0
      %1115 = vmatprep.subr.bf16.mxu0 0
      %1116 = vmatpush1.bf16.msra.mxu0 %v683
      %1117 = vmatprep.subr.bf16.mxu0 0
      %1118 = vmatpush1.bf16.msra.mxu0 %v684
      %1119 = vmatprep.subr.bf16.mxu0 0
      %1120 = vmatpush1.bf16.msra.mxu0 %v685
      %1121 = vmatprep.subr.bf16.mxu0 0
      %1122 = vmatpush1.bf16.msra.mxu0 %v686
      %1123 = vmatprep.subr.bf16.mxu0 0
      %1124 = vmatpush1.bf16.msra.mxu0 %v687
      %1125 = vmatprep.subr.bf16.mxu0 0
      %1126 = vmatpush1.bf16.msra.mxu0 %v688
      %1127 = vmatprep.subr.bf16.mxu0 0
      %1128 = vmatpush1.bf16.msra.mxu0 %v689
      %1129 = vmatprep.subr.bf16.mxu0 0
      %1130 = vmatpush1.bf16.msra.mxu0 %v690
      %1131 = vmatprep.subr.bf16.mxu0 0
      %1132 = vmatpush1.bf16.msra.mxu0 %v691
      %1133 = vmatprep.subr.bf16.mxu0 0
      %1134 = vmatpush1.bf16.msra.mxu0 %v692
      %1135 = vmatprep.subr.bf16.mxu0 0
      %1136 = vmatpush1.bf16.msra.mxu0 %v693
      %1137 = vmatprep.subr.bf16.mxu0 0
      %1138 = vmatpush1.bf16.msra.mxu0 %v694
      %1139 = vmatprep.subr.bf16.mxu0 0
      %1140 = vmatpush1.bf16.msra.mxu0 %v695
      %1141 = vmatprep.subr.bf16.mxu0 0
      %1142 = vmatpush1.bf16.msra.mxu0 %v696
      %1143 = vmatprep.subr.bf16.mxu0 0
      %1144 = vmatpush1.bf16.msra.mxu0 %v697
      %1145 = vmatprep.subr.bf16.mxu0 0
      %1146 = vmatpush1.bf16.msra.mxu0 %v698
      %1147 = vmatprep.mubr.bf16.mxu0 %v1059
      %1148 = vmatmul.mubr.bf16.gmra.mrb[0].mxu0 %v1058
      %v1149 = vpop.f32.mrb[0].mxu0
      %v1150 = vadd.f32 %v1109, %v1149
      %v1151 = vpop.f32.mrb[0].mxu0
      %v1152 = vpop.f32.mrb[0].mxu0
      %v1153 = vadd.f32 %v1112, %v1152
      %v1154 = vpop.f32.mrb[0].mxu0
      %1155 = vdwg.mxu0
      %1156 = vmatprep.subr.bf16.mxu0 0
      %1157 = vmatpush1.bf16.msra.mxu0 %v699
      %1158 = vmatprep.subr.bf16.mxu0 0
      %1159 = vmatpush1.bf16.msra.mxu0 %v700
      %1160 = vmatprep.subr.bf16.mxu0 0
      %1161 = vmatpush1.bf16.msra.mxu0 %v701
      %1162 = vmatprep.subr.bf16.mxu0 0
      %1163 = vmatpush1.bf16.msra.mxu0 %v702
      %1164 = vmatprep.subr.bf16.mxu0 0
      %1165 = vmatpush1.bf16.msra.mxu0 %v703
      %1166 = vmatprep.subr.bf16.mxu0 0
      %1167 = vmatpush1.bf16.msra.mxu0 %v704
      %1168 = vmatprep.subr.bf16.mxu0 0
      %1169 = vmatpush1.bf16.msra.mxu0 %v705
      %1170 = vmatprep.subr.bf16.mxu0 0
      %1171 = vmatpush1.bf16.msra.mxu0 %v706
      %1172 = vmatprep.subr.bf16.mxu0 0
      %1173 = vmatpush1.bf16.msra.mxu0 %v707
      %1174 = vmatprep.subr.bf16.mxu0 0
      %1175 = vmatpush1.bf16.msra.mxu0 %v708
      %1176 = vmatprep.subr.bf16.mxu0 0
      %1177 = vmatpush1.bf16.msra.mxu0 %v709
      %1178 = vmatprep.subr.bf16.mxu0 0
      %1179 = vmatpush1.bf16.msra.mxu0 %v710
      %1180 = vmatprep.subr.bf16.mxu0 0
      %1181 = vmatpush1.bf16.msra.mxu0 %v711
      %1182 = vmatprep.subr.bf16.mxu0 0
      %1183 = vmatpush1.bf16.msra.mxu0 %v712
      %1184 = vmatprep.subr.bf16.mxu0 0
      %1185 = vmatpush1.bf16.msra.mxu0 %v713
      %1186 = vmatprep.subr.bf16.mxu0 0
      %1187 = vmatpush1.bf16.msra.mxu0 %v714
      %1188 = vmatprep.mubr.bf16.mxu0 %v1061
      %1189 = vmatmul.mubr.bf16.gmra.mrb[0].mxu0 %v1060
      %v1190 = vpop.f32.mrb[0].mxu0
      %v1191 = vadd.f32 %v1150, %v1190
      %v1192 = vpop.f32.mrb[0].mxu0
      %v1193 = vpop.f32.mrb[0].mxu0
      %v1194 = vadd.f32 %v1153, %v1193
      %v1195 = vpop.f32.mrb[0].mxu0
      %1196 = vdwg.mxu0
      %1197 = vmatprep.subr.bf16.mxu0 0
      %1198 = vmatpush1.bf16.msra.mxu0 %v715
      %1199 = vmatprep.subr.bf16.mxu0 0
      %1200 = vmatpush1.bf16.msra.mxu0 %v716
      %1201 = vmatprep.subr.bf16.mxu0 0
      %1202 = vmatpush1.bf16.msra.mxu0 %v717
      %1203 = vmatprep.subr.bf16.mxu0 0
      %1204 = vmatpush1.bf16.msra.mxu0 %v718
      %1205 = vmatprep.subr.bf16.mxu0 0
      %1206 = vmatpush1.bf16.msra.mxu0 %v719
      %1207 = vmatprep.subr.bf16.mxu0 0
      %1208 = vmatpush1.bf16.msra.mxu0 %v720
      %1209 = vmatprep.subr.bf16.mxu0 0
      %1210 = vmatpush1.bf16.msra.mxu0 %v721
      %1211 = vmatprep.subr.bf16.mxu0 0
      %1212 = vmatpush1.bf16.msra.mxu0 %v722
      %1213 = vmatprep.subr.bf16.mxu0 0
      %1214 = vmatpush1.bf16.msra.mxu0 %v723
      %1215 = vmatprep.subr.bf16.mxu0 0
      %1216 = vmatpush1.bf16.msra.mxu0 %v724
      %1217 = vmatprep.subr.bf16.mxu0 0
      %1218 = vmatpush1.bf16.msra.mxu0 %v725
      %1219 = vmatprep.subr.bf16.mxu0 0
      %1220 = vmatpush1.bf16.msra.mxu0 %v726
      %1221 = vmatprep.subr.bf16.mxu0 0
      %1222 = vmatpush1.bf16.msra.mxu0 %v727
      %1223 = vmatprep.subr.bf16.mxu0 0
      %1224 = vmatpush1.bf16.msra.mxu0 %v728
      %1225 = vmatprep.subr.bf16.mxu0 0
      %1226 = vmatpush1.bf16.msra.mxu0 %v729
      %1227 = vmatprep.subr.bf16.mxu0 0
      %1228 = vmatpush1.bf16.msra.mxu0 %v730
      %1229 = vmatprep.mubr.bf16.mxu0 %v1063
      %1230 = vmatmul.mubr.bf16.gmra.mrb[0].mxu0 %v1062
      %v1231 = vpop.f32.mrb[0].mxu0
      %v1232 = vadd.f32 %v1191, %v1231
      %v1233 = vpop.f32.mrb[0].mxu0
      %v1234 = vpop.f32.mrb[0].mxu0
      %v1235 = vadd.f32 %v1194, %v1234
      %v1236 = vpop.f32.mrb[0].mxu0
      %1237 = vdwg.mxu0
      %1238 = vmatprep.subr.bf16.mxu0 0
      %1239 = vmatpush1.bf16.msra.mxu0 %v731
      %1240 = vmatprep.subr.bf16.mxu0 0
      %1241 = vmatpush1.bf16.msra.mxu0 %v732
      %1242 = vmatprep.subr.bf16.mxu0 0
      %1243 = vmatpush1.bf16.msra.mxu0 %v733
      %1244 = vmatprep.subr.bf16.mxu0 0
      %1245 = vmatpush1.bf16.msra.mxu0 %v734
      %1246 = vmatprep.subr.bf16.mxu0 0
      %1247 = vmatpush1.bf16.msra.mxu0 %v735
      %1248 = vmatprep.subr.bf16.mxu0 0
      %1249 = vmatpush1.bf16.msra.mxu0 %v736
      %1250 = vmatprep.subr.bf16.mxu0 0
      %1251 = vmatpush1.bf16.msra.mxu0 %v737
      %1252 = vmatprep.subr.bf16.mxu0 0
      %1253 = vmatpush1.bf16.msra.mxu0 %v738
      %1254 = vmatprep.subr.bf16.mxu0 0
      %1255 = vmatpush1.bf16.msra.mxu0 0
      %1256 = vmatprep.subr.bf16.mxu0 0
      %1257 = vmatpush1.bf16.msra.mxu0 0
      %1258 = vmatprep.subr.bf16.mxu0 0
      %1259 = vmatpush1.bf16.msra.mxu0 0
      %1260 = vmatprep.subr.bf16.mxu0 0
      %1261 = vmatpush1.bf16.msra.mxu0 0
      %1262 = vmatprep.subr.bf16.mxu0 0
      %1263 = vmatpush1.bf16.msra.mxu0 0
      %1264 = vmatprep.subr.bf16.mxu0 0
      %1265 = vmatpush1.bf16.msra.mxu0 0
      %1266 = vmatprep.subr.bf16.mxu0 0
      %1267 = vmatpush1.bf16.msra.mxu0 0
      %1268 = vmatprep.subr.bf16.mxu0 0
      %1269 = vmatpush1.bf16.msra.mxu0 0
      %1270 = vmatprep.mubr.bf16.mxu0 0
      %1271 = vmatmul.mubr.bf16.gmra.mrb[0].mxu0 %v1064
      %v1272 = vpop.f32.mrb[0].mxu0
      %v1273 = vadd.f32 %v1232, %v1272
      %v1274 = vpop.f32.mrb[0].mxu0
      %v1275 = vpop.f32.mrb[0].mxu0
      %v1276 = vadd.f32 %v1235, %v1275
      %v1277 = vpop.f32.mrb[0].mxu0
      %1278 = vdwg.mxu0
      %v1279 = vmax.f32 %v1273, 0.0
      %v1280 = vmax.f32 %v1276, 0.0
      %v1281 = vmax.f32 %v1016, %v1279
      %v1282 = vmax.f32 %v1017, %v1280
      %v1283 = vld [vmem:[%s165 + $0x90] sm:$0xff]
      %v1284 = vld [vmem:[%s165 + $0x98] sm:$0xff]
      %v1285 = vld [vmem:[%s165 + $0xa0] sm:$0xff]
      %v1286 = vld [vmem:[%s165 + $0xa8] sm:$0xff]
      %v1287 = vld [vmem:[%s165 + $0xb0] sm:$0xf]
      %v1288 = vld [vmem:[%s165 + $0xb4] sm:$0xff]
      %v1289 = vld [vmem:[%s165 + $0xbc] sm:$0xff]
      %v1290 = vld [vmem:[%s165 + $0xc4] sm:$0xff]
      %v1291 = vld [vmem:[%s165 + $0xcc] sm:$0xff]
      %v1292 = vld [vmem:[%s165 + $0xd4] sm:$0xf]
      %v1303 = vunpack.c.l.b16 %v1283
      %v1304 = vunpack.c.h.b16 %v1283
      %v1305 = vunpack.c.l.b16 %v1284
      %v1306 = vunpack.c.h.b16 %v1284
      %v1307 = vunpack.c.l.b16 %v1285
      %v1308 = vunpack.c.h.b16 %v1285
      %v1309 = vunpack.c.l.b16 %v1286
      %v1310 = vunpack.c.h.b16 %v1286
      %v1311 = vunpack.c.l.b16 %v1287
      %v1312 = vunpack.c.l.b16 %v1288
      %v1313 = vunpack.c.h.b16 %v1288
      %v1314 = vunpack.c.l.b16 %v1289
      %v1315 = vunpack.c.h.b16 %v1289
      %v1316 = vunpack.c.l.b16 %v1290
      %v1317 = vunpack.c.h.b16 %v1290
      %v1318 = vunpack.c.l.b16 %v1291
      %v1319 = vunpack.c.h.b16 %v1291
      %v1320 = vunpack.c.l.b16 %v1292
      %v1321 = vpack.c.b16 %v1312, %v1303
      %v1322 = vpack.c.b16 %v1313, %v1304
      %v1323 = vpack.c.b16 %v1314, %v1305
      %v1324 = vpack.c.b16 %v1315, %v1306
      %v1325 = vpack.c.b16 %v1316, %v1307
      %v1326 = vpack.c.b16 %v1317, %v1308
      %v1327 = vpack.c.b16 %v1318, %v1309
      %v1328 = vpack.c.b16 %v1319, %v1310
      %v1329 = vpack.c.b16 %v1320, %v1311
      %1339 = vmatprep.subr.bf16.mxu0 0
      %1340 = vmatpush1.bf16.msra.mxu0 %v667
      %1341 = vmatprep.subr.bf16.mxu0 0
      %1342 = vmatpush1.bf16.msra.mxu0 %v668
      %1343 = vmatprep.subr.bf16.mxu0 0
      %1344 = vmatpush1.bf16.msra.mxu0 %v669
      %1345 = vmatprep.subr.bf16.mxu0 0
      %1346 = vmatpush1.bf16.msra.mxu0 %v670
      %1347 = vmatprep.subr.bf16.mxu0 0
      %1348 = vmatpush1.bf16.msra.mxu0 %v671
      %1349 = vmatprep.subr.bf16.mxu0 0
      %1350 = vmatpush1.bf16.msra.mxu0 %v672
      %1351 = vmatprep.subr.bf16.mxu0 0
      %1352 = vmatpush1.bf16.msra.mxu0 %v673
      %1353 = vmatprep.subr.bf16.mxu0 0
      %1354 = vmatpush1.bf16.msra.mxu0 %v674
      %1355 = vmatprep.subr.bf16.mxu0 0
      %1356 = vmatpush1.bf16.msra.mxu0 %v675
      %1357 = vmatprep.subr.bf16.mxu0 0
      %1358 = vmatpush1.bf16.msra.mxu0 %v676
      %1359 = vmatprep.subr.bf16.mxu0 0
      %1360 = vmatpush1.bf16.msra.mxu0 %v677
      %1361 = vmatprep.subr.bf16.mxu0 0
      %1362 = vmatpush1.bf16.msra.mxu0 %v678
      %1363 = vmatprep.subr.bf16.mxu0 0
      %1364 = vmatpush1.bf16.msra.mxu0 %v679
      %1365 = vmatprep.subr.bf16.mxu0 0
      %1366 = vmatpush1.bf16.msra.mxu0 %v680
      %1367 = vmatprep.subr.bf16.mxu0 0
      %1368 = vmatpush1.bf16.msra.mxu0 %v681
      %1369 = vmatprep.subr.bf16.mxu0 0
      %1370 = vmatpush1.bf16.msra.mxu0 %v682
      %1371 = vmatprep.mubr.bf16.mxu0 %v1322
      %1372 = vmatmul.mubr.bf16.gmra.mrb[0].mxu0 %v1321
      %v1373 = vpop.f32.mrb[0].mxu0
      %v1374 = vadd.f32 %v331, %v1373
      %v1375 = vpop.f32.mrb[0].mxu0
      %v1376 = vpop.f32.mrb[0].mxu0
      %v1377 = vadd.f32 %v331, %v1376
      %v1378 = vpop.f32.mrb[0].mxu0
      %1379 = vdwg.mxu0
      %1380 = vmatprep.subr.bf16.mxu0 0
      %1381 = vmatpush1.bf16.msra.mxu0 %v683
      %1382 = vmatprep.subr.bf16.mxu0 0
      %1383 = vmatpush1.bf16.msra.mxu0 %v684
      %1384 = vmatprep.subr.bf16.mxu0 0
      %1385 = vmatpush1.bf16.msra.mxu0 %v685
      %1386 = vmatprep.subr.bf16.mxu0 0
      %1387 = vmatpush1.bf16.msra.mxu0 %v686
      %1388 = vmatprep.subr.bf16.mxu0 0
      %1389 = vmatpush1.bf16.msra.mxu0 %v687
      %1390 = vmatprep.subr.bf16.mxu0 0
      %1391 = vmatpush1.bf16.msra.mxu0 %v688
      %1392 = vmatprep.subr.bf16.mxu0 0
      %1393 = vmatpush1.bf16.msra.mxu0 %v689
      %1394 = vmatprep.subr.bf16.mxu0 0
      %1395 = vmatpush1.bf16.msra.mxu0 %v690
      %1396 = vmatprep.subr.bf16.mxu0 0
      %1397 = vmatpush1.bf16.msra.mxu0 %v691
      %1398 = vmatprep.subr.bf16.mxu0 0
      %1399 = vmatpush1.bf16.msra.mxu0 %v692
      %1400 = vmatprep.subr.bf16.mxu0 0
      %1401 = vmatpush1.bf16.msra.mxu0 %v693
      %1402 = vmatprep.subr.bf16.mxu0 0
      %1403 = vmatpush1.bf16.msra.mxu0 %v694
      %1404 = vmatprep.subr.bf16.mxu0 0
      %1405 = vmatpush1.bf16.msra.mxu0 %v695
      %1406 = vmatprep.subr.bf16.mxu0 0
      %1407 = vmatpush1.bf16.msra.mxu0 %v696
      %1408 = vmatprep.subr.bf16.mxu0 0
      %1409 = vmatpush1.bf16.msra.mxu0 %v697
      %1410 = vmatprep.subr.bf16.mxu0 0
      %1411 = vmatpush1.bf16.msra.mxu0 %v698
      %1412 = vmatprep.mubr.bf16.mxu0 %v1324
      %1413 = vmatmul.mubr.bf16.gmra.mrb[0].mxu0 %v1323
      %v1414 = vpop.f32.mrb[0].mxu0
      %v1415 = vadd.f32 %v1374, %v1414
      %v1416 = vpop.f32.mrb[0].mxu0
      %v1417 = vpop.f32.mrb[0].mxu0
      %v1418 = vadd.f32 %v1377, %v1417
      %v1419 = vpop.f32.mrb[0].mxu0
      %1420 = vdwg.mxu0
      %1421 = vmatprep.subr.bf16.mxu0 0
      %1422 = vmatpush1.bf16.msra.mxu0 %v699
      %1423 = vmatprep.subr.bf16.mxu0 0
      %1424 = vmatpush1.bf16.msra.mxu0 %v700
      %1425 = vmatprep.subr.bf16.mxu0 0
      %1426 = vmatpush1.bf16.msra.mxu0 %v701
      %1427 = vmatprep.subr.bf16.mxu0 0
      %1428 = vmatpush1.bf16.msra.mxu0 %v702
      %1429 = vmatprep.subr.bf16.mxu0 0
      %1430 = vmatpush1.bf16.msra.mxu0 %v703
      %1431 = vmatprep.subr.bf16.mxu0 0
      %1432 = vmatpush1.bf16.msra.mxu0 %v704
      %1433 = vmatprep.subr.bf16.mxu0 0
      %1434 = vmatpush1.bf16.msra.mxu0 %v705
      %1435 = vmatprep.subr.bf16.mxu0 0
      %1436 = vmatpush1.bf16.msra.mxu0 %v706
      %1437 = vmatprep.subr.bf16.mxu0 0
      %1438 = vmatpush1.bf16.msra.mxu0 %v707
      %1439 = vmatprep.subr.bf16.mxu0 0
      %1440 = vmatpush1.bf16.msra.mxu0 %v708
      %1441 = vmatprep.subr.bf16.mxu0 0
      %1442 = vmatpush1.bf16.msra.mxu0 %v709
      %1443 = vmatprep.subr.bf16.mxu0 0
      %1444 = vmatpush1.bf16.msra.mxu0 %v710
      %1445 = vmatprep.subr.bf16.mxu0 0
      %1446 = vmatpush1.bf16.msra.mxu0 %v711
      %1447 = vmatprep.subr.bf16.mxu0 0
      %1448 = vmatpush1.bf16.msra.mxu0 %v712
      %1449 = vmatprep.subr.bf16.mxu0 0
      %1450 = vmatpush1.bf16.msra.mxu0 %v713
      %1451 = vmatprep.subr.bf16.mxu0 0
      %1452 = vmatpush1.bf16.msra.mxu0 %v714
      %1453 = vmatprep.mubr.bf16.mxu0 %v1326
      %1454 = vmatmul.mubr.bf16.gmra.mrb[0].mxu0 %v1325
      %v1455 = vpop.f32.mrb[0].mxu0
      %v1456 = vadd.f32 %v1415, %v1455
      %v1457 = vpop.f32.mrb[0].mxu0
      %v1458 = vpop.f32.mrb[0].mxu0
      %v1459 = vadd.f32 %v1418, %v1458
      %v1460 = vpop.f32.mrb[0].mxu0
      %1461 = vdwg.mxu0
      %1462 = vmatprep.subr.bf16.mxu0 0
      %1463 = vmatpush1.bf16.msra.mxu0 %v715
      %1464 = vmatprep.subr.bf16.mxu0 0
      %1465 = vmatpush1.bf16.msra.mxu0 %v716
      %1466 = vmatprep.subr.bf16.mxu0 0
      %1467 = vmatpush1.bf16.msra.mxu0 %v717
      %1468 = vmatprep.subr.bf16.mxu0 0
      %1469 = vmatpush1.bf16.msra.mxu0 %v718
      %1470 = vmatprep.subr.bf16.mxu0 0
      %1471 = vmatpush1.bf16.msra.mxu0 %v719
      %1472 = vmatprep.subr.bf16.mxu0 0
      %1473 = vmatpush1.bf16.msra.mxu0 %v720
      %1474 = vmatprep.subr.bf16.mxu0 0
      %1475 = vmatpush1.bf16.msra.mxu0 %v721
      %1476 = vmatprep.subr.bf16.mxu0 0
      %1477 = vmatpush1.bf16.msra.mxu0 %v722
      %1478 = vmatprep.subr.bf16.mxu0 0
      %1479 = vmatpush1.bf16.msra.mxu0 %v723
      %1480 = vmatprep.subr.bf16.mxu0 0
      %1481 = vmatpush1.bf16.msra.mxu0 %v724
      %1482 = vmatprep.subr.bf16.mxu0 0
      %1483 = vmatpush1.bf16.msra.mxu0 %v725
      %1484 = vmatprep.subr.bf16.mxu0 0
      %1485 = vmatpush1.bf16.msra.mxu0 %v726
      %1486 = vmatprep.subr.bf16.mxu0 0
      %1487 = vmatpush1.bf16.msra.mxu0 %v727
      %1488 = vmatprep.subr.bf16.mxu0 0
      %1489 = vmatpush1.bf16.msra.mxu0 %v728
      %1490 = vmatprep.subr.bf16.mxu0 0
      %1491 = vmatpush1.bf16.msra.mxu0 %v729
      %1492 = vmatprep.subr.bf16.mxu0 0
      %1493 = vmatpush1.bf16.msra.mxu0 %v730
      %1494 = vmatprep.mubr.bf16.mxu0 %v1328
      %1495 = vmatmul.mubr.bf16.gmra.mrb[0].mxu0 %v1327
      %v1496 = vpop.f32.mrb[0].mxu0
      %v1497 = vadd.f32 %v1456, %v1496
      %v1498 = vpop.f32.mrb[0].mxu0
      %v1499 = vpop.f32.mrb[0].mxu0
      %v1500 = vadd.f32 %v1459, %v1499
      %v1501 = vpop.f32.mrb[0].mxu0
      %1502 = vdwg.mxu0
      %1503 = vmatprep.subr.bf16.mxu0 0
      %1504 = vmatpush1.bf16.msra.mxu0 %v731
      %1505 = vmatprep.subr.bf16.mxu0 0
      %1506 = vmatpush1.bf16.msra.mxu0 %v732
      %1507 = vmatprep.subr.bf16.mxu0 0
      %1508 = vmatpush1.bf16.msra.mxu0 %v733
      %1509 = vmatprep.subr.bf16.mxu0 0
      %1510 = vmatpush1.bf16.msra.mxu0 %v734
      %1511 = vmatprep.subr.bf16.mxu0 0
      %1512 = vmatpush1.bf16.msra.mxu0 %v735
      %1513 = vmatprep.subr.bf16.mxu0 0
      %1514 = vmatpush1.bf16.msra.mxu0 %v736
      %1515 = vmatprep.subr.bf16.mxu0 0
      %1516 = vmatpush1.bf16.msra.mxu0 %v737
      %1517 = vmatprep.subr.bf16.mxu0 0
      %1518 = vmatpush1.bf16.msra.mxu0 %v738
      %1519 = vmatprep.subr.bf16.mxu0 0
      %1520 = vmatpush1.bf16.msra.mxu0 0
      %1521 = vmatprep.subr.bf16.mxu0 0
      %1522 = vmatpush1.bf16.msra.mxu0 0
      %1523 = vmatprep.subr.bf16.mxu0 0
      %1524 = vmatpush1.bf16.msra.mxu0 0
      %1525 = vmatprep.subr.bf16.mxu0 0
      %1526 = vmatpush1.bf16.msra.mxu0 0
      %1527 = vmatprep.subr.bf16.mxu0 0
      %1528 = vmatpush1.bf16.msra.mxu0 0
      %1529 = vmatprep.subr.bf16.mxu0 0
      %1530 = vmatpush1.bf16.msra.mxu0 0
      %1531 = vmatprep.subr.bf16.mxu0 0
      %1532 = vmatpush1.bf16.msra.mxu0 0
      %1533 = vmatprep.subr.bf16.mxu0 0
      %1534 = vmatpush1.bf16.msra.mxu0 0
      %1535 = vmatprep.mubr.bf16.mxu0 0
      %1536 = vmatmul.mubr.bf16.gmra.mrb[0].mxu0 %v1329
      %v1537 = vpop.f32.mrb[0].mxu0
      %v1538 = vadd.f32 %v1497, %v1537
      %v1539 = vpop.f32.mrb[0].mxu0
      %v1540 = vpop.f32.mrb[0].mxu0
      %v1541 = vadd.f32 %v1500, %v1540
      %v1542 = vpop.f32.mrb[0].mxu0
      %1543 = vdwg.mxu0
      %v1544 = vmax.f32 %v1538, 0.0
      %v1545 = vmax.f32 %v1541, 0.0
      %v1546 = vld [vmem:[%s165 + $0xd8] sm:$0xff]
      %v1547 = vld [vmem:[%s165 + $0xe0] sm:$0xff]
      %v1548 = vld [vmem:[%s165 + $0xe8] sm:$0xff]
      %v1549 = vld [vmem:[%s165 + $0xf0] sm:$0xff]
      %v1550 = vld [vmem:[%s165 + $0xf8] sm:$0xf]
      %v1551 = vld [vmem:[%s165 + $0xfc] sm:$0xff]
      %v1552 = vld [vmem:[%s165 + $0x104] sm:$0xff]
      %v1553 = vld [vmem:[%s165 + $0x10c] sm:$0xff]
      %v1554 = vld [vmem:[%s165 + $0x114] sm:$0xff]
      %v1555 = vld [vmem:[%s165 + $0x11c] sm:$0xf]
      %v1566 = vunpack.c.l.b16 %v1546
      %v1567 = vunpack.c.h.b16 %v1546
      %v1568 = vunpack.c.l.b16 %v1547
      %v1569 = vunpack.c.h.b16 %v1547
      %v1570 = vunpack.c.l.b16 %v1548
      %v1571 = vunpack.c.h.b16 %v1548
      %v1572 = vunpack.c.l.b16 %v1549
      %v1573 = vunpack.c.h.b16 %v1549
      %v1574 = vunpack.c.l.b16 %v1550
      %v1575 = vunpack.c.l.b16 %v1551
      %v1576 = vunpack.c.h.b16 %v1551
      %v1577 = vunpack.c.l.b16 %v1552
      %v1578 = vunpack.c.h.b16 %v1552
      %v1579 = vunpack.c.l.b16 %v1553
      %v1580 = vunpack.c.h.b16 %v1553
      %v1581 = vunpack.c.l.b16 %v1554
      %v1582 = vunpack.c.h.b16 %v1554
      %v1583 = vunpack.c.l.b16 %v1555
      %v1584 = vpack.c.b16 %v1575, %v1566
      %v1585 = vpack.c.b16 %v1576, %v1567
      %v1586 = vpack.c.b16 %v1577, %v1568
      %v1587 = vpack.c.b16 %v1578, %v1569
      %v1588 = vpack.c.b16 %v1579, %v1570
      %v1589 = vpack.c.b16 %v1580, %v1571
      %v1590 = vpack.c.b16 %v1581, %v1572
      %v1591 = vpack.c.b16 %v1582, %v1573
      %v1592 = vpack.c.b16 %v1583, %v1574
      %1602 = vmatprep.subr.bf16.mxu0 0
      %1603 = vmatpush1.bf16.msra.mxu0 %v667
      %1604 = vmatprep.subr.bf16.mxu0 0
      %1605 = vmatpush1.bf16.msra.mxu0 %v668
      %1606 = vmatprep.subr.bf16.mxu0 0
      %1607 = vmatpush1.bf16.msra.mxu0 %v669
      %1608 = vmatprep.subr.bf16.mxu0 0
      %1609 = vmatpush1.bf16.msra.mxu0 %v670
      %1610 = vmatprep.subr.bf16.mxu0 0
      %1611 = vmatpush1.bf16.msra.mxu0 %v671
      %1612 = vmatprep.subr.bf16.mxu0 0
      %1613 = vmatpush1.bf16.msra.mxu0 %v672
      %1614 = vmatprep.subr.bf16.mxu0 0
      %1615 = vmatpush1.bf16.msra.mxu0 %v673
      %1616 = vmatprep.subr.bf16.mxu0 0
      %1617 = vmatpush1.bf16.msra.mxu0 %v674
      %1618 = vmatprep.subr.bf16.mxu0 0
      %1619 = vmatpush1.bf16.msra.mxu0 %v675
      %1620 = vmatprep.subr.bf16.mxu0 0
      %1621 = vmatpush1.bf16.msra.mxu0 %v676
      %1622 = vmatprep.subr.bf16.mxu0 0
      %1623 = vmatpush1.bf16.msra.mxu0 %v677
      %1624 = vmatprep.subr.bf16.mxu0 0
      %1625 = vmatpush1.bf16.msra.mxu0 %v678
      %1626 = vmatprep.subr.bf16.mxu0 0
      %1627 = vmatpush1.bf16.msra.mxu0 %v679
      %1628 = vmatprep.subr.bf16.mxu0 0
      %1629 = vmatpush1.bf16.msra.mxu0 %v680
      %1630 = vmatprep.subr.bf16.mxu0 0
      %1631 = vmatpush1.bf16.msra.mxu0 %v681
      %1632 = vmatprep.subr.bf16.mxu0 0
      %1633 = vmatpush1.bf16.msra.mxu0 %v682
      %1634 = vmatprep.mubr.bf16.mxu0 %v1585
      %1635 = vmatmul.mubr.bf16.gmra.mrb[0].mxu0 %v1584
      %v1636 = vpop.f32.mrb[0].mxu0
      %v1637 = vadd.f32 %v331, %v1636
      %v1638 = vpop.f32.mrb[0].mxu0
      %v1639 = vpop.f32.mrb[0].mxu0
      %v1640 = vadd.f32 %v331, %v1639
      %v1641 = vpop.f32.mrb[0].mxu0
      %1642 = vdwg.mxu0
      %1643 = vmatprep.subr.bf16.mxu0 0
      %1644 = vmatpush1.bf16.msra.mxu0 %v683
      %1645 = vmatprep.subr.bf16.mxu0 0
      %1646 = vmatpush1.bf16.msra.mxu0 %v684
      %1647 = vmatprep.subr.bf16.mxu0 0
      %1648 = vmatpush1.bf16.msra.mxu0 %v685
      %1649 = vmatprep.subr.bf16.mxu0 0
      %1650 = vmatpush1.bf16.msra.mxu0 %v686
      %1651 = vmatprep.subr.bf16.mxu0 0
      %1652 = vmatpush1.bf16.msra.mxu0 %v687
      %1653 = vmatprep.subr.bf16.mxu0 0
      %1654 = vmatpush1.bf16.msra.mxu0 %v688
      %1655 = vmatprep.subr.bf16.mxu0 0
      %1656 = vmatpush1.bf16.msra.mxu0 %v689
      %1657 = vmatprep.subr.bf16.mxu0 0
      %1658 = vmatpush1.bf16.msra.mxu0 %v690
      %1659 = vmatprep.subr.bf16.mxu0 0
      %1660 = vmatpush1.bf16.msra.mxu0 %v691
      %1661 = vmatprep.subr.bf16.mxu0 0
      %1662 = vmatpush1.bf16.msra.mxu0 %v692
      %1663 = vmatprep.subr.bf16.mxu0 0
      %1664 = vmatpush1.bf16.msra.mxu0 %v693
      %1665 = vmatprep.subr.bf16.mxu0 0
      %1666 = vmatpush1.bf16.msra.mxu0 %v694
      %1667 = vmatprep.subr.bf16.mxu0 0
      %1668 = vmatpush1.bf16.msra.mxu0 %v695
      %1669 = vmatprep.subr.bf16.mxu0 0
      %1670 = vmatpush1.bf16.msra.mxu0 %v696
      %1671 = vmatprep.subr.bf16.mxu0 0
      %1672 = vmatpush1.bf16.msra.mxu0 %v697
      %1673 = vmatprep.subr.bf16.mxu0 0
      %1674 = vmatpush1.bf16.msra.mxu0 %v698
      %1675 = vmatprep.mubr.bf16.mxu0 %v1587
      %1676 = vmatmul.mubr.bf16.gmra.mrb[0].mxu0 %v1586
      %v1677 = vpop.f32.mrb[0].mxu0
      %v1678 = vadd.f32 %v1637, %v1677
      %v1679 = vpop.f32.mrb[0].mxu0
      %v1680 = vpop.f32.mrb[0].mxu0
      %v1681 = vadd.f32 %v1640, %v1680
      %v1682 = vpop.f32.mrb[0].mxu0
      %1683 = vdwg.mxu0
      %1684 = vmatprep.subr.bf16.mxu0 0
      %1685 = vmatpush1.bf16.msra.mxu0 %v699
      %1686 = vmatprep.subr.bf16.mxu0 0
      %1687 = vmatpush1.bf16.msra.mxu0 %v700
      %1688 = vmatprep.subr.bf16.mxu0 0
      %1689 = vmatpush1.bf16.msra.mxu0 %v701
      %1690 = vmatprep.subr.bf16.mxu0 0
      %1691 = vmatpush1.bf16.msra.mxu0 %v702
      %1692 = vmatprep.subr.bf16.mxu0 0
      %1693 = vmatpush1.bf16.msra.mxu0 %v703
      %1694 = vmatprep.subr.bf16.mxu0 0
      %1695 = vmatpush1.bf16.msra.mxu0 %v704
      %1696 = vmatprep.subr.bf16.mxu0 0
      %1697 = vmatpush1.bf16.msra.mxu0 %v705
      %1698 = vmatprep.subr.bf16.mxu0 0
      %1699 = vmatpush1.bf16.msra.mxu0 %v706
      %1700 = vmatprep.subr.bf16.mxu0 0
      %1701 = vmatpush1.bf16.msra.mxu0 %v707
      %1702 = vmatprep.subr.bf16.mxu0 0
      %1703 = vmatpush1.bf16.msra.mxu0 %v708
      %1704 = vmatprep.subr.bf16.mxu0 0
      %1705 = vmatpush1.bf16.msra.mxu0 %v709
      %1706 = vmatprep.subr.bf16.mxu0 0
      %1707 = vmatpush1.bf16.msra.mxu0 %v710
      %1708 = vmatprep.subr.bf16.mxu0 0
      %1709 = vmatpush1.bf16.msra.mxu0 %v711
      %1710 = vmatprep.subr.bf16.mxu0 0
      %1711 = vmatpush1.bf16.msra.mxu0 %v712
      %1712 = vmatprep.subr.bf16.mxu0 0
      %1713 = vmatpush1.bf16.msra.mxu0 %v713
      %1714 = vmatprep.subr.bf16.mxu0 0
      %1715 = vmatpush1.bf16.msra.mxu0 %v714
      %1716 = vmatprep.mubr.bf16.mxu0 %v1589
      %1717 = vmatmul.mubr.bf16.gmra.mrb[0].mxu0 %v1588
      %v1718 = vpop.f32.mrb[0].mxu0
      %v1719 = vadd.f32 %v1678, %v1718
      %v1720 = vpop.f32.mrb[0].mxu0
      %v1721 = vpop.f32.mrb[0].mxu0
      %v1722 = vadd.f32 %v1681, %v1721
      %v1723 = vpop.f32.mrb[0].mxu0
      %1724 = vdwg.mxu0
      %1725 = vmatprep.subr.bf16.mxu0 0
      %1726 = vmatpush1.bf16.msra.mxu0 %v715
      %1727 = vmatprep.subr.bf16.mxu0 0
      %1728 = vmatpush1.bf16.msra.mxu0 %v716
      %1729 = vmatprep.subr.bf16.mxu0 0
      %1730 = vmatpush1.bf16.msra.mxu0 %v717
      %1731 = vmatprep.subr.bf16.mxu0 0
      %1732 = vmatpush1.bf16.msra.mxu0 %v718
      %1733 = vmatprep.subr.bf16.mxu0 0
      %1734 = vmatpush1.bf16.msra.mxu0 %v719
      %1735 = vmatprep.subr.bf16.mxu0 0
      %1736 = vmatpush1.bf16.msra.mxu0 %v720
      %1737 = vmatprep.subr.bf16.mxu0 0
      %1738 = vmatpush1.bf16.msra.mxu0 %v721
      %1739 = vmatprep.subr.bf16.mxu0 0
      %1740 = vmatpush1.bf16.msra.mxu0 %v722
      %1741 = vmatprep.subr.bf16.mxu0 0
      %1742 = vmatpush1.bf16.msra.mxu0 %v723
      %1743 = vmatprep.subr.bf16.mxu0 0
      %1744 = vmatpush1.bf16.msra.mxu0 %v724
      %1745 = vmatprep.subr.bf16.mxu0 0
      %1746 = vmatpush1.bf16.msra.mxu0 %v725
      %1747 = vmatprep.subr.bf16.mxu0 0
      %1748 = vmatpush1.bf16.msra.mxu0 %v726
      %1749 = vmatprep.subr.bf16.mxu0 0
      %1750 = vmatpush1.bf16.msra.mxu0 %v727
      %1751 = vmatprep.subr.bf16.mxu0 0
      %1752 = vmatpush1.bf16.msra.mxu0 %v728
      %1753 = vmatprep.subr.bf16.mxu0 0
      %1754 = vmatpush1.bf16.msra.mxu0 %v729
      %1755 = vmatprep.subr.bf16.mxu0 0
      %1756 = vmatpush1.bf16.msra.mxu0 %v730
      %1757 = vmatprep.mubr.bf16.mxu0 %v1591
      %1758 = vmatmul.mubr.bf16.gmra.mrb[0].mxu0 %v1590
      %v1759 = vpop.f32.mrb[0].mxu0
      %v1760 = vadd.f32 %v1719, %v1759
      %v1761 = vpop.f32.mrb[0].mxu0
      %v1762 = vpop.f32.mrb[0].mxu0
      %v1763 = vadd.f32 %v1722, %v1762
      %v1764 = vpop.f32.mrb[0].mxu0
      %1765 = vdwg.mxu0
      %1766 = vmatprep.subr.bf16.mxu0 0
      %1767 = vmatpush1.bf16.msra.mxu0 %v731
      %1768 = vmatprep.subr.bf16.mxu0 0
      %1769 = vmatpush1.bf16.msra.mxu0 %v732
      %1770 = vmatprep.subr.bf16.mxu0 0
      %1771 = vmatpush1.bf16.msra.mxu0 %v733
      %1772 = vmatprep.subr.bf16.mxu0 0
      %1773 = vmatpush1.bf16.msra.mxu0 %v734
      %1774 = vmatprep.subr.bf16.mxu0 0
      %1775 = vmatpush1.bf16.msra.mxu0 %v735
      %1776 = vmatprep.subr.bf16.mxu0 0
      %1777 = vmatpush1.bf16.msra.mxu0 %v736
      %1778 = vmatprep.subr.bf16.mxu0 0
      %1779 = vmatpush1.bf16.msra.mxu0 %v737
      %1780 = vmatprep.subr.bf16.mxu0 0
      %1781 = vmatpush1.bf16.msra.mxu0 %v738
      %1782 = vmatprep.subr.bf16.mxu0 0
      %1783 = vmatpush1.bf16.msra.mxu0 0
      %1784 = vmatprep.subr.bf16.mxu0 0
      %1785 = vmatpush1.bf16.msra.mxu0 0
      %1786 = vmatprep.subr.bf16.mxu0 0
      %1787 = vmatpush1.bf16.msra.mxu0 0
      %1788 = vmatprep.subr.bf16.mxu0 0
      %1789 = vmatpush1.bf16.msra.mxu0 0
      %1790 = vmatprep.subr.bf16.mxu0 0
      %1791 = vmatpush1.bf16.msra.mxu0 0
      %1792 = vmatprep.subr.bf16.mxu0 0
      %1793 = vmatpush1.bf16.msra.mxu0 0
      %1794 = vmatprep.subr.bf16.mxu0 0
      %1795 = vmatpush1.bf16.msra.mxu0 0
      %1796 = vmatprep.subr.bf16.mxu0 0
      %1797 = vmatpush1.bf16.msra.mxu0 0
      %1798 = vmatprep.mubr.bf16.mxu0 0
      %1799 = vmatmul.mubr.bf16.gmra.mrb[0].mxu0 %v1592
      %v1800 = vpop.f32.mrb[0].mxu0
      %v1801 = vadd.f32 %v1760, %v1800
      %v1802 = vpop.f32.mrb[0].mxu0
      %v1803 = vpop.f32.mrb[0].mxu0
      %v1804 = vadd.f32 %v1763, %v1803
      %v1805 = vpop.f32.mrb[0].mxu0
      %1806 = vdwg.mxu0
      %v1807 = vmax.f32 %v1801, 0.0
      %v1808 = vmax.f32 %v1804, 0.0
      %v1809 = vmax.f32 %v1544, %v1807
      %v1810 = vmax.f32 %v1545, %v1808
      %v1811 = vmax.f32 %v1281, %v1809
      %v1812 = vmax.f32 %v1282, %v1810
      %1813 = vst [vmem:[%s170] sm:$0xff] %v1811
      %1814 = vst [vmem:[%s170 + $0x8] sm:$0xff] %v1812
      %p1815 = scmp.lt.s32.totalorder %s14, 1
      %s1816 = scalar_select %p1815, %s14, 1
      %s1817 = smul.addr %s1816, 2
      %s1818 = smul.addr %s1817, 8
      %s1819 = scalar_lea.vmem %s3, %s1818
      // Predicated region
      $region33: #{encoder_forward.7} parent=31 // pred_check
        %p1820 = pneg %p100
      $region34: #{encoder_forward.7} parent=31 // pred_check_branch
        %1822 = sbr.rel (%p1820) target = $region36
      $region35: #{encoder_forward.7} parent=31 // pred_region
        _
      $region36: #{encoder_forward.7} parent=31 // pred_fallthru
        _
    $region32: #{encoder_forward.7} parent=5 // pred_fallthru
      _
    %p1823 = scmp.le.s32.totalorder 2, %s9
    // Predicated region
    $region37: #{encoder_forward.7} parent=5 // pred_check
      %p1824 = pneg %p1823
    $region38: #{encoder_forward.7} parent=5 // pred_check_branch
      %1826 = sbr.rel (%p1824) target = $region40
    $region39: #{encoder_forward.7} parent=5 // pred_region
      %s1827 = ssub.s32 %s9, 2
      // Predicated region
      $region41: #{encoder_forward.7} parent=39 // pred_check
        %p1828 = pneg %p106
      $region42: #{encoder_forward.7} parent=39 // pred_check_branch
        %1830 = sbr.rel (%p1828) target = $region44
      $region43: #{encoder_forward.7} parent=39 // pred_region
        %p1831 = scmp.lt.s32.totalorder %s15, 1
        %s1832 = scalar_select %p1831, %s15, 1
        %s1833 = smul.addr %s1832, 2
        %s1834 = smul.addr %s1833, 8
        %s1835 = scalar_lea.vmem %s3, %s1834
      $region44: #{encoder_forward.7} parent=39 // pred_fallthru
        _
    $region40: #{encoder_forward.7} parent=5 // pred_fallthru
      _
  $region6: #{encoder_forward.7} parent=0 // loop_footer
    %s13 = sadd.s32 1, %s9
  $region7: #{encoder_forward.7} parent=0 // loop_footer_branch
    %8 = sbr.rel target = $region3
  $region8: #{encoder_forward.7} parent=0 // loop_exit
    _

// kernel: encoder_forward.9
$region0: #{encoder_forward.9}
  #allocation0 [shape = 'u32[]', space=smem, size = 0x4, offset = 0x4, fixed_abs, tag = 'smem constant byte address 0x4 - core index']
  #allocation1 [shape = 'u32[144,128]{1,0:T(1,128)}', space=vmem, size = 0x12000, scoped, tag = 'internal scratch']
  %s0 = inlined_call_operand.vmem [shape: bf16[2,1024], index: 0, kind: input, shape index: {}]
  %s1 = inlined_call_operand.vmem [shape: bf16[1024,128], index: 1, kind: input, shape index: {}]
  %s2 = inlined_call_operand.vmem [shape: f32[1,128], index: 2, kind: input, shape index: {}]
  %s3 = inlined_call_operand.vmem [shape: bf16[128,64], index: 3, kind: input, shape index: {}]
  %s4 = inlined_call_operand.vmem [shape: f32[1,64], index: 4, kind: input, shape index: {}]
  %s5 = inlined_call_operand.hbm [shape: f32[2,64], index: 5, kind: output, shape index: {}]
  %s6 = sld [smem:[#allocation0]]
  $region30: #{encoder_forward.9} parent=0
    _
  %s8 = ssub.s32 1, %s6
  %s9 = scalar_select 0, %s8, %s6
  $region1: #{encoder_forward.9} parent=0
    #allocation2 [shape = 'u8[1024]{0}', space=vmem, size = 0x400, scoped, tag = 'output window, operand 0, single buffered']
    #allocation3 [shape = 's32[1]{0}', space=sflag, size = 0x4, scoped, tag = 'scoped memory for encoder_forward.9']
    %10 = vsyncpa [#allocation3], 0
    // Predicated region
    $region2: #{encoder_forward.9} parent=1 // pred_check
      _
    $region3: #{encoder_forward.9} parent=1 // pred_check_branch
      %12 = sbr.rel (0) target = $region5
    $region4: #{encoder_forward.9} parent=1 // pred_region
      _
    $region5: #{encoder_forward.9} parent=1 // pred_fallthru
      _
    // Predicated region
    $region6: #{encoder_forward.9} parent=1 // pred_check
      _
    $region7: #{encoder_forward.9} parent=1 // pred_check_branch
      %14 = sbr.rel (0) target = $region9
    $region8: #{encoder_forward.9} parent=1 // pred_region
      _
    $region9: #{encoder_forward.9} parent=1 // pred_fallthru
      _
    // Predicated region
    $region10: #{encoder_forward.9} parent=1 // pred_check
      _
    $region11: #{encoder_forward.9} parent=1 // pred_check_branch
      %16 = sbr.rel (0) target = $region13
    $region12: #{encoder_forward.9} parent=1 // pred_region
      _
    $region13: #{encoder_forward.9} parent=1 // pred_fallthru
      _
    // Predicated region
    $region14: #{encoder_forward.9} parent=1 // pred_check
      _
    $region15: #{encoder_forward.9} parent=1 // pred_check_branch
      %18 = sbr.rel (0) target = $region17
    $region16: #{encoder_forward.9} parent=1 // pred_region
      _
    $region17: #{encoder_forward.9} parent=1 // pred_fallthru
      _
    // Predicated region
    $region18: #{encoder_forward.9} parent=1 // pred_check
      _
    $region19: #{encoder_forward.9} parent=1 // pred_check_branch
      %20 = sbr.rel (0) target = $region21
    $region20: #{encoder_forward.9} parent=1 // pred_region
      _
    $region21: #{encoder_forward.9} parent=1 // pred_fallthru
      _
    %v22 = vld [vmem:[%s0] sm:$0xff]
    %v23 = vld [vmem:[%s1] sm:$0xf]
    %v24 = vld [vmem:[%s1 + $0x4] sm:$0xf]
    %v25 = vld [vmem:[%s1 + $0x8] sm:$0xf]
    %v26 = vld [vmem:[%s1 + $0xc] sm:$0xf]
    %v27 = vld [vmem:[%s1 + $0x10] sm:$0xf]
    %v28 = vld [vmem:[%s1 + $0x14] sm:$0xf]
    %v29 = vld [vmem:[%s1 + $0x18] sm:$0xf]
    %v30 = vld [vmem:[%s1 + $0x1c] sm:$0xf]
    %v31 = vld [vmem:[%s1 + $0x20] sm:$0xf]
    %v32 = vld [vmem:[%s1 + $0x24] sm:$0xf]
    %v33 = vld [vmem:[%s1 + $0x28] sm:$0xf]
    %v34 = vld [vmem:[%s1 + $0x2c] sm:$0xf]
    %v35 = vld [vmem:[%s1 + $0x30] sm:$0xf]
    %v36 = vld [vmem:[%s1 + $0x34] sm:$0xf]
    %v37 = vld [vmem:[%s1 + $0x38] sm:$0xf]
    %v38 = vld [vmem:[%s1 + $0x3c] sm:$0xf]
    %v39 = vld [vmem:[%s1 + $0x40] sm:$0xf]
    %v40 = vld [vmem:[%s1 + $0x44] sm:$0xf]
    %v41 = vld [vmem:[%s1 + $0x48] sm:$0xf]
    %v42 = vld [vmem:[%s1 + $0x4c] sm:$0xf]
    %v43 = vld [vmem:[%s1 + $0x50] sm:$0xf]
    %v44 = vld [vmem:[%s1 + $0x54] sm:$0xf]
    %v45 = vld [vmem:[%s1 + $0x58] sm:$0xf]
    %v46 = vld [vmem:[%s1 + $0x5c] sm:$0xf]
    %v47 = vld [vmem:[%s1 + $0x60] sm:$0xf]
    %v48 = vld [vmem:[%s1 + $0x64] sm:$0xf]
    %v49 = vld [vmem:[%s1 + $0x68] sm:$0xf]
    %v50 = vld [vmem:[%s1 + $0x6c] sm:$0xf]
    %v51 = vld [vmem:[%s1 + $0x70] sm:$0xf]
    %v52 = vld [vmem:[%s1 + $0x74] sm:$0xf]
    %v53 = vld [vmem:[%s1 + $0x78] sm:$0xf]
    %v54 = vld [vmem:[%s1 + $0x7c] sm:$0xf]
    %v55 = vld [vmem:[%s1 + $0x80] sm:$0xf]
    %v56 = vld [vmem:[%s1 + $0x84] sm:$0xf]
    %v57 = vld [vmem:[%s1 + $0x88] sm:$0xf]
    %v58 = vld [vmem:[%s1 + $0x8c] sm:$0xf]
    %v59 = vld [vmem:[%s1 + $0x90] sm:$0xf]
    %v60 = vld [vmem:[%s1 + $0x94] sm:$0xf]
    %v61 = vld [vmem:[%s1 + $0x98] sm:$0xf]
    %v62 = vld [vmem:[%s1 + $0x9c] sm:$0xf]
    %v63 = vld [vmem:[%s1 + $0xa0] sm:$0xf]
    %v64 = vld [vmem:[%s1 + $0xa4] sm:$0xf]
    %v65 = vld [vmem:[%s1 + $0xa8] sm:$0xf]
    %v66 = vld [vmem:[%s1 + $0xac] sm:$0xf]
    %v67 = vld [vmem:[%s1 + $0xb0] sm:$0xf]
    %v68 = vld [vmem:[%s1 + $0xb4] sm:$0xf]
    %v69 = vld [vmem:[%s1 + $0xb8] sm:$0xf]
    %v70 = vld [vmem:[%s1 + $0xbc] sm:$0xf]
    %v71 = vld [vmem:[%s1 + $0xc0] sm:$0xf]
    %v72 = vld [vmem:[%s1 + $0xc4] sm:$0xf]
    %v73 = vld [vmem:[%s1 + $0xc8] sm:$0xf]
    %v74 = vld [vmem:[%s1 + $0xcc] sm:$0xf]
    %v75 = vld [vmem:[%s1 + $0xd0] sm:$0xf]
    %v76 = vld [vmem:[%s1 + $0xd4] sm:$0xf]
    %v77 = vld [vmem:[%s1 + $0xd8] sm:$0xf]
    %v78 = vld [vmem:[%s1 + $0xdc] sm:$0xf]
    %v79 = vld [vmem:[%s1 + $0xe0] sm:$0xf]
    %v80 = vld [vmem:[%s1 + $0xe4] sm:$0xf]
    %v81 = vld [vmem:[%s1 + $0xe8] sm:$0xf]
    %v82 = vld [vmem:[%s1 + $0xec] sm:$0xf]
    %v83 = vld [vmem:[%s1 + $0xf0] sm:$0xf]
    %v84 = vld [vmem:[%s1 + $0xf4] sm:$0xf]
    %v85 = vld [vmem:[%s1 + $0xf8] sm:$0xf]
    %v86 = vld [vmem:[%s1 + $0xfc] sm:$0xf]
    %v87 = vld [vmem:[%s1 + $0x100] sm:$0xf]
    %v88 = vld [vmem:[%s1 + $0x104] sm:$0xf]
    %v89 = vld [vmem:[%s1 + $0x108] sm:$0xf]
    %v90 = vld [vmem:[%s1 + $0x10c] sm:$0xf]
    %v91 = vld [vmem:[%s1 + $0x110] sm:$0xf]
    %v92 = vld [vmem:[%s1 + $0x114] sm:$0xf]
    %v93 = vld [vmem:[%s1 + $0x118] sm:$0xf]
    %v94 = vld [vmem:[%s1 + $0x11c] sm:$0xf]
    %v95 = vld [vmem:[%s1 + $0x120] sm:$0xf]
    %v96 = vld [vmem:[%s1 + $0x124] sm:$0xf]
    %v97 = vld [vmem:[%s1 + $0x128] sm:$0xf]
    %v98 = vld [vmem:[%s1 + $0x12c] sm:$0xf]
    %v99 = vld [vmem:[%s1 + $0x130] sm:$0xf]
    %v100 = vld [vmem:[%s1 + $0x134] sm:$0xf]
    %v101 = vld [vmem:[%s1 + $0x138] sm:$0xf]
    %v102 = vld [vmem:[%s1 + $0x13c] sm:$0xf]
    %v103 = vld [vmem:[%s1 + $0x140] sm:$0xf]
    %v104 = vld [vmem:[%s1 + $0x144] sm:$0xf]
    %v105 = vld [vmem:[%s1 + $0x148] sm:$0xf]
    %v106 = vld [vmem:[%s1 + $0x14c] sm:$0xf]
    %v107 = vld [vmem:[%s1 + $0x150] sm:$0xf]
    %v108 = vld [vmem:[%s1 + $0x154] sm:$0xf]
    %v109 = vld [vmem:[%s1 + $0x158] sm:$0xf]
    %v110 = vld [vmem:[%s1 + $0x15c] sm:$0xf]
    %v111 = vld [vmem:[%s1 + $0x160] sm:$0xf]
    %v112 = vld [vmem:[%s1 + $0x164] sm:$0xf]
    %v113 = vld [vmem:[%s1 + $0x168] sm:$0xf]
    %v114 = vld [vmem:[%s1 + $0x16c] sm:$0xf]
    %v115 = vld [vmem:[%s1 + $0x170] sm:$0xf]
    %v116 = vld [vmem:[%s1 + $0x174] sm:$0xf]
    %v117 = vld [vmem:[%s1 + $0x178] sm:$0xf]
    %v118 = vld [vmem:[%s1 + $0x17c] sm:$0xf]
    %v119 = vld [vmem:[%s1 + $0x180] sm:$0xf]
    %v120 = vld [vmem:[%s1 + $0x184] sm:$0xf]
    %v121 = vld [vmem:[%s1 + $0x188] sm:$0xf]
    %v122 = vld [vmem:[%s1 + $0x18c] sm:$0xf]
    %v123 = vld [vmem:[%s1 + $0x190] sm:$0xf]
    %v124 = vld [vmem:[%s1 + $0x194] sm:$0xf]
    %v125 = vld [vmem:[%s1 + $0x198] sm:$0xf]
    %v126 = vld [vmem:[%s1 + $0x19c] sm:$0xf]
    %v127 = vld [vmem:[%s1 + $0x1a0] sm:$0xf]
    %v128 = vld [vmem:[%s1 + $0x1a4] sm:$0xf]
    %v129 = vld [vmem:[%s1 + $0x1a8] sm:$0xf]
    %v130 = vld [vmem:[%s1 + $0x1ac] sm:$0xf]
    %v131 = vld [vmem:[%s1 + $0x1b0] sm:$0xf]
    %v132 = vld [vmem:[%s1 + $0x1b4] sm:$0xf]
    %v133 = vld [vmem:[%s1 + $0x1b8] sm:$0xf]
    %v134 = vld [vmem:[%s1 + $0x1bc] sm:$0xf]
    %v135 = vld [vmem:[%s1 + $0x1c0] sm:$0xf]
    %v136 = vld [vmem:[%s1 + $0x1c4] sm:$0xf]
    %v137 = vld [vmem:[%s1 + $0x1c8] sm:$0xf]
    %v138 = vld [vmem:[%s1 + $0x1cc] sm:$0xf]
    %v139 = vld [vmem:[%s1 + $0x1d0] sm:$0xf]
    %v140 = vld [vmem:[%s1 + $0x1d4] sm:$0xf]
    %v141 = vld [vmem:[%s1 + $0x1d8] sm:$0xf]
    %v142 = vld [vmem:[%s1 + $0x1dc] sm:$0xf]
    %v143 = vld [vmem:[%s1 + $0x1e0] sm:$0xf]
    %v144 = vld [vmem:[%s1 + $0x1e4] sm:$0xf]
    %v145 = vld [vmem:[%s1 + $0x1e8] sm:$0xf]
    %v146 = vld [vmem:[%s1 + $0x1ec] sm:$0xf]
    %v147 = vld [vmem:[%s1 + $0x1f0] sm:$0xf]
    %v148 = vld [vmem:[%s1 + $0x1f4] sm:$0xf]
    %v149 = vld [vmem:[%s1 + $0x1f8] sm:$0xf]
    %v150 = vld [vmem:[%s1 + $0x1fc] sm:$0xf]
    %v151 = vld [vmem:[%s2] sm:$0x1]
    %v153 = vlaneseq
    %v154 = vshrl.u32 %v153, 7
    %v155 = vsub.s32 0, %v154
    %v156 = vrot.slane %v151, %v155
    %v159 = vcombine.high %v22, %v22
    %v161 = vunpack.c.l.s4 1966171168
    %v162 = vunpack.c.0.s8 %v161
    %v163 = vlaneseq
    %v164 = vshrl.u32 %v163, 7
    %v165 = vsub.s32 %v162, %v164
    %v166 = vrot.slane %v22, %v165
    %v168 = vunpack.c.l.s4 1966171168
    %v169 = vunpack.c.0.s8 %v168
    %v170 = vlaneseq
    %v171 = vshrl.u32 %v170, 7
    %v172 = vsub.s32 %v169, %v171
    %v173 = vrot.slane %v159, %v172
    %v174 = vcombine.high %v166, %v166
    %v175 = vcombine.high %v173, %v173
    %v177 = vunpack.c.l.s4 1966171168
    %v178 = vunpack.c.0.s8 %v177
    %v179 = vlaneseq
    %v180 = vshrl.u32 %v179, 7
    %v181 = vsub.s32 %v178, %v180
    %v182 = vrot.slane %v166, %v181
    %v184 = vunpack.c.l.s4 1966171168
    %v185 = vunpack.c.0.s8 %v184
    %v186 = vlaneseq
    %v187 = vshrl.u32 %v186, 7
    %v188 = vsub.s32 %v185, %v187
    %v189 = vrot.slane %v173, %v188
    %v191 = vunpack.c.l.s4 1966171168
    %v192 = vunpack.c.0.s8 %v191
    %v193 = vlaneseq
    %v194 = vshrl.u32 %v193, 7
    %v195 = vsub.s32 %v192, %v194
    %v196 = vrot.slane %v174, %v195
    %v198 = vunpack.c.l.s4 1966171168
    %v199 = vunpack.c.0.s8 %v198
    %v200 = vlaneseq
    %v201 = vshrl.u32 %v200, 7
    %v202 = vsub.s32 %v199, %v201
    %v203 = vrot.slane %v175, %v202
    %v204 = vcombine.high %v182, %v182
    %v205 = vcombine.high %v189, %v189
    %v206 = vcombine.high %v196, %v196
    %v207 = vcombine.high %v203, %v203
    %v344 = vunpack.c.l.b16 %v23
    %v345 = vunpack.c.l.b16 %v24
    %v346 = vunpack.c.l.b16 %v25
    %v347 = vunpack.c.l.b16 %v26
    %v348 = vunpack.c.l.b16 %v27
    %v349 = vunpack.c.l.b16 %v28
    %v350 = vunpack.c.l.b16 %v29
    %v351 = vunpack.c.l.b16 %v30
    %v352 = vunpack.c.l.b16 %v31
    %v353 = vunpack.c.l.b16 %v32
    %v354 = vunpack.c.l.b16 %v33
    %v355 = vunpack.c.l.b16 %v34
    %v356 = vunpack.c.l.b16 %v35
    %v357 = vunpack.c.l.b16 %v36
    %v358 = vunpack.c.l.b16 %v37
    %v359 = vunpack.c.l.b16 %v38
    %v360 = vunpack.c.l.b16 %v39
    %v361 = vunpack.c.l.b16 %v40
    %v362 = vunpack.c.l.b16 %v41
    %v363 = vunpack.c.l.b16 %v42
    %v364 = vunpack.c.l.b16 %v43
    %v365 = vunpack.c.l.b16 %v44
    %v366 = vunpack.c.l.b16 %v45
    %v367 = vunpack.c.l.b16 %v46
    %v368 = vunpack.c.l.b16 %v47
    %v369 = vunpack.c.l.b16 %v48
    %v370 = vunpack.c.l.b16 %v49
    %v371 = vunpack.c.l.b16 %v50
    %v372 = vunpack.c.l.b16 %v51
    %v373 = vunpack.c.l.b16 %v52
    %v374 = vunpack.c.l.b16 %v53
    %v375 = vunpack.c.l.b16 %v54
    %v376 = vunpack.c.l.b16 %v55
    %v377 = vunpack.c.l.b16 %v56
    %v378 = vunpack.c.l.b16 %v57
    %v379 = vunpack.c.l.b16 %v58
    %v380 = vunpack.c.l.b16 %v59
    %v381 = vunpack.c.l.b16 %v60
    %v382 = vunpack.c.l.b16 %v61
    %v383 = vunpack.c.l.b16 %v62
    %v384 = vunpack.c.l.b16 %v63
    %v385 = vunpack.c.l.b16 %v64
    %v386 = vunpack.c.l.b16 %v65
    %v387 = vunpack.c.l.b16 %v66
    %v388 = vunpack.c.l.b16 %v67
    %v389 = vunpack.c.l.b16 %v68
    %v390 = vunpack.c.l.b16 %v69
    %v391 = vunpack.c.l.b16 %v70
    %v392 = vunpack.c.l.b16 %v71
    %v393 = vunpack.c.l.b16 %v72
    %v394 = vunpack.c.l.b16 %v73
    %v395 = vunpack.c.l.b16 %v74
    %v396 = vunpack.c.l.b16 %v75
    %v397 = vunpack.c.l.b16 %v76
    %v398 = vunpack.c.l.b16 %v77
    %v399 = vunpack.c.l.b16 %v78
    %v400 = vunpack.c.l.b16 %v79
    %v401 = vunpack.c.l.b16 %v80
    %v402 = vunpack.c.l.b16 %v81
    %v403 = vunpack.c.l.b16 %v82
    %v404 = vunpack.c.l.b16 %v83
    %v405 = vunpack.c.l.b16 %v84
    %v406 = vunpack.c.l.b16 %v85
    %v407 = vunpack.c.l.b16 %v86
    %v408 = vunpack.c.l.b16 %v87
    %v409 = vunpack.c.l.b16 %v88
    %v410 = vunpack.c.l.b16 %v89
    %v411 = vunpack.c.l.b16 %v90
    %v412 = vunpack.c.l.b16 %v91
    %v413 = vunpack.c.l.b16 %v92
    %v414 = vunpack.c.l.b16 %v93
    %v415 = vunpack.c.l.b16 %v94
    %v416 = vunpack.c.l.b16 %v95
    %v417 = vunpack.c.l.b16 %v96
    %v418 = vunpack.c.l.b16 %v97
    %v419 = vunpack.c.l.b16 %v98
    %v420 = vunpack.c.l.b16 %v99
    %v421 = vunpack.c.l.b16 %v100
    %v422 = vunpack.c.l.b16 %v101
    %v423 = vunpack.c.l.b16 %v102
    %v424 = vunpack.c.l.b16 %v103
    %v425 = vunpack.c.l.b16 %v104
    %v426 = vunpack.c.l.b16 %v105
    %v427 = vunpack.c.l.b16 %v106
    %v428 = vunpack.c.l.b16 %v107
    %v429 = vunpack.c.l.b16 %v108
    %v430 = vunpack.c.l.b16 %v109
    %v431 = vunpack.c.l.b16 %v110
    %v432 = vunpack.c.l.b16 %v111
    %v433 = vunpack.c.l.b16 %v112
    %v434 = vunpack.c.l.b16 %v113
    %v435 = vunpack.c.l.b16 %v114
    %v436 = vunpack.c.l.b16 %v115
    %v437 = vunpack.c.l.b16 %v116
    %v438 = vunpack.c.l.b16 %v117
    %v439 = vunpack.c.l.b16 %v118
    %v440 = vunpack.c.l.b16 %v119
    %v441 = vunpack.c.l.b16 %v120
    %v442 = vunpack.c.l.b16 %v121
    %v443 = vunpack.c.l.b16 %v122
    %v444 = vunpack.c.l.b16 %v123
    %v445 = vunpack.c.l.b16 %v124
    %v446 = vunpack.c.l.b16 %v125
    %v447 = vunpack.c.l.b16 %v126
    %v448 = vunpack.c.l.b16 %v127
    %v449 = vunpack.c.l.b16 %v128
    %v450 = vunpack.c.l.b16 %v129
    %v451 = vunpack.c.l.b16 %v130
    %v452 = vunpack.c.l.b16 %v131
    %v453 = vunpack.c.l.b16 %v132
    %v454 = vunpack.c.l.b16 %v133
    %v455 = vunpack.c.l.b16 %v134
    %v456 = vunpack.c.l.b16 %v135
    %v457 = vunpack.c.l.b16 %v136
    %v458 = vunpack.c.l.b16 %v137
    %v459 = vunpack.c.l.b16 %v138
    %v460 = vunpack.c.l.b16 %v139
    %v461 = vunpack.c.l.b16 %v140
    %v462 = vunpack.c.l.b16 %v141
    %v463 = vunpack.c.l.b16 %v142
    %v464 = vunpack.c.l.b16 %v143
    %v465 = vunpack.c.l.b16 %v144
    %v466 = vunpack.c.l.b16 %v145
    %v467 = vunpack.c.l.b16 %v146
    %v468 = vunpack.c.l.b16 %v147
    %v469 = vunpack.c.l.b16 %v148
    %v470 = vunpack.c.l.b16 %v149
    %v471 = vunpack.c.l.b16 %v150
    %v472 = vpack.c.b16 %v345, %v344
    %v473 = vpack.c.b16 %v347, %v346
    %v474 = vpack.c.b16 %v349, %v348
    %v475 = vpack.c.b16 %v351, %v350
    %v476 = vpack.c.b16 %v353, %v352
    %v477 = vpack.c.b16 %v355, %v354
    %v478 = vpack.c.b16 %v357, %v356
    %v479 = vpack.c.b16 %v359, %v358
    %v480 = vpack.c.b16 %v361, %v360
    %v481 = vpack.c.b16 %v363, %v362
    %v482 = vpack.c.b16 %v365, %v364
    %v483 = vpack.c.b16 %v367, %v366
    %v484 = vpack.c.b16 %v369, %v368
    %v485 = vpack.c.b16 %v371, %v370
    %v486 = vpack.c.b16 %v373, %v372
    %v487 = vpack.c.b16 %v375, %v374
    %v488 = vpack.c.b16 %v377, %v376
    %v489 = vpack.c.b16 %v379, %v378
    %v490 = vpack.c.b16 %v381, %v380
    %v491 = vpack.c.b16 %v383, %v382
    %v492 = vpack.c.b16 %v385, %v384
    %v493 = vpack.c.b16 %v387, %v386
    %v494 = vpack.c.b16 %v389, %v388
    %v495 = vpack.c.b16 %v391, %v390
    %v496 = vpack.c.b16 %v393, %v392
    %v497 = vpack.c.b16 %v395, %v394
    %v498 = vpack.c.b16 %v397, %v396
    %v499 = vpack.c.b16 %v399, %v398
    %v500 = vpack.c.b16 %v401, %v400
    %v501 = vpack.c.b16 %v403, %v402
    %v502 = vpack.c.b16 %v405, %v404
    %v503 = vpack.c.b16 %v407, %v406
    %v504 = vpack.c.b16 %v409, %v408
    %v505 = vpack.c.b16 %v411, %v410
    %v506 = vpack.c.b16 %v413, %v412
    %v507 = vpack.c.b16 %v415, %v414
    %v508 = vpack.c.b16 %v417, %v416
    %v509 = vpack.c.b16 %v419, %v418
    %v510 = vpack.c.b16 %v421, %v420
    %v511 = vpack.c.b16 %v423, %v422
    %v512 = vpack.c.b16 %v425, %v424
    %v513 = vpack.c.b16 %v427, %v426
    %v514 = vpack.c.b16 %v429, %v428
    %v515 = vpack.c.b16 %v431, %v430
    %v516 = vpack.c.b16 %v433, %v432
    %v517 = vpack.c.b16 %v435, %v434
    %v518 = vpack.c.b16 %v437, %v436
    %v519 = vpack.c.b16 %v439, %v438
    %v520 = vpack.c.b16 %v441, %v440
    %v521 = vpack.c.b16 %v443, %v442
    %v522 = vpack.c.b16 %v445, %v444
    %v523 = vpack.c.b16 %v447, %v446
    %v524 = vpack.c.b16 %v449, %v448
    %v525 = vpack.c.b16 %v451, %v450
    %v526 = vpack.c.b16 %v453, %v452
    %v527 = vpack.c.b16 %v455, %v454
    %v528 = vpack.c.b16 %v457, %v456
    %v529 = vpack.c.b16 %v459, %v458
    %v530 = vpack.c.b16 %v461, %v460
    %v531 = vpack.c.b16 %v463, %v462
    %v532 = vpack.c.b16 %v465, %v464
    %v533 = vpack.c.b16 %v467, %v466
    %v534 = vpack.c.b16 %v469, %v468
    %v535 = vpack.c.b16 %v471, %v470
    %600 = vmatprep.subr.bf16.mxu0 0
    %601 = vmatpush1.bf16.msra.mxu0 %v472
    %602 = vmatprep.subr.bf16.mxu0 0
    %603 = vmatpush1.bf16.msra.mxu0 %v473
    %604 = vmatprep.subr.bf16.mxu0 0
    %605 = vmatpush1.bf16.msra.mxu0 %v474
    %606 = vmatprep.subr.bf16.mxu0 0
    %607 = vmatpush1.bf16.msra.mxu0 %v475
    %608 = vmatprep.subr.bf16.mxu0 0
    %609 = vmatpush1.bf16.msra.mxu0 %v476
    %610 = vmatprep.subr.bf16.mxu0 0
    %611 = vmatpush1.bf16.msra.mxu0 %v477
    %612 = vmatprep.subr.bf16.mxu0 0
    %613 = vmatpush1.bf16.msra.mxu0 %v478
    %614 = vmatprep.subr.bf16.mxu0 0
    %615 = vmatpush1.bf16.msra.mxu0 %v479
    %616 = vmatprep.subr.bf16.mxu0 0
    %617 = vmatpush1.bf16.msra.mxu0 %v480
    %618 = vmatprep.subr.bf16.mxu0 0
    %619 = vmatpush1.bf16.msra.mxu0 %v481
    %620 = vmatprep.subr.bf16.mxu0 0
    %621 = vmatpush1.bf16.msra.mxu0 %v482
    %622 = vmatprep.subr.bf16.mxu0 0
    %623 = vmatpush1.bf16.msra.mxu0 %v483
    %624 = vmatprep.subr.bf16.mxu0 0
    %625 = vmatpush1.bf16.msra.mxu0 %v484
    %626 = vmatprep.subr.bf16.mxu0 0
    %627 = vmatpush1.bf16.msra.mxu0 %v485
    %628 = vmatprep.subr.bf16.mxu0 0
    %629 = vmatpush1.bf16.msra.mxu0 %v486
    %630 = vmatprep.subr.bf16.mxu0 0
    %631 = vmatpush1.bf16.msra.mxu0 %v487
    %632 = vmatprep.mubr.bf16.mxu0 %v196
    %633 = vmatmul.mubr.bf16.gmra.mrb[0].mxu0 %v182
    %v634 = vpop.f32.mrb[0].mxu0
    %v635 = vadd.f32 %v156, %v634
    %v636 = vpop.f32.mrb[0].mxu0
    %v637 = vpop.f32.mrb[0].mxu0
    %v638 = vpop.f32.mrb[0].mxu0
    %639 = vdwg.mxu0
    %640 = vmatprep.subr.bf16.mxu0 0
    %641 = vmatpush1.bf16.msra.mxu0 %v488
    %642 = vmatprep.subr.bf16.mxu0 0
    %643 = vmatpush1.bf16.msra.mxu0 %v489
    %644 = vmatprep.subr.bf16.mxu0 0
    %645 = vmatpush1.bf16.msra.mxu0 %v490
    %646 = vmatprep.subr.bf16.mxu0 0
    %647 = vmatpush1.bf16.msra.mxu0 %v491
    %648 = vmatprep.subr.bf16.mxu0 0
    %649 = vmatpush1.bf16.msra.mxu0 %v492
    %650 = vmatprep.subr.bf16.mxu0 0
    %651 = vmatpush1.bf16.msra.mxu0 %v493
    %652 = vmatprep.subr.bf16.mxu0 0
    %653 = vmatpush1.bf16.msra.mxu0 %v494
    %654 = vmatprep.subr.bf16.mxu0 0
    %655 = vmatpush1.bf16.msra.mxu0 %v495
    %656 = vmatprep.subr.bf16.mxu0 0
    %657 = vmatpush1.bf16.msra.mxu0 %v496
    %658 = vmatprep.subr.bf16.mxu0 0
    %659 = vmatpush1.bf16.msra.mxu0 %v497
    %660 = vmatprep.subr.bf16.mxu0 0
    %661 = vmatpush1.bf16.msra.mxu0 %v498
    %662 = vmatprep.subr.bf16.mxu0 0
    %663 = vmatpush1.bf16.msra.mxu0 %v499
    %664 = vmatprep.subr.bf16.mxu0 0
    %665 = vmatpush1.bf16.msra.mxu0 %v500
    %666 = vmatprep.subr.bf16.mxu0 0
    %667 = vmatpush1.bf16.msra.mxu0 %v501
    %668 = vmatprep.subr.bf16.mxu0 0
    %669 = vmatpush1.bf16.msra.mxu0 %v502
    %670 = vmatprep.subr.bf16.mxu0 0
    %671 = vmatpush1.bf16.msra.mxu0 %v503
    %672 = vmatprep.mubr.bf16.mxu0 %v206
    %673 = vmatmul.mubr.bf16.gmra.mrb[0].mxu0 %v204
    %v674 = vpop.f32.mrb[0].mxu0
    %v675 = vadd.f32 %v635, %v674
    %v676 = vpop.f32.mrb[0].mxu0
    %v677 = vpop.f32.mrb[0].mxu0
    %v678 = vpop.f32.mrb[0].mxu0
    %679 = vdwg.mxu0
    %680 = vmatprep.subr.bf16.mxu0 0
    %681 = vmatpush1.bf16.msra.mxu0 %v504
    %682 = vmatprep.subr.bf16.mxu0 0
    %683 = vmatpush1.bf16.msra.mxu0 %v505
    %684 = vmatprep.subr.bf16.mxu0 0
    %685 = vmatpush1.bf16.msra.mxu0 %v506
    %686 = vmatprep.subr.bf16.mxu0 0
    %687 = vmatpush1.bf16.msra.mxu0 %v507
    %688 = vmatprep.subr.bf16.mxu0 0
    %689 = vmatpush1.bf16.msra.mxu0 %v508
    %690 = vmatprep.subr.bf16.mxu0 0
    %691 = vmatpush1.bf16.msra.mxu0 %v509
    %692 = vmatprep.subr.bf16.mxu0 0
    %693 = vmatpush1.bf16.msra.mxu0 %v510
    %694 = vmatprep.subr.bf16.mxu0 0
    %695 = vmatpush1.bf16.msra.mxu0 %v511
    %696 = vmatprep.subr.bf16.mxu0 0
    %697 = vmatpush1.bf16.msra.mxu0 %v512
    %698 = vmatprep.subr.bf16.mxu0 0
    %699 = vmatpush1.bf16.msra.mxu0 %v513
    %700 = vmatprep.subr.bf16.mxu0 0
    %701 = vmatpush1.bf16.msra.mxu0 %v514
    %702 = vmatprep.subr.bf16.mxu0 0
    %703 = vmatpush1.bf16.msra.mxu0 %v515
    %704 = vmatprep.subr.bf16.mxu0 0
    %705 = vmatpush1.bf16.msra.mxu0 %v516
    %706 = vmatprep.subr.bf16.mxu0 0
    %707 = vmatpush1.bf16.msra.mxu0 %v517
    %708 = vmatprep.subr.bf16.mxu0 0
    %709 = vmatpush1.bf16.msra.mxu0 %v518
    %710 = vmatprep.subr.bf16.mxu0 0
    %711 = vmatpush1.bf16.msra.mxu0 %v519
    %712 = vmatprep.mubr.bf16.mxu0 %v203
    %713 = vmatmul.mubr.bf16.gmra.mrb[0].mxu0 %v189
    %v714 = vpop.f32.mrb[0].mxu0
    %v715 = vadd.f32 %v675, %v714
    %v716 = vpop.f32.mrb[0].mxu0
    %v717 = vpop.f32.mrb[0].mxu0
    %v718 = vpop.f32.mrb[0].mxu0
    %719 = vdwg.mxu0
    %720 = vmatprep.subr.bf16.mxu0 0
    %721 = vmatpush1.bf16.msra.mxu0 %v520
    %722 = vmatprep.subr.bf16.mxu0 0
    %723 = vmatpush1.bf16.msra.mxu0 %v521
    %724 = vmatprep.subr.bf16.mxu0 0
    %725 = vmatpush1.bf16.msra.mxu0 %v522
    %726 = vmatprep.subr.bf16.mxu0 0
    %727 = vmatpush1.bf16.msra.mxu0 %v523
    %728 = vmatprep.subr.bf16.mxu0 0
    %729 = vmatpush1.bf16.msra.mxu0 %v524
    %730 = vmatprep.subr.bf16.mxu0 0
    %731 = vmatpush1.bf16.msra.mxu0 %v525
    %732 = vmatprep.subr.bf16.mxu0 0
    %733 = vmatpush1.bf16.msra.mxu0 %v526
    %734 = vmatprep.subr.bf16.mxu0 0
    %735 = vmatpush1.bf16.msra.mxu0 %v527
    %736 = vmatprep.subr.bf16.mxu0 0
    %737 = vmatpush1.bf16.msra.mxu0 %v528
    %738 = vmatprep.subr.bf16.mxu0 0
    %739 = vmatpush1.bf16.msra.mxu0 %v529
    %740 = vmatprep.subr.bf16.mxu0 0
    %741 = vmatpush1.bf16.msra.mxu0 %v530
    %742 = vmatprep.subr.bf16.mxu0 0
    %743 = vmatpush1.bf16.msra.mxu0 %v531
    %744 = vmatprep.subr.bf16.mxu0 0
    %745 = vmatpush1.bf16.msra.mxu0 %v532
    %746 = vmatprep.subr.bf16.mxu0 0
    %747 = vmatpush1.bf16.msra.mxu0 %v533
    %748 = vmatprep.subr.bf16.mxu0 0
    %749 = vmatpush1.bf16.msra.mxu0 %v534
    %750 = vmatprep.subr.bf16.mxu0 0
    %751 = vmatpush1.bf16.msra.mxu0 %v535
    %752 = vmatprep.mubr.bf16.mxu0 %v207
    %753 = vmatmul.mubr.bf16.gmra.mrb[0].mxu0 %v205
    %v754 = vpop.f32.mrb[0].mxu0
    %v755 = vadd.f32 %v715, %v754
    %v756 = vpop.f32.mrb[0].mxu0
    %v757 = vpop.f32.mrb[0].mxu0
    %v758 = vpop.f32.mrb[0].mxu0
    %759 = vdwg.mxu0
    %v760 = vmax.f32 %v755, 0.0
    %v761 = vpack.c.bf16 %v760, %v760
    %v762 = vld [vmem:[%s3] sm:$0xf]
    %v763 = vld [vmem:[%s3 + $0x4] sm:$0xf]
    %v764 = vld [vmem:[%s3 + $0x8] sm:$0xf]
    %v765 = vld [vmem:[%s3 + $0xc] sm:$0xf]
    %v766 = vld [vmem:[%s3 + $0x10] sm:$0xf]
    %v767 = vld [vmem:[%s3 + $0x14] sm:$0xf]
    %v768 = vld [vmem:[%s3 + $0x18] sm:$0xf]
    %v769 = vld [vmem:[%s3 + $0x1c] sm:$0xf]
    %v770 = vld [vmem:[%s3 + $0x20] sm:$0xf]
    %v771 = vld [vmem:[%s3 + $0x24] sm:$0xf]
    %v772 = vld [vmem:[%s3 + $0x28] sm:$0xf]
    %v773 = vld [vmem:[%s3 + $0x2c] sm:$0xf]
    %v774 = vld [vmem:[%s3 + $0x30] sm:$0xf]
    %v775 = vld [vmem:[%s3 + $0x34] sm:$0xf]
    %v776 = vld [vmem:[%s3 + $0x38] sm:$0xf]
    %v777 = vld [vmem:[%s3 + $0x3c] sm:$0xf]
    %v778 = vld [vmem:[%s4] sm:$0x1]
    %v780 = vlaneseq
    %v781 = vshrl.u32 %v780, 7
    %v782 = vsub.s32 0, %v781
    %v783 = vrot.slane %v778, %v782
    %v801 = vunpack.c.l.b16 %v762
    %v802 = vunpack.c.l.b16 %v763
    %v803 = vunpack.c.l.b16 %v764
    %v804 = vunpack.c.l.b16 %v765
    %v805 = vunpack.c.l.b16 %v766
    %v806 = vunpack.c.l.b16 %v767
    %v807 = vunpack.c.l.b16 %v768
    %v808 = vunpack.c.l.b16 %v769
    %v809 = vunpack.c.l.b16 %v770
    %v810 = vunpack.c.l.b16 %v771
    %v811 = vunpack.c.l.b16 %v772
    %v812 = vunpack.c.l.b16 %v773
    %v813 = vunpack.c.l.b16 %v774
    %v814 = vunpack.c.l.b16 %v775
    %v815 = vunpack.c.l.b16 %v776
    %v816 = vunpack.c.l.b16 %v777
    %v817 = vpack.c.b16 %v802, %v801
    %v818 = vpack.c.b16 %v804, %v803
    %v819 = vpack.c.b16 %v806, %v805
    %v820 = vpack.c.b16 %v808, %v807
    %v821 = vpack.c.b16 %v810, %v809
    %v822 = vpack.c.b16 %v812, %v811
    %v823 = vpack.c.b16 %v814, %v813
    %v824 = vpack.c.b16 %v816, %v815
    %833 = vmatprep.subr.bf16.mxu0 0
    %834 = vmatpush1.bf16.msra.mxu0 %v817
    %835 = vmatprep.subr.bf16.mxu0 0
    %836 = vmatpush1.bf16.msra.mxu0 %v818
    %837 = vmatprep.subr.bf16.mxu0 0
    %838 = vmatpush1.bf16.msra.mxu0 %v819
    %839 = vmatprep.subr.bf16.mxu0 0
    %840 = vmatpush1.bf16.msra.mxu0 %v820
    %841 = vmatprep.subr.bf16.mxu0 0
    %842 = vmatpush1.bf16.msra.mxu0 %v821
    %843 = vmatprep.subr.bf16.mxu0 0
    %844 = vmatpush1.bf16.msra.mxu0 %v822
    %845 = vmatprep.subr.bf16.mxu0 0
    %846 = vmatpush1.bf16.msra.mxu0 %v823
    %847 = vmatprep.subr.bf16.mxu0 0
    %848 = vmatpush1.bf16.msra.mxu0 %v824
    %849 = vmatprep.subr.bf16.mxu0 0
    %850 = vmatpush1.bf16.msra.mxu0 0
    %851 = vmatprep.subr.bf16.mxu0 0
    %852 = vmatpush1.bf16.msra.mxu0 0
    %853 = vmatprep.subr.bf16.mxu0 0
    %854 = vmatpush1.bf16.msra.mxu0 0
    %855 = vmatprep.subr.bf16.mxu0 0
    %856 = vmatpush1.bf16.msra.mxu0 0
    %857 = vmatprep.subr.bf16.mxu0 0
    %858 = vmatpush1.bf16.msra.mxu0 0
    %859 = vmatprep.subr.bf16.mxu0 0
    %860 = vmatpush1.bf16.msra.mxu0 0
    %861 = vmatprep.subr.bf16.mxu0 0
    %862 = vmatpush1.bf16.msra.mxu0 0
    %863 = vmatprep.subr.bf16.mxu0 0
    %864 = vmatpush1.bf16.msra.mxu0 0
    %865 = vmatprep.mubr.bf16.mxu0 0
    %866 = vmatmul.mubr.bf16.gmra.mrb[0].mxu0 %v761
    %v867 = vpop.f32.mrb[0].mxu0
    %v868 = vadd.f32 %v783, %v867
    %v869 = vpop.f32.mrb[0].mxu0
    %v870 = vpop.f32.mrb[0].mxu0
    %v871 = vpop.f32.mrb[0].mxu0
    %872 = vdwg.mxu0
    %vm873 = vcmask 517120
    %874 = vst.msk [vmem:[#allocation2] sm:$0x3] %vm873, %v868
    // Predicated region
    $region22: #{encoder_forward.9} parent=1 // pred_check
      _
    $region23: #{encoder_forward.9} parent=1 // pred_check_branch
      %876 = sbr.rel (0) target = $region25
    $region24: #{encoder_forward.9} parent=1 // pred_region
      %s878 = ssub.s32 32, 32
      %879 = vsyncadd [#allocation3], %s878
      %s881 = sshll.u32 [#allocation2], 4
      %s882 = int_to_ptr.vmem [resolvable:$true] %s881
      %884 = dma.vmem_to_hbm [thread:$0]  %s882, 32, %s5, [#allocation3]
    $region25: #{encoder_forward.9} parent=1 // pred_fallthru
      _
    // Predicated region
    $region26: #{encoder_forward.9} parent=1 // pred_check
      _
    $region27: #{encoder_forward.9} parent=1 // pred_check_branch
      %886 = sbr.rel (0) target = $region29
    $region28: #{encoder_forward.9} parent=1 // pred_region
      %887 = dma.done [#allocation3], 32
    $region29: #{encoder_forward.9} parent=1 // pred_fallthru
      _
    %888 = vsyncpa [#allocation3], 1

// kernel: encoder_forward.8
$region0: #{encoder_forward.8}
  #allocation0 [shape = 'u32[]', space=smem, size = 0x4, offset = 0x4, fixed_abs, tag = 'smem constant byte address 0x4 - core index']
  #allocation1 [shape = 'u32[144,128]{1,0:T(1,128)}', space=vmem, size = 0x12000, scoped, tag = 'internal scratch']
  %s0 = inlined_call_operand.vmem [shape: bf16[2,16,1152], index: 0, kind: input, shape index: {}]
  %s1 = inlined_call_operand.vmem [shape: bf16[1152,256], index: 1, kind: input, shape index: {}]
  %s2 = inlined_call_operand.vmem [shape: f32[1,256], index: 2, kind: input, shape index: {}]
  %s3 = inlined_call_operand.vmem [shape: f32[2,4,256], index: 3, kind: output, shape index: {}]
  %s4 = sld [smem:[#allocation0]]
  $region45: #{encoder_forward.8} parent=0
    _
  %s6 = ssub.s32 1, %s4
  %s7 = scalar_select 0, %s6, %s4
  loop: start=0, step=1, limit=4
  $region2: #{encoder_forward.8} parent=0 // loop_pre_header
    _
  $region3: #{encoder_forward.8} parent=0 // loop_header
    %s9 = sphi 0, %s13
    %p10 = scmp.ge.s32.totalorder %s9, 4
    %s19 = sphi 0, %s21
    %s22 = sphi 0, %s19
    %s23 = sphi 0, %s22
    %s39 = sphi 0, %s23
    %s43 = sphi 0, %s43
    %s45 = sphi 0, %s43
    %s46 = sphi 0, %s45
    %s60 = sphi 0, %s46
    %s64 = sphi 0, %s64
    %s66 = sphi 0, %s64
    %s67 = sphi 0, %s66
    %s81 = sphi 0, %s67
    %s87 = sphi 0, %s89
    %s90 = sphi 0, %s87
    %s91 = sphi 0, %s90
    %s107 = sphi 0, %s91
  $region4: #{encoder_forward.8} parent=0 // loop_header_branch
    %12 = sbr.rel (%p10) target = $region8
  $region5: #{encoder_forward.8} parent=0 // loop_body
    %s14 = ssub.s32 %s9, 1
    %s15 = ssub.s32 %s9, 2
    %s16 = sadd.s32 %s9, 1
    %s17 = ssub.s32 %s9, %s16
    %p18 = scmp.eq.s32.totalorder %s17, 0
    %s20 = sadd.s32 %s19, 1
    %s21 = scalar_select %p18, %s19, %s20
    %p24 = pneg %p18
    %p25 = scmp.eq.s32.totalorder %s9, 1
    %p26 = por %p24, %p25
    %p27 = scmp.ne.s32.totalorder %s19, %s22
    %p28 = scmp.eq.s32.totalorder %s9, 0
    %p29 = por %p27, %p28
    %p30 = scmp.ne.s32.totalorder %s19, %s22
    %p31 = scmp.eq.s32.totalorder %s14, 1
    %p32 = por %p30, %p31
    %p33 = scmp.ne.s32.totalorder %s22, %s23
    %p34 = scmp.eq.s32.totalorder %s14, 0
    %p35 = por %p33, %p34
    %p36 = scmp.ne.s32.totalorder %s22, %s23
    %p37 = scmp.eq.s32.totalorder %s15, 1
    %p38 = por %p36, %p37
    %p40 = scmp.ne.s32.totalorder %s23, %s39
    %p41 = scmp.eq.s32.totalorder %s15, 0
    %p42 = por %p40, %p41
    %s44 = sadd.s32 %s43, 1
    %p47 = scmp.eq.s32.totalorder %s9, 1
    %p48 = scmp.ne.s32.totalorder %s43, %s45
    %p49 = scmp.eq.s32.totalorder %s9, 0
    %p50 = por %p48, %p49
    %p51 = scmp.ne.s32.totalorder %s43, %s45
    %p52 = scmp.eq.s32.totalorder %s14, 1
    %p53 = por %p51, %p52
    %p54 = scmp.ne.s32.totalorder %s45, %s46
    %p55 = scmp.eq.s32.totalorder %s14, 0
    %p56 = por %p54, %p55
    %p57 = scmp.ne.s32.totalorder %s45, %s46
    %p58 = scmp.eq.s32.totalorder %s15, 1
    %p59 = por %p57, %p58
    %p61 = scmp.ne.s32.totalorder %s46, %s60
    %p62 = scmp.eq.s32.totalorder %s15, 0
    %p63 = por %p61, %p62
    %s65 = sadd.s32 %s64, 1
    %p68 = scmp.eq.s32.totalorder %s9, 1
    %p69 = scmp.ne.s32.totalorder %s64, %s66
    %p70 = scmp.eq.s32.totalorder %s9, 0
    %p71 = por %p69, %p70
    %p72 = scmp.ne.s32.totalorder %s64, %s66
    %p73 = scmp.eq.s32.totalorder %s14, 1
    %p74 = por %p72, %p73
    %p75 = scmp.ne.s32.totalorder %s66, %s67
    %p76 = scmp.eq.s32.totalorder %s14, 0
    %p77 = por %p75, %p76
    %p78 = scmp.ne.s32.totalorder %s66, %s67
    %p79 = scmp.eq.s32.totalorder %s15, 1
    %p80 = por %p78, %p79
    %p82 = scmp.ne.s32.totalorder %s67, %s81
    %p83 = scmp.eq.s32.totalorder %s15, 0
    %p84 = por %p82, %p83
    %s85 = ssub.s32 %s9, %s16
    %p86 = scmp.eq.s32.totalorder %s85, 0
    %s88 = sadd.s32 %s87, 1
    %s89 = scalar_select %p86, %s87, %s88
    %p92 = pneg %p86
    %p93 = scmp.eq.s32.totalorder %s9, 1
    %p94 = por %p92, %p93
    %p95 = scmp.ne.s32.totalorder %s87, %s90
    %p96 = scmp.eq.s32.totalorder %s9, 0
    %p97 = por %p95, %p96
    %p98 = scmp.ne.s32.totalorder %s87, %s90
    %p99 = scmp.eq.s32.totalorder %s14, 1
    %p100 = por %p98, %p99
    %p101 = scmp.ne.s32.totalorder %s90, %s91
    %p102 = scmp.eq.s32.totalorder %s14, 0
    %p103 = por %p101, %p102
    %p104 = scmp.ne.s32.totalorder %s90, %s91
    %p105 = scmp.eq.s32.totalorder %s15, 1
    %p106 = por %p104, %p105
    %p108 = scmp.ne.s32.totalorder %s91, %s107
    %p109 = scmp.eq.s32.totalorder %s15, 0
    %p110 = por %p108, %p109
    %p111 = scmp.le.s32.totalorder 1, %s9
    %p112 = scmp.lt.s32.totalorder %s9, 3
    %p113 = pnand %p111, %p112
    %p114 = pneg %p113
    // Predicated region
    $region9: #{encoder_forward.8} parent=5 // pred_check
      _
    $region10: #{encoder_forward.8} parent=5 // pred_check_branch
      %116 = sbr.rel (%p113) target = $region12
    $region11: #{encoder_forward.8} parent=5 // pred_region
      %s117 = ssub.s32 %s9, 1
      // Predicated region
      $region13: #{encoder_forward.8} parent=11 // pred_check
        %p118 = pneg %p56
      $region14: #{encoder_forward.8} parent=11 // pred_check_branch
        %120 = sbr.rel (%p118) target = $region16
      $region15: #{encoder_forward.8} parent=11 // pred_region
        _
      $region16: #{encoder_forward.8} parent=11 // pred_fallthru
        _
      // Predicated region
      $region17: #{encoder_forward.8} parent=11 // pred_check
        %p121 = pneg %p77
      $region18: #{encoder_forward.8} parent=11 // pred_check_branch
        %123 = sbr.rel (%p121) target = $region20
      $region19: #{encoder_forward.8} parent=11 // pred_region
        _
      $region20: #{encoder_forward.8} parent=11 // pred_fallthru
        _
    $region12: #{encoder_forward.8} parent=5 // pred_fallthru
      _
    %p124 = scmp.lt.s32.totalorder %s9, 2
    // Predicated region
    $region21: #{encoder_forward.8} parent=5 // pred_check
      %p125 = pneg %p124
    $region22: #{encoder_forward.8} parent=5 // pred_check_branch
      %127 = sbr.rel (%p125) target = $region24
    $region23: #{encoder_forward.8} parent=5 // pred_region
      // Predicated region
      $region25: #{encoder_forward.8} parent=23 // pred_check
        %p128 = pneg %p29
      $region26: #{encoder_forward.8} parent=23 // pred_check_branch
        %130 = sbr.rel (%p128) target = $region28
      $region27: #{encoder_forward.8} parent=23 // pred_region
        %p131 = scmp.lt.s32.totalorder %s9, 1
        %s132 = scalar_select %p131, %s9, 1
        %s133 = smul.addr %s132, 18
        %s134 = smul.addr %s133, 4
        %s135 = scalar_lea.vmem %s0, %s134
      $region28: #{encoder_forward.8} parent=23 // pred_fallthru
        _
    $region24: #{encoder_forward.8} parent=5 // pred_fallthru
      _
    %p136 = scmp.le.s32.totalorder 1, %s9
    %p137 = scmp.lt.s32.totalorder %s9, 3
    %p138 = pnand %p136, %p137
    %p139 = pneg %p138
    // Predicated region
    $region29: #{encoder_forward.8} parent=5 // pred_check
      _
    $region30: #{encoder_forward.8} parent=5 // pred_check_branch
      %141 = sbr.rel (%p138) target = $region32
    $region31: #{encoder_forward.8} parent=5 // pred_region
      %s142 = ssub.s32 %s9, 1
      %p143 = scmp.lt.s32.totalorder %s14, 1
      %s144 = scalar_select %p143, %s14, 1
      %s145 = smul.addr %s144, 18
      %s146 = smul.addr %s145, 4
      %s147 = scalar_lea.vmem %s0, %s146
      %p148 = pneg %p35
      %p149 = pneg %p32
      %p150 = pneg %p56
      %p151 = pneg %p53
      %p152 = pneg %p77
      %p153 = pneg %p74
      %p154 = pneg %p103
      %p155 = pneg %p100
      %p156 = scmp.lt.s32.totalorder %s14, 1
      %s157 = scalar_select %p156, %s14, 1
      %s158 = smul.addr %s157, 2
      %s159 = smul.addr %s158, 4
      %s160 = scalar_lea.vmem %s3, %s159
      %p161 = scmp.lt.s32.totalorder %s14, 1
      %s162 = scalar_select %p161, %s14, 1
      %s163 = smul.addr %s162, 18
      %s164 = smul.addr %s163, 4
      %s165 = scalar_lea.vmem %s0, %s164
      %p166 = scmp.lt.s32.totalorder %s14, 1
      %s167 = scalar_select %p166, %s14, 1
      %s168 = smul.addr %s167, 2
      %s169 = smul.addr %s168, 4
      %s170 = scalar_lea.vmem %s3, %s169
      %v172 = vld [vmem:[%s1] sm:$0xff]
      %v173 = vld [vmem:[%s1 + $0x8] sm:$0xff]
      %v174 = vld [vmem:[%s1 + $0x10] sm:$0xff]
      %v175 = vld [vmem:[%s1 + $0x18] sm:$0xff]
      %v176 = vld [vmem:[%s1 + $0x20] sm:$0xff]
      %v177 = vld [vmem:[%s1 + $0x28] sm:$0xff]
      %v178 = vld [vmem:[%s1 + $0x30] sm:$0xff]
      %v179 = vld [vmem:[%s1 + $0x38] sm:$0xff]
      %v180 = vld [vmem:[%s1 + $0x40] sm:$0xff]
      %v181 = vld [vmem:[%s1 + $0x48] sm:$0xff]
      %v182 = vld [vmem:[%s1 + $0x50] sm:$0xff]
      %v183 = vld [vmem:[%s1 + $0x58] sm:$0xff]
      %v184 = vld [vmem:[%s1 + $0x60] sm:$0xff]
      %v185 = vld [vmem:[%s1 + $0x68] sm:$0xff]
      %v186 = vld [vmem:[%s1 + $0x70] sm:$0xff]
      %v187 = vld [vmem:[%s1 + $0x78] sm:$0xff]
      %v188 = vld [vmem:[%s1 + $0x80] sm:$0xff]
      %v189 = vld [vmem:[%s1 + $0x88] sm:$0xff]
      %v190 = vld [vmem:[%s1 + $0x90] sm:$0xff]
      %v191 = vld [vmem:[%s1 + $0x98] sm:$0xff]
      %v192 = vld [vmem:[%s1 + $0xa0] sm:$0xff]
      %v193 = vld [vmem:[%s1 + $0xa8] sm:$0xff]
      %v194 = vld [vmem:[%s1 + $0xb0] sm:$0xff]
      %v195 = vld [vmem:[%s1 + $0xb8] sm:$0xff]
      %v196 = vld [vmem:[%s1 + $0xc0] sm:$0xff]
      %v197 = vld [vmem:[%s1 + $0xc8] sm:$0xff]
      %v198 = vld [vmem:[%s1 + $0xd0] sm:$0xff]
      %v199 = vld [vmem:[%s1 + $0xd8] sm:$0xff]
      %v200 = vld [vmem:[%s1 + $0xe0] sm:$0xff]
      %v201 = vld [vmem:[%s1 + $0xe8] sm:$0xff]
      %v202 = vld [vmem:[%s1 + $0xf0] sm:$0xff]
      %v203 = vld [vmem:[%s1 + $0xf8] sm:$0xff]
      %v204 = vld [vmem:[%s1 + $0x100] sm:$0xff]
      %v205 = vld [vmem:[%s1 + $0x108] sm:$0xff]
      %v206 = vld [vmem:[%s1 + $0x110] sm:$0xff]
      %v207 = vld [vmem:[%s1 + $0x118] sm:$0xff]
      %v208 = vld [vmem:[%s1 + $0x120] sm:$0xff]
      %v209 = vld [vmem:[%s1 + $0x128] sm:$0xff]
      %v210 = vld [vmem:[%s1 + $0x130] sm:$0xff]
      %v211 = vld [vmem:[%s1 + $0x138] sm:$0xff]
      %v212 = vld [vmem:[%s1 + $0x140] sm:$0xff]
      %v213 = vld [vmem:[%s1 + $0x148] sm:$0xff]
      %v214 = vld [vmem:[%s1 + $0x150] sm:$0xff]
      %v215 = vld [vmem:[%s1 + $0x158] sm:$0xff]
      %v216 = vld [vmem:[%s1 + $0x160] sm:$0xff]
      %v217 = vld [vmem:[%s1 + $0x168] sm:$0xff]
      %v218 = vld [vmem:[%s1 + $0x170] sm:$0xff]
      %v219 = vld [vmem:[%s1 + $0x178] sm:$0xff]
      %v220 = vld [vmem:[%s1 + $0x180] sm:$0xff]
      %v221 = vld [vmem:[%s1 + $0x188] sm:$0xff]
      %v222 = vld [vmem:[%s1 + $0x190] sm:$0xff]
      %v223 = vld [vmem:[%s1 + $0x198] sm:$0xff]
      %v224 = vld [vmem:[%s1 + $0x1a0] sm:$0xff]
      %v225 = vld [vmem:[%s1 + $0x1a8] sm:$0xff]
      %v226 = vld [vmem:[%s1 + $0x1b0] sm:$0xff]
      %v227 = vld [vmem:[%s1 + $0x1b8] sm:$0xff]
      %v228 = vld [vmem:[%s1 + $0x1c0] sm:$0xff]
      %v229 = vld [vmem:[%s1 + $0x1c8] sm:$0xff]
      %v230 = vld [vmem:[%s1 + $0x1d0] sm:$0xff]
      %v231 = vld [vmem:[%s1 + $0x1d8] sm:$0xff]
      %v232 = vld [vmem:[%s1 + $0x1e0] sm:$0xff]
      %v233 = vld [vmem:[%s1 + $0x1e8] sm:$0xff]
      %v234 = vld [vmem:[%s1 + $0x1f0] sm:$0xff]
      %v235 = vld [vmem:[%s1 + $0x1f8] sm:$0xff]
      %v236 = vld [vmem:[%s1 + $0x200] sm:$0xff]
      %v237 = vld [vmem:[%s1 + $0x208] sm:$0xff]
      %v238 = vld [vmem:[%s1 + $0x210] sm:$0xff]
      %v239 = vld [vmem:[%s1 + $0x218] sm:$0xff]
      %v240 = vld [vmem:[%s1 + $0x220] sm:$0xff]
      %v241 = vld [vmem:[%s1 + $0x228] sm:$0xff]
      %v242 = vld [vmem:[%s1 + $0x230] sm:$0xff]
      %v243 = vld [vmem:[%s1 + $0x238] sm:$0xff]
      %v244 = vld [vmem:[%s1 + $0x240] sm:$0xff]
      %v245 = vld [vmem:[%s1 + $0x248] sm:$0xff]
      %v246 = vld [vmem:[%s1 + $0x250] sm:$0xff]
      %v247 = vld [vmem:[%s1 + $0x258] sm:$0xff]
      %v248 = vld [vmem:[%s1 + $0x260] sm:$0xff]
      %v249 = vld [vmem:[%s1 + $0x268] sm:$0xff]
      %v250 = vld [vmem:[%s1 + $0x270] sm:$0xff]
      %v251 = vld [vmem:[%s1 + $0x278] sm:$0xff]
      %v252 = vld [vmem:[%s1 + $0x280] sm:$0xff]
      %v253 = vld [vmem:[%s1 + $0x288] sm:$0xff]
      %v254 = vld [vmem:[%s1 + $0x290] sm:$0xff]
      %v255 = vld [vmem:[%s1 + $0x298] sm:$0xff]
      %v256 = vld [vmem:[%s1 + $0x2a0] sm:$0xff]
      %v257 = vld [vmem:[%s1 + $0x2a8] sm:$0xff]
      %v258 = vld [vmem:[%s1 + $0x2b0] sm:$0xff]
      %v259 = vld [vmem:[%s1 + $0x2b8] sm:$0xff]
      %v260 = vld [vmem:[%s1 + $0x2c0] sm:$0xff]
      %v261 = vld [vmem:[%s1 + $0x2c8] sm:$0xff]
      %v262 = vld [vmem:[%s1 + $0x2d0] sm:$0xff]
      %v263 = vld [vmem:[%s1 + $0x2d8] sm:$0xff]
      %v264 = vld [vmem:[%s1 + $0x2e0] sm:$0xff]
      %v265 = vld [vmem:[%s1 + $0x2e8] sm:$0xff]
      %v266 = vld [vmem:[%s1 + $0x2f0] sm:$0xff]
      %v267 = vld [vmem:[%s1 + $0x2f8] sm:$0xff]
      %v268 = vld [vmem:[%s1 + $0x300] sm:$0xff]
      %v269 = vld [vmem:[%s1 + $0x308] sm:$0xff]
      %v270 = vld [vmem:[%s1 + $0x310] sm:$0xff]
      %v271 = vld [vmem:[%s1 + $0x318] sm:$0xff]
      %v272 = vld [vmem:[%s1 + $0x320] sm:$0xff]
      %v273 = vld [vmem:[%s1 + $0x328] sm:$0xff]
      %v274 = vld [vmem:[%s1 + $0x330] sm:$0xff]
      %v275 = vld [vmem:[%s1 + $0x338] sm:$0xff]
      %v276 = vld [vmem:[%s1 + $0x340] sm:$0xff]
      %v277 = vld [vmem:[%s1 + $0x348] sm:$0xff]
      %v278 = vld [vmem:[%s1 + $0x350] sm:$0xff]
      %v279 = vld [vmem:[%s1 + $0x358] sm:$0xff]
      %v280 = vld [vmem:[%s1 + $0x360] sm:$0xff]
      %v281 = vld [vmem:[%s1 + $0x368] sm:$0xff]
      %v282 = vld [vmem:[%s1 + $0x370] sm:$0xff]
      %v283 = vld [vmem:[%s1 + $0x378] sm:$0xff]
      %v284 = vld [vmem:[%s1 + $0x380] sm:$0xff]
      %v285 = vld [vmem:[%s1 + $0x388] sm:$0xff]
      %v286 = vld [vmem:[%s1 + $0x390] sm:$0xff]
      %v287 = vld [vmem:[%s1 + $0x398] sm:$0xff]
      %v288 = vld [vmem:[%s1 + $0x3a0] sm:$0xff]
      %v289 = vld [vmem:[%s1 + $0x3a8] sm:$0xff]
      %v290 = vld [vmem:[%s1 + $0x3b0] sm:$0xff]
      %v291 = vld [vmem:[%s1 + $0x3b8] sm:$0xff]
      %v292 = vld [vmem:[%s1 + $0x3c0] sm:$0xff]
      %v293 = vld [vmem:[%s1 + $0x3c8] sm:$0xff]
      %v294 = vld [vmem:[%s1 + $0x3d0] sm:$0xff]
      %v295 = vld [vmem:[%s1 + $0x3d8] sm:$0xff]
      %v296 = vld [vmem:[%s1 + $0x3e0] sm:$0xff]
      %v297 = vld [vmem:[%s1 + $0x3e8] sm:$0xff]
      %v298 = vld [vmem:[%s1 + $0x3f0] sm:$0xff]
      %v299 = vld [vmem:[%s1 + $0x3f8] sm:$0xff]
      %v300 = vld [vmem:[%s1 + $0x400] sm:$0xff]
      %v301 = vld [vmem:[%s1 + $0x408] sm:$0xff]
      %v302 = vld [vmem:[%s1 + $0x410] sm:$0xff]
      %v303 = vld [vmem:[%s1 + $0x418] sm:$0xff]
      %v304 = vld [vmem:[%s1 + $0x420] sm:$0xff]
      %v305 = vld [vmem:[%s1 + $0x428] sm:$0xff]
      %v306 = vld [vmem:[%s1 + $0x430] sm:$0xff]
      %v307 = vld [vmem:[%s1 + $0x438] sm:$0xff]
      %v308 = vld [vmem:[%s1 + $0x440] sm:$0xff]
      %v309 = vld [vmem:[%s1 + $0x448] sm:$0xff]
      %v310 = vld [vmem:[%s1 + $0x450] sm:$0xff]
      %v311 = vld [vmem:[%s1 + $0x458] sm:$0xff]
      %v312 = vld [vmem:[%s1 + $0x460] sm:$0xff]
      %v313 = vld [vmem:[%s1 + $0x468] sm:$0xff]
      %v314 = vld [vmem:[%s1 + $0x470] sm:$0xff]
      %v315 = vld [vmem:[%s1 + $0x478] sm:$0xff]
      %v316 = vld [vmem:[%s2] sm:$0x3]
      %v317 = vld [vmem:[%s165] sm:$0x33]
      %v318 = vld [vmem:[%s165 + $0x8] sm:$0x33]
      %v319 = vld [vmem:[%s165 + $0x10] sm:$0x33]
      %v320 = vld [vmem:[%s165 + $0x18] sm:$0x33]
      %v321 = vld [vmem:[%s165 + $0x20] sm:$0x3]
      %v323 = vlaneseq
      %v324 = vshrl.u32 %v323, 7
      %v325 = vsub.s32 0, %v324
      %v326 = vrot.slane %v316, %v325
      %v327 = vlaneseq
      %v328 = vshrl.u32 %v327, 7
      %v329 = vsub.s32 1, %v328
      %v330 = vrot.slane %v316, %v329
      %v338 = vunpack.c.l.b16 %v317
      %v339 = vunpack.c.h.b16 %v317
      %v340 = vunpack.c.l.b16 %v318
      %v341 = vunpack.c.h.b16 %v318
      %v342 = vunpack.c.l.b16 %v319
      %v343 = vunpack.c.h.b16 %v319
      %v344 = vunpack.c.l.b16 %v320
      %v345 = vunpack.c.h.b16 %v320
      %v346 = vunpack.c.l.b16 %v321
      %v347 = vpack.c.b16 %v338, %v338
      %v348 = vpack.c.b16 %v339, %v339
      %v349 = vpack.c.b16 %v340, %v340
      %v350 = vpack.c.b16 %v341, %v341
      %v351 = vpack.c.b16 %v342, %v342
      %v352 = vpack.c.b16 %v343, %v343
      %v353 = vpack.c.b16 %v344, %v344
      %v354 = vpack.c.b16 %v345, %v345
      %v355 = vpack.c.b16 %v346, %v346
      %v509 = vunpack.c.l.b16 %v172
      %v510 = vunpack.c.h.b16 %v172
      %v511 = vunpack.c.l.b16 %v173
      %v512 = vunpack.c.h.b16 %v173
      %v513 = vunpack.c.l.b16 %v174
      %v514 = vunpack.c.h.b16 %v174
      %v515 = vunpack.c.l.b16 %v175
      %v516 = vunpack.c.h.b16 %v175
      %v517 = vunpack.c.l.b16 %v176
      %v518 = vunpack.c.h.b16 %v176
      %v519 = vunpack.c.l.b16 %v177
      %v520 = vunpack.c.h.b16 %v177
      %v521 = vunpack.c.l.b16 %v178
      %v522 = vunpack.c.h.b16 %v178
      %v523 = vunpack.c.l.b16 %v179
      %v524 = vunpack.c.h.b16 %v179
      %v525 = vunpack.c.l.b16 %v180
      %v526 = vunpack.c.h.b16 %v180
      %v527 = vunpack.c.l.b16 %v181
      %v528 = vunpack.c.h.b16 %v181
      %v529 = vunpack.c.l.b16 %v182
      %v530 = vunpack.c.h.b16 %v182
      %v531 = vunpack.c.l.b16 %v183
      %v532 = vunpack.c.h.b16 %v183
      %v533 = vunpack.c.l.b16 %v184
      %v534 = vunpack.c.h.b16 %v184
      %v535 = vunpack.c.l.b16 %v185
      %v536 = vunpack.c.h.b16 %v185
      %v537 = vunpack.c.l.b16 %v186
      %v538 = vunpack.c.h.b16 %v186
      %v539 = vunpack.c.l.b16 %v187
      %v540 = vunpack.c.h.b16 %v187
      %v541 = vunpack.c.l.b16 %v188
      %v542 = vunpack.c.h.b16 %v188
      %v543 = vunpack.c.l.b16 %v189
      %v544 = vunpack.c.h.b16 %v189
      %v545 = vunpack.c.l.b16 %v190
      %v546 = vunpack.c.h.b16 %v190
      %v547 = vunpack.c.l.b16 %v191
      %v548 = vunpack.c.h.b16 %v191
      %v549 = vunpack.c.l.b16 %v192
      %v550 = vunpack.c.h.b16 %v192
      %v551 = vunpack.c.l.b16 %v193
      %v552 = vunpack.c.h.b16 %v193
      %v553 = vunpack.c.l.b16 %v194
      %v554 = vunpack.c.h.b16 %v194
      %v555 = vunpack.c.l.b16 %v195
      %v556 = vunpack.c.h.b16 %v195
      %v557 = vunpack.c.l.b16 %v196
      %v558 = vunpack.c.h.b16 %v196
      %v559 = vunpack.c.l.b16 %v197
      %v560 = vunpack.c.h.b16 %v197
      %v561 = vunpack.c.l.b16 %v198
      %v562 = vunpack.c.h.b16 %v198
      %v563 = vunpack.c.l.b16 %v199
      %v564 = vunpack.c.h.b16 %v199
      %v565 = vunpack.c.l.b16 %v200
      %v566 = vunpack.c.h.b16 %v200
      %v567 = vunpack.c.l.b16 %v201
      %v568 = vunpack.c.h.b16 %v201
      %v569 = vunpack.c.l.b16 %v202
      %v570 = vunpack.c.h.b16 %v202
      %v571 = vunpack.c.l.b16 %v203
      %v572 = vunpack.c.h.b16 %v203
      %v573 = vunpack.c.l.b16 %v204
      %v574 = vunpack.c.h.b16 %v204
      %v575 = vunpack.c.l.b16 %v205
      %v576 = vunpack.c.h.b16 %v205
      %v577 = vunpack.c.l.b16 %v206
      %v578 = vunpack.c.h.b16 %v206
      %v579 = vunpack.c.l.b16 %v207
      %v580 = vunpack.c.h.b16 %v207
      %v581 = vunpack.c.l.b16 %v208
      %v582 = vunpack.c.h.b16 %v208
      %v583 = vunpack.c.l.b16 %v209
      %v584 = vunpack.c.h.b16 %v209
      %v585 = vunpack.c.l.b16 %v210
      %v586 = vunpack.c.h.b16 %v210
      %v587 = vunpack.c.l.b16 %v211
      %v588 = vunpack.c.h.b16 %v211
      %v589 = vunpack.c.l.b16 %v212
      %v590 = vunpack.c.h.b16 %v212
      %v591 = vunpack.c.l.b16 %v213
      %v592 = vunpack.c.h.b16 %v213
      %v593 = vunpack.c.l.b16 %v214
      %v594 = vunpack.c.h.b16 %v214
      %v595 = vunpack.c.l.b16 %v215
      %v596 = vunpack.c.h.b16 %v215
      %v597 = vunpack.c.l.b16 %v216
      %v598 = vunpack.c.h.b16 %v216
      %v599 = vunpack.c.l.b16 %v217
      %v600 = vunpack.c.h.b16 %v217
      %v601 = vunpack.c.l.b16 %v218
      %v602 = vunpack.c.h.b16 %v218
      %v603 = vunpack.c.l.b16 %v219
      %v604 = vunpack.c.h.b16 %v219
      %v605 = vunpack.c.l.b16 %v220
      %v606 = vunpack.c.h.b16 %v220
      %v607 = vunpack.c.l.b16 %v221
      %v608 = vunpack.c.h.b16 %v221
      %v609 = vunpack.c.l.b16 %v222
      %v610 = vunpack.c.h.b16 %v222
      %v611 = vunpack.c.l.b16 %v223
      %v612 = vunpack.c.h.b16 %v223
      %v613 = vunpack.c.l.b16 %v224
      %v614 = vunpack.c.h.b16 %v224
      %v615 = vunpack.c.l.b16 %v225
      %v616 = vunpack.c.h.b16 %v225
      %v617 = vunpack.c.l.b16 %v226
      %v618 = vunpack.c.h.b16 %v226
      %v619 = vunpack.c.l.b16 %v227
      %v620 = vunpack.c.h.b16 %v227
      %v621 = vunpack.c.l.b16 %v228
      %v622 = vunpack.c.h.b16 %v228
      %v623 = vunpack.c.l.b16 %v229
      %v624 = vunpack.c.h.b16 %v229
      %v625 = vunpack.c.l.b16 %v230
      %v626 = vunpack.c.h.b16 %v230
      %v627 = vunpack.c.l.b16 %v231
      %v628 = vunpack.c.h.b16 %v231
      %v629 = vunpack.c.l.b16 %v232
      %v630 = vunpack.c.h.b16 %v232
      %v631 = vunpack.c.l.b16 %v233
      %v632 = vunpack.c.h.b16 %v233
      %v633 = vunpack.c.l.b16 %v234
      %v634 = vunpack.c.h.b16 %v234
      %v635 = vunpack.c.l.b16 %v235
      %v636 = vunpack.c.h.b16 %v235
      %v637 = vunpack.c.l.b16 %v236
      %v638 = vunpack.c.h.b16 %v236
      %v639 = vunpack.c.l.b16 %v237
      %v640 = vunpack.c.h.b16 %v237
      %v641 = vunpack.c.l.b16 %v238
      %v642 = vunpack.c.h.b16 %v238
      %v643 = vunpack.c.l.b16 %v239
      %v644 = vunpack.c.h.b16 %v239
      %v645 = vunpack.c.l.b16 %v240
      %v646 = vunpack.c.h.b16 %v240
      %v647 = vunpack.c.l.b16 %v241
      %v648 = vunpack.c.h.b16 %v241
      %v649 = vunpack.c.l.b16 %v242
      %v650 = vunpack.c.h.b16 %v242
      %v651 = vunpack.c.l.b16 %v243
      %v652 = vunpack.c.h.b16 %v243
      %v653 = vunpack.c.l.b16 %v244
      %v654 = vunpack.c.h.b16 %v244
      %v655 = vunpack.c.l.b16 %v245
      %v656 = vunpack.c.h.b16 %v245
      %v657 = vunpack.c.l.b16 %v246
      %v658 = vunpack.c.h.b16 %v246
      %v659 = vunpack.c.l.b16 %v247
      %v660 = vunpack.c.h.b16 %v247
      %v661 = vunpack.c.l.b16 %v248
      %v662 = vunpack.c.h.b16 %v248
      %v663 = vunpack.c.l.b16 %v249
      %v664 = vunpack.c.h.b16 %v249
      %v665 = vunpack.c.l.b16 %v250
      %v666 = vunpack.c.h.b16 %v250
      %v667 = vunpack.c.l.b16 %v251
      %v668 = vunpack.c.h.b16 %v251
      %v669 = vunpack.c.l.b16 %v252
      %v670 = vunpack.c.h.b16 %v252
      %v671 = vunpack.c.l.b16 %v253
      %v672 = vunpack.c.h.b16 %v253
      %v673 = vunpack.c.l.b16 %v254
      %v674 = vunpack.c.h.b16 %v254
      %v675 = vunpack.c.l.b16 %v255
      %v676 = vunpack.c.h.b16 %v255
      %v677 = vunpack.c.l.b16 %v256
      %v678 = vunpack.c.h.b16 %v256
      %v679 = vunpack.c.l.b16 %v257
      %v680 = vunpack.c.h.b16 %v257
      %v681 = vunpack.c.l.b16 %v258
      %v682 = vunpack.c.h.b16 %v258
      %v683 = vunpack.c.l.b16 %v259
      %v684 = vunpack.c.h.b16 %v259
      %v685 = vunpack.c.l.b16 %v260
      %v686 = vunpack.c.h.b16 %v260
      %v687 = vunpack.c.l.b16 %v261
      %v688 = vunpack.c.h.b16 %v261
      %v689 = vunpack.c.l.b16 %v262
      %v690 = vunpack.c.h.b16 %v262
      %v691 = vunpack.c.l.b16 %v263
      %v692 = vunpack.c.h.b16 %v263
      %v693 = vunpack.c.l.b16 %v264
      %v694 = vunpack.c.h.b16 %v264
      %v695 = vunpack.c.l.b16 %v265
      %v696 = vunpack.c.h.b16 %v265
      %v697 = vunpack.c.l.b16 %v266
      %v698 = vunpack.c.h.b16 %v266
      %v699 = vunpack.c.l.b16 %v267
      %v700 = vunpack.c.h.b16 %v267
      %v701 = vunpack.c.l.b16 %v268
      %v702 = vunpack.c.h.b16 %v268
      %v703 = vunpack.c.l.b16 %v269
      %v704 = vunpack.c.h.b16 %v269
      %v705 = vunpack.c.l.b16 %v270
      %v706 = vunpack.c.h.b16 %v270
      %v707 = vunpack.c.l.b16 %v271
      %v708 = vunpack.c.h.b16 %v271
      %v709 = vunpack.c.l.b16 %v272
      %v710 = vunpack.c.h.b16 %v272
      %v711 = vunpack.c.l.b16 %v273
      %v712 = vunpack.c.h.b16 %v273
      %v713 = vunpack.c.l.b16 %v274
      %v714 = vunpack.c.h.b16 %v274
      %v715 = vunpack.c.l.b16 %v275
      %v716 = vunpack.c.h.b16 %v275
      %v717 = vunpack.c.l.b16 %v276
      %v718 = vunpack.c.h.b16 %v276
      %v719 = vunpack.c.l.b16 %v277
      %v720 = vunpack.c.h.b16 %v277
      %v721 = vunpack.c.l.b16 %v278
      %v722 = vunpack.c.h.b16 %v278
      %v723 = vunpack.c.l.b16 %v279
      %v724 = vunpack.c.h.b16 %v279
      %v725 = vunpack.c.l.b16 %v280
      %v726 = vunpack.c.h.b16 %v280
      %v727 = vunpack.c.l.b16 %v281
      %v728 = vunpack.c.h.b16 %v281
      %v729 = vunpack.c.l.b16 %v282
      %v730 = vunpack.c.h.b16 %v282
      %v731 = vunpack.c.l.b16 %v283
      %v732 = vunpack.c.h.b16 %v283
      %v733 = vunpack.c.l.b16 %v284
      %v734 = vunpack.c.h.b16 %v284
      %v735 = vunpack.c.l.b16 %v285
      %v736 = vunpack.c.h.b16 %v285
      %v737 = vunpack.c.l.b16 %v286
      %v738 = vunpack.c.h.b16 %v286
      %v739 = vunpack.c.l.b16 %v287
      %v740 = vunpack.c.h.b16 %v287
      %v741 = vunpack.c.l.b16 %v288
      %v742 = vunpack.c.h.b16 %v288
      %v743 = vunpack.c.l.b16 %v289
      %v744 = vunpack.c.h.b16 %v289
      %v745 = vunpack.c.l.b16 %v290
      %v746 = vunpack.c.h.b16 %v290
      %v747 = vunpack.c.l.b16 %v291
      %v748 = vunpack.c.h.b16 %v291
      %v749 = vunpack.c.l.b16 %v292
      %v750 = vunpack.c.h.b16 %v292
      %v751 = vunpack.c.l.b16 %v293
      %v752 = vunpack.c.h.b16 %v293
      %v753 = vunpack.c.l.b16 %v294
      %v754 = vunpack.c.h.b16 %v294
      %v755 = vunpack.c.l.b16 %v295
      %v756 = vunpack.c.h.b16 %v295
      %v757 = vunpack.c.l.b16 %v296
      %v758 = vunpack.c.h.b16 %v296
      %v759 = vunpack.c.l.b16 %v297
      %v760 = vunpack.c.h.b16 %v297
      %v761 = vunpack.c.l.b16 %v298
      %v762 = vunpack.c.h.b16 %v298
      %v763 = vunpack.c.l.b16 %v299
      %v764 = vunpack.c.h.b16 %v299
      %v765 = vunpack.c.l.b16 %v300
      %v766 = vunpack.c.h.b16 %v300
      %v767 = vunpack.c.l.b16 %v301
      %v768 = vunpack.c.h.b16 %v301
      %v769 = vunpack.c.l.b16 %v302
      %v770 = vunpack.c.h.b16 %v302
      %v771 = vunpack.c.l.b16 %v303
      %v772 = vunpack.c.h.b16 %v303
      %v773 = vunpack.c.l.b16 %v304
      %v774 = vunpack.c.h.b16 %v304
      %v775 = vunpack.c.l.b16 %v305
      %v776 = vunpack.c.h.b16 %v305
      %v777 = vunpack.c.l.b16 %v306
      %v778 = vunpack.c.h.b16 %v306
      %v779 = vunpack.c.l.b16 %v307
      %v780 = vunpack.c.h.b16 %v307
      %v781 = vunpack.c.l.b16 %v308
      %v782 = vunpack.c.h.b16 %v308
      %v783 = vunpack.c.l.b16 %v309
      %v784 = vunpack.c.h.b16 %v309
      %v785 = vunpack.c.l.b16 %v310
      %v786 = vunpack.c.h.b16 %v310
      %v787 = vunpack.c.l.b16 %v311
      %v788 = vunpack.c.h.b16 %v311
      %v789 = vunpack.c.l.b16 %v312
      %v790 = vunpack.c.h.b16 %v312
      %v791 = vunpack.c.l.b16 %v313
      %v792 = vunpack.c.h.b16 %v313
      %v793 = vunpack.c.l.b16 %v314
      %v794 = vunpack.c.h.b16 %v314
      %v795 = vunpack.c.l.b16 %v315
      %v796 = vunpack.c.h.b16 %v315
      %v797 = vpack.c.b16 %v511, %v509
      %v798 = vpack.c.b16 %v512, %v510
      %v799 = vpack.c.b16 %v515, %v513
      %v800 = vpack.c.b16 %v516, %v514
      %v801 = vpack.c.b16 %v519, %v517
      %v802 = vpack.c.b16 %v520, %v518
      %v803 = vpack.c.b16 %v523, %v521
      %v804 = vpack.c.b16 %v524, %v522
      %v805 = vpack.c.b16 %v527, %v525
      %v806 = vpack.c.b16 %v528, %v526
      %v807 = vpack.c.b16 %v531, %v529
      %v808 = vpack.c.b16 %v532, %v530
      %v809 = vpack.c.b16 %v535, %v533
      %v810 = vpack.c.b16 %v536, %v534
      %v811 = vpack.c.b16 %v539, %v537
      %v812 = vpack.c.b16 %v540, %v538
      %v813 = vpack.c.b16 %v543, %v541
      %v814 = vpack.c.b16 %v544, %v542
      %v815 = vpack.c.b16 %v547, %v545
      %v816 = vpack.c.b16 %v548, %v546
      %v817 = vpack.c.b16 %v551, %v549
      %v818 = vpack.c.b16 %v552, %v550
      %v819 = vpack.c.b16 %v555, %v553
      %v820 = vpack.c.b16 %v556, %v554
      %v821 = vpack.c.b16 %v559, %v557
      %v822 = vpack.c.b16 %v560, %v558
      %v823 = vpack.c.b16 %v563, %v561
      %v824 = vpack.c.b16 %v564, %v562
      %v825 = vpack.c.b16 %v567, %v565
      %v826 = vpack.c.b16 %v568, %v566
      %v827 = vpack.c.b16 %v571, %v569
      %v828 = vpack.c.b16 %v572, %v570
      %v829 = vpack.c.b16 %v575, %v573
      %v830 = vpack.c.b16 %v576, %v574
      %v831 = vpack.c.b16 %v579, %v577
      %v832 = vpack.c.b16 %v580, %v578
      %v833 = vpack.c.b16 %v583, %v581
      %v834 = vpack.c.b16 %v584, %v582
      %v835 = vpack.c.b16 %v587, %v585
      %v836 = vpack.c.b16 %v588, %v586
      %v837 = vpack.c.b16 %v591, %v589
      %v838 = vpack.c.b16 %v592, %v590
      %v839 = vpack.c.b16 %v595, %v593
      %v840 = vpack.c.b16 %v596, %v594
      %v841 = vpack.c.b16 %v599, %v597
      %v842 = vpack.c.b16 %v600, %v598
      %v843 = vpack.c.b16 %v603, %v601
      %v844 = vpack.c.b16 %v604, %v602
      %v845 = vpack.c.b16 %v607, %v605
      %v846 = vpack.c.b16 %v608, %v606
      %v847 = vpack.c.b16 %v611, %v609
      %v848 = vpack.c.b16 %v612, %v610
      %v849 = vpack.c.b16 %v615, %v613
      %v850 = vpack.c.b16 %v616, %v614
      %v851 = vpack.c.b16 %v619, %v617
      %v852 = vpack.c.b16 %v620, %v618
      %v853 = vpack.c.b16 %v623, %v621
      %v854 = vpack.c.b16 %v624, %v622
      %v855 = vpack.c.b16 %v627, %v625
      %v856 = vpack.c.b16 %v628, %v626
      %v857 = vpack.c.b16 %v631, %v629
      %v858 = vpack.c.b16 %v632, %v630
      %v859 = vpack.c.b16 %v635, %v633
      %v860 = vpack.c.b16 %v636, %v634
      %v861 = vpack.c.b16 %v639, %v637
      %v862 = vpack.c.b16 %v640, %v638
      %v863 = vpack.c.b16 %v643, %v641
      %v864 = vpack.c.b16 %v644, %v642
      %v865 = vpack.c.b16 %v647, %v645
      %v866 = vpack.c.b16 %v648, %v646
      %v867 = vpack.c.b16 %v651, %v649
      %v868 = vpack.c.b16 %v652, %v650
      %v869 = vpack.c.b16 %v655, %v653
      %v870 = vpack.c.b16 %v656, %v654
      %v871 = vpack.c.b16 %v659, %v657
      %v872 = vpack.c.b16 %v660, %v658
      %v873 = vpack.c.b16 %v663, %v661
      %v874 = vpack.c.b16 %v664, %v662
      %v875 = vpack.c.b16 %v667, %v665
      %v876 = vpack.c.b16 %v668, %v666
      %v877 = vpack.c.b16 %v671, %v669
      %v878 = vpack.c.b16 %v672, %v670
      %v879 = vpack.c.b16 %v675, %v673
      %v880 = vpack.c.b16 %v676, %v674
      %v881 = vpack.c.b16 %v679, %v677
      %v882 = vpack.c.b16 %v680, %v678
      %v883 = vpack.c.b16 %v683, %v681
      %v884 = vpack.c.b16 %v684, %v682
      %v885 = vpack.c.b16 %v687, %v685
      %v886 = vpack.c.b16 %v688, %v686
      %v887 = vpack.c.b16 %v691, %v689
      %v888 = vpack.c.b16 %v692, %v690
      %v889 = vpack.c.b16 %v695, %v693
      %v890 = vpack.c.b16 %v696, %v694
      %v891 = vpack.c.b16 %v699, %v697
      %v892 = vpack.c.b16 %v700, %v698
      %v893 = vpack.c.b16 %v703, %v701
      %v894 = vpack.c.b16 %v704, %v702
      %v895 = vpack.c.b16 %v707, %v705
      %v896 = vpack.c.b16 %v708, %v706
      %v897 = vpack.c.b16 %v711, %v709
      %v898 = vpack.c.b16 %v712, %v710
      %v899 = vpack.c.b16 %v715, %v713
      %v900 = vpack.c.b16 %v716, %v714
      %v901 = vpack.c.b16 %v719, %v717
      %v902 = vpack.c.b16 %v720, %v718
      %v903 = vpack.c.b16 %v723, %v721
      %v904 = vpack.c.b16 %v724, %v722
      %v905 = vpack.c.b16 %v727, %v725
      %v906 = vpack.c.b16 %v728, %v726
      %v907 = vpack.c.b16 %v731, %v729
      %v908 = vpack.c.b16 %v732, %v730
      %v909 = vpack.c.b16 %v735, %v733
      %v910 = vpack.c.b16 %v736, %v734
      %v911 = vpack.c.b16 %v739, %v737
      %v912 = vpack.c.b16 %v740, %v738
      %v913 = vpack.c.b16 %v743, %v741
      %v914 = vpack.c.b16 %v744, %v742
      %v915 = vpack.c.b16 %v747, %v745
      %v916 = vpack.c.b16 %v748, %v746
      %v917 = vpack.c.b16 %v751, %v749
      %v918 = vpack.c.b16 %v752, %v750
      %v919 = vpack.c.b16 %v755, %v753
      %v920 = vpack.c.b16 %v756, %v754
      %v921 = vpack.c.b16 %v759, %v757
      %v922 = vpack.c.b16 %v760, %v758
      %v923 = vpack.c.b16 %v763, %v761
      %v924 = vpack.c.b16 %v764, %v762
      %v925 = vpack.c.b16 %v767, %v765
      %v926 = vpack.c.b16 %v768, %v766
      %v927 = vpack.c.b16 %v771, %v769
      %v928 = vpack.c.b16 %v772, %v770
      %v929 = vpack.c.b16 %v775, %v773
      %v930 = vpack.c.b16 %v776, %v774
      %v931 = vpack.c.b16 %v779, %v777
      %v932 = vpack.c.b16 %v780, %v778
      %v933 = vpack.c.b16 %v783, %v781
      %v934 = vpack.c.b16 %v784, %v782
      %v935 = vpack.c.b16 %v787, %v785
      %v936 = vpack.c.b16 %v788, %v786
      %v937 = vpack.c.b16 %v791, %v789
      %v938 = vpack.c.b16 %v792, %v790
      %v939 = vpack.c.b16 %v795, %v793
      %v940 = vpack.c.b16 %v796, %v794
      %1085 = vmatprep.subr.bf16.mxu0 %v798
      %1086 = vmatpush1.bf16.msra.mxu0 %v797
      %1087 = vmatprep.subr.bf16.mxu0 %v800
      %1088 = vmatpush1.bf16.msra.mxu0 %v799
      %1089 = vmatprep.subr.bf16.mxu0 %v802
      %1090 = vmatpush1.bf16.msra.mxu0 %v801
      %1091 = vmatprep.subr.bf16.mxu0 %v804
      %1092 = vmatpush1.bf16.msra.mxu0 %v803
      %1093 = vmatprep.subr.bf16.mxu0 %v806
      %1094 = vmatpush1.bf16.msra.mxu0 %v805
      %1095 = vmatprep.subr.bf16.mxu0 %v808
      %1096 = vmatpush1.bf16.msra.mxu0 %v807
      %1097 = vmatprep.subr.bf16.mxu0 %v810
      %1098 = vmatpush1.bf16.msra.mxu0 %v809
      %1099 = vmatprep.subr.bf16.mxu0 %v812
      %1100 = vmatpush1.bf16.msra.mxu0 %v811
      %1101 = vmatprep.subr.bf16.mxu0 %v814
      %1102 = vmatpush1.bf16.msra.mxu0 %v813
      %1103 = vmatprep.subr.bf16.mxu0 %v816
      %1104 = vmatpush1.bf16.msra.mxu0 %v815
      %1105 = vmatprep.subr.bf16.mxu0 %v818
      %1106 = vmatpush1.bf16.msra.mxu0 %v817
      %1107 = vmatprep.subr.bf16.mxu0 %v820
      %1108 = vmatpush1.bf16.msra.mxu0 %v819
      %1109 = vmatprep.subr.bf16.mxu0 %v822
      %1110 = vmatpush1.bf16.msra.mxu0 %v821
      %1111 = vmatprep.subr.bf16.mxu0 %v824
      %1112 = vmatpush1.bf16.msra.mxu0 %v823
      %1113 = vmatprep.subr.bf16.mxu0 %v826
      %1114 = vmatpush1.bf16.msra.mxu0 %v825
      %1115 = vmatprep.subr.bf16.mxu0 %v828
      %1116 = vmatpush1.bf16.msra.mxu0 %v827
      %1117 = vmatprep.mubr.bf16.mxu0 %v348
      %1118 = vmatmul.mubr.bf16.gmra.mrb[0].mxu0 %v347
      %v1119 = vpop.f32.mrb[0].mxu0
      %v1120 = vadd.f32 %v326, %v1119
      %v1121 = vpop.f32.mrb[0].mxu0
      %v1122 = vadd.f32 %v330, %v1121
      %v1123 = vpop.f32.mrb[0].mxu0
      %v1124 = vpop.f32.mrb[0].mxu0
      %1125 = vdwg.mxu0
      %1126 = vmatprep.subr.bf16.mxu0 %v830
      %1127 = vmatpush1.bf16.msra.mxu0 %v829
      %1128 = vmatprep.subr.bf16.mxu0 %v832
      %1129 = vmatpush1.bf16.msra.mxu0 %v831
      %1130 = vmatprep.subr.bf16.mxu0 %v834
      %1131 = vmatpush1.bf16.msra.mxu0 %v833
      %1132 = vmatprep.subr.bf16.mxu0 %v836
      %1133 = vmatpush1.bf16.msra.mxu0 %v835
      %1134 = vmatprep.subr.bf16.mxu0 %v838
      %1135 = vmatpush1.bf16.msra.mxu0 %v837
      %1136 = vmatprep.subr.bf16.mxu0 %v840
      %1137 = vmatpush1.bf16.msra.mxu0 %v839
      %1138 = vmatprep.subr.bf16.mxu0 %v842
      %1139 = vmatpush1.bf16.msra.mxu0 %v841
      %1140 = vmatprep.subr.bf16.mxu0 %v844
      %1141 = vmatpush1.bf16.msra.mxu0 %v843
      %1142 = vmatprep.subr.bf16.mxu0 %v846
      %1143 = vmatpush1.bf16.msra.mxu0 %v845
      %1144 = vmatprep.subr.bf16.mxu0 %v848
      %1145 = vmatpush1.bf16.msra.mxu0 %v847
      %1146 = vmatprep.subr.bf16.mxu0 %v850
      %1147 = vmatpush1.bf16.msra.mxu0 %v849
      %1148 = vmatprep.subr.bf16.mxu0 %v852
      %1149 = vmatpush1.bf16.msra.mxu0 %v851
      %1150 = vmatprep.subr.bf16.mxu0 %v854
      %1151 = vmatpush1.bf16.msra.mxu0 %v853
      %1152 = vmatprep.subr.bf16.mxu0 %v856
      %1153 = vmatpush1.bf16.msra.mxu0 %v855
      %1154 = vmatprep.subr.bf16.mxu0 %v858
      %1155 = vmatpush1.bf16.msra.mxu0 %v857
      %1156 = vmatprep.subr.bf16.mxu0 %v860
      %1157 = vmatpush1.bf16.msra.mxu0 %v859
      %1158 = vmatprep.mubr.bf16.mxu0 %v350
      %1159 = vmatmul.mubr.bf16.gmra.mrb[0].mxu0 %v349
      %v1160 = vpop.f32.mrb[0].mxu0
      %v1161 = vadd.f32 %v1120, %v1160
      %v1162 = vpop.f32.mrb[0].mxu0
      %v1163 = vadd.f32 %v1122, %v1162
      %v1164 = vpop.f32.mrb[0].mxu0
      %v1165 = vpop.f32.mrb[0].mxu0
      %1166 = vdwg.mxu0
      %1167 = vmatprep.subr.bf16.mxu0 %v862
      %1168 = vmatpush1.bf16.msra.mxu0 %v861
      %1169 = vmatprep.subr.bf16.mxu0 %v864
      %1170 = vmatpush1.bf16.msra.mxu0 %v863
      %1171 = vmatprep.subr.bf16.mxu0 %v866
      %1172 = vmatpush1.bf16.msra.mxu0 %v865
      %1173 = vmatprep.subr.bf16.mxu0 %v868
      %1174 = vmatpush1.bf16.msra.mxu0 %v867
      %1175 = vmatprep.subr.bf16.mxu0 %v870
      %1176 = vmatpush1.bf16.msra.mxu0 %v869
      %1177 = vmatprep.subr.bf16.mxu0 %v872
      %1178 = vmatpush1.bf16.msra.mxu0 %v871
      %1179 = vmatprep.subr.bf16.mxu0 %v874
      %1180 = vmatpush1.bf16.msra.mxu0 %v873
      %1181 = vmatprep.subr.bf16.mxu0 %v876
      %1182 = vmatpush1.bf16.msra.mxu0 %v875
      %1183 = vmatprep.subr.bf16.mxu0 %v878
      %1184 = vmatpush1.bf16.msra.mxu0 %v877
      %1185 = vmatprep.subr.bf16.mxu0 %v880
      %1186 = vmatpush1.bf16.msra.mxu0 %v879
      %1187 = vmatprep.subr.bf16.mxu0 %v882
      %1188 = vmatpush1.bf16.msra.mxu0 %v881
      %1189 = vmatprep.subr.bf16.mxu0 %v884
      %1190 = vmatpush1.bf16.msra.mxu0 %v883
      %1191 = vmatprep.subr.bf16.mxu0 %v886
      %1192 = vmatpush1.bf16.msra.mxu0 %v885
      %1193 = vmatprep.subr.bf16.mxu0 %v888
      %1194 = vmatpush1.bf16.msra.mxu0 %v887
      %1195 = vmatprep.subr.bf16.mxu0 %v890
      %1196 = vmatpush1.bf16.msra.mxu0 %v889
      %1197 = vmatprep.subr.bf16.mxu0 %v892
      %1198 = vmatpush1.bf16.msra.mxu0 %v891
      %1199 = vmatprep.mubr.bf16.mxu0 %v352
      %1200 = vmatmul.mubr.bf16.gmra.mrb[0].mxu0 %v351
      %v1201 = vpop.f32.mrb[0].mxu0
      %v1202 = vadd.f32 %v1161, %v1201
      %v1203 = vpop.f32.mrb[0].mxu0
      %v1204 = vadd.f32 %v1163, %v1203
      %v1205 = vpop.f32.mrb[0].mxu0
      %v1206 = vpop.f32.mrb[0].mxu0
      %1207 = vdwg.mxu0
      %1208 = vmatprep.subr.bf16.mxu0 %v894
      %1209 = vmatpush1.bf16.msra.mxu0 %v893
      %1210 = vmatprep.subr.bf16.mxu0 %v896
      %1211 = vmatpush1.bf16.msra.mxu0 %v895
      %1212 = vmatprep.subr.bf16.mxu0 %v898
      %1213 = vmatpush1.bf16.msra.mxu0 %v897
      %1214 = vmatprep.subr.bf16.mxu0 %v900
      %1215 = vmatpush1.bf16.msra.mxu0 %v899
      %1216 = vmatprep.subr.bf16.mxu0 %v902
      %1217 = vmatpush1.bf16.msra.mxu0 %v901
      %1218 = vmatprep.subr.bf16.mxu0 %v904
      %1219 = vmatpush1.bf16.msra.mxu0 %v903
      %1220 = vmatprep.subr.bf16.mxu0 %v906
      %1221 = vmatpush1.bf16.msra.mxu0 %v905
      %1222 = vmatprep.subr.bf16.mxu0 %v908
      %1223 = vmatpush1.bf16.msra.mxu0 %v907
      %1224 = vmatprep.subr.bf16.mxu0 %v910
      %1225 = vmatpush1.bf16.msra.mxu0 %v909
      %1226 = vmatprep.subr.bf16.mxu0 %v912
      %1227 = vmatpush1.bf16.msra.mxu0 %v911
      %1228 = vmatprep.subr.bf16.mxu0 %v914
      %1229 = vmatpush1.bf16.msra.mxu0 %v913
      %1230 = vmatprep.subr.bf16.mxu0 %v916
      %1231 = vmatpush1.bf16.msra.mxu0 %v915
      %1232 = vmatprep.subr.bf16.mxu0 %v918
      %1233 = vmatpush1.bf16.msra.mxu0 %v917
      %1234 = vmatprep.subr.bf16.mxu0 %v920
      %1235 = vmatpush1.bf16.msra.mxu0 %v919
      %1236 = vmatprep.subr.bf16.mxu0 %v922
      %1237 = vmatpush1.bf16.msra.mxu0 %v921
      %1238 = vmatprep.subr.bf16.mxu0 %v924
      %1239 = vmatpush1.bf16.msra.mxu0 %v923
      %1240 = vmatprep.mubr.bf16.mxu0 %v354
      %1241 = vmatmul.mubr.bf16.gmra.mrb[0].mxu0 %v353
      %v1242 = vpop.f32.mrb[0].mxu0
      %v1243 = vadd.f32 %v1202, %v1242
      %v1244 = vpop.f32.mrb[0].mxu0
      %v1245 = vadd.f32 %v1204, %v1244
      %v1246 = vpop.f32.mrb[0].mxu0
      %v1247 = vpop.f32.mrb[0].mxu0
      %1248 = vdwg.mxu0
      %1249 = vmatprep.subr.bf16.mxu0 %v926
      %1250 = vmatpush1.bf16.msra.mxu0 %v925
      %1251 = vmatprep.subr.bf16.mxu0 %v928
      %1252 = vmatpush1.bf16.msra.mxu0 %v927
      %1253 = vmatprep.subr.bf16.mxu0 %v930
      %1254 = vmatpush1.bf16.msra.mxu0 %v929
      %1255 = vmatprep.subr.bf16.mxu0 %v932
      %1256 = vmatpush1.bf16.msra.mxu0 %v931
      %1257 = vmatprep.subr.bf16.mxu0 %v934
      %1258 = vmatpush1.bf16.msra.mxu0 %v933
      %1259 = vmatprep.subr.bf16.mxu0 %v936
      %1260 = vmatpush1.bf16.msra.mxu0 %v935
      %1261 = vmatprep.subr.bf16.mxu0 %v938
      %1262 = vmatpush1.bf16.msra.mxu0 %v937
      %1263 = vmatprep.subr.bf16.mxu0 %v940
      %1264 = vmatpush1.bf16.msra.mxu0 %v939
      %1265 = vmatprep.subr.bf16.mxu0 0
      %1266 = vmatpush1.bf16.msra.mxu0 0
      %1267 = vmatprep.subr.bf16.mxu0 0
      %1268 = vmatpush1.bf16.msra.mxu0 0
      %1269 = vmatprep.subr.bf16.mxu0 0
      %1270 = vmatpush1.bf16.msra.mxu0 0
      %1271 = vmatprep.subr.bf16.mxu0 0
      %1272 = vmatpush1.bf16.msra.mxu0 0
      %1273 = vmatprep.subr.bf16.mxu0 0
      %1274 = vmatpush1.bf16.msra.mxu0 0
      %1275 = vmatprep.subr.bf16.mxu0 0
      %1276 = vmatpush1.bf16.msra.mxu0 0
      %1277 = vmatprep.subr.bf16.mxu0 0
      %1278 = vmatpush1.bf16.msra.mxu0 0
      %1279 = vmatprep.subr.bf16.mxu0 0
      %1280 = vmatpush1.bf16.msra.mxu0 0
      %1281 = vmatprep.mubr.bf16.mxu0 0
      %1282 = vmatmul.mubr.bf16.gmra.mrb[0].mxu0 %v355
      %v1283 = vpop.f32.mrb[0].mxu0
      %v1284 = vadd.f32 %v1243, %v1283
      %v1285 = vpop.f32.mrb[0].mxu0
      %v1286 = vadd.f32 %v1245, %v1285
      %v1287 = vpop.f32.mrb[0].mxu0
      %v1288 = vpop.f32.mrb[0].mxu0
      %1289 = vdwg.mxu0
      %v1290 = vmax.f32 %v1284, 0.0
      %v1291 = vmax.f32 %v1286, 0.0
      %v1292 = vld [vmem:[%s165] sm:$0xcc]
      %v1293 = vld [vmem:[%s165 + $0x8] sm:$0xcc]
      %v1294 = vld [vmem:[%s165 + $0x10] sm:$0xcc]
      %v1295 = vld [vmem:[%s165 + $0x18] sm:$0xcc]
      %v1296 = vld [vmem:[%s165 + $0x20] sm:$0xc]
      %v1302 = vunpack.c.l.b16 %v1292
      %v1303 = vunpack.c.h.b16 %v1292
      %v1304 = vunpack.c.l.b16 %v1293
      %v1305 = vunpack.c.h.b16 %v1293
      %v1306 = vunpack.c.l.b16 %v1294
      %v1307 = vunpack.c.h.b16 %v1294
      %v1308 = vunpack.c.l.b16 %v1295
      %v1309 = vunpack.c.h.b16 %v1295
      %v1310 = vunpack.c.l.b16 %v1296
      %v1311 = vpack.c.b16 %v1302, %v1302
      %v1312 = vpack.c.b16 %v1303, %v1303
      %v1313 = vpack.c.b16 %v1304, %v1304
      %v1314 = vpack.c.b16 %v1305, %v1305
      %v1315 = vpack.c.b16 %v1306, %v1306
      %v1316 = vpack.c.b16 %v1307, %v1307
      %v1317 = vpack.c.b16 %v1308, %v1308
      %v1318 = vpack.c.b16 %v1309, %v1309
      %v1319 = vpack.c.b16 %v1310, %v1310
      %v1320 = vrot.slane %v1311, 2
      %v1321 = vrot.slane %v1312, 2
      %v1322 = vrot.slane %v1313, 2
      %v1323 = vrot.slane %v1314, 2
      %v1324 = vrot.slane %v1315, 2
      %v1325 = vrot.slane %v1316, 2
      %v1326 = vrot.slane %v1317, 2
      %v1327 = vrot.slane %v1318, 2
      %v1328 = vrot.slane %v1319, 2
      %1338 = vmatprep.subr.bf16.mxu0 %v798
      %1339 = vmatpush1.bf16.msra.mxu0 %v797
      %1340 = vmatprep.subr.bf16.mxu0 %v800
      %1341 = vmatpush1.bf16.msra.mxu0 %v799
      %1342 = vmatprep.subr.bf16.mxu0 %v802
      %1343 = vmatpush1.bf16.msra.mxu0 %v801
      %1344 = vmatprep.subr.bf16.mxu0 %v804
      %1345 = vmatpush1.bf16.msra.mxu0 %v803
      %1346 = vmatprep.subr.bf16.mxu0 %v806
      %1347 = vmatpush1.bf16.msra.mxu0 %v805
      %1348 = vmatprep.subr.bf16.mxu0 %v808
      %1349 = vmatpush1.bf16.msra.mxu0 %v807
      %1350 = vmatprep.subr.bf16.mxu0 %v810
      %1351 = vmatpush1.bf16.msra.mxu0 %v809
      %1352 = vmatprep.subr.bf16.mxu0 %v812
      %1353 = vmatpush1.bf16.msra.mxu0 %v811
      %1354 = vmatprep.subr.bf16.mxu0 %v814
      %1355 = vmatpush1.bf16.msra.mxu0 %v813
      %1356 = vmatprep.subr.bf16.mxu0 %v816
      %1357 = vmatpush1.bf16.msra.mxu0 %v815
      %1358 = vmatprep.subr.bf16.mxu0 %v818
      %1359 = vmatpush1.bf16.msra.mxu0 %v817
      %1360 = vmatprep.subr.bf16.mxu0 %v820
      %1361 = vmatpush1.bf16.msra.mxu0 %v819
      %1362 = vmatprep.subr.bf16.mxu0 %v822
      %1363 = vmatpush1.bf16.msra.mxu0 %v821
      %1364 = vmatprep.subr.bf16.mxu0 %v824
      %1365 = vmatpush1.bf16.msra.mxu0 %v823
      %1366 = vmatprep.subr.bf16.mxu0 %v826
      %1367 = vmatpush1.bf16.msra.mxu0 %v825
      %1368 = vmatprep.subr.bf16.mxu0 %v828
      %1369 = vmatpush1.bf16.msra.mxu0 %v827
      %1370 = vmatprep.mubr.bf16.mxu0 %v1321
      %1371 = vmatmul.mubr.bf16.gmra.mrb[0].mxu0 %v1320
      %v1372 = vpop.f32.mrb[0].mxu0
      %v1373 = vadd.f32 %v326, %v1372
      %v1374 = vpop.f32.mrb[0].mxu0
      %v1375 = vadd.f32 %v330, %v1374
      %v1376 = vpop.f32.mrb[0].mxu0
      %v1377 = vpop.f32.mrb[0].mxu0
      %1378 = vdwg.mxu0
      %1379 = vmatprep.subr.bf16.mxu0 %v830
      %1380 = vmatpush1.bf16.msra.mxu0 %v829
      %1381 = vmatprep.subr.bf16.mxu0 %v832
      %1382 = vmatpush1.bf16.msra.mxu0 %v831
      %1383 = vmatprep.subr.bf16.mxu0 %v834
      %1384 = vmatpush1.bf16.msra.mxu0 %v833
      %1385 = vmatprep.subr.bf16.mxu0 %v836
      %1386 = vmatpush1.bf16.msra.mxu0 %v835
      %1387 = vmatprep.subr.bf16.mxu0 %v838
      %1388 = vmatpush1.bf16.msra.mxu0 %v837
      %1389 = vmatprep.subr.bf16.mxu0 %v840
      %1390 = vmatpush1.bf16.msra.mxu0 %v839
      %1391 = vmatprep.subr.bf16.mxu0 %v842
      %1392 = vmatpush1.bf16.msra.mxu0 %v841
      %1393 = vmatprep.subr.bf16.mxu0 %v844
      %1394 = vmatpush1.bf16.msra.mxu0 %v843
      %1395 = vmatprep.subr.bf16.mxu0 %v846
      %1396 = vmatpush1.bf16.msra.mxu0 %v845
      %1397 = vmatprep.subr.bf16.mxu0 %v848
      %1398 = vmatpush1.bf16.msra.mxu0 %v847
      %1399 = vmatprep.subr.bf16.mxu0 %v850
      %1400 = vmatpush1.bf16.msra.mxu0 %v849
      %1401 = vmatprep.subr.bf16.mxu0 %v852
      %1402 = vmatpush1.bf16.msra.mxu0 %v851
      %1403 = vmatprep.subr.bf16.mxu0 %v854
      %1404 = vmatpush1.bf16.msra.mxu0 %v853
      %1405 = vmatprep.subr.bf16.mxu0 %v856
      %1406 = vmatpush1.bf16.msra.mxu0 %v855
      %1407 = vmatprep.subr.bf16.mxu0 %v858
      %1408 = vmatpush1.bf16.msra.mxu0 %v857
      %1409 = vmatprep.subr.bf16.mxu0 %v860
      %1410 = vmatpush1.bf16.msra.mxu0 %v859
      %1411 = vmatprep.mubr.bf16.mxu0 %v1323
      %1412 = vmatmul.mubr.bf16.gmra.mrb[0].mxu0 %v1322
      %v1413 = vpop.f32.mrb[0].mxu0
      %v1414 = vadd.f32 %v1373, %v1413
      %v1415 = vpop.f32.mrb[0].mxu0
      %v1416 = vadd.f32 %v1375, %v1415
      %v1417 = vpop.f32.mrb[0].mxu0
      %v1418 = vpop.f32.mrb[0].mxu0
      %1419 = vdwg.mxu0
      %1420 = vmatprep.subr.bf16.mxu0 %v862
      %1421 = vmatpush1.bf16.msra.mxu0 %v861
      %1422 = vmatprep.subr.bf16.mxu0 %v864
      %1423 = vmatpush1.bf16.msra.mxu0 %v863
      %1424 = vmatprep.subr.bf16.mxu0 %v866
      %1425 = vmatpush1.bf16.msra.mxu0 %v865
      %1426 = vmatprep.subr.bf16.mxu0 %v868
      %1427 = vmatpush1.bf16.msra.mxu0 %v867
      %1428 = vmatprep.subr.bf16.mxu0 %v870
      %1429 = vmatpush1.bf16.msra.mxu0 %v869
      %1430 = vmatprep.subr.bf16.mxu0 %v872
      %1431 = vmatpush1.bf16.msra.mxu0 %v871
      %1432 = vmatprep.subr.bf16.mxu0 %v874
      %1433 = vmatpush1.bf16.msra.mxu0 %v873
      %1434 = vmatprep.subr.bf16.mxu0 %v876
      %1435 = vmatpush1.bf16.msra.mxu0 %v875
      %1436 = vmatprep.subr.bf16.mxu0 %v878
      %1437 = vmatpush1.bf16.msra.mxu0 %v877
      %1438 = vmatprep.subr.bf16.mxu0 %v880
      %1439 = vmatpush1.bf16.msra.mxu0 %v879
      %1440 = vmatprep.subr.bf16.mxu0 %v882
      %1441 = vmatpush1.bf16.msra.mxu0 %v881
      %1442 = vmatprep.subr.bf16.mxu0 %v884
      %1443 = vmatpush1.bf16.msra.mxu0 %v883
      %1444 = vmatprep.subr.bf16.mxu0 %v886
      %1445 = vmatpush1.bf16.msra.mxu0 %v885
      %1446 = vmatprep.subr.bf16.mxu0 %v888
      %1447 = vmatpush1.bf16.msra.mxu0 %v887
      %1448 = vmatprep.subr.bf16.mxu0 %v890
      %1449 = vmatpush1.bf16.msra.mxu0 %v889
      %1450 = vmatprep.subr.bf16.mxu0 %v892
      %1451 = vmatpush1.bf16.msra.mxu0 %v891
      %1452 = vmatprep.mubr.bf16.mxu0 %v1325
      %1453 = vmatmul.mubr.bf16.gmra.mrb[0].mxu0 %v1324
      %v1454 = vpop.f32.mrb[0].mxu0
      %v1455 = vadd.f32 %v1414, %v1454
      %v1456 = vpop.f32.mrb[0].mxu0
      %v1457 = vadd.f32 %v1416, %v1456
      %v1458 = vpop.f32.mrb[0].mxu0
      %v1459 = vpop.f32.mrb[0].mxu0
      %1460 = vdwg.mxu0
      %1461 = vmatprep.subr.bf16.mxu0 %v894
      %1462 = vmatpush1.bf16.msra.mxu0 %v893
      %1463 = vmatprep.subr.bf16.mxu0 %v896
      %1464 = vmatpush1.bf16.msra.mxu0 %v895
      %1465 = vmatprep.subr.bf16.mxu0 %v898
      %1466 = vmatpush1.bf16.msra.mxu0 %v897
      %1467 = vmatprep.subr.bf16.mxu0 %v900
      %1468 = vmatpush1.bf16.msra.mxu0 %v899
      %1469 = vmatprep.subr.bf16.mxu0 %v902
      %1470 = vmatpush1.bf16.msra.mxu0 %v901
      %1471 = vmatprep.subr.bf16.mxu0 %v904
      %1472 = vmatpush1.bf16.msra.mxu0 %v903
      %1473 = vmatprep.subr.bf16.mxu0 %v906
      %1474 = vmatpush1.bf16.msra.mxu0 %v905
      %1475 = vmatprep.subr.bf16.mxu0 %v908
      %1476 = vmatpush1.bf16.msra.mxu0 %v907
      %1477 = vmatprep.subr.bf16.mxu0 %v910
      %1478 = vmatpush1.bf16.msra.mxu0 %v909
      %1479 = vmatprep.subr.bf16.mxu0 %v912
      %1480 = vmatpush1.bf16.msra.mxu0 %v911
      %1481 = vmatprep.subr.bf16.mxu0 %v914
      %1482 = vmatpush1.bf16.msra.mxu0 %v913
      %1483 = vmatprep.subr.bf16.mxu0 %v916
      %1484 = vmatpush1.bf16.msra.mxu0 %v915
      %1485 = vmatprep.subr.bf16.mxu0 %v918
      %1486 = vmatpush1.bf16.msra.mxu0 %v917
      %1487 = vmatprep.subr.bf16.mxu0 %v920
      %1488 = vmatpush1.bf16.msra.mxu0 %v919
      %1489 = vmatprep.subr.bf16.mxu0 %v922
      %1490 = vmatpush1.bf16.msra.mxu0 %v921
      %1491 = vmatprep.subr.bf16.mxu0 %v924
      %1492 = vmatpush1.bf16.msra.mxu0 %v923
      %1493 = vmatprep.mubr.bf16.mxu0 %v1327
      %1494 = vmatmul.mubr.bf16.gmra.mrb[0].mxu0 %v1326
      %v1495 = vpop.f32.mrb[0].mxu0
      %v1496 = vadd.f32 %v1455, %v1495
      %v1497 = vpop.f32.mrb[0].mxu0
      %v1498 = vadd.f32 %v1457, %v1497
      %v1499 = vpop.f32.mrb[0].mxu0
      %v1500 = vpop.f32.mrb[0].mxu0
      %1501 = vdwg.mxu0
      %1502 = vmatprep.subr.bf16.mxu0 %v926
      %1503 = vmatpush1.bf16.msra.mxu0 %v925
      %1504 = vmatprep.subr.bf16.mxu0 %v928
      %1505 = vmatpush1.bf16.msra.mxu0 %v927
      %1506 = vmatprep.subr.bf16.mxu0 %v930
      %1507 = vmatpush1.bf16.msra.mxu0 %v929
      %1508 = vmatprep.subr.bf16.mxu0 %v932
      %1509 = vmatpush1.bf16.msra.mxu0 %v931
      %1510 = vmatprep.subr.bf16.mxu0 %v934
      %1511 = vmatpush1.bf16.msra.mxu0 %v933
      %1512 = vmatprep.subr.bf16.mxu0 %v936
      %1513 = vmatpush1.bf16.msra.mxu0 %v935
      %1514 = vmatprep.subr.bf16.mxu0 %v938
      %1515 = vmatpush1.bf16.msra.mxu0 %v937
      %1516 = vmatprep.subr.bf16.mxu0 %v940
      %1517 = vmatpush1.bf16.msra.mxu0 %v939
      %1518 = vmatprep.subr.bf16.mxu0 0
      %1519 = vmatpush1.bf16.msra.mxu0 0
      %1520 = vmatprep.subr.bf16.mxu0 0
      %1521 = vmatpush1.bf16.msra.mxu0 0
      %1522 = vmatprep.subr.bf16.mxu0 0
      %1523 = vmatpush1.bf16.msra.mxu0 0
      %1524 = vmatprep.subr.bf16.mxu0 0
      %1525 = vmatpush1.bf16.msra.mxu0 0
      %1526 = vmatprep.subr.bf16.mxu0 0
      %1527 = vmatpush1.bf16.msra.mxu0 0
      %1528 = vmatprep.subr.bf16.mxu0 0
      %1529 = vmatpush1.bf16.msra.mxu0 0
      %1530 = vmatprep.subr.bf16.mxu0 0
      %1531 = vmatpush1.bf16.msra.mxu0 0
      %1532 = vmatprep.subr.bf16.mxu0 0
      %1533 = vmatpush1.bf16.msra.mxu0 0
      %1534 = vmatprep.mubr.bf16.mxu0 0
      %1535 = vmatmul.mubr.bf16.gmra.mrb[0].mxu0 %v1328
      %v1536 = vpop.f32.mrb[0].mxu0
      %v1537 = vadd.f32 %v1496, %v1536
      %v1538 = vpop.f32.mrb[0].mxu0
      %v1539 = vadd.f32 %v1498, %v1538
      %v1540 = vpop.f32.mrb[0].mxu0
      %v1541 = vpop.f32.mrb[0].mxu0
      %1542 = vdwg.mxu0
      %v1543 = vmax.f32 %v1537, 0.0
      %v1544 = vmax.f32 %v1539, 0.0
      %v1545 = vmax.f32 %v1290, %v1543
      %v1546 = vmax.f32 %v1291, %v1544
      %v1547 = vld [vmem:[%s165 + $0x24] sm:$0x33]
      %v1548 = vld [vmem:[%s165 + $0x2c] sm:$0x33]
      %v1549 = vld [vmem:[%s165 + $0x34] sm:$0x33]
      %v1550 = vld [vmem:[%s165 + $0x3c] sm:$0x33]
      %v1551 = vld [vmem:[%s165 + $0x44] sm:$0x3]
      %v1557 = vunpack.c.l.b16 %v1547
      %v1558 = vunpack.c.h.b16 %v1547
      %v1559 = vunpack.c.l.b16 %v1548
      %v1560 = vunpack.c.h.b16 %v1548
      %v1561 = vunpack.c.l.b16 %v1549
      %v1562 = vunpack.c.h.b16 %v1549
      %v1563 = vunpack.c.l.b16 %v1550
      %v1564 = vunpack.c.h.b16 %v1550
      %v1565 = vunpack.c.l.b16 %v1551
      %v1566 = vpack.c.b16 %v1557, %v1557
      %v1567 = vpack.c.b16 %v1558, %v1558
      %v1568 = vpack.c.b16 %v1559, %v1559
      %v1569 = vpack.c.b16 %v1560, %v1560
      %v1570 = vpack.c.b16 %v1561, %v1561
      %v1571 = vpack.c.b16 %v1562, %v1562
      %v1572 = vpack.c.b16 %v1563, %v1563
      %v1573 = vpack.c.b16 %v1564, %v1564
      %v1574 = vpack.c.b16 %v1565, %v1565
      %1584 = vmatprep.subr.bf16.mxu0 %v798
      %1585 = vmatpush1.bf16.msra.mxu0 %v797
      %1586 = vmatprep.subr.bf16.mxu0 %v800
      %1587 = vmatpush1.bf16.msra.mxu0 %v799
      %1588 = vmatprep.subr.bf16.mxu0 %v802
      %1589 = vmatpush1.bf16.msra.mxu0 %v801
      %1590 = vmatprep.subr.bf16.mxu0 %v804
      %1591 = vmatpush1.bf16.msra.mxu0 %v803
      %1592 = vmatprep.subr.bf16.mxu0 %v806
      %1593 = vmatpush1.bf16.msra.mxu0 %v805
      %1594 = vmatprep.subr.bf16.mxu0 %v808
      %1595 = vmatpush1.bf16.msra.mxu0 %v807
      %1596 = vmatprep.subr.bf16.mxu0 %v810
      %1597 = vmatpush1.bf16.msra.mxu0 %v809
      %1598 = vmatprep.subr.bf16.mxu0 %v812
      %1599 = vmatpush1.bf16.msra.mxu0 %v811
      %1600 = vmatprep.subr.bf16.mxu0 %v814
      %1601 = vmatpush1.bf16.msra.mxu0 %v813
      %1602 = vmatprep.subr.bf16.mxu0 %v816
      %1603 = vmatpush1.bf16.msra.mxu0 %v815
      %1604 = vmatprep.subr.bf16.mxu0 %v818
      %1605 = vmatpush1.bf16.msra.mxu0 %v817
      %1606 = vmatprep.subr.bf16.mxu0 %v820
      %1607 = vmatpush1.bf16.msra.mxu0 %v819
      %1608 = vmatprep.subr.bf16.mxu0 %v822
      %1609 = vmatpush1.bf16.msra.mxu0 %v821
      %1610 = vmatprep.subr.bf16.mxu0 %v824
      %1611 = vmatpush1.bf16.msra.mxu0 %v823
      %1612 = vmatprep.subr.bf16.mxu0 %v826
      %1613 = vmatpush1.bf16.msra.mxu0 %v825
      %1614 = vmatprep.subr.bf16.mxu0 %v828
      %1615 = vmatpush1.bf16.msra.mxu0 %v827
      %1616 = vmatprep.mubr.bf16.mxu0 %v1567
      %1617 = vmatmul.mubr.bf16.gmra.mrb[0].mxu0 %v1566
      %v1618 = vpop.f32.mrb[0].mxu0
      %v1619 = vadd.f32 %v326, %v1618
      %v1620 = vpop.f32.mrb[0].mxu0
      %v1621 = vadd.f32 %v330, %v1620
      %v1622 = vpop.f32.mrb[0].mxu0
      %v1623 = vpop.f32.mrb[0].mxu0
      %1624 = vdwg.mxu0
      %1625 = vmatprep.subr.bf16.mxu0 %v830
      %1626 = vmatpush1.bf16.msra.mxu0 %v829
      %1627 = vmatprep.subr.bf16.mxu0 %v832
      %1628 = vmatpush1.bf16.msra.mxu0 %v831
      %1629 = vmatprep.subr.bf16.mxu0 %v834
      %1630 = vmatpush1.bf16.msra.mxu0 %v833
      %1631 = vmatprep.subr.bf16.mxu0 %v836
      %1632 = vmatpush1.bf16.msra.mxu0 %v835
      %1633 = vmatprep.subr.bf16.mxu0 %v838
      %1634 = vmatpush1.bf16.msra.mxu0 %v837
      %1635 = vmatprep.subr.bf16.mxu0 %v840
      %1636 = vmatpush1.bf16.msra.mxu0 %v839
      %1637 = vmatprep.subr.bf16.mxu0 %v842
      %1638 = vmatpush1.bf16.msra.mxu0 %v841
      %1639 = vmatprep.subr.bf16.mxu0 %v844
      %1640 = vmatpush1.bf16.msra.mxu0 %v843
      %1641 = vmatprep.subr.bf16.mxu0 %v846
      %1642 = vmatpush1.bf16.msra.mxu0 %v845
      %1643 = vmatprep.subr.bf16.mxu0 %v848
      %1644 = vmatpush1.bf16.msra.mxu0 %v847
      %1645 = vmatprep.subr.bf16.mxu0 %v850
      %1646 = vmatpush1.bf16.msra.mxu0 %v849
      %1647 = vmatprep.subr.bf16.mxu0 %v852
      %1648 = vmatpush1.bf16.msra.mxu0 %v851
      %1649 = vmatprep.subr.bf16.mxu0 %v854
      %1650 = vmatpush1.bf16.msra.mxu0 %v853
      %1651 = vmatprep.subr.bf16.mxu0 %v856
      %1652 = vmatpush1.bf16.msra.mxu0 %v855
      %1653 = vmatprep.subr.bf16.mxu0 %v858
      %1654 = vmatpush1.bf16.msra.mxu0 %v857
      %1655 = vmatprep.subr.bf16.mxu0 %v860
      %1656 = vmatpush1.bf16.msra.mxu0 %v859
      %1657 = vmatprep.mubr.bf16.mxu0 %v1569
      %1658 = vmatmul.mubr.bf16.gmra.mrb[0].mxu0 %v1568
      %v1659 = vpop.f32.mrb[0].mxu0
      %v1660 = vadd.f32 %v1619, %v1659
      %v1661 = vpop.f32.mrb[0].mxu0
      %v1662 = vadd.f32 %v1621, %v1661
      %v1663 = vpop.f32.mrb[0].mxu0
      %v1664 = vpop.f32.mrb[0].mxu0
      %1665 = vdwg.mxu0
      %1666 = vmatprep.subr.bf16.mxu0 %v862
      %1667 = vmatpush1.bf16.msra.mxu0 %v861
      %1668 = vmatprep.subr.bf16.mxu0 %v864
      %1669 = vmatpush1.bf16.msra.mxu0 %v863
      %1670 = vmatprep.subr.bf16.mxu0 %v866
      %1671 = vmatpush1.bf16.msra.mxu0 %v865
      %1672 = vmatprep.subr.bf16.mxu0 %v868
      %1673 = vmatpush1.bf16.msra.mxu0 %v867
      %1674 = vmatprep.subr.bf16.mxu0 %v870
      %1675 = vmatpush1.bf16.msra.mxu0 %v869
      %1676 = vmatprep.subr.bf16.mxu0 %v872
      %1677 = vmatpush1.bf16.msra.mxu0 %v871
      %1678 = vmatprep.subr.bf16.mxu0 %v874
      %1679 = vmatpush1.bf16.msra.mxu0 %v873
      %1680 = vmatprep.subr.bf16.mxu0 %v876
      %1681 = vmatpush1.bf16.msra.mxu0 %v875
      %1682 = vmatprep.subr.bf16.mxu0 %v878
      %1683 = vmatpush1.bf16.msra.mxu0 %v877
      %1684 = vmatprep.subr.bf16.mxu0 %v880
      %1685 = vmatpush1.bf16.msra.mxu0 %v879
      %1686 = vmatprep.subr.bf16.mxu0 %v882
      %1687 = vmatpush1.bf16.msra.mxu0 %v881
      %1688 = vmatprep.subr.bf16.mxu0 %v884
      %1689 = vmatpush1.bf16.msra.mxu0 %v883
      %1690 = vmatprep.subr.bf16.mxu0 %v886
      %1691 = vmatpush1.bf16.msra.mxu0 %v885
      %1692 = vmatprep.subr.bf16.mxu0 %v888
      %1693 = vmatpush1.bf16.msra.mxu0 %v887
      %1694 = vmatprep.subr.bf16.mxu0 %v890
      %1695 = vmatpush1.bf16.msra.mxu0 %v889
      %1696 = vmatprep.subr.bf16.mxu0 %v892
      %1697 = vmatpush1.bf16.msra.mxu0 %v891
      %1698 = vmatprep.mubr.bf16.mxu0 %v1571
      %1699 = vmatmul.mubr.bf16.gmra.mrb[0].mxu0 %v1570
      %v1700 = vpop.f32.mrb[0].mxu0
      %v1701 = vadd.f32 %v1660, %v1700
      %v1702 = vpop.f32.mrb[0].mxu0
      %v1703 = vadd.f32 %v1662, %v1702
      %v1704 = vpop.f32.mrb[0].mxu0
      %v1705 = vpop.f32.mrb[0].mxu0
      %1706 = vdwg.mxu0
      %1707 = vmatprep.subr.bf16.mxu0 %v894
      %1708 = vmatpush1.bf16.msra.mxu0 %v893
      %1709 = vmatprep.subr.bf16.mxu0 %v896
      %1710 = vmatpush1.bf16.msra.mxu0 %v895
      %1711 = vmatprep.subr.bf16.mxu0 %v898
      %1712 = vmatpush1.bf16.msra.mxu0 %v897
      %1713 = vmatprep.subr.bf16.mxu0 %v900
      %1714 = vmatpush1.bf16.msra.mxu0 %v899
      %1715 = vmatprep.subr.bf16.mxu0 %v902
      %1716 = vmatpush1.bf16.msra.mxu0 %v901
      %1717 = vmatprep.subr.bf16.mxu0 %v904
      %1718 = vmatpush1.bf16.msra.mxu0 %v903
      %1719 = vmatprep.subr.bf16.mxu0 %v906
      %1720 = vmatpush1.bf16.msra.mxu0 %v905
      %1721 = vmatprep.subr.bf16.mxu0 %v908
      %1722 = vmatpush1.bf16.msra.mxu0 %v907
      %1723 = vmatprep.subr.bf16.mxu0 %v910
      %1724 = vmatpush1.bf16.msra.mxu0 %v909
      %1725 = vmatprep.subr.bf16.mxu0 %v912
      %1726 = vmatpush1.bf16.msra.mxu0 %v911
      %1727 = vmatprep.subr.bf16.mxu0 %v914
      %1728 = vmatpush1.bf16.msra.mxu0 %v913
      %1729 = vmatprep.subr.bf16.mxu0 %v916
      %1730 = vmatpush1.bf16.msra.mxu0 %v915
      %1731 = vmatprep.subr.bf16.mxu0 %v918
      %1732 = vmatpush1.bf16.msra.mxu0 %v917
      %1733 = vmatprep.subr.bf16.mxu0 %v920
      %1734 = vmatpush1.bf16.msra.mxu0 %v919
      %1735 = vmatprep.subr.bf16.mxu0 %v922
      %1736 = vmatpush1.bf16.msra.mxu0 %v921
      %1737 = vmatprep.subr.bf16.mxu0 %v924
      %1738 = vmatpush1.bf16.msra.mxu0 %v923
      %1739 = vmatprep.mubr.bf16.mxu0 %v1573
      %1740 = vmatmul.mubr.bf16.gmra.mrb[0].mxu0 %v1572
      %v1741 = vpop.f32.mrb[0].mxu0
      %v1742 = vadd.f32 %v1701, %v1741
      %v1743 = vpop.f32.mrb[0].mxu0
      %v1744 = vadd.f32 %v1703, %v1743
      %v1745 = vpop.f32.mrb[0].mxu0
      %v1746 = vpop.f32.mrb[0].mxu0
      %1747 = vdwg.mxu0
      %1748 = vmatprep.subr.bf16.mxu0 %v926
      %1749 = vmatpush1.bf16.msra.mxu0 %v925
      %1750 = vmatprep.subr.bf16.mxu0 %v928
      %1751 = vmatpush1.bf16.msra.mxu0 %v927
      %1752 = vmatprep.subr.bf16.mxu0 %v930
      %1753 = vmatpush1.bf16.msra.mxu0 %v929
      %1754 = vmatprep.subr.bf16.mxu0 %v932
      %1755 = vmatpush1.bf16.msra.mxu0 %v931
      %1756 = vmatprep.subr.bf16.mxu0 %v934
      %1757 = vmatpush1.bf16.msra.mxu0 %v933
      %1758 = vmatprep.subr.bf16.mxu0 %v936
      %1759 = vmatpush1.bf16.msra.mxu0 %v935
      %1760 = vmatprep.subr.bf16.mxu0 %v938
      %1761 = vmatpush1.bf16.msra.mxu0 %v937
      %1762 = vmatprep.subr.bf16.mxu0 %v940
      %1763 = vmatpush1.bf16.msra.mxu0 %v939
      %1764 = vmatprep.subr.bf16.mxu0 0
      %1765 = vmatpush1.bf16.msra.mxu0 0
      %1766 = vmatprep.subr.bf16.mxu0 0
      %1767 = vmatpush1.bf16.msra.mxu0 0
      %1768 = vmatprep.subr.bf16.mxu0 0
      %1769 = vmatpush1.bf16.msra.mxu0 0
      %1770 = vmatprep.subr.bf16.mxu0 0
      %1771 = vmatpush1.bf16.msra.mxu0 0
      %1772 = vmatprep.subr.bf16.mxu0 0
      %1773 = vmatpush1.bf16.msra.mxu0 0
      %1774 = vmatprep.subr.bf16.mxu0 0
      %1775 = vmatpush1.bf16.msra.mxu0 0
      %1776 = vmatprep.subr.bf16.mxu0 0
      %1777 = vmatpush1.bf16.msra.mxu0 0
      %1778 = vmatprep.subr.bf16.mxu0 0
      %1779 = vmatpush1.bf16.msra.mxu0 0
      %1780 = vmatprep.mubr.bf16.mxu0 0
      %1781 = vmatmul.mubr.bf16.gmra.mrb[0].mxu0 %v1574
      %v1782 = vpop.f32.mrb[0].mxu0
      %v1783 = vadd.f32 %v1742, %v1782
      %v1784 = vpop.f32.mrb[0].mxu0
      %v1785 = vadd.f32 %v1744, %v1784
      %v1786 = vpop.f32.mrb[0].mxu0
      %v1787 = vpop.f32.mrb[0].mxu0
      %1788 = vdwg.mxu0
      %v1789 = vmax.f32 %v1783, 0.0
      %v1790 = vmax.f32 %v1785, 0.0
      %v1791 = vld [vmem:[%s165 + $0x24] sm:$0xcc]
      %v1792 = vld [vmem:[%s165 + $0x2c] sm:$0xcc]
      %v1793 = vld [vmem:[%s165 + $0x34] sm:$0xcc]
      %v1794 = vld [vmem:[%s165 + $0x3c] sm:$0xcc]
      %v1795 = vld [vmem:[%s165 + $0x44] sm:$0xc]
      %v1801 = vunpack.c.l.b16 %v1791
      %v1802 = vunpack.c.h.b16 %v1791
      %v1803 = vunpack.c.l.b16 %v1792
      %v1804 = vunpack.c.h.b16 %v1792
      %v1805 = vunpack.c.l.b16 %v1793
      %v1806 = vunpack.c.h.b16 %v1793
      %v1807 = vunpack.c.l.b16 %v1794
      %v1808 = vunpack.c.h.b16 %v1794
      %v1809 = vunpack.c.l.b16 %v1795
      %v1810 = vpack.c.b16 %v1801, %v1801
      %v1811 = vpack.c.b16 %v1802, %v1802
      %v1812 = vpack.c.b16 %v1803, %v1803
      %v1813 = vpack.c.b16 %v1804, %v1804
      %v1814 = vpack.c.b16 %v1805, %v1805
      %v1815 = vpack.c.b16 %v1806, %v1806
      %v1816 = vpack.c.b16 %v1807, %v1807
      %v1817 = vpack.c.b16 %v1808, %v1808
      %v1818 = vpack.c.b16 %v1809, %v1809
      %v1819 = vrot.slane %v1810, 2
      %v1820 = vrot.slane %v1811, 2
      %v1821 = vrot.slane %v1812, 2
      %v1822 = vrot.slane %v1813, 2
      %v1823 = vrot.slane %v1814, 2
      %v1824 = vrot.slane %v1815, 2
      %v1825 = vrot.slane %v1816, 2
      %v1826 = vrot.slane %v1817, 2
      %v1827 = vrot.slane %v1818, 2
      %1837 = vmatprep.subr.bf16.mxu0 %v798
      %1838 = vmatpush1.bf16.msra.mxu0 %v797
      %1839 = vmatprep.subr.bf16.mxu0 %v800
      %1840 = vmatpush1.bf16.msra.mxu0 %v799
      %1841 = vmatprep.subr.bf16.mxu0 %v802
      %1842 = vmatpush1.bf16.msra.mxu0 %v801
      %1843 = vmatprep.subr.bf16.mxu0 %v804
      %1844 = vmatpush1.bf16.msra.mxu0 %v803
      %1845 = vmatprep.subr.bf16.mxu0 %v806
      %1846 = vmatpush1.bf16.msra.mxu0 %v805
      %1847 = vmatprep.subr.bf16.mxu0 %v808
      %1848 = vmatpush1.bf16.msra.mxu0 %v807
      %1849 = vmatprep.subr.bf16.mxu0 %v810
      %1850 = vmatpush1.bf16.msra.mxu0 %v809
      %1851 = vmatprep.subr.bf16.mxu0 %v812
      %1852 = vmatpush1.bf16.msra.mxu0 %v811
      %1853 = vmatprep.subr.bf16.mxu0 %v814
      %1854 = vmatpush1.bf16.msra.mxu0 %v813
      %1855 = vmatprep.subr.bf16.mxu0 %v816
      %1856 = vmatpush1.bf16.msra.mxu0 %v815
      %1857 = vmatprep.subr.bf16.mxu0 %v818
      %1858 = vmatpush1.bf16.msra.mxu0 %v817
      %1859 = vmatprep.subr.bf16.mxu0 %v820
      %1860 = vmatpush1.bf16.msra.mxu0 %v819
      %1861 = vmatprep.subr.bf16.mxu0 %v822
      %1862 = vmatpush1.bf16.msra.mxu0 %v821
      %1863 = vmatprep.subr.bf16.mxu0 %v824
      %1864 = vmatpush1.bf16.msra.mxu0 %v823
      %1865 = vmatprep.subr.bf16.mxu0 %v826
      %1866 = vmatpush1.bf16.msra.mxu0 %v825
      %1867 = vmatprep.subr.bf16.mxu0 %v828
      %1868 = vmatpush1.bf16.msra.mxu0 %v827
      %1869 = vmatprep.mubr.bf16.mxu0 %v1820
      %1870 = vmatmul.mubr.bf16.gmra.mrb[0].mxu0 %v1819
      %v1871 = vpop.f32.mrb[0].mxu0
      %v1872 = vadd.f32 %v326, %v1871
      %v1873 = vpop.f32.mrb[0].mxu0
      %v1874 = vadd.f32 %v330, %v1873
      %v1875 = vpop.f32.mrb[0].mxu0
      %v1876 = vpop.f32.mrb[0].mxu0
      %1877 = vdwg.mxu0
      %1878 = vmatprep.subr.bf16.mxu0 %v830
      %1879 = vmatpush1.bf16.msra.mxu0 %v829
      %1880 = vmatprep.subr.bf16.mxu0 %v832
      %1881 = vmatpush1.bf16.msra.mxu0 %v831
      %1882 = vmatprep.subr.bf16.mxu0 %v834
      %1883 = vmatpush1.bf16.msra.mxu0 %v833
      %1884 = vmatprep.subr.bf16.mxu0 %v836
      %1885 = vmatpush1.bf16.msra.mxu0 %v835
      %1886 = vmatprep.subr.bf16.mxu0 %v838
      %1887 = vmatpush1.bf16.msra.mxu0 %v837
      %1888 = vmatprep.subr.bf16.mxu0 %v840
      %1889 = vmatpush1.bf16.msra.mxu0 %v839
      %1890 = vmatprep.subr.bf16.mxu0 %v842
      %1891 = vmatpush1.bf16.msra.mxu0 %v841
      %1892 = vmatprep.subr.bf16.mxu0 %v844
      %1893 = vmatpush1.bf16.msra.mxu0 %v843
      %1894 = vmatprep.subr.bf16.mxu0 %v846
      %1895 = vmatpush1.bf16.msra.mxu0 %v845
      %1896 = vmatprep.subr.bf16.mxu0 %v848
      %1897 = vmatpush1.bf16.msra.mxu0 %v847
      %1898 = vmatprep.subr.bf16.mxu0 %v850
      %1899 = vmatpush1.bf16.msra.mxu0 %v849
      %1900 = vmatprep.subr.bf16.mxu0 %v852
      %1901 = vmatpush1.bf16.msra.mxu0 %v851
      %1902 = vmatprep.subr.bf16.mxu0 %v854
      %1903 = vmatpush1.bf16.msra.mxu0 %v853
      %1904 = vmatprep.subr.bf16.mxu0 %v856
      %1905 = vmatpush1.bf16.msra.mxu0 %v855
      %1906 = vmatprep.subr.bf16.mxu0 %v858
      %1907 = vmatpush1.bf16.msra.mxu0 %v857
      %1908 = vmatprep.subr.bf16.mxu0 %v860
      %1909 = vmatpush1.bf16.msra.mxu0 %v859
      %1910 = vmatprep.mubr.bf16.mxu0 %v1822
      %1911 = vmatmul.mubr.bf16.gmra.mrb[0].mxu0 %v1821
      %v1912 = vpop.f32.mrb[0].mxu0
      %v1913 = vadd.f32 %v1872, %v1912
      %v1914 = vpop.f32.mrb[0].mxu0
      %v1915 = vadd.f32 %v1874, %v1914
      %v1916 = vpop.f32.mrb[0].mxu0
      %v1917 = vpop.f32.mrb[0].mxu0
      %1918 = vdwg.mxu0
      %1919 = vmatprep.subr.bf16.mxu0 %v862
      %1920 = vmatpush1.bf16.msra.mxu0 %v861
      %1921 = vmatprep.subr.bf16.mxu0 %v864
      %1922 = vmatpush1.bf16.msra.mxu0 %v863
      %1923 = vmatprep.subr.bf16.mxu0 %v866
      %1924 = vmatpush1.bf16.msra.mxu0 %v865
      %1925 = vmatprep.subr.bf16.mxu0 %v868
      %1926 = vmatpush1.bf16.msra.mxu0 %v867
      %1927 = vmatprep.subr.bf16.mxu0 %v870
      %1928 = vmatpush1.bf16.msra.mxu0 %v869
      %1929 = vmatprep.subr.bf16.mxu0 %v872
      %1930 = vmatpush1.bf16.msra.mxu0 %v871
      %1931 = vmatprep.subr.bf16.mxu0 %v874
      %1932 = vmatpush1.bf16.msra.mxu0 %v873
      %1933 = vmatprep.subr.bf16.mxu0 %v876
      %1934 = vmatpush1.bf16.msra.mxu0 %v875
      %1935 = vmatprep.subr.bf16.mxu0 %v878
      %1936 = vmatpush1.bf16.msra.mxu0 %v877
      %1937 = vmatprep.subr.bf16.mxu0 %v880
      %1938 = vmatpush1.bf16.msra.mxu0 %v879
      %1939 = vmatprep.subr.bf16.mxu0 %v882
      %1940 = vmatpush1.bf16.msra.mxu0 %v881
      %1941 = vmatprep.subr.bf16.mxu0 %v884
      %1942 = vmatpush1.bf16.msra.mxu0 %v883
      %1943 = vmatprep.subr.bf16.mxu0 %v886
      %1944 = vmatpush1.bf16.msra.mxu0 %v885
      %1945 = vmatprep.subr.bf16.mxu0 %v888
      %1946 = vmatpush1.bf16.msra.mxu0 %v887
      %1947 = vmatprep.subr.bf16.mxu0 %v890
      %1948 = vmatpush1.bf16.msra.mxu0 %v889
      %1949 = vmatprep.subr.bf16.mxu0 %v892
      %1950 = vmatpush1.bf16.msra.mxu0 %v891
      %1951 = vmatprep.mubr.bf16.mxu0 %v1824
      %1952 = vmatmul.mubr.bf16.gmra.mrb[0].mxu0 %v1823
      %v1953 = vpop.f32.mrb[0].mxu0
      %v1954 = vadd.f32 %v1913, %v1953
      %v1955 = vpop.f32.mrb[0].mxu0
      %v1956 = vadd.f32 %v1915, %v1955
      %v1957 = vpop.f32.mrb[0].mxu0
      %v1958 = vpop.f32.mrb[0].mxu0
      %1959 = vdwg.mxu0
      %1960 = vmatprep.subr.bf16.mxu0 %v894
      %1961 = vmatpush1.bf16.msra.mxu0 %v893
      %1962 = vmatprep.subr.bf16.mxu0 %v896
      %1963 = vmatpush1.bf16.msra.mxu0 %v895
      %1964 = vmatprep.subr.bf16.mxu0 %v898
      %1965 = vmatpush1.bf16.msra.mxu0 %v897
      %1966 = vmatprep.subr.bf16.mxu0 %v900
      %1967 = vmatpush1.bf16.msra.mxu0 %v899
      %1968 = vmatprep.subr.bf16.mxu0 %v902
      %1969 = vmatpush1.bf16.msra.mxu0 %v901
      %1970 = vmatprep.subr.bf16.mxu0 %v904
      %1971 = vmatpush1.bf16.msra.mxu0 %v903
      %1972 = vmatprep.subr.bf16.mxu0 %v906
      %1973 = vmatpush1.bf16.msra.mxu0 %v905
      %1974 = vmatprep.subr.bf16.mxu0 %v908
      %1975 = vmatpush1.bf16.msra.mxu0 %v907
      %1976 = vmatprep.subr.bf16.mxu0 %v910
      %1977 = vmatpush1.bf16.msra.mxu0 %v909
      %1978 = vmatprep.subr.bf16.mxu0 %v912
      %1979 = vmatpush1.bf16.msra.mxu0 %v911
      %1980 = vmatprep.subr.bf16.mxu0 %v914
      %1981 = vmatpush1.bf16.msra.mxu0 %v913
      %1982 = vmatprep.subr.bf16.mxu0 %v916
      %1983 = vmatpush1.bf16.msra.mxu0 %v915
      %1984 = vmatprep.subr.bf16.mxu0 %v918
      %1985 = vmatpush1.bf16.msra.mxu0 %v917
      %1986 = vmatprep.subr.bf16.mxu0 %v920
      %1987 = vmatpush1.bf16.msra.mxu0 %v919
      %1988 = vmatprep.subr.bf16.mxu0 %v922
      %1989 = vmatpush1.bf16.msra.mxu0 %v921
      %1990 = vmatprep.subr.bf16.mxu0 %v924
      %1991 = vmatpush1.bf16.msra.mxu0 %v923
      %1992 = vmatprep.mubr.bf16.mxu0 %v1826
      %1993 = vmatmul.mubr.bf16.gmra.mrb[0].mxu0 %v1825
      %v1994 = vpop.f32.mrb[0].mxu0
      %v1995 = vadd.f32 %v1954, %v1994
      %v1996 = vpop.f32.mrb[0].mxu0
      %v1997 = vadd.f32 %v1956, %v1996
      %v1998 = vpop.f32.mrb[0].mxu0
      %v1999 = vpop.f32.mrb[0].mxu0
      %2000 = vdwg.mxu0
      %2001 = vmatprep.subr.bf16.mxu0 %v926
      %2002 = vmatpush1.bf16.msra.mxu0 %v925
      %2003 = vmatprep.subr.bf16.mxu0 %v928
      %2004 = vmatpush1.bf16.msra.mxu0 %v927
      %2005 = vmatprep.subr.bf16.mxu0 %v930
      %2006 = vmatpush1.bf16.msra.mxu0 %v929
      %2007 = vmatprep.subr.bf16.mxu0 %v932
      %2008 = vmatpush1.bf16.msra.mxu0 %v931
      %2009 = vmatprep.subr.bf16.mxu0 %v934
      %2010 = vmatpush1.bf16.msra.mxu0 %v933
      %2011 = vmatprep.subr.bf16.mxu0 %v936
      %2012 = vmatpush1.bf16.msra.mxu0 %v935
      %2013 = vmatprep.subr.bf16.mxu0 %v938
      %2014 = vmatpush1.bf16.msra.mxu0 %v937
      %2015 = vmatprep.subr.bf16.mxu0 %v940
      %2016 = vmatpush1.bf16.msra.mxu0 %v939
      %2017 = vmatprep.subr.bf16.mxu0 0
      %2018 = vmatpush1.bf16.msra.mxu0 0
      %2019 = vmatprep.subr.bf16.mxu0 0
      %2020 = vmatpush1.bf16.msra.mxu0 0
      %2021 = vmatprep.subr.bf16.mxu0 0
      %2022 = vmatpush1.bf16.msra.mxu0 0
      %2023 = vmatprep.subr.bf16.mxu0 0
      %2024 = vmatpush1.bf16.msra.mxu0 0
      %2025 = vmatprep.subr.bf16.mxu0 0
      %2026 = vmatpush1.bf16.msra.mxu0 0
      %2027 = vmatprep.subr.bf16.mxu0 0
      %2028 = vmatpush1.bf16.msra.mxu0 0
      %2029 = vmatprep.subr.bf16.mxu0 0
      %2030 = vmatpush1.bf16.msra.mxu0 0
      %2031 = vmatprep.subr.bf16.mxu0 0
      %2032 = vmatpush1.bf16.msra.mxu0 0
      %2033 = vmatprep.mubr.bf16.mxu0 0
      %2034 = vmatmul.mubr.bf16.gmra.mrb[0].mxu0 %v1827
      %v2035 = vpop.f32.mrb[0].mxu0
      %v2036 = vadd.f32 %v1995, %v2035
      %v2037 = vpop.f32.mrb[0].mxu0
      %v2038 = vadd.f32 %v1997, %v2037
      %v2039 = vpop.f32.mrb[0].mxu0
      %v2040 = vpop.f32.mrb[0].mxu0
      %2041 = vdwg.mxu0
      %v2042 = vmax.f32 %v2036, 0.0
      %v2043 = vmax.f32 %v2038, 0.0
      %v2044 = vmax.f32 %v1789, %v2042
      %v2045 = vmax.f32 %v1790, %v2043
      %v2046 = vmax.f32 %v1545, %v2044
      %v2047 = vmax.f32 %v1546, %v2045
      %v2050 = vcombine.low %v2046, %v2047
      %2052 = vst [vmem:[%s170] sm:$0xff] %v2050
      %p2053 = scmp.lt.s32.totalorder %s14, 1
      %s2054 = scalar_select %p2053, %s14, 1
      %s2055 = smul.addr %s2054, 2
      %s2056 = smul.addr %s2055, 4
      %s2057 = scalar_lea.vmem %s3, %s2056
      // Predicated region
      $region33: #{encoder_forward.8} parent=31 // pred_check
        %p2058 = pneg %p100
      $region34: #{encoder_forward.8} parent=31 // pred_check_branch
        %2060 = sbr.rel (%p2058) target = $region36
      $region35: #{encoder_forward.8} parent=31 // pred_region
        _
      $region36: #{encoder_forward.8} parent=31 // pred_fallthru
        _
    $region32: #{encoder_forward.8} parent=5 // pred_fallthru
      _
    %p2061 = scmp.le.s32.totalorder 2, %s9
    // Predicated region
    $region37: #{encoder_forward.8} parent=5 // pred_check
      %p2062 = pneg %p2061
    $region38: #{encoder_forward.8} parent=5 // pred_check_branch
      %2064 = sbr.rel (%p2062) target = $region40
    $region39: #{encoder_forward.8} parent=5 // pred_region
      %s2065 = ssub.s32 %s9, 2
      // Predicated region
      $region41: #{encoder_forward.8} parent=39 // pred_check
        %p2066 = pneg %p106
      $region42: #{encoder_forward.8} parent=39 // pred_check_branch
        %2068 = sbr.rel (%p2066) target = $region44
      $region43: #{encoder_forward.8} parent=39 // pred_region
        %p2069 = scmp.lt.s32.totalorder %s15, 1
        %s2070 = scalar_select %p2069, %s15, 1
        %s2071 = smul.addr %s2070, 2
        %s2072 = smul.addr %s2071, 4
        %s2073 = scalar_lea.vmem %s3, %s2072
      $region44: #{encoder_forward.8} parent=39 // pred_fallthru
        _
    $region40: #{encoder_forward.8} parent=5 // pred_fallthru
      _
  $region6: #{encoder_forward.8} parent=0 // loop_footer
    %s13 = sadd.s32 1, %s9
  $region7: #{encoder_forward.8} parent=0 // loop_footer_branch
    %8 = sbr.rel target = $region3
  $region8: #{encoder_forward.8} parent=0 // loop_exit
    _

</llo_original>
